<compile_context>
chip_gen: v5e
topology: v5e:2x2
jax: 0.10.0
libtpu: 0.0.40
codegen_flags: <defaults>
</compile_context>

<pallas_src>
import functools

import jax
import jax.numpy as jnp
from jax.experimental import pallas as pl
from jax.experimental.pallas import tpu as pltpu


def _round_up(x, m):
    return (x + m - 1) // m * m


_NOUT_PAD = 128  # lane-dense padded width for the 20-class projection


# ----------------------------------------------------------------------------
# Fused conv3x3(pad=1) + bias + 2x2 max-pool + ReLU.
# The wrapper builds 4 im2col "quadrant" matrices (one per pool position) with
# strided slices; the kernel does 4 shared-weight matmuls, chained max-reduce,
# adds bias, applies ReLU and stores the pooled activation directly.
# ----------------------------------------------------------------------------
def _conv_pool_kernel(p00_ref, p01_ref, p10_ref, p11_ref, w_ref, b_ref, o_ref):
    w = w_ref[...]
    # Chained max keeps at most one extra f32 temporary live (less store-slot /
    # spill pressure than a 4-wide maximum tree, esp. on v5e).
    m = jnp.dot(p00_ref[...], w, preferred_element_type=jnp.float32)
    m = jnp.maximum(m, jnp.dot(p01_ref[...], w, preferred_element_type=jnp.float32))
    m = jnp.maximum(m, jnp.dot(p10_ref[...], w, preferred_element_type=jnp.float32))
    m = jnp.maximum(m, jnp.dot(p11_ref[...], w, preferred_element_type=jnp.float32))
    o_ref[...] = jnp.maximum(m + b_ref[...], 0.0).astype(o_ref.dtype)


def conv3x3_relu_pool(x_nhwc, w_mat, b_row):
    """x: (B, H, W, Cin) bf16; w_mat: (9*Cin, Cout) bf16; b_row: (1, Cout) f32."""
    B, H, W, Cin = x_nhwc.shape
    K, N = w_mat.shape
    assert K == 9 * Cin
    assert H % 2 == 0 and W % 2 == 0, "MaxPool2d(2) needs even spatial dims here"
    Ho, Wo = H // 2, W // 2
    M = B * Ho * Wo

    xp = jnp.pad(x_nhwc, ((0, 0), (1, 1), (1, 1), (0, 0)))

    # Per-quadrant im2col built directly with strided slices: the full
    # (B, H, W, 9*Cin) patches intermediate never hits HBM.
    # Feature order (kh, kw, cin) matches the w_mat row order.
    def quad(qh, qw):
        cols = [xp[:, qh + i::2, qw + j::2, :][:, :Ho, :Wo, :]
                for i in range(3) for j in range(3)]
        return jnp.concatenate(cols, axis=-1).reshape(M, K)

    quads = [quad(qh, qw) for qh in range(2) for qw in range(2)]

    # Two balanced row tiles when possible: zero padding waste on every
    # generation, and a clean 2-way split across v7x's TensorCores (the extra
    # grid step costs <1us on single-TC v5e/v6e).
    if M % 16 == 0:
        ntiles, Mp = 2, M
    else:
        ntiles, Mp = 1, _round_up(M, 8)
        if Mp != M:
            quads = [jnp.pad(q, ((0, Mp - M), (0, 0))) for q in quads]
    TM = Mp // ntiles

    out = pl.pallas_call(
        _conv_pool_kernel,
        out_shape=jax.ShapeDtypeStruct((Mp, N), jnp.bfloat16),
        grid=(ntiles,),
        in_specs=[pl.BlockSpec((TM, K), lambda i: (i, 0)) for _ in range(4)]
        + [pl.BlockSpec((K, N), lambda i: (0, 0)),
           pl.BlockSpec((1, N), lambda i: (0, 0))],
        out_specs=pl.BlockSpec((TM, N), lambda i: (i, 0)),
        compiler_params=pltpu.CompilerParams(dimension_semantics=("parallel",)),
    )(*quads, w_mat, b_row)
    return out[:M].reshape(B, Ho, Wo, N)


# ----------------------------------------------------------------------------
# Fully fused: linear_1 + 2-layer bidirectional GRU + output Linear.
# One grid step; the (static, tiny) time loop is unrolled in Python.  Gate
# order is PyTorch's (r, z, n); both directions share one block-diagonal
# (2H, 6H) recurrent matmul per step.
# ----------------------------------------------------------------------------
def _gru_stack_kernel(x_ref, w1t_ref, b1_ref,
                      wih0_ref, bgi0_ref, whh0_ref, bgh0_ref,
                      wih1_ref, bgi1_ref, whh1_ref, bgh1_ref,
                      wout_ref, bout_ref, o_ref, *, T, Bg, hid):
    bf16 = jnp.bfloat16
    X = x_ref[...].reshape(T * Bg, -1)                              # (T*Bg, D) bf16

    # linear_1 (+ identity drop_1), batched over every (t, batch) row.
    x1 = (jnp.dot(X, w1t_ref[...], preferred_element_type=jnp.float32)
          + b1_ref[...]).astype(bf16)                               # (T*Bg, 64)

    def cell(gi, ghd, h_prev):
        r = jax.nn.sigmoid(gi[:, :hid] + ghd[:, :hid])
        z = jax.nn.sigmoid(gi[:, hid:2 * hid] + ghd[:, hid:2 * hid])
        n = jnp.tanh(gi[:, 2 * hid:] + r * ghd[:, 2 * hid:])
        return (1.0 - z) * n + z * h_prev

    def run_layer(xin, wih_ref, bgi_ref, whh_ref, bgh_ref):
        # Batched input projection for both directions (off the serial path):
        # columns [:3H] feed the fwd direction, [3H:] the bwd direction.
        gi = jnp.dot(xin, wih_ref[...],
                     preferred_element_type=jnp.float32) + bgi_ref[...]
        h_f = jnp.zeros((Bg, hid), jnp.float32)
        h_b = jnp.zeros((Bg, hid), jnp.float32)
        ys_f = [None] * T
        ys_b = [None] * T
        for t in range(T):                      # T = b_size, static at trace time
            tb = T - 1 - t                      # bwd direction consumes x[T-1-t]
            h = jnp.concatenate([h_f, h_b], axis=1).astype(bf16)
            gh = jnp.dot(h, whh_ref[...],
                         preferred_element_type=jnp.float32) + bgh_ref[...]
            h_f = cell(gi[t * Bg:(t + 1) * Bg, :3 * hid], gh[:, :3 * hid], h_f)
            h_b = cell(gi[tb * Bg:(tb + 1) * Bg, 3 * hid:], gh[:, 3 * hid:], h_b)
            ys_f[t] = h_f
            ys_b[tb] = h_b
        # (T*Bg, 2*hid), feature order [fwd | bwd] as in PyTorch.
        return jnp.concatenate(
            [jnp.concatenate([ys_f[t], ys_b[t]], axis=1) for t in range(T)], axis=0)

    y0 = run_layer(x1, wih0_ref, bgi0_ref, whh0_ref, bgh0_ref).astype(bf16)
    y1 = run_layer(y0, wih1_ref, bgi1_ref, whh1_ref, bgh1_ref).astype(bf16)

    # Output Linear (64 -> 20), padded to 128 lanes for a lane-dense store.
    logits = jnp.dot(y1, wout_ref[...],
                     preferred_element_type=jnp.float32) + bout_ref[...]
    o_ref[...] = logits.reshape(T, Bg, -1)


def gru_stack(x, pp):
    """x: (T, Bg, D) bf16 -> (T, Bg, 128) f32 logits (padded)."""
    T, Bg, D = x.shape
    hid = pp["whh0"].shape[0] // 2
    npad = pp["wout"].shape[1]

    def full(a):
        nd = a.ndim
        return pl.BlockSpec(a.shape, lambda i, _nd=nd: (0,) * _nd)

    args = (x, pp["w1t"], pp["b1"],
            pp["wih0"], pp["bgi0"], pp["whh0"], pp["bgh0"],
            pp["wih1"], pp["bgi1"], pp["whh1"], pp["bgh1"],
            pp["wout"], pp["bout"])
    return pl.pallas_call(
        functools.partial(_gru_stack_kernel, T=T, Bg=Bg, hid=hid),
        out_shape=jax.ShapeDtypeStruct((T, Bg, npad), jnp.float32),
        grid=(1,),
        in_specs=[full(a) for a in args],
        out_specs=pl.BlockSpec((T, Bg, npad), lambda i: (0, 0, 0)),
        compiler_params=pltpu.CompilerParams(dimension_semantics=("arbitrary",)),
    )(*args)


# ----------------------------------------------------------------------------
# Parameter preparation (PyTorch layout -> kernel operands).  Called ONCE,
# outside the jitted forward, so none of this runs on the per-call hot path.
# ----------------------------------------------------------------------------
def prepare_params(params):
    f32, bf16 = jnp.float32, jnp.bfloat16

    def conv_mat(w):  # (Cout, Cin, 3, 3) -> (9*Cin, Cout), rows ordered (kh, kw, cin)
        cout, cin = w.shape[0], w.shape[1]
        return jnp.transpose(w, (2, 3, 1, 0)).reshape(9 * cin, cout).astype(bf16)

    pp = {
        "conv1_wm": conv_mat(params["conv1_w"]),
        "conv1_bm": params["conv1_b"].reshape(1, -1).astype(f32),
        "conv2_wm": conv_mat(params["conv2_w"]),
        "conv2_bm": params["conv2_b"].reshape(1, -1).astype(f32),
        "w1t": params["lin1_w"].T.astype(bf16),           # (1152, 64)
        "b1": params["lin1_b"].reshape(1, -1).astype(f32),
    }

    hid = params["gru"][0]["fwd"]["weight_hh"].shape[1]
    mask_rz = jnp.concatenate([jnp.ones((2 * hid,), f32), jnp.zeros((hid,), f32)])
    mask_n = 1.0 - mask_rz

    def layer_ops(layer):
        wf = layer["fwd"]["weight_ih"].T.astype(f32)       # (D, 3H), gate order (r, z, n)
        wb = layer["bwd"]["weight_ih"].T.astype(f32)
        whf = layer["fwd"]["weight_hh"].T.astype(f32)      # (H, 3H)
        whb = layer["bwd"]["weight_hh"].T.astype(f32)
        bif = layer["fwd"]["bias_ih"].astype(f32)
        bhf = layer["fwd"]["bias_hh"].astype(f32)
        bib = layer["bwd"]["bias_ih"].astype(f32)
        bhb = layer["bwd"]["bias_hh"].astype(f32)
        wih = jnp.concatenate([wf, wb], axis=1).astype(bf16)          # (D, 6H)
        # r/z recurrent biases pre-added on the input side; n-gate recurrent
        # bias must stay inside the r*(...) factor -> it lives in bgh.
        bgi = jnp.concatenate([bif + bhf * mask_rz,
                               bib + bhb * mask_rz]).reshape(1, -1)   # (1, 6H)
        whh = jnp.zeros((2 * hid, 6 * hid), f32)
        whh = whh.at[:hid, :3 * hid].set(whf).at[hid:, 3 * hid:].set(whb).astype(bf16)
        bgh = jnp.concatenate([bhf * mask_n, bhb * mask_n]).reshape(1, -1)
        return wih, bgi, whh, bgh

    for li, layer in enumerate(params["gru"]):
        wih, bgi, whh, bgh = layer_ops(layer)
        pp[f"wih{li}"] = wih
        pp[f"bgi{li}"] = bgi
        pp[f"whh{li}"] = whh
        pp[f"bgh{li}"] = bgh

    wout_t = params["out_w"].T.astype(f32)                 # (2H, n_out)
    n_out = wout_t.shape[1]
    pp["wout"] = (jnp.zeros((2 * hid, _NOUT_PAD), f32)
                  .at[:, :n_out].set(wout_t).astype(bf16))
    pp["bout"] = jnp.zeros((1, _NOUT_PAD), f32).at[0, :n_out].set(
        params["out_b"].astype(f32))
    return pp, n_out


# ----------------------------------------------------------------------------
# Forward pass (jitted; takes the already-prepared operands).
# ----------------------------------------------------------------------------
def captcha_forward(images, pp, targets=None, *, n_out=20):
    """images: (B, 3, H, W) f32 NCHW -> (logits (W/4, B, n_out), None)."""
    if targets is not None:
        # TODO(synk): CTC loss branch (targets is not None) not implemented.
        raise NotImplementedError("CTC loss path not implemented")

    x = jnp.transpose(images, (0, 2, 3, 1)).astype(jnp.bfloat16)       # NCHW -> NHWC
    x = conv3x3_relu_pool(x, pp["conv1_wm"], pp["conv1_bm"])           # (B, H/2, W/2, 128)
    x = conv3x3_relu_pool(x, pp["conv2_wm"], pp["conv2_bm"])           # (B, H/4, W/4, 64)

    # PyTorch: permute(0,3,1,2).view(b, W/4, 64*H/4) -> features in (channel, height) order.
    B, H4, W4, C = x.shape
    x = jnp.transpose(x, (0, 2, 3, 1)).reshape(B, W4, C * H4)          # (B, W/4, 1152) bf16

    # nn.GRU default is seq-first, so the GRU time axis is b_size (module quirk kept).
    logits = gru_stack(x, pp)                                          # (B, W/4, 128) f32
    logits = logits[:, :, :n_out]                                      # (B, W/4, 20)
    return jnp.transpose(logits, (1, 0, 2)), None                      # (W/4, B, 20)


# ----------------------------------------------------------------------------
# Deterministic synthetic parameters in PyTorch-native layouts.
# ----------------------------------------------------------------------------
def init_params(key):
    ks = iter(jax.random.split(key, 40))
    s = 0.05

    def rnd(shape):
        return (s * jax.random.normal(next(ks), shape)).astype(jnp.float32)

    params = {
        "conv1_w": rnd((128, 3, 3, 3)), "conv1_b": rnd((128,)),
        "conv2_w": rnd((64, 128, 3, 3)), "conv2_b": rnd((64,)),
        "lin1_w": rnd((64, 1152)), "lin1_b": rnd((64,)),
        "out_w": rnd((20, 64)), "out_b": rnd((20,)),
    }
    hid = 32
    gru = []
    for d_in in (64, 2 * hid):
        layer = {}
        for dname in ("fwd", "bwd"):
            layer[dname] = {
                "weight_ih": rnd((3 * hid, d_in)),   # PyTorch (3H, D), gate order (r, z, n)
                "weight_hh": rnd((3 * hid, hid)),
                "bias_ih": rnd((3 * hid,)),
                "bias_hh": rnd((3 * hid,)),
            }
        gru.append(layer)
    params["gru"] = gru
    return params


if __name__ == "__main__":
    key = jax.random.PRNGKey(0)
    k_img, k_par = jax.random.split(key)

    # linear_1 expects 1152 = 64 * (H//4) features -> H = 72.  W = 32 -> sequence length 8.
    images = jax.random.normal(k_img, (2, 3, 72, 32), dtype=jnp.float32)
    params = init_params(k_par)

    # One-time parameter preparation, OUTSIDE the jitted hot path.
    pp, n_out = prepare_params(params)

    fwd = jax.jit(functools.partial(captcha_forward, n_out=n_out))
    logits, loss = fwd(images, pp)
    logits = jax.block_until_ready(logits)

    assert logits.shape == (8, 2, 20), logits.shape
    assert loss is None
    assert bool(jnp.all(jnp.isfinite(logits)))
    print("KERNEL_OK")
</pallas_src>

<mosaic_0001>
module attributes {stable_mosaic.version = 11 : i64} {
  func.func @_conv_pool_kernel(%arg0: i32, %arg1: memref<576x27xbf16, #tpu.memory_space<vmem>>, %arg2: memref<576x27xbf16, #tpu.memory_space<vmem>>, %arg3: memref<576x27xbf16, #tpu.memory_space<vmem>>, %arg4: memref<576x27xbf16, #tpu.memory_space<vmem>>, %arg5: memref<27x128xbf16, #tpu.memory_space<vmem>>, %arg6: memref<1x128xf32, #tpu.memory_space<vmem>>, %arg7: memref<576x128xbf16, #tpu.memory_space<vmem>>) attributes {dimension_semantics = [#tpu.dimension_semantics<parallel>], iteration_bounds = array<i64: 2>, scalar_prefetch = 0 : i64, scratch_operands = 0 : i64, tpu.core_type = #tpu.core_type<tc>, window_params = [{transform_indices = @transform_0, window_bounds = array<i64: 576, 27>}, {transform_indices = @transform_1, window_bounds = array<i64: 576, 27>}, {transform_indices = @transform_2, window_bounds = array<i64: 576, 27>}, {transform_indices = @transform_3, window_bounds = array<i64: 576, 27>}, {pipeline_mode = #tpu.pipeline_mode<synchronous>, transform_indices = @transform_4, window_bounds = array<i64: 27, 128>}, {pipeline_mode = #tpu.pipeline_mode<synchronous>, transform_indices = @transform_5, window_bounds = array<i64: 1, 128>}, {transform_indices = @transform_6, window_bounds = array<i64: 576, 128>}]} {
    %c0 = arith.constant 0 : index
    %c0_0 = arith.constant 0 : index
    %0 = vector.load %arg5[%c0, %c0_0] : memref<27x128xbf16, #tpu.memory_space<vmem>>, vector<27x128xbf16>
    %c0_1 = arith.constant 0 : index
    %c0_2 = arith.constant 0 : index
    %1 = vector.load %arg1[%c0_1, %c0_2] : memref<576x27xbf16, #tpu.memory_space<vmem>>, vector<576x27xbf16>
    %cst = arith.constant dense<0.000000e+00> : vector<576x128xf32>
    %2 = tpu.matmul %1, %0, %cst {dimension_numbers = #tpu.dot_dimension_numbers<[1], [0], [0], [1], [0, 0, 1, 1], [], []>} : vector<576x27xbf16>, vector<27x128xbf16>, vector<576x128xf32> -> vector<576x128xf32>
    %c0_3 = arith.constant 0 : index
    %c0_4 = arith.constant 0 : index
    %3 = vector.load %arg2[%c0_3, %c0_4] : memref<576x27xbf16, #tpu.memory_space<vmem>>, vector<576x27xbf16>
    %cst_5 = arith.constant dense<0.000000e+00> : vector<576x128xf32>
    %4 = tpu.matmul %3, %0, %cst_5 {dimension_numbers = #tpu.dot_dimension_numbers<[1], [0], [0], [1], [0, 0, 1, 1], [], []>} : vector<576x27xbf16>, vector<27x128xbf16>, vector<576x128xf32> -> vector<576x128xf32>
    %5 = arith.maximumf %2, %4 : vector<576x128xf32>
    %c0_6 = arith.constant 0 : index
    %c0_7 = arith.constant 0 : index
    %6 = vector.load %arg3[%c0_6, %c0_7] : memref<576x27xbf16, #tpu.memory_space<vmem>>, vector<576x27xbf16>
    %cst_8 = arith.constant dense<0.000000e+00> : vector<576x128xf32>
    %7 = tpu.matmul %6, %0, %cst_8 {dimension_numbers = #tpu.dot_dimension_numbers<[1], [0], [0], [1], [0, 0, 1, 1], [], []>} : vector<576x27xbf16>, vector<27x128xbf16>, vector<576x128xf32> -> vector<576x128xf32>
    %8 = arith.maximumf %5, %7 : vector<576x128xf32>
    %c0_9 = arith.constant 0 : index
    %c0_10 = arith.constant 0 : index
    %9 = vector.load %arg4[%c0_9, %c0_10] : memref<576x27xbf16, #tpu.memory_space<vmem>>, vector<576x27xbf16>
    %cst_11 = arith.constant dense<0.000000e+00> : vector<576x128xf32>
    %10 = tpu.matmul %9, %0, %cst_11 {dimension_numbers = #tpu.dot_dimension_numbers<[1], [0], [0], [1], [0, 0, 1, 1], [], []>} : vector<576x27xbf16>, vector<27x128xbf16>, vector<576x128xf32> -> vector<576x128xf32>
    %11 = arith.maximumf %8, %10 : vector<576x128xf32>
    %c0_12 = arith.constant 0 : index
    %c0_13 = arith.constant 0 : index
    %12 = vector.load %arg6[%c0_12, %c0_13] : memref<1x128xf32, #tpu.memory_space<vmem>>, vector<1x128xf32>
    %13 = vector.broadcast %12 : vector<1x128xf32> to vector<576x128xf32>
    %14 = arith.addf %11, %13 : vector<576x128xf32>
    %cst_14 = arith.constant 0.000000e+00 : f32
    %15 = vector.broadcast %cst_14 : f32 to vector<576x128xf32>
    %16 = arith.maximumf %14, %15 : vector<576x128xf32>
    %17 = arith.truncf %16 : vector<576x128xf32> to vector<576x128xbf16>
    %c0_15 = arith.constant 0 : index
    %c0_16 = arith.constant 0 : index
    %18 = vector.load %arg7[%c0_15, %c0_16] : memref<576x128xbf16, #tpu.memory_space<vmem>>, vector<576x128xbf16>
    tpu.vector_store %arg7[%c0_15, %c0_16], %17 {strides = array<i32>} : memref<576x128xbf16, #tpu.memory_space<vmem>>, vector<576x128xbf16>,
    return
  }
  func.func @transform_0(%arg0: i32) -> (i32, i32) {
    %c0_i32 = arith.constant 0 : i32
    %c0_i32_0 = arith.constant 0 : i32
    return %arg0, %c0_i32 : i32, i32
  }
  func.func @transform_1(%arg0: i32) -> (i32, i32) {
    %c0_i32 = arith.constant 0 : i32
    %c0_i32_0 = arith.constant 0 : i32
    return %arg0, %c0_i32 : i32, i32
  }
  func.func @transform_2(%arg0: i32) -> (i32, i32) {
    %c0_i32 = arith.constant 0 : i32
    %c0_i32_0 = arith.constant 0 : i32
    return %arg0, %c0_i32 : i32, i32
  }
  func.func @transform_3(%arg0: i32) -> (i32, i32) {
    %c0_i32 = arith.constant 0 : i32
    %c0_i32_0 = arith.constant 0 : i32
    return %arg0, %c0_i32 : i32, i32
  }
  func.func @transform_4(%arg0: i32) -> (i32, i32) {
    %c0_i32 = arith.constant 0 : i32
    %c0_i32_0 = arith.constant 0 : i32
    %c0_i32_1 = arith.constant 0 : i32
    return %c0_i32, %c0_i32_0 : i32, i32
  }
  func.func @transform_5(%arg0: i32) -> (i32, i32) {
    %c0_i32 = arith.constant 0 : i32
    %c0_i32_0 = arith.constant 0 : i32
    %c0_i32_1 = arith.constant 0 : i32
    return %c0_i32, %c0_i32_0 : i32, i32
  }
  func.func @transform_6(%arg0: i32) -> (i32, i32) {
    %c0_i32 = arith.constant 0 : i32
    %c0_i32_0 = arith.constant 0 : i32
    return %arg0, %c0_i32 : i32, i32
  }
}

module attributes {stable_mosaic.version = 11 : i64} {
  func.func @_conv_pool_kernel(%arg0: i32, %arg1: memref<144x1152xbf16, #tpu.memory_space<vmem>>, %arg2: memref<144x1152xbf16, #tpu.memory_space<vmem>>, %arg3: memref<144x1152xbf16, #tpu.memory_space<vmem>>, %arg4: memref<144x1152xbf16, #tpu.memory_space<vmem>>, %arg5: memref<1152x64xbf16, #tpu.memory_space<vmem>>, %arg6: memref<1x64xf32, #tpu.memory_space<vmem>>, %arg7: memref<144x64xbf16, #tpu.memory_space<vmem>>) attributes {dimension_semantics = [#tpu.dimension_semantics<parallel>], iteration_bounds = array<i64: 2>, scalar_prefetch = 0 : i64, scratch_operands = 0 : i64, tpu.core_type = #tpu.core_type<tc>, window_params = [{transform_indices = @transform_0, window_bounds = array<i64: 144, 1152>}, {transform_indices = @transform_1, window_bounds = array<i64: 144, 1152>}, {transform_indices = @transform_2, window_bounds = array<i64: 144, 1152>}, {transform_indices = @transform_3, window_bounds = array<i64: 144, 1152>}, {pipeline_mode = #tpu.pipeline_mode<synchronous>, transform_indices = @transform_4, window_bounds = array<i64: 1152, 64>}, {pipeline_mode = #tpu.pipeline_mode<synchronous>, transform_indices = @transform_5, window_bounds = array<i64: 1, 64>}, {transform_indices = @transform_6, window_bounds = array<i64: 144, 64>}]} {
    %c0 = arith.constant 0 : index
    %c0_0 = arith.constant 0 : index
    %0 = vector.load %arg5[%c0, %c0_0] : memref<1152x64xbf16, #tpu.memory_space<vmem>>, vector<1152x64xbf16>
    %c0_1 = arith.constant 0 : index
    %c0_2 = arith.constant 0 : index
    %1 = vector.load %arg1[%c0_1, %c0_2] : memref<144x1152xbf16, #tpu.memory_space<vmem>>, vector<144x1152xbf16>
    %cst = arith.constant dense<0.000000e+00> : vector<144x64xf32>
    %2 = tpu.matmul %1, %0, %cst {dimension_numbers = #tpu.dot_dimension_numbers<[1], [0], [0], [1], [0, 0, 1, 1], [], []>} : vector<144x1152xbf16>, vector<1152x64xbf16>, vector<144x64xf32> -> vector<144x64xf32>
    %c0_3 = arith.constant 0 : index
    %c0_4 = arith.constant 0 : index
    %3 = vector.load %arg2[%c0_3, %c0_4] : memref<144x1152xbf16, #tpu.memory_space<vmem>>, vector<144x1152xbf16>
    %cst_5 = arith.constant dense<0.000000e+00> : vector<144x64xf32>
    %4 = tpu.matmul %3, %0, %cst_5 {dimension_numbers = #tpu.dot_dimension_numbers<[1], [0], [0], [1], [0, 0, 1, 1], [], []>} : vector<144x1152xbf16>, vector<1152x64xbf16>, vector<144x64xf32> -> vector<144x64xf32>
    %5 = arith.maximumf %2, %4 : vector<144x64xf32>
    %c0_6 = arith.constant 0 : index
    %c0_7 = arith.constant 0 : index
    %6 = vector.load %arg3[%c0_6, %c0_7] : memref<144x1152xbf16, #tpu.memory_space<vmem>>, vector<144x1152xbf16>
    %cst_8 = arith.constant dense<0.000000e+00> : vector<144x64xf32>
    %7 = tpu.matmul %6, %0, %cst_8 {dimension_numbers = #tpu.dot_dimension_numbers<[1], [0], [0], [1], [0, 0, 1, 1], [], []>} : vector<144x1152xbf16>, vector<1152x64xbf16>, vector<144x64xf32> -> vector<144x64xf32>
    %8 = arith.maximumf %5, %7 : vector<144x64xf32>
    %c0_9 = arith.constant 0 : index
    %c0_10 = arith.constant 0 : index
    %9 = vector.load %arg4[%c0_9, %c0_10] : memref<144x1152xbf16, #tpu.memory_space<vmem>>, vector<144x1152xbf16>
    %cst_11 = arith.constant dense<0.000000e+00> : vector<144x64xf32>
    %10 = tpu.matmul %9, %0, %cst_11 {dimension_numbers = #tpu.dot_dimension_numbers<[1], [0], [0], [1], [0, 0, 1, 1], [], []>} : vector<144x1152xbf16>, vector<1152x64xbf16>, vector<144x64xf32> -> vector<144x64xf32>
    %11 = arith.maximumf %8, %10 : vector<144x64xf32>
    %c0_12 = arith.constant 0 : index
    %c0_13 = arith.constant 0 : index
    %12 = vector.load %arg6[%c0_12, %c0_13] : memref<1x64xf32, #tpu.memory_space<vmem>>, vector<1x64xf32>
    %13 = vector.broadcast %12 : vector<1x64xf32> to vector<144x64xf32>
    %14 = arith.addf %11, %13 : vector<144x64xf32>
    %cst_14 = arith.constant 0.000000e+00 : f32
    %15 = vector.broadcast %cst_14 : f32 to vector<144x64xf32>
    %16 = arith.maximumf %14, %15 : vector<144x64xf32>
    %17 = arith.truncf %16 : vector<144x64xf32> to vector<144x64xbf16>
    %c0_15 = arith.constant 0 : index
    %c0_16 = arith.constant 0 : index
    %18 = vector.load %arg7[%c0_15, %c0_16] : memref<144x64xbf16, #tpu.memory_space<vmem>>, vector<144x64xbf16>
    tpu.vector_store %arg7[%c0_15, %c0_16], %17 {strides = array<i32>} : memref<144x64xbf16, #tpu.memory_space<vmem>>, vector<144x64xbf16>,
    return
  }
  func.func @transform_0(%arg0: i32) -> (i32, i32) {
    %c0_i32 = arith.constant 0 : i32
    %c0_i32_0 = arith.constant 0 : i32
    return %arg0, %c0_i32 : i32, i32
  }
  func.func @transform_1(%arg0: i32) -> (i32, i32) {
    %c0_i32 = arith.constant 0 : i32
    %c0_i32_0 = arith.constant 0 : i32
    return %arg0, %c0_i32 : i32, i32
  }
  func.func @transform_2(%arg0: i32) -> (i32, i32) {
    %c0_i32 = arith.constant 0 : i32
    %c0_i32_0 = arith.constant 0 : i32
    return %arg0, %c0_i32 : i32, i32
  }
  func.func @transform_3(%arg0: i32) -> (i32, i32) {
    %c0_i32 = arith.constant 0 : i32
    %c0_i32_0 = arith.constant 0 : i32
    return %arg0, %c0_i32 : i32, i32
  }
  func.func @transform_4(%arg0: i32) -> (i32, i32) {
    %c0_i32 = arith.constant 0 : i32
    %c0_i32_0 = arith.constant 0 : i32
    %c0_i32_1 = arith.constant 0 : i32
    return %c0_i32, %c0_i32_0 : i32, i32
  }
  func.func @transform_5(%arg0: i32) -> (i32, i32) {
    %c0_i32 = arith.constant 0 : i32
    %c0_i32_0 = arith.constant 0 : i32
    %c0_i32_1 = arith.constant 0 : i32
    return %c0_i32, %c0_i32_0 : i32, i32
  }
  func.func @transform_6(%arg0: i32) -> (i32, i32) {
    %c0_i32 = arith.constant 0 : i32
    %c0_i32_0 = arith.constant 0 : i32
    return %arg0, %c0_i32 : i32, i32
  }
}

module attributes {stable_mosaic.version = 11 : i64} {
  func.func @_gru_stack_kernel(%arg0: i32, %arg1: memref<2x8x1152xbf16, #tpu.memory_space<vmem>>, %arg2: memref<1152x64xbf16, #tpu.memory_space<vmem>>, %arg3: memref<1x64xf32, #tpu.memory_space<vmem>>, %arg4: memref<64x192xbf16, #tpu.memory_space<vmem>>, %arg5: memref<1x192xf32, #tpu.memory_space<vmem>>, %arg6: memref<64x192xbf16, #tpu.memory_space<vmem>>, %arg7: memref<1x192xf32, #tpu.memory_space<vmem>>, %arg8: memref<64x192xbf16, #tpu.memory_space<vmem>>, %arg9: memref<1x192xf32, #tpu.memory_space<vmem>>, %arg10: memref<64x192xbf16, #tpu.memory_space<vmem>>, %arg11: memref<1x192xf32, #tpu.memory_space<vmem>>, %arg12: memref<64x128xbf16, #tpu.memory_space<vmem>>, %arg13: memref<1x128xf32, #tpu.memory_space<vmem>>, %arg14: memref<2x8x128xf32, #tpu.memory_space<vmem>>) attributes {dimension_semantics = [#tpu.dimension_semantics<arbitrary>], iteration_bounds = array<i64: 1>, scalar_prefetch = 0 : i64, scratch_operands = 0 : i64, tpu.core_type = #tpu.core_type<tc>, window_params = [{pipeline_mode = #tpu.pipeline_mode<synchronous>, transform_indices = @transform_0, window_bounds = array<i64: 2, 8, 1152>}, {pipeline_mode = #tpu.pipeline_mode<synchronous>, transform_indices = @transform_1, window_bounds = array<i64: 1152, 64>}, {pipeline_mode = #tpu.pipeline_mode<synchronous>, transform_indices = @transform_2, window_bounds = array<i64: 1, 64>}, {pipeline_mode = #tpu.pipeline_mode<synchronous>, transform_indices = @transform_3, window_bounds = array<i64: 64, 192>}, {pipeline_mode = #tpu.pipeline_mode<synchronous>, transform_indices = @transform_4, window_bounds = array<i64: 1, 192>}, {pipeline_mode = #tpu.pipeline_mode<synchronous>, transform_indices = @transform_5, window_bounds = array<i64: 64, 192>}, {pipeline_mode = #tpu.pipeline_mode<synchronous>, transform_indices = @transform_6, window_bounds = array<i64: 1, 192>}, {pipeline_mode = #tpu.pipeline_mode<synchronous>, transform_indices = @transform_7, window_bounds = array<i64: 64, 192>}, {pipeline_mode = #tpu.pipeline_mode<synchronous>, transform_indices = @transform_8, window_bounds = array<i64: 1, 192>}, {pipeline_mode = #tpu.pipeline_mode<synchronous>, transform_indices = @transform_9, window_bounds = array<i64: 64, 192>}, {pipeline_mode = #tpu.pipeline_mode<synchronous>, transform_indices = @transform_10, window_bounds = array<i64: 1, 192>}, {pipeline_mode = #tpu.pipeline_mode<synchronous>, transform_indices = @transform_11, window_bounds = array<i64: 64, 128>}, {pipeline_mode = #tpu.pipeline_mode<synchronous>, transform_indices = @transform_12, window_bounds = array<i64: 1, 128>}, {pipeline_mode = #tpu.pipeline_mode<synchronous>, transform_indices = @transform_13, window_bounds = array<i64: 2, 8, 128>}]} {
    %c0 = arith.constant 0 : index
    %c0_0 = arith.constant 0 : index
    %c0_1 = arith.constant 0 : index
    %0 = vector.load %arg1[%c0, %c0_0, %c0_1] : memref<2x8x1152xbf16, #tpu.memory_space<vmem>>, vector<2x8x1152xbf16>
    %1 = vector.shape_cast %0 : vector<2x8x1152xbf16> to vector<16x1152xbf16>
    %c0_2 = arith.constant 0 : index
    %c0_3 = arith.constant 0 : index
    %2 = vector.load %arg2[%c0_2, %c0_3] : memref<1152x64xbf16, #tpu.memory_space<vmem>>, vector<1152x64xbf16>
    %cst = arith.constant dense<0.000000e+00> : vector<16x64xf32>
    %3 = tpu.matmul %1, %2, %cst {dimension_numbers = #tpu.dot_dimension_numbers<[1], [0], [0], [1], [0, 0, 1, 1], [], []>} : vector<16x1152xbf16>, vector<1152x64xbf16>, vector<16x64xf32> -> vector<16x64xf32>
    %c0_4 = arith.constant 0 : index
    %c0_5 = arith.constant 0 : index
    %4 = vector.load %arg3[%c0_4, %c0_5] : memref<1x64xf32, #tpu.memory_space<vmem>>, vector<1x64xf32>
    %5 = vector.broadcast %4 : vector<1x64xf32> to vector<16x64xf32>
    %6 = arith.addf %3, %5 : vector<16x64xf32>
    %7 = arith.truncf %6 : vector<16x64xf32> to vector<16x64xbf16>
    %c0_6 = arith.constant 0 : index
    %c0_7 = arith.constant 0 : index
    %8 = vector.load %arg4[%c0_6, %c0_7] : memref<64x192xbf16, #tpu.memory_space<vmem>>, vector<64x192xbf16>
    %cst_8 = arith.constant dense<0.000000e+00> : vector<16x192xf32>
    %9 = tpu.matmul %7, %8, %cst_8 {dimension_numbers = #tpu.dot_dimension_numbers<[1], [0], [0], [1], [0, 0, 1, 1], [], []>} : vector<16x64xbf16>, vector<64x192xbf16>, vector<16x192xf32> -> vector<16x192xf32>
    %c0_9 = arith.constant 0 : index
    %c0_10 = arith.constant 0 : index
    %10 = vector.load %arg5[%c0_9, %c0_10] : memref<1x192xf32, #tpu.memory_space<vmem>>, vector<1x192xf32>
    %11 = vector.broadcast %10 : vector<1x192xf32> to vector<16x192xf32>
    %12 = arith.addf %9, %11 : vector<16x192xf32>
    %cst_11 = arith.constant 0.000000e+00 : f32
    %13 = vector.broadcast %cst_11 : f32 to vector<8x32xf32>
    %cst_12 = arith.constant 0.000000e+00 : f32
    %14 = vector.broadcast %cst_12 : f32 to vector<8x32xf32>
    %15 = tpu.concatenate %13, %14 in 1 : vector<8x32xf32>, vector<8x32xf32> -> vector<8x64xf32>
    %16 = arith.truncf %15 : vector<8x64xf32> to vector<8x64xbf16>
    %c0_13 = arith.constant 0 : index
    %c0_14 = arith.constant 0 : index
    %17 = vector.load %arg6[%c0_13, %c0_14] : memref<64x192xbf16, #tpu.memory_space<vmem>>, vector<64x192xbf16>
    %cst_15 = arith.constant dense<0.000000e+00> : vector<8x192xf32>
    %18 = tpu.matmul %16, %17, %cst_15 {dimension_numbers = #tpu.dot_dimension_numbers<[1], [0], [0], [1], [0, 0, 1, 1], [], []>} : vector<8x64xbf16>, vector<64x192xbf16>, vector<8x192xf32> -> vector<8x192xf32>
    %c0_16 = arith.constant 0 : index
    %c0_17 = arith.constant 0 : index
    %19 = vector.load %arg7[%c0_16, %c0_17] : memref<1x192xf32, #tpu.memory_space<vmem>>, vector<1x192xf32>
    %20 = vector.broadcast %19 : vector<1x192xf32> to vector<8x192xf32>
    %21 = arith.addf %18, %20 : vector<8x192xf32>
    %22 = vector.extract_strided_slice %12 {offsets = [0, 0], sizes = [8, 96], strides = [1, 1]} : vector<16x192xf32> to vector<8x96xf32>
    %23 = vector.extract_strided_slice %21 {offsets = [0, 0], sizes = [8, 96], strides = [1, 1]} : vector<8x192xf32> to vector<8x96xf32>
    %24 = vector.extract_strided_slice %22 {offsets = [0, 0], sizes = [8, 32], strides = [1, 1]} : vector<8x96xf32> to vector<8x32xf32>
    %25 = vector.extract_strided_slice %23 {offsets = [0, 0], sizes = [8, 32], strides = [1, 1]} : vector<8x96xf32> to vector<8x32xf32>
    %26 = arith.addf %24, %25 : vector<8x32xf32>
    %27 = arith.negf %26 : vector<8x32xf32>
    %28 = math.exp %27 : vector<8x32xf32>
    %cst_18 = arith.constant 1.000000e+00 : f32
    %29 = vector.broadcast %cst_18 : f32 to vector<8x32xf32>
    %30 = arith.addf %29, %28 : vector<8x32xf32>
    %31 = arith.divf %29, %30 : vector<8x32xf32>
    %32 = vector.extract_strided_slice %22 {offsets = [0, 32], sizes = [8, 32], strides = [1, 1]} : vector<8x96xf32> to vector<8x32xf32>
    %33 = vector.extract_strided_slice %23 {offsets = [0, 32], sizes = [8, 32], strides = [1, 1]} : vector<8x96xf32> to vector<8x32xf32>
    %34 = arith.addf %32, %33 : vector<8x32xf32>
    %35 = arith.negf %34 : vector<8x32xf32>
    %36 = math.exp %35 : vector<8x32xf32>
    %cst_19 = arith.constant 1.000000e+00 : f32
    %37 = vector.broadcast %cst_19 : f32 to vector<8x32xf32>
    %38 = arith.addf %37, %36 : vector<8x32xf32>
    %39 = arith.divf %37, %38 : vector<8x32xf32>
    %40 = vector.extract_strided_slice %22 {offsets = [0, 64], sizes = [8, 32], strides = [1, 1]} : vector<8x96xf32> to vector<8x32xf32>
    %41 = vector.extract_strided_slice %23 {offsets = [0, 64], sizes = [8, 32], strides = [1, 1]} : vector<8x96xf32> to vector<8x32xf32>
    %42 = arith.mulf %31, %41 : vector<8x32xf32>
    %43 = arith.addf %40, %42 : vector<8x32xf32>
    %44 = math.tanh %43 : vector<8x32xf32>
    %cst_20 = arith.constant 1.000000e+00 : f32
    %45 = vector.broadcast %cst_20 : f32 to vector<8x32xf32>
    %46 = arith.subf %45, %39 : vector<8x32xf32>
    %47 = arith.mulf %46, %44 : vector<8x32xf32>
    %48 = arith.mulf %39, %13 : vector<8x32xf32>
    %49 = arith.addf %47, %48 : vector<8x32xf32>
    %50 = vector.extract_strided_slice %12 {offsets = [8, 96], sizes = [8, 96], strides = [1, 1]} : vector<16x192xf32> to vector<8x96xf32>
    %51 = vector.extract_strided_slice %21 {offsets = [0, 96], sizes = [8, 96], strides = [1, 1]} : vector<8x192xf32> to vector<8x96xf32>
    %52 = vector.extract_strided_slice %50 {offsets = [0, 0], sizes = [8, 32], strides = [1, 1]} : vector<8x96xf32> to vector<8x32xf32>
    %53 = vector.extract_strided_slice %51 {offsets = [0, 0], sizes = [8, 32], strides = [1, 1]} : vector<8x96xf32> to vector<8x32xf32>
    %54 = arith.addf %52, %53 : vector<8x32xf32>
    %55 = arith.negf %54 : vector<8x32xf32>
    %56 = math.exp %55 : vector<8x32xf32>
    %cst_21 = arith.constant 1.000000e+00 : f32
    %57 = vector.broadcast %cst_21 : f32 to vector<8x32xf32>
    %58 = arith.addf %57, %56 : vector<8x32xf32>
    %59 = arith.divf %57, %58 : vector<8x32xf32>
    %60 = vector.extract_strided_slice %50 {offsets = [0, 32], sizes = [8, 32], strides = [1, 1]} : vector<8x96xf32> to vector<8x32xf32>
    %61 = vector.extract_strided_slice %51 {offsets = [0, 32], sizes = [8, 32], strides = [1, 1]} : vector<8x96xf32> to vector<8x32xf32>
    %62 = arith.addf %60, %61 : vector<8x32xf32>
    %63 = arith.negf %62 : vector<8x32xf32>
    %64 = math.exp %63 : vector<8x32xf32>
    %cst_22 = arith.constant 1.000000e+00 : f32
    %65 = vector.broadcast %cst_22 : f32 to vector<8x32xf32>
    %66 = arith.addf %65, %64 : vector<8x32xf32>
    %67 = arith.divf %65, %66 : vector<8x32xf32>
    %68 = vector.extract_strided_slice %50 {offsets = [0, 64], sizes = [8, 32], strides = [1, 1]} : vector<8x96xf32> to vector<8x32xf32>
    %69 = vector.extract_strided_slice %51 {offsets = [0, 64], sizes = [8, 32], strides = [1, 1]} : vector<8x96xf32> to vector<8x32xf32>
    %70 = arith.mulf %59, %69 : vector<8x32xf32>
    %71 = arith.addf %68, %70 : vector<8x32xf32>
    %72 = math.tanh %71 : vector<8x32xf32>
    %cst_23 = arith.constant 1.000000e+00 : f32
    %73 = vector.broadcast %cst_23 : f32 to vector<8x32xf32>
    %74 = arith.subf %73, %67 : vector<8x32xf32>
    %75 = arith.mulf %74, %72 : vector<8x32xf32>
    %76 = arith.mulf %67, %14 : vector<8x32xf32>
    %77 = arith.addf %75, %76 : vector<8x32xf32>
    %78 = tpu.concatenate %49, %77 in 1 : vector<8x32xf32>, vector<8x32xf32> -> vector<8x64xf32>
    %79 = arith.truncf %78 : vector<8x64xf32> to vector<8x64xbf16>
    %c0_24 = arith.constant 0 : index
    %c0_25 = arith.constant 0 : index
    %80 = vector.load %arg6[%c0_24, %c0_25] : memref<64x192xbf16, #tpu.memory_space<vmem>>, vector<64x192xbf16>
    %cst_26 = arith.constant dense<0.000000e+00> : vector<8x192xf32>
    %81 = tpu.matmul %79, %80, %cst_26 {dimension_numbers = #tpu.dot_dimension_numbers<[1], [0], [0], [1], [0, 0, 1, 1], [], []>} : vector<8x64xbf16>, vector<64x192xbf16>, vector<8x192xf32> -> vector<8x192xf32>
    %c0_27 = arith.constant 0 : index
    %c0_28 = arith.constant 0 : index
    %82 = vector.load %arg7[%c0_27, %c0_28] : memref<1x192xf32, #tpu.memory_space<vmem>>, vector<1x192xf32>
    %83 = vector.broadcast %82 : vector<1x192xf32> to vector<8x192xf32>
    %84 = arith.addf %81, %83 : vector<8x192xf32>
    %85 = vector.extract_strided_slice %12 {offsets = [8, 0], sizes = [8, 96], strides = [1, 1]} : vector<16x192xf32> to vector<8x96xf32>
    %86 = vector.extract_strided_slice %84 {offsets = [0, 0], sizes = [8, 96], strides = [1, 1]} : vector<8x192xf32> to vector<8x96xf32>
    %87 = vector.extract_strided_slice %85 {offsets = [0, 0], sizes = [8, 32], strides = [1, 1]} : vector<8x96xf32> to vector<8x32xf32>
    %88 = vector.extract_strided_slice %86 {offsets = [0, 0], sizes = [8, 32], strides = [1, 1]} : vector<8x96xf32> to vector<8x32xf32>
    %89 = arith.addf %87, %88 : vector<8x32xf32>
    %90 = arith.negf %89 : vector<8x32xf32>
    %91 = math.exp %90 : vector<8x32xf32>
    %cst_29 = arith.constant 1.000000e+00 : f32
    %92 = vector.broadcast %cst_29 : f32 to vector<8x32xf32>
    %93 = arith.addf %92, %91 : vector<8x32xf32>
    %94 = arith.divf %92, %93 : vector<8x32xf32>
    %95 = vector.extract_strided_slice %85 {offsets = [0, 32], sizes = [8, 32], strides = [1, 1]} : vector<8x96xf32> to vector<8x32xf32>
    %96 = vector.extract_strided_slice %86 {offsets = [0, 32], sizes = [8, 32], strides = [1, 1]} : vector<8x96xf32> to vector<8x32xf32>
    %97 = arith.addf %95, %96 : vector<8x32xf32>
    %98 = arith.negf %97 : vector<8x32xf32>
    %99 = math.exp %98 : vector<8x32xf32>
    %cst_30 = arith.constant 1.000000e+00 : f32
    %100 = vector.broadcast %cst_30 : f32 to vector<8x32xf32>
    %101 = arith.addf %100, %99 : vector<8x32xf32>
    %102 = arith.divf %100, %101 : vector<8x32xf32>
    %103 = vector.extract_strided_slice %85 {offsets = [0, 64], sizes = [8, 32], strides = [1, 1]} : vector<8x96xf32> to vector<8x32xf32>
    %104 = vector.extract_strided_slice %86 {offsets = [0, 64], sizes = [8, 32], strides = [1, 1]} : vector<8x96xf32> to vector<8x32xf32>
    %105 = arith.mulf %94, %104 : vector<8x32xf32>
    %106 = arith.addf %103, %105 : vector<8x32xf32>
    %107 = math.tanh %106 : vector<8x32xf32>
    %cst_31 = arith.constant 1.000000e+00 : f32
    %108 = vector.broadcast %cst_31 : f32 to vector<8x32xf32>
    %109 = arith.subf %108, %102 : vector<8x32xf32>
    %110 = arith.mulf %109, %107 : vector<8x32xf32>
    %111 = arith.mulf %102, %49 : vector<8x32xf32>
    %112 = arith.addf %110, %111 : vector<8x32xf32>
    %113 = vector.extract_strided_slice %12 {offsets = [0, 96], sizes = [8, 96], strides = [1, 1]} : vector<16x192xf32> to vector<8x96xf32>
    %114 = vector.extract_strided_slice %84 {offsets = [0, 96], sizes = [8, 96], strides = [1, 1]} : vector<8x192xf32> to vector<8x96xf32>
    %115 = vector.extract_strided_slice %113 {offsets = [0, 0], sizes = [8, 32], strides = [1, 1]} : vector<8x96xf32> to vector<8x32xf32>
    %116 = vector.extract_strided_slice %114 {offsets = [0, 0], sizes = [8, 32], strides = [1, 1]} : vector<8x96xf32> to vector<8x32xf32>
    %117 = arith.addf %115, %116 : vector<8x32xf32>
    %118 = arith.negf %117 : vector<8x32xf32>
    %119 = math.exp %118 : vector<8x32xf32>
    %cst_32 = arith.constant 1.000000e+00 : f32
    %120 = vector.broadcast %cst_32 : f32 to vector<8x32xf32>
    %121 = arith.addf %120, %119 : vector<8x32xf32>
    %122 = arith.divf %120, %121 : vector<8x32xf32>
    %123 = vector.extract_strided_slice %113 {offsets = [0, 32], sizes = [8, 32], strides = [1, 1]} : vector<8x96xf32> to vector<8x32xf32>
    %124 = vector.extract_strided_slice %114 {offsets = [0, 32], sizes = [8, 32], strides = [1, 1]} : vector<8x96xf32> to vector<8x32xf32>
    %125 = arith.addf %123, %124 : vector<8x32xf32>
    %126 = arith.negf %125 : vector<8x32xf32>
    %127 = math.exp %126 : vector<8x32xf32>
    %cst_33 = arith.constant 1.000000e+00 : f32
    %128 = vector.broadcast %cst_33 : f32 to vector<8x32xf32>
    %129 = arith.addf %128, %127 : vector<8x32xf32>
    %130 = arith.divf %128, %129 : vector<8x32xf32>
    %131 = vector.extract_strided_slice %113 {offsets = [0, 64], sizes = [8, 32], strides = [1, 1]} : vector<8x96xf32> to vector<8x32xf32>
    %132 = vector.extract_strided_slice %114 {offsets = [0, 64], sizes = [8, 32], strides = [1, 1]} : vector<8x96xf32> to vector<8x32xf32>
    %133 = arith.mulf %122, %132 : vector<8x32xf32>
    %134 = arith.addf %131, %133 : vector<8x32xf32>
    %135 = math.tanh %134 : vector<8x32xf32>
    %cst_34 = arith.constant 1.000000e+00 : f32
    %136 = vector.broadcast %cst_34 : f32 to vector<8x32xf32>
    %137 = arith.subf %136, %130 : vector<8x32xf32>
    %138 = arith.mulf %137, %135 : vector<8x32xf32>
    %139 = arith.mulf %130, %77 : vector<8x32xf32>
    %140 = arith.addf %138, %139 : vector<8x32xf32>
    %141 = tpu.concatenate %49, %140 in 1 : vector<8x32xf32>, vector<8x32xf32> -> vector<8x64xf32>
    %142 = tpu.concatenate %112, %77 in 1 : vector<8x32xf32>, vector<8x32xf32> -> vector<8x64xf32>
    %143 = tpu.concatenate %141, %142 in 0 : vector<8x64xf32>, vector<8x64xf32> -> vector<16x64xf32>
    %144 = arith.truncf %143 : vector<16x64xf32> to vector<16x64xbf16>
    %c0_35 = arith.constant 0 : index
    %c0_36 = arith.constant 0 : index
    %145 = vector.load %arg8[%c0_35, %c0_36] : memref<64x192xbf16, #tpu.memory_space<vmem>>, vector<64x192xbf16>
    %cst_37 = arith.constant dense<0.000000e+00> : vector<16x192xf32>
    %146 = tpu.matmul %144, %145, %cst_37 {dimension_numbers = #tpu.dot_dimension_numbers<[1], [0], [0], [1], [0, 0, 1, 1], [], []>} : vector<16x64xbf16>, vector<64x192xbf16>, vector<16x192xf32> -> vector<16x192xf32>
    %c0_38 = arith.constant 0 : index
    %c0_39 = arith.constant 0 : index
    %147 = vector.load %arg9[%c0_38, %c0_39] : memref<1x192xf32, #tpu.memory_space<vmem>>, vector<1x192xf32>
    %148 = vector.broadcast %147 : vector<1x192xf32> to vector<16x192xf32>
    %149 = arith.addf %146, %148 : vector<16x192xf32>
    %cst_40 = arith.constant 0.000000e+00 : f32
    %150 = vector.broadcast %cst_40 : f32 to vector<8x32xf32>
    %cst_41 = arith.constant 0.000000e+00 : f32
    %151 = vector.broadcast %cst_41 : f32 to vector<8x32xf32>
    %152 = tpu.concatenate %150, %151 in 1 : vector<8x32xf32>, vector<8x32xf32> -> vector<8x64xf32>
    %153 = arith.truncf %152 : vector<8x64xf32> to vector<8x64xbf16>
    %c0_42 = arith.constant 0 : index
    %c0_43 = arith.constant 0 : index
    %154 = vector.load %arg10[%c0_42, %c0_43] : memref<64x192xbf16, #tpu.memory_space<vmem>>, vector<64x192xbf16>
    %cst_44 = arith.constant dense<0.000000e+00> : vector<8x192xf32>
    %155 = tpu.matmul %153, %154, %cst_44 {dimension_numbers = #tpu.dot_dimension_numbers<[1], [0], [0], [1], [0, 0, 1, 1], [], []>} : vector<8x64xbf16>, vector<64x192xbf16>, vector<8x192xf32> -> vector<8x192xf32>
    %c0_45 = arith.constant 0 : index
    %c0_46 = arith.constant 0 : index
    %156 = vector.load %arg11[%c0_45, %c0_46] : memref<1x192xf32, #tpu.memory_space<vmem>>, vector<1x192xf32>
    %157 = vector.broadcast %156 : vector<1x192xf32> to vector<8x192xf32>
    %158 = arith.addf %155, %157 : vector<8x192xf32>
    %159 = vector.extract_strided_slice %149 {offsets = [0, 0], sizes = [8, 96], strides = [1, 1]} : vector<16x192xf32> to vector<8x96xf32>
    %160 = vector.extract_strided_slice %158 {offsets = [0, 0], sizes = [8, 96], strides = [1, 1]} : vector<8x192xf32> to vector<8x96xf32>
    %161 = vector.extract_strided_slice %159 {offsets = [0, 0], sizes = [8, 32], strides = [1, 1]} : vector<8x96xf32> to vector<8x32xf32>
    %162 = vector.extract_strided_slice %160 {offsets = [0, 0], sizes = [8, 32], strides = [1, 1]} : vector<8x96xf32> to vector<8x32xf32>
    %163 = arith.addf %161, %162 : vector<8x32xf32>
    %164 = arith.negf %163 : vector<8x32xf32>
    %165 = math.exp %164 : vector<8x32xf32>
    %cst_47 = arith.constant 1.000000e+00 : f32
    %166 = vector.broadcast %cst_47 : f32 to vector<8x32xf32>
    %167 = arith.addf %166, %165 : vector<8x32xf32>
    %168 = arith.divf %166, %167 : vector<8x32xf32>
    %169 = vector.extract_strided_slice %159 {offsets = [0, 32], sizes = [8, 32], strides = [1, 1]} : vector<8x96xf32> to vector<8x32xf32>
    %170 = vector.extract_strided_slice %160 {offsets = [0, 32], sizes = [8, 32], strides = [1, 1]} : vector<8x96xf32> to vector<8x32xf32>
    %171 = arith.addf %169, %170 : vector<8x32xf32>
    %172 = arith.negf %171 : vector<8x32xf32>
    %173 = math.exp %172 : vector<8x32xf32>
    %cst_48 = arith.constant 1.000000e+00 : f32
    %174 = vector.broadcast %cst_48 : f32 to vector<8x32xf32>
    %175 = arith.addf %174, %173 : vector<8x32xf32>
    %176 = arith.divf %174, %175 : vector<8x32xf32>
    %177 = vector.extract_strided_slice %159 {offsets = [0, 64], sizes = [8, 32], strides = [1, 1]} : vector<8x96xf32> to vector<8x32xf32>
    %178 = vector.extract_strided_slice %160 {offsets = [0, 64], sizes = [8, 32], strides = [1, 1]} : vector<8x96xf32> to vector<8x32xf32>
    %179 = arith.mulf %168, %178 : vector<8x32xf32>
    %180 = arith.addf %177, %179 : vector<8x32xf32>
    %181 = math.tanh %180 : vector<8x32xf32>
    %cst_49 = arith.constant 1.000000e+00 : f32
    %182 = vector.broadcast %cst_49 : f32 to vector<8x32xf32>
    %183 = arith.subf %182, %176 : vector<8x32xf32>
    %184 = arith.mulf %183, %181 : vector<8x32xf32>
    %185 = arith.mulf %176, %150 : vector<8x32xf32>
    %186 = arith.addf %184, %185 : vector<8x32xf32>
    %187 = vector.extract_strided_slice %149 {offsets = [8, 96], sizes = [8, 96], strides = [1, 1]} : vector<16x192xf32> to vector<8x96xf32>
    %188 = vector.extract_strided_slice %158 {offsets = [0, 96], sizes = [8, 96], strides = [1, 1]} : vector<8x192xf32> to vector<8x96xf32>
    %189 = vector.extract_strided_slice %187 {offsets = [0, 0], sizes = [8, 32], strides = [1, 1]} : vector<8x96xf32> to vector<8x32xf32>
    %190 = vector.extract_strided_slice %188 {offsets = [0, 0], sizes = [8, 32], strides = [1, 1]} : vector<8x96xf32> to vector<8x32xf32>
    %191 = arith.addf %189, %190 : vector<8x32xf32>
    %192 = arith.negf %191 : vector<8x32xf32>
    %193 = math.exp %192 : vector<8x32xf32>
    %cst_50 = arith.constant 1.000000e+00 : f32
    %194 = vector.broadcast %cst_50 : f32 to vector<8x32xf32>
    %195 = arith.addf %194, %193 : vector<8x32xf32>
    %196 = arith.divf %194, %195 : vector<8x32xf32>
    %197 = vector.extract_strided_slice %187 {offsets = [0, 32], sizes = [8, 32], strides = [1, 1]} : vector<8x96xf32> to vector<8x32xf32>
    %198 = vector.extract_strided_slice %188 {offsets = [0, 32], sizes = [8, 32], strides = [1, 1]} : vector<8x96xf32> to vector<8x32xf32>
    %199 = arith.addf %197, %198 : vector<8x32xf32>
    %200 = arith.negf %199 : vector<8x32xf32>
    %201 = math.exp %200 : vector<8x32xf32>
    %cst_51 = arith.constant 1.000000e+00 : f32
    %202 = vector.broadcast %cst_51 : f32 to vector<8x32xf32>
    %203 = arith.addf %202, %201 : vector<8x32xf32>
    %204 = arith.divf %202, %203 : vector<8x32xf32>
    %205 = vector.extract_strided_slice %187 {offsets = [0, 64], sizes = [8, 32], strides = [1, 1]} : vector<8x96xf32> to vector<8x32xf32>
    %206 = vector.extract_strided_slice %188 {offsets = [0, 64], sizes = [8, 32], strides = [1, 1]} : vector<8x96xf32> to vector<8x32xf32>
    %207 = arith.mulf %196, %206 : vector<8x32xf32>
    %208 = arith.addf %205, %207 : vector<8x32xf32>
    %209 = math.tanh %208 : vector<8x32xf32>
    %cst_52 = arith.constant 1.000000e+00 : f32
    %210 = vector.broadcast %cst_52 : f32 to vector<8x32xf32>
    %211 = arith.subf %210, %204 : vector<8x32xf32>
    %212 = arith.mulf %211, %209 : vector<8x32xf32>
    %213 = arith.mulf %204, %151 : vector<8x32xf32>
    %214 = arith.addf %212, %213 : vector<8x32xf32>
    %215 = tpu.concatenate %186, %214 in 1 : vector<8x32xf32>, vector<8x32xf32> -> vector<8x64xf32>
    %216 = arith.truncf %215 : vector<8x64xf32> to vector<8x64xbf16>
    %c0_53 = arith.constant 0 : index
    %c0_54 = arith.constant 0 : index
    %217 = vector.load %arg10[%c0_53, %c0_54] : memref<64x192xbf16, #tpu.memory_space<vmem>>, vector<64x192xbf16>
    %cst_55 = arith.constant dense<0.000000e+00> : vector<8x192xf32>
    %218 = tpu.matmul %216, %217, %cst_55 {dimension_numbers = #tpu.dot_dimension_numbers<[1], [0], [0], [1], [0, 0, 1, 1], [], []>} : vector<8x64xbf16>, vector<64x192xbf16>, vector<8x192xf32> -> vector<8x192xf32>
    %c0_56 = arith.constant 0 : index
    %c0_57 = arith.constant 0 : index
    %219 = vector.load %arg11[%c0_56, %c0_57] : memref<1x192xf32, #tpu.memory_space<vmem>>, vector<1x192xf32>
    %220 = vector.broadcast %219 : vector<1x192xf32> to vector<8x192xf32>
    %221 = arith.addf %218, %220 : vector<8x192xf32>
    %222 = vector.extract_strided_slice %149 {offsets = [8, 0], sizes = [8, 96], strides = [1, 1]} : vector<16x192xf32> to vector<8x96xf32>
    %223 = vector.extract_strided_slice %221 {offsets = [0, 0], sizes = [8, 96], strides = [1, 1]} : vector<8x192xf32> to vector<8x96xf32>
    %224 = vector.extract_strided_slice %222 {offsets = [0, 0], sizes = [8, 32], strides = [1, 1]} : vector<8x96xf32> to vector<8x32xf32>
    %225 = vector.extract_strided_slice %223 {offsets = [0, 0], sizes = [8, 32], strides = [1, 1]} : vector<8x96xf32> to vector<8x32xf32>
    %226 = arith.addf %224, %225 : vector<8x32xf32>
    %227 = arith.negf %226 : vector<8x32xf32>
    %228 = math.exp %227 : vector<8x32xf32>
    %cst_58 = arith.constant 1.000000e+00 : f32
    %229 = vector.broadcast %cst_58 : f32 to vector<8x32xf32>
    %230 = arith.addf %229, %228 : vector<8x32xf32>
    %231 = arith.divf %229, %230 : vector<8x32xf32>
    %232 = vector.extract_strided_slice %222 {offsets = [0, 32], sizes = [8, 32], strides = [1, 1]} : vector<8x96xf32> to vector<8x32xf32>
    %233 = vector.extract_strided_slice %223 {offsets = [0, 32], sizes = [8, 32], strides = [1, 1]} : vector<8x96xf32> to vector<8x32xf32>
    %234 = arith.addf %232, %233 : vector<8x32xf32>
    %235 = arith.negf %234 : vector<8x32xf32>
    %236 = math.exp %235 : vector<8x32xf32>
    %cst_59 = arith.constant 1.000000e+00 : f32
    %237 = vector.broadcast %cst_59 : f32 to vector<8x32xf32>
    %238 = arith.addf %237, %236 : vector<8x32xf32>
    %239 = arith.divf %237, %238 : vector<8x32xf32>
    %240 = vector.extract_strided_slice %222 {offsets = [0, 64], sizes = [8, 32], strides = [1, 1]} : vector<8x96xf32> to vector<8x32xf32>
    %241 = vector.extract_strided_slice %223 {offsets = [0, 64], sizes = [8, 32], strides = [1, 1]} : vector<8x96xf32> to vector<8x32xf32>
    %242 = arith.mulf %231, %241 : vector<8x32xf32>
    %243 = arith.addf %240, %242 : vector<8x32xf32>
    %244 = math.tanh %243 : vector<8x32xf32>
    %cst_60 = arith.constant 1.000000e+00 : f32
    %245 = vector.broadcast %cst_60 : f32 to vector<8x32xf32>
    %246 = arith.subf %245, %239 : vector<8x32xf32>
    %247 = arith.mulf %246, %244 : vector<8x32xf32>
    %248 = arith.mulf %239, %186 : vector<8x32xf32>
    %249 = arith.addf %247, %248 : vector<8x32xf32>
    %250 = vector.extract_strided_slice %149 {offsets = [0, 96], sizes = [8, 96], strides = [1, 1]} : vector<16x192xf32> to vector<8x96xf32>
    %251 = vector.extract_strided_slice %221 {offsets = [0, 96], sizes = [8, 96], strides = [1, 1]} : vector<8x192xf32> to vector<8x96xf32>
    %252 = vector.extract_strided_slice %250 {offsets = [0, 0], sizes = [8, 32], strides = [1, 1]} : vector<8x96xf32> to vector<8x32xf32>
    %253 = vector.extract_strided_slice %251 {offsets = [0, 0], sizes = [8, 32], strides = [1, 1]} : vector<8x96xf32> to vector<8x32xf32>
    %254 = arith.addf %252, %253 : vector<8x32xf32>
    %255 = arith.negf %254 : vector<8x32xf32>
    %256 = math.exp %255 : vector<8x32xf32>
    %cst_61 = arith.constant 1.000000e+00 : f32
    %257 = vector.broadcast %cst_61 : f32 to vector<8x32xf32>
    %258 = arith.addf %257, %256 : vector<8x32xf32>
    %259 = arith.divf %257, %258 : vector<8x32xf32>
    %260 = vector.extract_strided_slice %250 {offsets = [0, 32], sizes = [8, 32], strides = [1, 1]} : vector<8x96xf32> to vector<8x32xf32>
    %261 = vector.extract_strided_slice %251 {offsets = [0, 32], sizes = [8, 32], strides = [1, 1]} : vector<8x96xf32> to vector<8x32xf32>
    %262 = arith.addf %260, %261 : vector<8x32xf32>
    %263 = arith.negf %262 : vector<8x32xf32>
    %264 = math.exp %263 : vector<8x32xf32>
    %cst_62 = arith.constant 1.000000e+00 : f32
    %265 = vector.broadcast %cst_62 : f32 to vector<8x32xf32>
    %266 = arith.addf %265, %264 : vector<8x32xf32>
    %267 = arith.divf %265, %266 : vector<8x32xf32>
    %268 = vector.extract_strided_slice %250 {offsets = [0, 64], sizes = [8, 32], strides = [1, 1]} : vector<8x96xf32> to vector<8x32xf32>
    %269 = vector.extract_strided_slice %251 {offsets = [0, 64], sizes = [8, 32], strides = [1, 1]} : vector<8x96xf32> to vector<8x32xf32>
    %270 = arith.mulf %259, %269 : vector<8x32xf32>
    %271 = arith.addf %268, %270 : vector<8x32xf32>
    %272 = math.tanh %271 : vector<8x32xf32>
    %cst_63 = arith.constant 1.000000e+00 : f32
    %273 = vector.broadcast %cst_63 : f32 to vector<8x32xf32>
    %274 = arith.subf %273, %267 : vector<8x32xf32>
    %275 = arith.mulf %274, %272 : vector<8x32xf32>
    %276 = arith.mulf %267, %214 : vector<8x32xf32>
    %277 = arith.addf %275, %276 : vector<8x32xf32>
    %278 = tpu.concatenate %186, %277 in 1 : vector<8x32xf32>, vector<8x32xf32> -> vector<8x64xf32>
    %279 = tpu.concatenate %249, %214 in 1 : vector<8x32xf32>, vector<8x32xf32> -> vector<8x64xf32>
    %280 = tpu.concatenate %278, %279 in 0 : vector<8x64xf32>, vector<8x64xf32> -> vector<16x64xf32>
    %281 = arith.truncf %280 : vector<16x64xf32> to vector<16x64xbf16>
    %c0_64 = arith.constant 0 : index
    %c0_65 = arith.constant 0 : index
    %282 = vector.load %arg12[%c0_64, %c0_65] : memref<64x128xbf16, #tpu.memory_space<vmem>>, vector<64x128xbf16>
    %cst_66 = arith.constant dense<0.000000e+00> : vector<16x128xf32>
    %283 = tpu.matmul %281, %282, %cst_66 {dimension_numbers = #tpu.dot_dimension_numbers<[1], [0], [0], [1], [0, 0, 1, 1], [], []>} : vector<16x64xbf16>, vector<64x128xbf16>, vector<16x128xf32> -> vector<16x128xf32>
    %c0_67 = arith.constant 0 : index
    %c0_68 = arith.constant 0 : index
    %284 = vector.load %arg13[%c0_67, %c0_68] : memref<1x128xf32, #tpu.memory_space<vmem>>, vector<1x128xf32>
    %285 = vector.broadcast %284 : vector<1x128xf32> to vector<16x128xf32>
    %286 = arith.addf %283, %285 : vector<16x128xf32>
    %287 = vector.shape_cast %286 : vector<16x128xf32> to vector<2x8x128xf32>
    %c0_69 = arith.constant 0 : index
    %c0_70 = arith.constant 0 : index
    %c0_71 = arith.constant 0 : index
    %288 = vector.load %arg14[%c0_69, %c0_70, %c0_71] : memref<2x8x128xf32, #tpu.memory_space<vmem>>, vector<2x8x128xf32>
    tpu.vector_store %arg14[%c0_69, %c0_70, %c0_71], %287 {strides = array<i32>} : memref<2x8x128xf32, #tpu.memory_space<vmem>>, vector<2x8x128xf32>,
    return
  }
  func.func @transform_0(%arg0: i32) -> (i32, i32, i32) {
    %c0_i32 = arith.constant 0 : i32
    %c0_i32_0 = arith.constant 0 : i32
    %c0_i32_1 = arith.constant 0 : i32
    %c0_i32_2 = arith.constant 0 : i32
    return %c0_i32, %c0_i32_0, %c0_i32_1 : i32, i32, i32
  }
  func.func @transform_1(%arg0: i32) -> (i32, i32) {
    %c0_i32 = arith.constant 0 : i32
    %c0_i32_0 = arith.constant 0 : i32
    %c0_i32_1 = arith.constant 0 : i32
    return %c0_i32, %c0_i32_0 : i32, i32
  }
  func.func @transform_2(%arg0: i32) -> (i32, i32) {
    %c0_i32 = arith.constant 0 : i32
    %c0_i32_0 = arith.constant 0 : i32
    %c0_i32_1 = arith.constant 0 : i32
    return %c0_i32, %c0_i32_0 : i32, i32
  }
  func.func @transform_3(%arg0: i32) -> (i32, i32) {
    %c0_i32 = arith.constant 0 : i32
    %c0_i32_0 = arith.constant 0 : i32
    %c0_i32_1 = arith.constant 0 : i32
    return %c0_i32, %c0_i32_0 : i32, i32
  }
  func.func @transform_4(%arg0: i32) -> (i32, i32) {
    %c0_i32 = arith.constant 0 : i32
    %c0_i32_0 = arith.constant 0 : i32
    %c0_i32_1 = arith.constant 0 : i32
    return %c0_i32, %c0_i32_0 : i32, i32
  }
  func.func @transform_5(%arg0: i32) -> (i32, i32) {
    %c0_i32 = arith.constant 0 : i32
    %c0_i32_0 = arith.constant 0 : i32
    %c0_i32_1 = arith.constant 0 : i32
    return %c0_i32, %c0_i32_0 : i32, i32
  }
  func.func @transform_6(%arg0: i32) -> (i32, i32) {
    %c0_i32 = arith.constant 0 : i32
    %c0_i32_0 = arith.constant 0 : i32
    %c0_i32_1 = arith.constant 0 : i32
    return %c0_i32, %c0_i32_0 : i32, i32
  }
  func.func @transform_7(%arg0: i32) -> (i32, i32) {
    %c0_i32 = arith.constant 0 : i32
    %c0_i32_0 = arith.constant 0 : i32
    %c0_i32_1 = arith.constant 0 : i32
    return %c0_i32, %c0_i32_0 : i32, i32
  }
  func.func @transform_8(%arg0: i32) -> (i32, i32) {
    %c0_i32 = arith.constant 0 : i32
    %c0_i32_0 = arith.constant 0 : i32
    %c0_i32_1 = arith.constant 0 : i32
    return %c0_i32, %c0_i32_0 : i32, i32
  }
  func.func @transform_9(%arg0: i32) -> (i32, i32) {
    %c0_i32 = arith.constant 0 : i32
    %c0_i32_0 = arith.constant 0 : i32
    %c0_i32_1 = arith.constant 0 : i32
    return %c0_i32, %c0_i32_0 : i32, i32
  }
  func.func @transform_10(%arg0: i32) -> (i32, i32) {
    %c0_i32 = arith.constant 0 : i32
    %c0_i32_0 = arith.constant 0 : i32
    %c0_i32_1 = arith.constant 0 : i32
    return %c0_i32, %c0_i32_0 : i32, i32
  }
  func.func @transform_11(%arg0: i32) -> (i32, i32) {
    %c0_i32 = arith.constant 0 : i32
    %c0_i32_0 = arith.constant 0 : i32
    %c0_i32_1 = arith.constant 0 : i32
    return %c0_i32, %c0_i32_0 : i32, i32
  }
  func.func @transform_12(%arg0: i32) -> (i32, i32) {
    %c0_i32 = arith.constant 0 : i32
    %c0_i32_0 = arith.constant 0 : i32
    %c0_i32_1 = arith.constant 0 : i32
    return %c0_i32, %c0_i32_0 : i32, i32
  }
  func.func @transform_13(%arg0: i32) -> (i32, i32, i32) {
    %c0_i32 = arith.constant 0 : i32
    %c0_i32_0 = arith.constant 0 : i32
    %c0_i32_1 = arith.constant 0 : i32
    %c0_i32_2 = arith.constant 0 : i32
    return %c0_i32, %c0_i32_0, %c0_i32_1 : i32, i32, i32
  }
}

</mosaic_0001>

<llo_original>
// kernel: captcha_forward.3
$region0: #{captcha_forward.3}
  #allocation0 [shape = 'u32[]', space=smem, size = 0x4, offset = 0x4, fixed_abs, tag = 'smem constant byte address 0x4 - core index']
  #allocation1 [shape = 'u32[72,128]{1,0:T(1,128)}', space=vmem, size = 0x9000, scoped, tag = 'internal scratch']
  %s0 = inlined_call_operand.vmem [shape: bf16[1152,27], index: 0, kind: input, shape index: {}]
  %s1 = inlined_call_operand.vmem [shape: bf16[1152,27], index: 1, kind: input, shape index: {}]
  %s2 = inlined_call_operand.vmem [shape: bf16[1152,27], index: 2, kind: input, shape index: {}]
  %s3 = inlined_call_operand.vmem [shape: bf16[1152,27], index: 3, kind: input, shape index: {}]
  %s4 = inlined_call_operand.vmem [shape: bf16[27,128], index: 4, kind: input, shape index: {}]
  %s5 = inlined_call_operand.vmem [shape: f32[1,128], index: 5, kind: input, shape index: {}]
  %s6 = inlined_call_operand.vmem [shape: bf16[1152,128], index: 6, kind: output, shape index: {}]
  %s7 = sld [smem:[#allocation0]]
  $region57: #{captcha_forward.3} parent=0
    _
  %s9 = ssub.s32 1, %s7
  %s10 = scalar_select 0, %s9, %s7
  loop: start=0, step=1, limit=4
  $region2: #{captcha_forward.3} parent=0 // loop_pre_header
    _
  $region3: #{captcha_forward.3} parent=0 // loop_header
    %s12 = sphi 0, %s16
    %p13 = scmp.ge.s32.totalorder %s12, 4
    %s22 = sphi 0, %s24
    %s25 = sphi 0, %s22
    %s26 = sphi 0, %s25
    %s42 = sphi 0, %s26
    %s48 = sphi 0, %s50
    %s51 = sphi 0, %s48
    %s52 = sphi 0, %s51
    %s68 = sphi 0, %s52
    %s74 = sphi 0, %s76
    %s77 = sphi 0, %s74
    %s78 = sphi 0, %s77
    %s94 = sphi 0, %s78
    %s100 = sphi 0, %s102
    %s103 = sphi 0, %s100
    %s104 = sphi 0, %s103
    %s120 = sphi 0, %s104
    %s124 = sphi 0, %s124
    %s126 = sphi 0, %s124
    %s127 = sphi 0, %s126
    %s141 = sphi 0, %s127
    %s145 = sphi 0, %s145
    %s147 = sphi 0, %s145
    %s148 = sphi 0, %s147
    %s162 = sphi 0, %s148
    %s168 = sphi 0, %s170
    %s171 = sphi 0, %s168
    %s172 = sphi 0, %s171
    %s188 = sphi 0, %s172
  $region4: #{captcha_forward.3} parent=0 // loop_header_branch
    %15 = sbr.rel (%p13) target = $region8
  $region5: #{captcha_forward.3} parent=0 // loop_body
    %s17 = ssub.s32 %s12, 1
    %s18 = ssub.s32 %s12, 2
    %s19 = sadd.s32 %s12, 1
    %s20 = ssub.s32 %s12, %s19
    %p21 = scmp.eq.s32.totalorder %s20, 0
    %s23 = sadd.s32 %s22, 1
    %s24 = scalar_select %p21, %s22, %s23
    %p27 = pneg %p21
    %p28 = scmp.eq.s32.totalorder %s12, 1
    %p29 = por %p27, %p28
    %p30 = scmp.ne.s32.totalorder %s22, %s25
    %p31 = scmp.eq.s32.totalorder %s12, 0
    %p32 = por %p30, %p31
    %p33 = scmp.ne.s32.totalorder %s22, %s25
    %p34 = scmp.eq.s32.totalorder %s17, 1
    %p35 = por %p33, %p34
    %p36 = scmp.ne.s32.totalorder %s25, %s26
    %p37 = scmp.eq.s32.totalorder %s17, 0
    %p38 = por %p36, %p37
    %p39 = scmp.ne.s32.totalorder %s25, %s26
    %p40 = scmp.eq.s32.totalorder %s18, 1
    %p41 = por %p39, %p40
    %p43 = scmp.ne.s32.totalorder %s26, %s42
    %p44 = scmp.eq.s32.totalorder %s18, 0
    %p45 = por %p43, %p44
    %s46 = ssub.s32 %s12, %s19
    %p47 = scmp.eq.s32.totalorder %s46, 0
    %s49 = sadd.s32 %s48, 1
    %s50 = scalar_select %p47, %s48, %s49
    %p53 = pneg %p47
    %p54 = scmp.eq.s32.totalorder %s12, 1
    %p55 = por %p53, %p54
    %p56 = scmp.ne.s32.totalorder %s48, %s51
    %p57 = scmp.eq.s32.totalorder %s12, 0
    %p58 = por %p56, %p57
    %p59 = scmp.ne.s32.totalorder %s48, %s51
    %p60 = scmp.eq.s32.totalorder %s17, 1
    %p61 = por %p59, %p60
    %p62 = scmp.ne.s32.totalorder %s51, %s52
    %p63 = scmp.eq.s32.totalorder %s17, 0
    %p64 = por %p62, %p63
    %p65 = scmp.ne.s32.totalorder %s51, %s52
    %p66 = scmp.eq.s32.totalorder %s18, 1
    %p67 = por %p65, %p66
    %p69 = scmp.ne.s32.totalorder %s52, %s68
    %p70 = scmp.eq.s32.totalorder %s18, 0
    %p71 = por %p69, %p70
    %s72 = ssub.s32 %s12, %s19
    %p73 = scmp.eq.s32.totalorder %s72, 0
    %s75 = sadd.s32 %s74, 1
    %s76 = scalar_select %p73, %s74, %s75
    %p79 = pneg %p73
    %p80 = scmp.eq.s32.totalorder %s12, 1
    %p81 = por %p79, %p80
    %p82 = scmp.ne.s32.totalorder %s74, %s77
    %p83 = scmp.eq.s32.totalorder %s12, 0
    %p84 = por %p82, %p83
    %p85 = scmp.ne.s32.totalorder %s74, %s77
    %p86 = scmp.eq.s32.totalorder %s17, 1
    %p87 = por %p85, %p86
    %p88 = scmp.ne.s32.totalorder %s77, %s78
    %p89 = scmp.eq.s32.totalorder %s17, 0
    %p90 = por %p88, %p89
    %p91 = scmp.ne.s32.totalorder %s77, %s78
    %p92 = scmp.eq.s32.totalorder %s18, 1
    %p93 = por %p91, %p92
    %p95 = scmp.ne.s32.totalorder %s78, %s94
    %p96 = scmp.eq.s32.totalorder %s18, 0
    %p97 = por %p95, %p96
    %s98 = ssub.s32 %s12, %s19
    %p99 = scmp.eq.s32.totalorder %s98, 0
    %s101 = sadd.s32 %s100, 1
    %s102 = scalar_select %p99, %s100, %s101
    %p105 = pneg %p99
    %p106 = scmp.eq.s32.totalorder %s12, 1
    %p107 = por %p105, %p106
    %p108 = scmp.ne.s32.totalorder %s100, %s103
    %p109 = scmp.eq.s32.totalorder %s12, 0
    %p110 = por %p108, %p109
    %p111 = scmp.ne.s32.totalorder %s100, %s103
    %p112 = scmp.eq.s32.totalorder %s17, 1
    %p113 = por %p111, %p112
    %p114 = scmp.ne.s32.totalorder %s103, %s104
    %p115 = scmp.eq.s32.totalorder %s17, 0
    %p116 = por %p114, %p115
    %p117 = scmp.ne.s32.totalorder %s103, %s104
    %p118 = scmp.eq.s32.totalorder %s18, 1
    %p119 = por %p117, %p118
    %p121 = scmp.ne.s32.totalorder %s104, %s120
    %p122 = scmp.eq.s32.totalorder %s18, 0
    %p123 = por %p121, %p122
    %s125 = sadd.s32 %s124, 1
    %p128 = scmp.eq.s32.totalorder %s12, 1
    %p129 = scmp.ne.s32.totalorder %s124, %s126
    %p130 = scmp.eq.s32.totalorder %s12, 0
    %p131 = por %p129, %p130
    %p132 = scmp.ne.s32.totalorder %s124, %s126
    %p133 = scmp.eq.s32.totalorder %s17, 1
    %p134 = por %p132, %p133
    %p135 = scmp.ne.s32.totalorder %s126, %s127
    %p136 = scmp.eq.s32.totalorder %s17, 0
    %p137 = por %p135, %p136
    %p138 = scmp.ne.s32.totalorder %s126, %s127
    %p139 = scmp.eq.s32.totalorder %s18, 1
    %p140 = por %p138, %p139
    %p142 = scmp.ne.s32.totalorder %s127, %s141
    %p143 = scmp.eq.s32.totalorder %s18, 0
    %p144 = por %p142, %p143
    %s146 = sadd.s32 %s145, 1
    %p149 = scmp.eq.s32.totalorder %s12, 1
    %p150 = scmp.ne.s32.totalorder %s145, %s147
    %p151 = scmp.eq.s32.totalorder %s12, 0
    %p152 = por %p150, %p151
    %p153 = scmp.ne.s32.totalorder %s145, %s147
    %p154 = scmp.eq.s32.totalorder %s17, 1
    %p155 = por %p153, %p154
    %p156 = scmp.ne.s32.totalorder %s147, %s148
    %p157 = scmp.eq.s32.totalorder %s17, 0
    %p158 = por %p156, %p157
    %p159 = scmp.ne.s32.totalorder %s147, %s148
    %p160 = scmp.eq.s32.totalorder %s18, 1
    %p161 = por %p159, %p160
    %p163 = scmp.ne.s32.totalorder %s148, %s162
    %p164 = scmp.eq.s32.totalorder %s18, 0
    %p165 = por %p163, %p164
    %s166 = ssub.s32 %s12, %s19
    %p167 = scmp.eq.s32.totalorder %s166, 0
    %s169 = sadd.s32 %s168, 1
    %s170 = scalar_select %p167, %s168, %s169
    %p173 = pneg %p167
    %p174 = scmp.eq.s32.totalorder %s12, 1
    %p175 = por %p173, %p174
    %p176 = scmp.ne.s32.totalorder %s168, %s171
    %p177 = scmp.eq.s32.totalorder %s12, 0
    %p178 = por %p176, %p177
    %p179 = scmp.ne.s32.totalorder %s168, %s171
    %p180 = scmp.eq.s32.totalorder %s17, 1
    %p181 = por %p179, %p180
    %p182 = scmp.ne.s32.totalorder %s171, %s172
    %p183 = scmp.eq.s32.totalorder %s17, 0
    %p184 = por %p182, %p183
    %p185 = scmp.ne.s32.totalorder %s171, %s172
    %p186 = scmp.eq.s32.totalorder %s18, 1
    %p187 = por %p185, %p186
    %p189 = scmp.ne.s32.totalorder %s172, %s188
    %p190 = scmp.eq.s32.totalorder %s18, 0
    %p191 = por %p189, %p190
    %p192 = scmp.le.s32.totalorder 1, %s12
    %p193 = scmp.lt.s32.totalorder %s12, 3
    %p194 = pnand %p192, %p193
    %p195 = pneg %p194
    // Predicated region
    $region9: #{captcha_forward.3} parent=5 // pred_check
      _
    $region10: #{captcha_forward.3} parent=5 // pred_check_branch
      %197 = sbr.rel (%p194) target = $region12
    $region11: #{captcha_forward.3} parent=5 // pred_region
      %s198 = ssub.s32 %s12, 1
      // Predicated region
      $region13: #{captcha_forward.3} parent=11 // pred_check
        %p199 = pneg %p137
      $region14: #{captcha_forward.3} parent=11 // pred_check_branch
        %201 = sbr.rel (%p199) target = $region16
      $region15: #{captcha_forward.3} parent=11 // pred_region
        _
      $region16: #{captcha_forward.3} parent=11 // pred_fallthru
        _
      // Predicated region
      $region17: #{captcha_forward.3} parent=11 // pred_check
        %p202 = pneg %p158
      $region18: #{captcha_forward.3} parent=11 // pred_check_branch
        %204 = sbr.rel (%p202) target = $region20
      $region19: #{captcha_forward.3} parent=11 // pred_region
        _
      $region20: #{captcha_forward.3} parent=11 // pred_fallthru
        _
    $region12: #{captcha_forward.3} parent=5 // pred_fallthru
      _
    %p205 = scmp.lt.s32.totalorder %s12, 2
    // Predicated region
    $region21: #{captcha_forward.3} parent=5 // pred_check
      %p206 = pneg %p205
    $region22: #{captcha_forward.3} parent=5 // pred_check_branch
      %208 = sbr.rel (%p206) target = $region24
    $region23: #{captcha_forward.3} parent=5 // pred_region
      // Predicated region
      $region25: #{captcha_forward.3} parent=23 // pred_check
        %p209 = pneg %p32
      $region26: #{captcha_forward.3} parent=23 // pred_check_branch
        %211 = sbr.rel (%p209) target = $region28
      $region27: #{captcha_forward.3} parent=23 // pred_region
        %s212 = smul.u32 72, %s12
        %p213 = scmp.lt.s32.totalorder %s212, 143
        %s214 = scalar_select %p213, %s212, 143
        %s215 = smul.addr %s214, 4
        %s216 = scalar_lea.vmem %s0, %s215
        %s217 = smul.u32 72, %s12
      $region28: #{captcha_forward.3} parent=23 // pred_fallthru
        _
      // Predicated region
      $region29: #{captcha_forward.3} parent=23 // pred_check
        %p218 = pneg %p58
      $region30: #{captcha_forward.3} parent=23 // pred_check_branch
        %220 = sbr.rel (%p218) target = $region32
      $region31: #{captcha_forward.3} parent=23 // pred_region
        %s221 = smul.u32 72, %s12
        %p222 = scmp.lt.s32.totalorder %s221, 143
        %s223 = scalar_select %p222, %s221, 143
        %s224 = smul.addr %s223, 4
        %s225 = scalar_lea.vmem %s1, %s224
        %s226 = smul.u32 72, %s12
      $region32: #{captcha_forward.3} parent=23 // pred_fallthru
        _
      // Predicated region
      $region33: #{captcha_forward.3} parent=23 // pred_check
        %p227 = pneg %p84
      $region34: #{captcha_forward.3} parent=23 // pred_check_branch
        %229 = sbr.rel (%p227) target = $region36
      $region35: #{captcha_forward.3} parent=23 // pred_region
        %s230 = smul.u32 72, %s12
        %p231 = scmp.lt.s32.totalorder %s230, 143
        %s232 = scalar_select %p231, %s230, 143
        %s233 = smul.addr %s232, 4
        %s234 = scalar_lea.vmem %s2, %s233
        %s235 = smul.u32 72, %s12
      $region36: #{captcha_forward.3} parent=23 // pred_fallthru
        _
      // Predicated region
      $region37: #{captcha_forward.3} parent=23 // pred_check
        %p236 = pneg %p110
      $region38: #{captcha_forward.3} parent=23 // pred_check_branch
        %238 = sbr.rel (%p236) target = $region40
      $region39: #{captcha_forward.3} parent=23 // pred_region
        %s239 = smul.u32 72, %s12
        %p240 = scmp.lt.s32.totalorder %s239, 143
        %s241 = scalar_select %p240, %s239, 143
        %s242 = smul.addr %s241, 4
        %s243 = scalar_lea.vmem %s3, %s242
        %s244 = smul.u32 72, %s12
      $region40: #{captcha_forward.3} parent=23 // pred_fallthru
        _
    $region24: #{captcha_forward.3} parent=5 // pred_fallthru
      _
    %p245 = scmp.le.s32.totalorder 1, %s12
    %p246 = scmp.lt.s32.totalorder %s12, 3
    %p247 = pnand %p245, %p246
    %p248 = pneg %p247
    // Predicated region
    $region41: #{captcha_forward.3} parent=5 // pred_check
      _
    $region42: #{captcha_forward.3} parent=5 // pred_check_branch
      %250 = sbr.rel (%p247) target = $region44
    $region43: #{captcha_forward.3} parent=5 // pred_region
      %s251 = ssub.s32 %s12, 1
      %s252 = smul.u32 72, %s17
      %p253 = scmp.lt.s32.totalorder %s252, 143
      %s254 = scalar_select %p253, %s252, 143
      %s255 = smul.addr %s254, 4
      %s256 = scalar_lea.vmem %s0, %s255
      %p257 = pneg %p38
      %p258 = pneg %p35
      %s259 = smul.u32 72, %s17
      %p260 = scmp.lt.s32.totalorder %s259, 143
      %s261 = scalar_select %p260, %s259, 143
      %s262 = smul.addr %s261, 4
      %s263 = scalar_lea.vmem %s1, %s262
      %p264 = pneg %p64
      %p265 = pneg %p61
      %s266 = smul.u32 72, %s17
      %p267 = scmp.lt.s32.totalorder %s266, 143
      %s268 = scalar_select %p267, %s266, 143
      %s269 = smul.addr %s268, 4
      %s270 = scalar_lea.vmem %s2, %s269
      %p271 = pneg %p90
      %p272 = pneg %p87
      %s273 = smul.u32 72, %s17
      %p274 = scmp.lt.s32.totalorder %s273, 143
      %s275 = scalar_select %p274, %s273, 143
      %s276 = smul.addr %s275, 4
      %s277 = scalar_lea.vmem %s3, %s276
      %p278 = pneg %p116
      %p279 = pneg %p113
      %p280 = pneg %p137
      %p281 = pneg %p134
      %p282 = pneg %p158
      %p283 = pneg %p155
      %p284 = pneg %p184
      %p285 = pneg %p181
      %s286 = smul.u32 72, %s17
      %p287 = scmp.lt.s32.totalorder %s286, 143
      %s288 = scalar_select %p287, %s286, 143
      %s289 = smul.addr %s288, 4
      %s290 = scalar_lea.vmem %s6, %s289
      %s291 = smul.u32 72, %s17
      %p292 = scmp.lt.s32.totalorder %s291, 143
      %s293 = scalar_select %p292, %s291, 143
      %s294 = smul.addr %s293, 4
      %s295 = scalar_lea.vmem %s0, %s294
      %s296 = smul.u32 72, %s17
      %s297 = smul.u32 72, %s17
      %p298 = scmp.lt.s32.totalorder %s297, 143
      %s299 = scalar_select %p298, %s297, 143
      %s300 = smul.addr %s299, 4
      %s301 = scalar_lea.vmem %s1, %s300
      %s302 = smul.u32 72, %s17
      %s303 = smul.u32 72, %s17
      %p304 = scmp.lt.s32.totalorder %s303, 143
      %s305 = scalar_select %p304, %s303, 143
      %s306 = smul.addr %s305, 4
      %s307 = scalar_lea.vmem %s2, %s306
      %s308 = smul.u32 72, %s17
      %s309 = smul.u32 72, %s17
      %p310 = scmp.lt.s32.totalorder %s309, 143
      %s311 = scalar_select %p310, %s309, 143
      %s312 = smul.addr %s311, 4
      %s313 = scalar_lea.vmem %s3, %s312
      %s314 = smul.u32 72, %s17
      %s315 = smul.u32 72, %s17
      %p316 = scmp.lt.s32.totalorder %s315, 143
      %s317 = scalar_select %p316, %s315, 143
      %s318 = smul.addr %s317, 4
      %s319 = scalar_lea.vmem %s6, %s318
      %s320 = smul.u32 72, %s17
      %v322 = vld [vmem:[%s4] sm:$0xf]
      %v323 = vld [vmem:[%s4 + $0x4] sm:$0xf]
      %v324 = vld [vmem:[%s4 + $0x8] sm:$0xf]
      %v325 = vld [vmem:[%s4 + $0xc] sm:$0x3]
      %v326 = vld [vmem:[%s295] sm:$0xf]
      %v327 = vld [vmem:[%s295 + $0x4] sm:$0xf]
      %v328 = vld [vmem:[%s295 + $0x8] sm:$0xf]
      %v329 = vld [vmem:[%s295 + $0xc] sm:$0xf]
      %v330 = vld [vmem:[%s295 + $0x10] sm:$0xf]
      %v331 = vld [vmem:[%s295 + $0x14] sm:$0xf]
      %v332 = vld [vmem:[%s295 + $0x18] sm:$0xf]
      %v333 = vld [vmem:[%s295 + $0x1c] sm:$0xf]
      %v334 = vld [vmem:[%s295 + $0x20] sm:$0xf]
      %v335 = vld [vmem:[%s295 + $0x24] sm:$0xf]
      %v336 = vld [vmem:[%s295 + $0x28] sm:$0xf]
      %v337 = vld [vmem:[%s295 + $0x2c] sm:$0xf]
      %v338 = vld [vmem:[%s295 + $0x30] sm:$0xf]
      %v339 = vld [vmem:[%s295 + $0x34] sm:$0xf]
      %v340 = vld [vmem:[%s295 + $0x38] sm:$0xf]
      %v341 = vld [vmem:[%s295 + $0x3c] sm:$0xf]
      %v342 = vld [vmem:[%s295 + $0x40] sm:$0xf]
      %v343 = vld [vmem:[%s295 + $0x44] sm:$0xf]
      %v344 = vld [vmem:[%s295 + $0x48] sm:$0xf]
      %v345 = vld [vmem:[%s295 + $0x4c] sm:$0xf]
      %v346 = vld [vmem:[%s295 + $0x50] sm:$0xf]
      %v347 = vld [vmem:[%s295 + $0x54] sm:$0xf]
      %v348 = vld [vmem:[%s295 + $0x58] sm:$0xf]
      %v349 = vld [vmem:[%s295 + $0x5c] sm:$0xf]
      %v350 = vld [vmem:[%s295 + $0x60] sm:$0xf]
      %v351 = vld [vmem:[%s295 + $0x64] sm:$0xf]
      %v352 = vld [vmem:[%s295 + $0x68] sm:$0xf]
      %v353 = vld [vmem:[%s295 + $0x6c] sm:$0xf]
      %v354 = vld [vmem:[%s295 + $0x70] sm:$0xf]
      %v355 = vld [vmem:[%s295 + $0x74] sm:$0xf]
      %v356 = vld [vmem:[%s295 + $0x78] sm:$0xf]
      %v357 = vld [vmem:[%s295 + $0x7c] sm:$0xf]
      %v358 = vld [vmem:[%s295 + $0x80] sm:$0xf]
      %v359 = vld [vmem:[%s295 + $0x84] sm:$0xf]
      %v360 = vld [vmem:[%s295 + $0x88] sm:$0xf]
      %v361 = vld [vmem:[%s295 + $0x8c] sm:$0xf]
      %v362 = vld [vmem:[%s295 + $0x90] sm:$0xf]
      %v363 = vld [vmem:[%s295 + $0x94] sm:$0xf]
      %v364 = vld [vmem:[%s295 + $0x98] sm:$0xf]
      %v365 = vld [vmem:[%s295 + $0x9c] sm:$0xf]
      %v366 = vld [vmem:[%s295 + $0xa0] sm:$0xf]
      %v367 = vld [vmem:[%s295 + $0xa4] sm:$0xf]
      %v368 = vld [vmem:[%s295 + $0xa8] sm:$0xf]
      %v369 = vld [vmem:[%s295 + $0xac] sm:$0xf]
      %v370 = vld [vmem:[%s295 + $0xb0] sm:$0xf]
      %v371 = vld [vmem:[%s295 + $0xb4] sm:$0xf]
      %v372 = vld [vmem:[%s295 + $0xb8] sm:$0xf]
      %v373 = vld [vmem:[%s295 + $0xbc] sm:$0xf]
      %v374 = vld [vmem:[%s295 + $0xc0] sm:$0xf]
      %v375 = vld [vmem:[%s295 + $0xc4] sm:$0xf]
      %v376 = vld [vmem:[%s295 + $0xc8] sm:$0xf]
      %v377 = vld [vmem:[%s295 + $0xcc] sm:$0xf]
      %v378 = vld [vmem:[%s295 + $0xd0] sm:$0xf]
      %v379 = vld [vmem:[%s295 + $0xd4] sm:$0xf]
      %v380 = vld [vmem:[%s295 + $0xd8] sm:$0xf]
      %v381 = vld [vmem:[%s295 + $0xdc] sm:$0xf]
      %v382 = vld [vmem:[%s295 + $0xe0] sm:$0xf]
      %v383 = vld [vmem:[%s295 + $0xe4] sm:$0xf]
      %v384 = vld [vmem:[%s295 + $0xe8] sm:$0xf]
      %v385 = vld [vmem:[%s295 + $0xec] sm:$0xf]
      %v386 = vld [vmem:[%s295 + $0xf0] sm:$0xf]
      %v387 = vld [vmem:[%s295 + $0xf4] sm:$0xf]
      %v388 = vld [vmem:[%s295 + $0xf8] sm:$0xf]
      %v389 = vld [vmem:[%s295 + $0xfc] sm:$0xf]
      %v390 = vld [vmem:[%s295 + $0x100] sm:$0xf]
      %v391 = vld [vmem:[%s295 + $0x104] sm:$0xf]
      %v392 = vld [vmem:[%s295 + $0x108] sm:$0xf]
      %v393 = vld [vmem:[%s295 + $0x10c] sm:$0xf]
      %v394 = vld [vmem:[%s295 + $0x110] sm:$0xf]
      %v395 = vld [vmem:[%s295 + $0x114] sm:$0xf]
      %v396 = vld [vmem:[%s295 + $0x118] sm:$0xf]
      %v397 = vld [vmem:[%s295 + $0x11c] sm:$0xf]
      %v470 = vunpack.c.l.b16 %v326
      %v471 = vunpack.c.l.b16 %v327
      %v472 = vunpack.c.l.b16 %v328
      %v473 = vunpack.c.l.b16 %v329
      %v474 = vunpack.c.l.b16 %v330
      %v475 = vunpack.c.l.b16 %v331
      %v476 = vunpack.c.l.b16 %v332
      %v477 = vunpack.c.l.b16 %v333
      %v478 = vunpack.c.l.b16 %v334
      %v479 = vunpack.c.l.b16 %v335
      %v480 = vunpack.c.l.b16 %v336
      %v481 = vunpack.c.l.b16 %v337
      %v482 = vunpack.c.l.b16 %v338
      %v483 = vunpack.c.l.b16 %v339
      %v484 = vunpack.c.l.b16 %v340
      %v485 = vunpack.c.l.b16 %v341
      %v486 = vunpack.c.l.b16 %v342
      %v487 = vunpack.c.l.b16 %v343
      %v488 = vunpack.c.l.b16 %v344
      %v489 = vunpack.c.l.b16 %v345
      %v490 = vunpack.c.l.b16 %v346
      %v491 = vunpack.c.l.b16 %v347
      %v492 = vunpack.c.l.b16 %v348
      %v493 = vunpack.c.l.b16 %v349
      %v494 = vunpack.c.l.b16 %v350
      %v495 = vunpack.c.l.b16 %v351
      %v496 = vunpack.c.l.b16 %v352
      %v497 = vunpack.c.l.b16 %v353
      %v498 = vunpack.c.l.b16 %v354
      %v499 = vunpack.c.l.b16 %v355
      %v500 = vunpack.c.l.b16 %v356
      %v501 = vunpack.c.l.b16 %v357
      %v502 = vunpack.c.l.b16 %v358
      %v503 = vunpack.c.l.b16 %v359
      %v504 = vunpack.c.l.b16 %v360
      %v505 = vunpack.c.l.b16 %v361
      %v506 = vunpack.c.l.b16 %v362
      %v507 = vunpack.c.l.b16 %v363
      %v508 = vunpack.c.l.b16 %v364
      %v509 = vunpack.c.l.b16 %v365
      %v510 = vunpack.c.l.b16 %v366
      %v511 = vunpack.c.l.b16 %v367
      %v512 = vunpack.c.l.b16 %v368
      %v513 = vunpack.c.l.b16 %v369
      %v514 = vunpack.c.l.b16 %v370
      %v515 = vunpack.c.l.b16 %v371
      %v516 = vunpack.c.l.b16 %v372
      %v517 = vunpack.c.l.b16 %v373
      %v518 = vunpack.c.l.b16 %v374
      %v519 = vunpack.c.l.b16 %v375
      %v520 = vunpack.c.l.b16 %v376
      %v521 = vunpack.c.l.b16 %v377
      %v522 = vunpack.c.l.b16 %v378
      %v523 = vunpack.c.l.b16 %v379
      %v524 = vunpack.c.l.b16 %v380
      %v525 = vunpack.c.l.b16 %v381
      %v526 = vunpack.c.l.b16 %v382
      %v527 = vunpack.c.l.b16 %v383
      %v528 = vunpack.c.l.b16 %v384
      %v529 = vunpack.c.l.b16 %v385
      %v530 = vunpack.c.l.b16 %v386
      %v531 = vunpack.c.l.b16 %v387
      %v532 = vunpack.c.l.b16 %v388
      %v533 = vunpack.c.l.b16 %v389
      %v534 = vunpack.c.l.b16 %v390
      %v535 = vunpack.c.l.b16 %v391
      %v536 = vunpack.c.l.b16 %v392
      %v537 = vunpack.c.l.b16 %v393
      %v538 = vunpack.c.l.b16 %v394
      %v539 = vunpack.c.l.b16 %v395
      %v540 = vunpack.c.l.b16 %v396
      %v541 = vunpack.c.l.b16 %v397
      %v542 = vpack.c.b16 %v471, %v470
      %v543 = vpack.c.b16 %v473, %v472
      %v544 = vpack.c.b16 %v475, %v474
      %v545 = vpack.c.b16 %v477, %v476
      %v546 = vpack.c.b16 %v479, %v478
      %v547 = vpack.c.b16 %v481, %v480
      %v548 = vpack.c.b16 %v483, %v482
      %v549 = vpack.c.b16 %v485, %v484
      %v550 = vpack.c.b16 %v487, %v486
      %v551 = vpack.c.b16 %v489, %v488
      %v552 = vpack.c.b16 %v491, %v490
      %v553 = vpack.c.b16 %v493, %v492
      %v554 = vpack.c.b16 %v495, %v494
      %v555 = vpack.c.b16 %v497, %v496
      %v556 = vpack.c.b16 %v499, %v498
      %v557 = vpack.c.b16 %v501, %v500
      %v558 = vpack.c.b16 %v503, %v502
      %v559 = vpack.c.b16 %v505, %v504
      %v560 = vpack.c.b16 %v507, %v506
      %v561 = vpack.c.b16 %v509, %v508
      %v562 = vpack.c.b16 %v511, %v510
      %v563 = vpack.c.b16 %v513, %v512
      %v564 = vpack.c.b16 %v515, %v514
      %v565 = vpack.c.b16 %v517, %v516
      %v566 = vpack.c.b16 %v519, %v518
      %v567 = vpack.c.b16 %v521, %v520
      %v568 = vpack.c.b16 %v523, %v522
      %v569 = vpack.c.b16 %v525, %v524
      %v570 = vpack.c.b16 %v527, %v526
      %v571 = vpack.c.b16 %v529, %v528
      %v572 = vpack.c.b16 %v531, %v530
      %v573 = vpack.c.b16 %v533, %v532
      %v574 = vpack.c.b16 %v535, %v534
      %v575 = vpack.c.b16 %v537, %v536
      %v576 = vpack.c.b16 %v539, %v538
      %v577 = vpack.c.b16 %v541, %v540
      %v582 = vunpack.c.l.b16 %v322
      %v583 = vunpack.c.l.b16 %v323
      %v584 = vunpack.c.l.b16 %v324
      %v585 = vunpack.c.l.b16 %v325
      %v586 = vpack.c.b16 %v583, %v582
      %v587 = vpack.c.b16 %v585, %v584
      %vm589 = vcmask 220160
      %v591 = vsel %vm589, %v542, 0
      %v594 = vsel %vm589, %v543, 0
      %v597 = vsel %vm589, %v544, 0
      %v600 = vsel %vm589, %v545, 0
      %v603 = vsel %vm589, %v546, 0
      %v606 = vsel %vm589, %v547, 0
      %v609 = vsel %vm589, %v548, 0
      %v612 = vsel %vm589, %v549, 0
      %v615 = vsel %vm589, %v550, 0
      %v618 = vsel %vm589, %v551, 0
      %v621 = vsel %vm589, %v552, 0
      %v624 = vsel %vm589, %v553, 0
      %v627 = vsel %vm589, %v554, 0
      %v630 = vsel %vm589, %v555, 0
      %v633 = vsel %vm589, %v556, 0
      %v636 = vsel %vm589, %v557, 0
      %v639 = vsel %vm589, %v558, 0
      %v642 = vsel %vm589, %v559, 0
      %v645 = vsel %vm589, %v560, 0
      %v648 = vsel %vm589, %v561, 0
      %v651 = vsel %vm589, %v562, 0
      %v654 = vsel %vm589, %v563, 0
      %v657 = vsel %vm589, %v564, 0
      %v660 = vsel %vm589, %v565, 0
      %v663 = vsel %vm589, %v566, 0
      %v666 = vsel %vm589, %v567, 0
      %v669 = vsel %vm589, %v568, 0
      %v672 = vsel %vm589, %v569, 0
      %v675 = vsel %vm589, %v570, 0
      %v678 = vsel %vm589, %v571, 0
      %v681 = vsel %vm589, %v572, 0
      %v684 = vsel %vm589, %v573, 0
      %v687 = vsel %vm589, %v574, 0
      %v690 = vsel %vm589, %v575, 0
      %v693 = vsel %vm589, %v576, 0
      %v696 = vsel %vm589, %v577, 0
      %vm698 = vcmask 1044480
      %vm699 = vcmask 1045504
      %v700 = vsel %vm698, 4294967295, 65535
      %v701 = vsel %vm699, %v700, 0
      %v703 = vand.u32 %v587, %v701
      %705 = vmatpush.bf16.msra.mxu0 0
      %706 = vmatpush.bf16.msra.mxu0 0
      %707 = vmatpush.bf16.msra.mxu0 0
      %708 = vmatpush.bf16.msra.mxu0 0
      %709 = vmatpush.bf16.msra.mxu0 0
      %710 = vmatpush.bf16.msra.mxu0 0
      %711 = vmatpush.bf16.msra.mxu0 %v703
      %712 = vmatpush.bf16.msra.mxu0 %v586
      %713 = vmatmul.bf16.gmra.mxu0 %v591
      %v714 = vpop.f32.mrf.mxu0
      %v715 = vadd.f32 0.0, %v714
      %v716 = vpop.f32.mrf.mxu0
      %v717 = vadd.f32 0.0, %v716
      %718 = vmatmul.bf16.gmra.mxu0 %v594
      %v719 = vpop.f32.mrf.mxu0
      %v720 = vadd.f32 0.0, %v719
      %v721 = vpop.f32.mrf.mxu0
      %v722 = vadd.f32 0.0, %v721
      %723 = vmatmul.bf16.gmra.mxu0 %v597
      %v724 = vpop.f32.mrf.mxu0
      %v725 = vadd.f32 0.0, %v724
      %v726 = vpop.f32.mrf.mxu0
      %v727 = vadd.f32 0.0, %v726
      %728 = vmatmul.bf16.gmra.mxu0 %v600
      %v729 = vpop.f32.mrf.mxu0
      %v730 = vadd.f32 0.0, %v729
      %v731 = vpop.f32.mrf.mxu0
      %v732 = vadd.f32 0.0, %v731
      %733 = vmatmul.bf16.gmra.mxu0 %v603
      %v734 = vpop.f32.mrf.mxu0
      %v735 = vadd.f32 0.0, %v734
      %v736 = vpop.f32.mrf.mxu0
      %v737 = vadd.f32 0.0, %v736
      %738 = vmatmul.bf16.gmra.mxu0 %v606
      %v739 = vpop.f32.mrf.mxu0
      %v740 = vadd.f32 0.0, %v739
      %v741 = vpop.f32.mrf.mxu0
      %v742 = vadd.f32 0.0, %v741
      %743 = vmatmul.bf16.gmra.mxu0 %v609
      %v744 = vpop.f32.mrf.mxu0
      %v745 = vadd.f32 0.0, %v744
      %v746 = vpop.f32.mrf.mxu0
      %v747 = vadd.f32 0.0, %v746
      %748 = vmatmul.bf16.gmra.mxu0 %v612
      %v749 = vpop.f32.mrf.mxu0
      %v750 = vadd.f32 0.0, %v749
      %v751 = vpop.f32.mrf.mxu0
      %v752 = vadd.f32 0.0, %v751
      %753 = vmatmul.bf16.gmra.mxu0 %v615
      %v754 = vpop.f32.mrf.mxu0
      %v755 = vadd.f32 0.0, %v754
      %v756 = vpop.f32.mrf.mxu0
      %v757 = vadd.f32 0.0, %v756
      %758 = vmatmul.bf16.gmra.mxu0 %v618
      %v759 = vpop.f32.mrf.mxu0
      %v760 = vadd.f32 0.0, %v759
      %v761 = vpop.f32.mrf.mxu0
      %v762 = vadd.f32 0.0, %v761
      %763 = vmatmul.bf16.gmra.mxu0 %v621
      %v764 = vpop.f32.mrf.mxu0
      %v765 = vadd.f32 0.0, %v764
      %v766 = vpop.f32.mrf.mxu0
      %v767 = vadd.f32 0.0, %v766
      %768 = vmatmul.bf16.gmra.mxu0 %v624
      %v769 = vpop.f32.mrf.mxu0
      %v770 = vadd.f32 0.0, %v769
      %v771 = vpop.f32.mrf.mxu0
      %v772 = vadd.f32 0.0, %v771
      %773 = vmatmul.bf16.gmra.mxu0 %v627
      %v774 = vpop.f32.mrf.mxu0
      %v775 = vadd.f32 0.0, %v774
      %v776 = vpop.f32.mrf.mxu0
      %v777 = vadd.f32 0.0, %v776
      %778 = vmatmul.bf16.gmra.mxu0 %v630
      %v779 = vpop.f32.mrf.mxu0
      %v780 = vadd.f32 0.0, %v779
      %v781 = vpop.f32.mrf.mxu0
      %v782 = vadd.f32 0.0, %v781
      %783 = vmatmul.bf16.gmra.mxu0 %v633
      %v784 = vpop.f32.mrf.mxu0
      %v785 = vadd.f32 0.0, %v784
      %v786 = vpop.f32.mrf.mxu0
      %v787 = vadd.f32 0.0, %v786
      %788 = vmatmul.bf16.gmra.mxu0 %v636
      %v789 = vpop.f32.mrf.mxu0
      %v790 = vadd.f32 0.0, %v789
      %v791 = vpop.f32.mrf.mxu0
      %v792 = vadd.f32 0.0, %v791
      %793 = vmatmul.bf16.gmra.mxu0 %v639
      %v794 = vpop.f32.mrf.mxu0
      %v795 = vadd.f32 0.0, %v794
      %v796 = vpop.f32.mrf.mxu0
      %v797 = vadd.f32 0.0, %v796
      %798 = vmatmul.bf16.gmra.mxu0 %v642
      %v799 = vpop.f32.mrf.mxu0
      %v800 = vadd.f32 0.0, %v799
      %v801 = vpop.f32.mrf.mxu0
      %v802 = vadd.f32 0.0, %v801
      %803 = vmatmul.bf16.gmra.mxu0 %v645
      %v804 = vpop.f32.mrf.mxu0
      %v805 = vadd.f32 0.0, %v804
      %v806 = vpop.f32.mrf.mxu0
      %v807 = vadd.f32 0.0, %v806
      %808 = vmatmul.bf16.gmra.mxu0 %v648
      %v809 = vpop.f32.mrf.mxu0
      %v810 = vadd.f32 0.0, %v809
      %v811 = vpop.f32.mrf.mxu0
      %v812 = vadd.f32 0.0, %v811
      %813 = vmatmul.bf16.gmra.mxu0 %v651
      %v814 = vpop.f32.mrf.mxu0
      %v815 = vadd.f32 0.0, %v814
      %v816 = vpop.f32.mrf.mxu0
      %v817 = vadd.f32 0.0, %v816
      %818 = vmatmul.bf16.gmra.mxu0 %v654
      %v819 = vpop.f32.mrf.mxu0
      %v820 = vadd.f32 0.0, %v819
      %v821 = vpop.f32.mrf.mxu0
      %v822 = vadd.f32 0.0, %v821
      %823 = vmatmul.bf16.gmra.mxu0 %v657
      %v824 = vpop.f32.mrf.mxu0
      %v825 = vadd.f32 0.0, %v824
      %v826 = vpop.f32.mrf.mxu0
      %v827 = vadd.f32 0.0, %v826
      %828 = vmatmul.bf16.gmra.mxu0 %v660
      %v829 = vpop.f32.mrf.mxu0
      %v830 = vadd.f32 0.0, %v829
      %v831 = vpop.f32.mrf.mxu0
      %v832 = vadd.f32 0.0, %v831
      %833 = vmatmul.bf16.gmra.mxu0 %v663
      %v834 = vpop.f32.mrf.mxu0
      %v835 = vadd.f32 0.0, %v834
      %v836 = vpop.f32.mrf.mxu0
      %v837 = vadd.f32 0.0, %v836
      %838 = vmatmul.bf16.gmra.mxu0 %v666
      %v839 = vpop.f32.mrf.mxu0
      %v840 = vadd.f32 0.0, %v839
      %v841 = vpop.f32.mrf.mxu0
      %v842 = vadd.f32 0.0, %v841
      %843 = vmatmul.bf16.gmra.mxu0 %v669
      %v844 = vpop.f32.mrf.mxu0
      %v845 = vadd.f32 0.0, %v844
      %v846 = vpop.f32.mrf.mxu0
      %v847 = vadd.f32 0.0, %v846
      %848 = vmatmul.bf16.gmra.mxu0 %v672
      %v849 = vpop.f32.mrf.mxu0
      %v850 = vadd.f32 0.0, %v849
      %v851 = vpop.f32.mrf.mxu0
      %v852 = vadd.f32 0.0, %v851
      %853 = vmatmul.bf16.gmra.mxu0 %v675
      %v854 = vpop.f32.mrf.mxu0
      %v855 = vadd.f32 0.0, %v854
      %v856 = vpop.f32.mrf.mxu0
      %v857 = vadd.f32 0.0, %v856
      %858 = vmatmul.bf16.gmra.mxu0 %v678
      %v859 = vpop.f32.mrf.mxu0
      %v860 = vadd.f32 0.0, %v859
      %v861 = vpop.f32.mrf.mxu0
      %v862 = vadd.f32 0.0, %v861
      %863 = vmatmul.bf16.gmra.mxu0 %v681
      %v864 = vpop.f32.mrf.mxu0
      %v865 = vadd.f32 0.0, %v864
      %v866 = vpop.f32.mrf.mxu0
      %v867 = vadd.f32 0.0, %v866
      %868 = vmatmul.bf16.gmra.mxu0 %v684
      %v869 = vpop.f32.mrf.mxu0
      %v870 = vadd.f32 0.0, %v869
      %v871 = vpop.f32.mrf.mxu0
      %v872 = vadd.f32 0.0, %v871
      %873 = vmatmul.bf16.gmra.mxu0 %v687
      %v874 = vpop.f32.mrf.mxu0
      %v875 = vadd.f32 0.0, %v874
      %v876 = vpop.f32.mrf.mxu0
      %v877 = vadd.f32 0.0, %v876
      %878 = vmatmul.bf16.gmra.mxu0 %v690
      %v879 = vpop.f32.mrf.mxu0
      %v880 = vadd.f32 0.0, %v879
      %v881 = vpop.f32.mrf.mxu0
      %v882 = vadd.f32 0.0, %v881
      %883 = vmatmul.bf16.gmra.mxu0 %v693
      %v884 = vpop.f32.mrf.mxu0
      %v885 = vadd.f32 0.0, %v884
      %v886 = vpop.f32.mrf.mxu0
      %v887 = vadd.f32 0.0, %v886
      %888 = vmatmul.bf16.gmra.mxu0 %v696
      %v889 = vpop.f32.mrf.mxu0
      %v890 = vadd.f32 0.0, %v889
      %v891 = vpop.f32.mrf.mxu0
      %v892 = vadd.f32 0.0, %v891
      %893 = vdwg.mxu0
      %v894 = vld [vmem:[%s301] sm:$0xf]
      %v895 = vld [vmem:[%s301 + $0x4] sm:$0xf]
      %v896 = vld [vmem:[%s301 + $0x8] sm:$0xf]
      %v897 = vld [vmem:[%s301 + $0xc] sm:$0xf]
      %v898 = vld [vmem:[%s301 + $0x10] sm:$0xf]
      %v899 = vld [vmem:[%s301 + $0x14] sm:$0xf]
      %v900 = vld [vmem:[%s301 + $0x18] sm:$0xf]
      %v901 = vld [vmem:[%s301 + $0x1c] sm:$0xf]
      %v902 = vld [vmem:[%s301 + $0x20] sm:$0xf]
      %v903 = vld [vmem:[%s301 + $0x24] sm:$0xf]
      %v904 = vld [vmem:[%s301 + $0x28] sm:$0xf]
      %v905 = vld [vmem:[%s301 + $0x2c] sm:$0xf]
      %v906 = vld [vmem:[%s301 + $0x30] sm:$0xf]
      %v907 = vld [vmem:[%s301 + $0x34] sm:$0xf]
      %v908 = vld [vmem:[%s301 + $0x38] sm:$0xf]
      %v909 = vld [vmem:[%s301 + $0x3c] sm:$0xf]
      %v910 = vld [vmem:[%s301 + $0x40] sm:$0xf]
      %v911 = vld [vmem:[%s301 + $0x44] sm:$0xf]
      %v912 = vld [vmem:[%s301 + $0x48] sm:$0xf]
      %v913 = vld [vmem:[%s301 + $0x4c] sm:$0xf]
      %v914 = vld [vmem:[%s301 + $0x50] sm:$0xf]
      %v915 = vld [vmem:[%s301 + $0x54] sm:$0xf]
      %v916 = vld [vmem:[%s301 + $0x58] sm:$0xf]
      %v917 = vld [vmem:[%s301 + $0x5c] sm:$0xf]
      %v918 = vld [vmem:[%s301 + $0x60] sm:$0xf]
      %v919 = vld [vmem:[%s301 + $0x64] sm:$0xf]
      %v920 = vld [vmem:[%s301 + $0x68] sm:$0xf]
      %v921 = vld [vmem:[%s301 + $0x6c] sm:$0xf]
      %v922 = vld [vmem:[%s301 + $0x70] sm:$0xf]
      %v923 = vld [vmem:[%s301 + $0x74] sm:$0xf]
      %v924 = vld [vmem:[%s301 + $0x78] sm:$0xf]
      %v925 = vld [vmem:[%s301 + $0x7c] sm:$0xf]
      %v926 = vld [vmem:[%s301 + $0x80] sm:$0xf]
      %v927 = vld [vmem:[%s301 + $0x84] sm:$0xf]
      %v928 = vld [vmem:[%s301 + $0x88] sm:$0xf]
      %v929 = vld [vmem:[%s301 + $0x8c] sm:$0xf]
      %v930 = vld [vmem:[%s301 + $0x90] sm:$0xf]
      %v931 = vld [vmem:[%s301 + $0x94] sm:$0xf]
      %v932 = vld [vmem:[%s301 + $0x98] sm:$0xf]
      %v933 = vld [vmem:[%s301 + $0x9c] sm:$0xf]
      %v934 = vld [vmem:[%s301 + $0xa0] sm:$0xf]
      %v935 = vld [vmem:[%s301 + $0xa4] sm:$0xf]
      %v936 = vld [vmem:[%s301 + $0xa8] sm:$0xf]
      %v937 = vld [vmem:[%s301 + $0xac] sm:$0xf]
      %v938 = vld [vmem:[%s301 + $0xb0] sm:$0xf]
      %v939 = vld [vmem:[%s301 + $0xb4] sm:$0xf]
      %v940 = vld [vmem:[%s301 + $0xb8] sm:$0xf]
      %v941 = vld [vmem:[%s301 + $0xbc] sm:$0xf]
      %v942 = vld [vmem:[%s301 + $0xc0] sm:$0xf]
      %v943 = vld [vmem:[%s301 + $0xc4] sm:$0xf]
      %v944 = vld [vmem:[%s301 + $0xc8] sm:$0xf]
      %v945 = vld [vmem:[%s301 + $0xcc] sm:$0xf]
      %v946 = vld [vmem:[%s301 + $0xd0] sm:$0xf]
      %v947 = vld [vmem:[%s301 + $0xd4] sm:$0xf]
      %v948 = vld [vmem:[%s301 + $0xd8] sm:$0xf]
      %v949 = vld [vmem:[%s301 + $0xdc] sm:$0xf]
      %v950 = vld [vmem:[%s301 + $0xe0] sm:$0xf]
      %v951 = vld [vmem:[%s301 + $0xe4] sm:$0xf]
      %v952 = vld [vmem:[%s301 + $0xe8] sm:$0xf]
      %v953 = vld [vmem:[%s301 + $0xec] sm:$0xf]
      %v954 = vld [vmem:[%s301 + $0xf0] sm:$0xf]
      %v955 = vld [vmem:[%s301 + $0xf4] sm:$0xf]
      %v956 = vld [vmem:[%s301 + $0xf8] sm:$0xf]
      %v957 = vld [vmem:[%s301 + $0xfc] sm:$0xf]
      %v958 = vld [vmem:[%s301 + $0x100] sm:$0xf]
      %v959 = vld [vmem:[%s301 + $0x104] sm:$0xf]
      %v960 = vld [vmem:[%s301 + $0x108] sm:$0xf]
      %v961 = vld [vmem:[%s301 + $0x10c] sm:$0xf]
      %v962 = vld [vmem:[%s301 + $0x110] sm:$0xf]
      %v963 = vld [vmem:[%s301 + $0x114] sm:$0xf]
      %v964 = vld [vmem:[%s301 + $0x118] sm:$0xf]
      %v965 = vld [vmem:[%s301 + $0x11c] sm:$0xf]
      %v1038 = vunpack.c.l.b16 %v894
      %v1039 = vunpack.c.l.b16 %v895
      %v1040 = vunpack.c.l.b16 %v896
      %v1041 = vunpack.c.l.b16 %v897
      %v1042 = vunpack.c.l.b16 %v898
      %v1043 = vunpack.c.l.b16 %v899
      %v1044 = vunpack.c.l.b16 %v900
      %v1045 = vunpack.c.l.b16 %v901
      %v1046 = vunpack.c.l.b16 %v902
      %v1047 = vunpack.c.l.b16 %v903
      %v1048 = vunpack.c.l.b16 %v904
      %v1049 = vunpack.c.l.b16 %v905
      %v1050 = vunpack.c.l.b16 %v906
      %v1051 = vunpack.c.l.b16 %v907
      %v1052 = vunpack.c.l.b16 %v908
      %v1053 = vunpack.c.l.b16 %v909
      %v1054 = vunpack.c.l.b16 %v910
      %v1055 = vunpack.c.l.b16 %v911
      %v1056 = vunpack.c.l.b16 %v912
      %v1057 = vunpack.c.l.b16 %v913
      %v1058 = vunpack.c.l.b16 %v914
      %v1059 = vunpack.c.l.b16 %v915
      %v1060 = vunpack.c.l.b16 %v916
      %v1061 = vunpack.c.l.b16 %v917
      %v1062 = vunpack.c.l.b16 %v918
      %v1063 = vunpack.c.l.b16 %v919
      %v1064 = vunpack.c.l.b16 %v920
      %v1065 = vunpack.c.l.b16 %v921
      %v1066 = vunpack.c.l.b16 %v922
      %v1067 = vunpack.c.l.b16 %v923
      %v1068 = vunpack.c.l.b16 %v924
      %v1069 = vunpack.c.l.b16 %v925
      %v1070 = vunpack.c.l.b16 %v926
      %v1071 = vunpack.c.l.b16 %v927
      %v1072 = vunpack.c.l.b16 %v928
      %v1073 = vunpack.c.l.b16 %v929
      %v1074 = vunpack.c.l.b16 %v930
      %v1075 = vunpack.c.l.b16 %v931
      %v1076 = vunpack.c.l.b16 %v932
      %v1077 = vunpack.c.l.b16 %v933
      %v1078 = vunpack.c.l.b16 %v934
      %v1079 = vunpack.c.l.b16 %v935
      %v1080 = vunpack.c.l.b16 %v936
      %v1081 = vunpack.c.l.b16 %v937
      %v1082 = vunpack.c.l.b16 %v938
      %v1083 = vunpack.c.l.b16 %v939
      %v1084 = vunpack.c.l.b16 %v940
      %v1085 = vunpack.c.l.b16 %v941
      %v1086 = vunpack.c.l.b16 %v942
      %v1087 = vunpack.c.l.b16 %v943
      %v1088 = vunpack.c.l.b16 %v944
      %v1089 = vunpack.c.l.b16 %v945
      %v1090 = vunpack.c.l.b16 %v946
      %v1091 = vunpack.c.l.b16 %v947
      %v1092 = vunpack.c.l.b16 %v948
      %v1093 = vunpack.c.l.b16 %v949
      %v1094 = vunpack.c.l.b16 %v950
      %v1095 = vunpack.c.l.b16 %v951
      %v1096 = vunpack.c.l.b16 %v952
      %v1097 = vunpack.c.l.b16 %v953
      %v1098 = vunpack.c.l.b16 %v954
      %v1099 = vunpack.c.l.b16 %v955
      %v1100 = vunpack.c.l.b16 %v956
      %v1101 = vunpack.c.l.b16 %v957
      %v1102 = vunpack.c.l.b16 %v958
      %v1103 = vunpack.c.l.b16 %v959
      %v1104 = vunpack.c.l.b16 %v960
      %v1105 = vunpack.c.l.b16 %v961
      %v1106 = vunpack.c.l.b16 %v962
      %v1107 = vunpack.c.l.b16 %v963
      %v1108 = vunpack.c.l.b16 %v964
      %v1109 = vunpack.c.l.b16 %v965
      %v1110 = vpack.c.b16 %v1039, %v1038
      %v1111 = vpack.c.b16 %v1041, %v1040
      %v1112 = vpack.c.b16 %v1043, %v1042
      %v1113 = vpack.c.b16 %v1045, %v1044
      %v1114 = vpack.c.b16 %v1047, %v1046
      %v1115 = vpack.c.b16 %v1049, %v1048
      %v1116 = vpack.c.b16 %v1051, %v1050
      %v1117 = vpack.c.b16 %v1053, %v1052
      %v1118 = vpack.c.b16 %v1055, %v1054
      %v1119 = vpack.c.b16 %v1057, %v1056
      %v1120 = vpack.c.b16 %v1059, %v1058
      %v1121 = vpack.c.b16 %v1061, %v1060
      %v1122 = vpack.c.b16 %v1063, %v1062
      %v1123 = vpack.c.b16 %v1065, %v1064
      %v1124 = vpack.c.b16 %v1067, %v1066
      %v1125 = vpack.c.b16 %v1069, %v1068
      %v1126 = vpack.c.b16 %v1071, %v1070
      %v1127 = vpack.c.b16 %v1073, %v1072
      %v1128 = vpack.c.b16 %v1075, %v1074
      %v1129 = vpack.c.b16 %v1077, %v1076
      %v1130 = vpack.c.b16 %v1079, %v1078
      %v1131 = vpack.c.b16 %v1081, %v1080
      %v1132 = vpack.c.b16 %v1083, %v1082
      %v1133 = vpack.c.b16 %v1085, %v1084
      %v1134 = vpack.c.b16 %v1087, %v1086
      %v1135 = vpack.c.b16 %v1089, %v1088
      %v1136 = vpack.c.b16 %v1091, %v1090
      %v1137 = vpack.c.b16 %v1093, %v1092
      %v1138 = vpack.c.b16 %v1095, %v1094
      %v1139 = vpack.c.b16 %v1097, %v1096
      %v1140 = vpack.c.b16 %v1099, %v1098
      %v1141 = vpack.c.b16 %v1101, %v1100
      %v1142 = vpack.c.b16 %v1103, %v1102
      %v1143 = vpack.c.b16 %v1105, %v1104
      %v1144 = vpack.c.b16 %v1107, %v1106
      %v1145 = vpack.c.b16 %v1109, %v1108
      %v1147 = vsel %vm589, %v1110, 0
      %v1150 = vsel %vm589, %v1111, 0
      %v1153 = vsel %vm589, %v1112, 0
      %v1156 = vsel %vm589, %v1113, 0
      %v1159 = vsel %vm589, %v1114, 0
      %v1162 = vsel %vm589, %v1115, 0
      %v1165 = vsel %vm589, %v1116, 0
      %v1168 = vsel %vm589, %v1117, 0
      %v1171 = vsel %vm589, %v1118, 0
      %v1174 = vsel %vm589, %v1119, 0
      %v1177 = vsel %vm589, %v1120, 0
      %v1180 = vsel %vm589, %v1121, 0
      %v1183 = vsel %vm589, %v1122, 0
      %v1186 = vsel %vm589, %v1123, 0
      %v1189 = vsel %vm589, %v1124, 0
      %v1192 = vsel %vm589, %v1125, 0
      %v1195 = vsel %vm589, %v1126, 0
      %v1198 = vsel %vm589, %v1127, 0
      %v1201 = vsel %vm589, %v1128, 0
      %v1204 = vsel %vm589, %v1129, 0
      %v1207 = vsel %vm589, %v1130, 0
      %v1210 = vsel %vm589, %v1131, 0
      %v1213 = vsel %vm589, %v1132, 0
      %v1216 = vsel %vm589, %v1133, 0
      %v1219 = vsel %vm589, %v1134, 0
      %v1222 = vsel %vm589, %v1135, 0
      %v1225 = vsel %vm589, %v1136, 0
      %v1228 = vsel %vm589, %v1137, 0
      %v1231 = vsel %vm589, %v1138, 0
      %v1234 = vsel %vm589, %v1139, 0
      %v1237 = vsel %vm589, %v1140, 0
      %v1240 = vsel %vm589, %v1141, 0
      %v1243 = vsel %vm589, %v1142, 0
      %v1246 = vsel %vm589, %v1143, 0
      %v1249 = vsel %vm589, %v1144, 0
      %v1252 = vsel %vm589, %v1145, 0
      %1254 = vmatpush.bf16.msra.mxu0 0
      %1255 = vmatpush.bf16.msra.mxu0 0
      %1256 = vmatpush.bf16.msra.mxu0 0
      %1257 = vmatpush.bf16.msra.mxu0 0
      %1258 = vmatpush.bf16.msra.mxu0 0
      %1259 = vmatpush.bf16.msra.mxu0 0
      %1260 = vmatpush.bf16.msra.mxu0 %v703
      %1261 = vmatpush.bf16.msra.mxu0 %v586
      %1262 = vmatmul.bf16.gmra.mxu0 %v1147
      %v1263 = vpop.f32.mrf.mxu0
      %v1264 = vadd.f32 0.0, %v1263
      %v1265 = vpop.f32.mrf.mxu0
      %v1266 = vadd.f32 0.0, %v1265
      %1267 = vmatmul.bf16.gmra.mxu0 %v1150
      %v1268 = vpop.f32.mrf.mxu0
      %v1269 = vadd.f32 0.0, %v1268
      %v1270 = vpop.f32.mrf.mxu0
      %v1271 = vadd.f32 0.0, %v1270
      %1272 = vmatmul.bf16.gmra.mxu0 %v1153
      %v1273 = vpop.f32.mrf.mxu0
      %v1274 = vadd.f32 0.0, %v1273
      %v1275 = vpop.f32.mrf.mxu0
      %v1276 = vadd.f32 0.0, %v1275
      %1277 = vmatmul.bf16.gmra.mxu0 %v1156
      %v1278 = vpop.f32.mrf.mxu0
      %v1279 = vadd.f32 0.0, %v1278
      %v1280 = vpop.f32.mrf.mxu0
      %v1281 = vadd.f32 0.0, %v1280
      %1282 = vmatmul.bf16.gmra.mxu0 %v1159
      %v1283 = vpop.f32.mrf.mxu0
      %v1284 = vadd.f32 0.0, %v1283
      %v1285 = vpop.f32.mrf.mxu0
      %v1286 = vadd.f32 0.0, %v1285
      %1287 = vmatmul.bf16.gmra.mxu0 %v1162
      %v1288 = vpop.f32.mrf.mxu0
      %v1289 = vadd.f32 0.0, %v1288
      %v1290 = vpop.f32.mrf.mxu0
      %v1291 = vadd.f32 0.0, %v1290
      %1292 = vmatmul.bf16.gmra.mxu0 %v1165
      %v1293 = vpop.f32.mrf.mxu0
      %v1294 = vadd.f32 0.0, %v1293
      %v1295 = vpop.f32.mrf.mxu0
      %v1296 = vadd.f32 0.0, %v1295
      %1297 = vmatmul.bf16.gmra.mxu0 %v1168
      %v1298 = vpop.f32.mrf.mxu0
      %v1299 = vadd.f32 0.0, %v1298
      %v1300 = vpop.f32.mrf.mxu0
      %v1301 = vadd.f32 0.0, %v1300
      %1302 = vmatmul.bf16.gmra.mxu0 %v1171
      %v1303 = vpop.f32.mrf.mxu0
      %v1304 = vadd.f32 0.0, %v1303
      %v1305 = vpop.f32.mrf.mxu0
      %v1306 = vadd.f32 0.0, %v1305
      %1307 = vmatmul.bf16.gmra.mxu0 %v1174
      %v1308 = vpop.f32.mrf.mxu0
      %v1309 = vadd.f32 0.0, %v1308
      %v1310 = vpop.f32.mrf.mxu0
      %v1311 = vadd.f32 0.0, %v1310
      %1312 = vmatmul.bf16.gmra.mxu0 %v1177
      %v1313 = vpop.f32.mrf.mxu0
      %v1314 = vadd.f32 0.0, %v1313
      %v1315 = vpop.f32.mrf.mxu0
      %v1316 = vadd.f32 0.0, %v1315
      %1317 = vmatmul.bf16.gmra.mxu0 %v1180
      %v1318 = vpop.f32.mrf.mxu0
      %v1319 = vadd.f32 0.0, %v1318
      %v1320 = vpop.f32.mrf.mxu0
      %v1321 = vadd.f32 0.0, %v1320
      %1322 = vmatmul.bf16.gmra.mxu0 %v1183
      %v1323 = vpop.f32.mrf.mxu0
      %v1324 = vadd.f32 0.0, %v1323
      %v1325 = vpop.f32.mrf.mxu0
      %v1326 = vadd.f32 0.0, %v1325
      %1327 = vmatmul.bf16.gmra.mxu0 %v1186
      %v1328 = vpop.f32.mrf.mxu0
      %v1329 = vadd.f32 0.0, %v1328
      %v1330 = vpop.f32.mrf.mxu0
      %v1331 = vadd.f32 0.0, %v1330
      %1332 = vmatmul.bf16.gmra.mxu0 %v1189
      %v1333 = vpop.f32.mrf.mxu0
      %v1334 = vadd.f32 0.0, %v1333
      %v1335 = vpop.f32.mrf.mxu0
      %v1336 = vadd.f32 0.0, %v1335
      %1337 = vmatmul.bf16.gmra.mxu0 %v1192
      %v1338 = vpop.f32.mrf.mxu0
      %v1339 = vadd.f32 0.0, %v1338
      %v1340 = vpop.f32.mrf.mxu0
      %v1341 = vadd.f32 0.0, %v1340
      %1342 = vmatmul.bf16.gmra.mxu0 %v1195
      %v1343 = vpop.f32.mrf.mxu0
      %v1344 = vadd.f32 0.0, %v1343
      %v1345 = vpop.f32.mrf.mxu0
      %v1346 = vadd.f32 0.0, %v1345
      %1347 = vmatmul.bf16.gmra.mxu0 %v1198
      %v1348 = vpop.f32.mrf.mxu0
      %v1349 = vadd.f32 0.0, %v1348
      %v1350 = vpop.f32.mrf.mxu0
      %v1351 = vadd.f32 0.0, %v1350
      %1352 = vmatmul.bf16.gmra.mxu0 %v1201
      %v1353 = vpop.f32.mrf.mxu0
      %v1354 = vadd.f32 0.0, %v1353
      %v1355 = vpop.f32.mrf.mxu0
      %v1356 = vadd.f32 0.0, %v1355
      %1357 = vmatmul.bf16.gmra.mxu0 %v1204
      %v1358 = vpop.f32.mrf.mxu0
      %v1359 = vadd.f32 0.0, %v1358
      %v1360 = vpop.f32.mrf.mxu0
      %v1361 = vadd.f32 0.0, %v1360
      %1362 = vmatmul.bf16.gmra.mxu0 %v1207
      %v1363 = vpop.f32.mrf.mxu0
      %v1364 = vadd.f32 0.0, %v1363
      %v1365 = vpop.f32.mrf.mxu0
      %v1366 = vadd.f32 0.0, %v1365
      %1367 = vmatmul.bf16.gmra.mxu0 %v1210
      %v1368 = vpop.f32.mrf.mxu0
      %v1369 = vadd.f32 0.0, %v1368
      %v1370 = vpop.f32.mrf.mxu0
      %v1371 = vadd.f32 0.0, %v1370
      %1372 = vmatmul.bf16.gmra.mxu0 %v1213
      %v1373 = vpop.f32.mrf.mxu0
      %v1374 = vadd.f32 0.0, %v1373
      %v1375 = vpop.f32.mrf.mxu0
      %v1376 = vadd.f32 0.0, %v1375
      %1377 = vmatmul.bf16.gmra.mxu0 %v1216
      %v1378 = vpop.f32.mrf.mxu0
      %v1379 = vadd.f32 0.0, %v1378
      %v1380 = vpop.f32.mrf.mxu0
      %v1381 = vadd.f32 0.0, %v1380
      %1382 = vmatmul.bf16.gmra.mxu0 %v1219
      %v1383 = vpop.f32.mrf.mxu0
      %v1384 = vadd.f32 0.0, %v1383
      %v1385 = vpop.f32.mrf.mxu0
      %v1386 = vadd.f32 0.0, %v1385
      %1387 = vmatmul.bf16.gmra.mxu0 %v1222
      %v1388 = vpop.f32.mrf.mxu0
      %v1389 = vadd.f32 0.0, %v1388
      %v1390 = vpop.f32.mrf.mxu0
      %v1391 = vadd.f32 0.0, %v1390
      %1392 = vmatmul.bf16.gmra.mxu0 %v1225
      %v1393 = vpop.f32.mrf.mxu0
      %v1394 = vadd.f32 0.0, %v1393
      %v1395 = vpop.f32.mrf.mxu0
      %v1396 = vadd.f32 0.0, %v1395
      %1397 = vmatmul.bf16.gmra.mxu0 %v1228
      %v1398 = vpop.f32.mrf.mxu0
      %v1399 = vadd.f32 0.0, %v1398
      %v1400 = vpop.f32.mrf.mxu0
      %v1401 = vadd.f32 0.0, %v1400
      %1402 = vmatmul.bf16.gmra.mxu0 %v1231
      %v1403 = vpop.f32.mrf.mxu0
      %v1404 = vadd.f32 0.0, %v1403
      %v1405 = vpop.f32.mrf.mxu0
      %v1406 = vadd.f32 0.0, %v1405
      %1407 = vmatmul.bf16.gmra.mxu0 %v1234
      %v1408 = vpop.f32.mrf.mxu0
      %v1409 = vadd.f32 0.0, %v1408
      %v1410 = vpop.f32.mrf.mxu0
      %v1411 = vadd.f32 0.0, %v1410
      %1412 = vmatmul.bf16.gmra.mxu0 %v1237
      %v1413 = vpop.f32.mrf.mxu0
      %v1414 = vadd.f32 0.0, %v1413
      %v1415 = vpop.f32.mrf.mxu0
      %v1416 = vadd.f32 0.0, %v1415
      %1417 = vmatmul.bf16.gmra.mxu0 %v1240
      %v1418 = vpop.f32.mrf.mxu0
      %v1419 = vadd.f32 0.0, %v1418
      %v1420 = vpop.f32.mrf.mxu0
      %v1421 = vadd.f32 0.0, %v1420
      %1422 = vmatmul.bf16.gmra.mxu0 %v1243
      %v1423 = vpop.f32.mrf.mxu0
      %v1424 = vadd.f32 0.0, %v1423
      %v1425 = vpop.f32.mrf.mxu0
      %v1426 = vadd.f32 0.0, %v1425
      %1427 = vmatmul.bf16.gmra.mxu0 %v1246
      %v1428 = vpop.f32.mrf.mxu0
      %v1429 = vadd.f32 0.0, %v1428
      %v1430 = vpop.f32.mrf.mxu0
      %v1431 = vadd.f32 0.0, %v1430
      %1432 = vmatmul.bf16.gmra.mxu0 %v1249
      %v1433 = vpop.f32.mrf.mxu0
      %v1434 = vadd.f32 0.0, %v1433
      %v1435 = vpop.f32.mrf.mxu0
      %v1436 = vadd.f32 0.0, %v1435
      %1437 = vmatmul.bf16.gmra.mxu0 %v1252
      %v1438 = vpop.f32.mrf.mxu0
      %v1439 = vadd.f32 0.0, %v1438
      %v1440 = vpop.f32.mrf.mxu0
      %v1441 = vadd.f32 0.0, %v1440
      %1442 = vdwg.mxu0
      %v1443 = vmax.f32 %v715, %v1264
      %v1444 = vmax.f32 %v717, %v1266
      %v1445 = vmax.f32 %v720, %v1269
      %v1446 = vmax.f32 %v722, %v1271
      %v1447 = vmax.f32 %v725, %v1274
      %v1448 = vmax.f32 %v727, %v1276
      %v1449 = vmax.f32 %v730, %v1279
      %v1450 = vmax.f32 %v732, %v1281
      %v1451 = vmax.f32 %v735, %v1284
      %v1452 = vmax.f32 %v737, %v1286
      %v1453 = vmax.f32 %v740, %v1289
      %v1454 = vmax.f32 %v742, %v1291
      %v1455 = vmax.f32 %v745, %v1294
      %v1456 = vmax.f32 %v747, %v1296
      %v1457 = vmax.f32 %v750, %v1299
      %v1458 = vmax.f32 %v752, %v1301
      %v1459 = vmax.f32 %v755, %v1304
      %v1460 = vmax.f32 %v757, %v1306
      %v1461 = vmax.f32 %v760, %v1309
      %v1462 = vmax.f32 %v762, %v1311
      %v1463 = vmax.f32 %v765, %v1314
      %v1464 = vmax.f32 %v767, %v1316
      %v1465 = vmax.f32 %v770, %v1319
      %v1466 = vmax.f32 %v772, %v1321
      %v1467 = vmax.f32 %v775, %v1324
      %v1468 = vmax.f32 %v777, %v1326
      %v1469 = vmax.f32 %v780, %v1329
      %v1470 = vmax.f32 %v782, %v1331
      %v1471 = vmax.f32 %v785, %v1334
      %v1472 = vmax.f32 %v787, %v1336
      %v1473 = vmax.f32 %v790, %v1339
      %v1474 = vmax.f32 %v792, %v1341
      %v1475 = vmax.f32 %v795, %v1344
      %v1476 = vmax.f32 %v797, %v1346
      %v1477 = vmax.f32 %v800, %v1349
      %v1478 = vmax.f32 %v802, %v1351
      %v1479 = vmax.f32 %v805, %v1354
      %v1480 = vmax.f32 %v807, %v1356
      %v1481 = vmax.f32 %v810, %v1359
      %v1482 = vmax.f32 %v812, %v1361
      %v1483 = vmax.f32 %v815, %v1364
      %v1484 = vmax.f32 %v817, %v1366
      %v1485 = vmax.f32 %v820, %v1369
      %v1486 = vmax.f32 %v822, %v1371
      %v1487 = vmax.f32 %v825, %v1374
      %v1488 = vmax.f32 %v827, %v1376
      %v1489 = vmax.f32 %v830, %v1379
      %v1490 = vmax.f32 %v832, %v1381
      %v1491 = vmax.f32 %v835, %v1384
      %v1492 = vmax.f32 %v837, %v1386
      %v1493 = vmax.f32 %v840, %v1389
      %v1494 = vmax.f32 %v842, %v1391
      %v1495 = vmax.f32 %v845, %v1394
      %v1496 = vmax.f32 %v847, %v1396
      %v1497 = vmax.f32 %v850, %v1399
      %v1498 = vmax.f32 %v852, %v1401
      %v1499 = vmax.f32 %v855, %v1404
      %v1500 = vmax.f32 %v857, %v1406
      %v1501 = vmax.f32 %v860, %v1409
      %v1502 = vmax.f32 %v862, %v1411
      %v1503 = vmax.f32 %v865, %v1414
      %v1504 = vmax.f32 %v867, %v1416
      %v1505 = vmax.f32 %v870, %v1419
      %v1506 = vmax.f32 %v872, %v1421
      %v1507 = vmax.f32 %v875, %v1424
      %v1508 = vmax.f32 %v877, %v1426
      %v1509 = vmax.f32 %v880, %v1429
      %v1510 = vmax.f32 %v882, %v1431
      %v1511 = vmax.f32 %v885, %v1434
      %v1512 = vmax.f32 %v887, %v1436
      %v1513 = vmax.f32 %v890, %v1439
      %v1514 = vmax.f32 %v892, %v1441
      %v1515 = vld [vmem:[%s307] sm:$0xf]
      %v1516 = vld [vmem:[%s307 + $0x4] sm:$0xf]
      %v1517 = vld [vmem:[%s307 + $0x8] sm:$0xf]
      %v1518 = vld [vmem:[%s307 + $0xc] sm:$0xf]
      %v1519 = vld [vmem:[%s307 + $0x10] sm:$0xf]
      %v1520 = vld [vmem:[%s307 + $0x14] sm:$0xf]
      %v1521 = vld [vmem:[%s307 + $0x18] sm:$0xf]
      %v1522 = vld [vmem:[%s307 + $0x1c] sm:$0xf]
      %v1523 = vld [vmem:[%s307 + $0x20] sm:$0xf]
      %v1524 = vld [vmem:[%s307 + $0x24] sm:$0xf]
      %v1525 = vld [vmem:[%s307 + $0x28] sm:$0xf]
      %v1526 = vld [vmem:[%s307 + $0x2c] sm:$0xf]
      %v1527 = vld [vmem:[%s307 + $0x30] sm:$0xf]
      %v1528 = vld [vmem:[%s307 + $0x34] sm:$0xf]
      %v1529 = vld [vmem:[%s307 + $0x38] sm:$0xf]
      %v1530 = vld [vmem:[%s307 + $0x3c] sm:$0xf]
      %v1531 = vld [vmem:[%s307 + $0x40] sm:$0xf]
      %v1532 = vld [vmem:[%s307 + $0x44] sm:$0xf]
      %v1533 = vld [vmem:[%s307 + $0x48] sm:$0xf]
      %v1534 = vld [vmem:[%s307 + $0x4c] sm:$0xf]
      %v1535 = vld [vmem:[%s307 + $0x50] sm:$0xf]
      %v1536 = vld [vmem:[%s307 + $0x54] sm:$0xf]
      %v1537 = vld [vmem:[%s307 + $0x58] sm:$0xf]
      %v1538 = vld [vmem:[%s307 + $0x5c] sm:$0xf]
      %v1539 = vld [vmem:[%s307 + $0x60] sm:$0xf]
      %v1540 = vld [vmem:[%s307 + $0x64] sm:$0xf]
      %v1541 = vld [vmem:[%s307 + $0x68] sm:$0xf]
      %v1542 = vld [vmem:[%s307 + $0x6c] sm:$0xf]
      %v1543 = vld [vmem:[%s307 + $0x70] sm:$0xf]
      %v1544 = vld [vmem:[%s307 + $0x74] sm:$0xf]
      %v1545 = vld [vmem:[%s307 + $0x78] sm:$0xf]
      %v1546 = vld [vmem:[%s307 + $0x7c] sm:$0xf]
      %v1547 = vld [vmem:[%s307 + $0x80] sm:$0xf]
      %v1548 = vld [vmem:[%s307 + $0x84] sm:$0xf]
      %v1549 = vld [vmem:[%s307 + $0x88] sm:$0xf]
      %v1550 = vld [vmem:[%s307 + $0x8c] sm:$0xf]
      %v1551 = vld [vmem:[%s307 + $0x90] sm:$0xf]
      %v1552 = vld [vmem:[%s307 + $0x94] sm:$0xf]
      %v1553 = vld [vmem:[%s307 + $0x98] sm:$0xf]
      %v1554 = vld [vmem:[%s307 + $0x9c] sm:$0xf]
      %v1555 = vld [vmem:[%s307 + $0xa0] sm:$0xf]
      %v1556 = vld [vmem:[%s307 + $0xa4] sm:$0xf]
      %v1557 = vld [vmem:[%s307 + $0xa8] sm:$0xf]
      %v1558 = vld [vmem:[%s307 + $0xac] sm:$0xf]
      %v1559 = vld [vmem:[%s307 + $0xb0] sm:$0xf]
      %v1560 = vld [vmem:[%s307 + $0xb4] sm:$0xf]
      %v1561 = vld [vmem:[%s307 + $0xb8] sm:$0xf]
      %v1562 = vld [vmem:[%s307 + $0xbc] sm:$0xf]
      %v1563 = vld [vmem:[%s307 + $0xc0] sm:$0xf]
      %v1564 = vld [vmem:[%s307 + $0xc4] sm:$0xf]
      %v1565 = vld [vmem:[%s307 + $0xc8] sm:$0xf]
      %v1566 = vld [vmem:[%s307 + $0xcc] sm:$0xf]
      %v1567 = vld [vmem:[%s307 + $0xd0] sm:$0xf]
      %v1568 = vld [vmem:[%s307 + $0xd4] sm:$0xf]
      %v1569 = vld [vmem:[%s307 + $0xd8] sm:$0xf]
      %v1570 = vld [vmem:[%s307 + $0xdc] sm:$0xf]
      %v1571 = vld [vmem:[%s307 + $0xe0] sm:$0xf]
      %v1572 = vld [vmem:[%s307 + $0xe4] sm:$0xf]
      %v1573 = vld [vmem:[%s307 + $0xe8] sm:$0xf]
      %v1574 = vld [vmem:[%s307 + $0xec] sm:$0xf]
      %v1575 = vld [vmem:[%s307 + $0xf0] sm:$0xf]
      %v1576 = vld [vmem:[%s307 + $0xf4] sm:$0xf]
      %v1577 = vld [vmem:[%s307 + $0xf8] sm:$0xf]
      %v1578 = vld [vmem:[%s307 + $0xfc] sm:$0xf]
      %v1579 = vld [vmem:[%s307 + $0x100] sm:$0xf]
      %v1580 = vld [vmem:[%s307 + $0x104] sm:$0xf]
      %v1581 = vld [vmem:[%s307 + $0x108] sm:$0xf]
      %v1582 = vld [vmem:[%s307 + $0x10c] sm:$0xf]
      %v1583 = vld [vmem:[%s307 + $0x110] sm:$0xf]
      %v1584 = vld [vmem:[%s307 + $0x114] sm:$0xf]
      %v1585 = vld [vmem:[%s307 + $0x118] sm:$0xf]
      %v1586 = vld [vmem:[%s307 + $0x11c] sm:$0xf]
      %v1659 = vunpack.c.l.b16 %v1515
      %v1660 = vunpack.c.l.b16 %v1516
      %v1661 = vunpack.c.l.b16 %v1517
      %v1662 = vunpack.c.l.b16 %v1518
      %v1663 = vunpack.c.l.b16 %v1519
      %v1664 = vunpack.c.l.b16 %v1520
      %v1665 = vunpack.c.l.b16 %v1521
      %v1666 = vunpack.c.l.b16 %v1522
      %v1667 = vunpack.c.l.b16 %v1523
      %v1668 = vunpack.c.l.b16 %v1524
      %v1669 = vunpack.c.l.b16 %v1525
      %v1670 = vunpack.c.l.b16 %v1526
      %v1671 = vunpack.c.l.b16 %v1527
      %v1672 = vunpack.c.l.b16 %v1528
      %v1673 = vunpack.c.l.b16 %v1529
      %v1674 = vunpack.c.l.b16 %v1530
      %v1675 = vunpack.c.l.b16 %v1531
      %v1676 = vunpack.c.l.b16 %v1532
      %v1677 = vunpack.c.l.b16 %v1533
      %v1678 = vunpack.c.l.b16 %v1534
      %v1679 = vunpack.c.l.b16 %v1535
      %v1680 = vunpack.c.l.b16 %v1536
      %v1681 = vunpack.c.l.b16 %v1537
      %v1682 = vunpack.c.l.b16 %v1538
      %v1683 = vunpack.c.l.b16 %v1539
      %v1684 = vunpack.c.l.b16 %v1540
      %v1685 = vunpack.c.l.b16 %v1541
      %v1686 = vunpack.c.l.b16 %v1542
      %v1687 = vunpack.c.l.b16 %v1543
      %v1688 = vunpack.c.l.b16 %v1544
      %v1689 = vunpack.c.l.b16 %v1545
      %v1690 = vunpack.c.l.b16 %v1546
      %v1691 = vunpack.c.l.b16 %v1547
      %v1692 = vunpack.c.l.b16 %v1548
      %v1693 = vunpack.c.l.b16 %v1549
      %v1694 = vunpack.c.l.b16 %v1550
      %v1695 = vunpack.c.l.b16 %v1551
      %v1696 = vunpack.c.l.b16 %v1552
      %v1697 = vunpack.c.l.b16 %v1553
      %v1698 = vunpack.c.l.b16 %v1554
      %v1699 = vunpack.c.l.b16 %v1555
      %v1700 = vunpack.c.l.b16 %v1556
      %v1701 = vunpack.c.l.b16 %v1557
      %v1702 = vunpack.c.l.b16 %v1558
      %v1703 = vunpack.c.l.b16 %v1559
      %v1704 = vunpack.c.l.b16 %v1560
      %v1705 = vunpack.c.l.b16 %v1561
      %v1706 = vunpack.c.l.b16 %v1562
      %v1707 = vunpack.c.l.b16 %v1563
      %v1708 = vunpack.c.l.b16 %v1564
      %v1709 = vunpack.c.l.b16 %v1565
      %v1710 = vunpack.c.l.b16 %v1566
      %v1711 = vunpack.c.l.b16 %v1567
      %v1712 = vunpack.c.l.b16 %v1568
      %v1713 = vunpack.c.l.b16 %v1569
      %v1714 = vunpack.c.l.b16 %v1570
      %v1715 = vunpack.c.l.b16 %v1571
      %v1716 = vunpack.c.l.b16 %v1572
      %v1717 = vunpack.c.l.b16 %v1573
      %v1718 = vunpack.c.l.b16 %v1574
      %v1719 = vunpack.c.l.b16 %v1575
      %v1720 = vunpack.c.l.b16 %v1576
      %v1721 = vunpack.c.l.b16 %v1577
      %v1722 = vunpack.c.l.b16 %v1578
      %v1723 = vunpack.c.l.b16 %v1579
      %v1724 = vunpack.c.l.b16 %v1580
      %v1725 = vunpack.c.l.b16 %v1581
      %v1726 = vunpack.c.l.b16 %v1582
      %v1727 = vunpack.c.l.b16 %v1583
      %v1728 = vunpack.c.l.b16 %v1584
      %v1729 = vunpack.c.l.b16 %v1585
      %v1730 = vunpack.c.l.b16 %v1586
      %v1731 = vpack.c.b16 %v1660, %v1659
      %v1732 = vpack.c.b16 %v1662, %v1661
      %v1733 = vpack.c.b16 %v1664, %v1663
      %v1734 = vpack.c.b16 %v1666, %v1665
      %v1735 = vpack.c.b16 %v1668, %v1667
      %v1736 = vpack.c.b16 %v1670, %v1669
      %v1737 = vpack.c.b16 %v1672, %v1671
      %v1738 = vpack.c.b16 %v1674, %v1673
      %v1739 = vpack.c.b16 %v1676, %v1675
      %v1740 = vpack.c.b16 %v1678, %v1677
      %v1741 = vpack.c.b16 %v1680, %v1679
      %v1742 = vpack.c.b16 %v1682, %v1681
      %v1743 = vpack.c.b16 %v1684, %v1683
      %v1744 = vpack.c.b16 %v1686, %v1685
      %v1745 = vpack.c.b16 %v1688, %v1687
      %v1746 = vpack.c.b16 %v1690, %v1689
      %v1747 = vpack.c.b16 %v1692, %v1691
      %v1748 = vpack.c.b16 %v1694, %v1693
      %v1749 = vpack.c.b16 %v1696, %v1695
      %v1750 = vpack.c.b16 %v1698, %v1697
      %v1751 = vpack.c.b16 %v1700, %v1699
      %v1752 = vpack.c.b16 %v1702, %v1701
      %v1753 = vpack.c.b16 %v1704, %v1703
      %v1754 = vpack.c.b16 %v1706, %v1705
      %v1755 = vpack.c.b16 %v1708, %v1707
      %v1756 = vpack.c.b16 %v1710, %v1709
      %v1757 = vpack.c.b16 %v1712, %v1711
      %v1758 = vpack.c.b16 %v1714, %v1713
      %v1759 = vpack.c.b16 %v1716, %v1715
      %v1760 = vpack.c.b16 %v1718, %v1717
      %v1761 = vpack.c.b16 %v1720, %v1719
      %v1762 = vpack.c.b16 %v1722, %v1721
      %v1763 = vpack.c.b16 %v1724, %v1723
      %v1764 = vpack.c.b16 %v1726, %v1725
      %v1765 = vpack.c.b16 %v1728, %v1727
      %v1766 = vpack.c.b16 %v1730, %v1729
      %v1768 = vsel %vm589, %v1731, 0
      %v1771 = vsel %vm589, %v1732, 0
      %v1774 = vsel %vm589, %v1733, 0
      %v1777 = vsel %vm589, %v1734, 0
      %v1780 = vsel %vm589, %v1735, 0
      %v1783 = vsel %vm589, %v1736, 0
      %v1786 = vsel %vm589, %v1737, 0
      %v1789 = vsel %vm589, %v1738, 0
      %v1792 = vsel %vm589, %v1739, 0
      %v1795 = vsel %vm589, %v1740, 0
      %v1798 = vsel %vm589, %v1741, 0
      %v1801 = vsel %vm589, %v1742, 0
      %v1804 = vsel %vm589, %v1743, 0
      %v1807 = vsel %vm589, %v1744, 0
      %v1810 = vsel %vm589, %v1745, 0
      %v1813 = vsel %vm589, %v1746, 0
      %v1816 = vsel %vm589, %v1747, 0
      %v1819 = vsel %vm589, %v1748, 0
      %v1822 = vsel %vm589, %v1749, 0
      %v1825 = vsel %vm589, %v1750, 0
      %v1828 = vsel %vm589, %v1751, 0
      %v1831 = vsel %vm589, %v1752, 0
      %v1834 = vsel %vm589, %v1753, 0
      %v1837 = vsel %vm589, %v1754, 0
      %v1840 = vsel %vm589, %v1755, 0
      %v1843 = vsel %vm589, %v1756, 0
      %v1846 = vsel %vm589, %v1757, 0
      %v1849 = vsel %vm589, %v1758, 0
      %v1852 = vsel %vm589, %v1759, 0
      %v1855 = vsel %vm589, %v1760, 0
      %v1858 = vsel %vm589, %v1761, 0
      %v1861 = vsel %vm589, %v1762, 0
      %v1864 = vsel %vm589, %v1763, 0
      %v1867 = vsel %vm589, %v1764, 0
      %v1870 = vsel %vm589, %v1765, 0
      %v1873 = vsel %vm589, %v1766, 0
      %1875 = vmatpush.bf16.msra.mxu0 0
      %1876 = vmatpush.bf16.msra.mxu0 0
      %1877 = vmatpush.bf16.msra.mxu0 0
      %1878 = vmatpush.bf16.msra.mxu0 0
      %1879 = vmatpush.bf16.msra.mxu0 0
      %1880 = vmatpush.bf16.msra.mxu0 0
      %1881 = vmatpush.bf16.msra.mxu0 %v703
      %1882 = vmatpush.bf16.msra.mxu0 %v586
      %1883 = vmatmul.bf16.gmra.mxu0 %v1768
      %v1884 = vpop.f32.mrf.mxu0
      %v1885 = vadd.f32 0.0, %v1884
      %v1886 = vpop.f32.mrf.mxu0
      %v1887 = vadd.f32 0.0, %v1886
      %1888 = vmatmul.bf16.gmra.mxu0 %v1771
      %v1889 = vpop.f32.mrf.mxu0
      %v1890 = vadd.f32 0.0, %v1889
      %v1891 = vpop.f32.mrf.mxu0
      %v1892 = vadd.f32 0.0, %v1891
      %1893 = vmatmul.bf16.gmra.mxu0 %v1774
      %v1894 = vpop.f32.mrf.mxu0
      %v1895 = vadd.f32 0.0, %v1894
      %v1896 = vpop.f32.mrf.mxu0
      %v1897 = vadd.f32 0.0, %v1896
      %1898 = vmatmul.bf16.gmra.mxu0 %v1777
      %v1899 = vpop.f32.mrf.mxu0
      %v1900 = vadd.f32 0.0, %v1899
      %v1901 = vpop.f32.mrf.mxu0
      %v1902 = vadd.f32 0.0, %v1901
      %1903 = vmatmul.bf16.gmra.mxu0 %v1780
      %v1904 = vpop.f32.mrf.mxu0
      %v1905 = vadd.f32 0.0, %v1904
      %v1906 = vpop.f32.mrf.mxu0
      %v1907 = vadd.f32 0.0, %v1906
      %1908 = vmatmul.bf16.gmra.mxu0 %v1783
      %v1909 = vpop.f32.mrf.mxu0
      %v1910 = vadd.f32 0.0, %v1909
      %v1911 = vpop.f32.mrf.mxu0
      %v1912 = vadd.f32 0.0, %v1911
      %1913 = vmatmul.bf16.gmra.mxu0 %v1786
      %v1914 = vpop.f32.mrf.mxu0
      %v1915 = vadd.f32 0.0, %v1914
      %v1916 = vpop.f32.mrf.mxu0
      %v1917 = vadd.f32 0.0, %v1916
      %1918 = vmatmul.bf16.gmra.mxu0 %v1789
      %v1919 = vpop.f32.mrf.mxu0
      %v1920 = vadd.f32 0.0, %v1919
      %v1921 = vpop.f32.mrf.mxu0
      %v1922 = vadd.f32 0.0, %v1921
      %1923 = vmatmul.bf16.gmra.mxu0 %v1792
      %v1924 = vpop.f32.mrf.mxu0
      %v1925 = vadd.f32 0.0, %v1924
      %v1926 = vpop.f32.mrf.mxu0
      %v1927 = vadd.f32 0.0, %v1926
      %1928 = vmatmul.bf16.gmra.mxu0 %v1795
      %v1929 = vpop.f32.mrf.mxu0
      %v1930 = vadd.f32 0.0, %v1929
      %v1931 = vpop.f32.mrf.mxu0
      %v1932 = vadd.f32 0.0, %v1931
      %1933 = vmatmul.bf16.gmra.mxu0 %v1798
      %v1934 = vpop.f32.mrf.mxu0
      %v1935 = vadd.f32 0.0, %v1934
      %v1936 = vpop.f32.mrf.mxu0
      %v1937 = vadd.f32 0.0, %v1936
      %1938 = vmatmul.bf16.gmra.mxu0 %v1801
      %v1939 = vpop.f32.mrf.mxu0
      %v1940 = vadd.f32 0.0, %v1939
      %v1941 = vpop.f32.mrf.mxu0
      %v1942 = vadd.f32 0.0, %v1941
      %1943 = vmatmul.bf16.gmra.mxu0 %v1804
      %v1944 = vpop.f32.mrf.mxu0
      %v1945 = vadd.f32 0.0, %v1944
      %v1946 = vpop.f32.mrf.mxu0
      %v1947 = vadd.f32 0.0, %v1946
      %1948 = vmatmul.bf16.gmra.mxu0 %v1807
      %v1949 = vpop.f32.mrf.mxu0
      %v1950 = vadd.f32 0.0, %v1949
      %v1951 = vpop.f32.mrf.mxu0
      %v1952 = vadd.f32 0.0, %v1951
      %1953 = vmatmul.bf16.gmra.mxu0 %v1810
      %v1954 = vpop.f32.mrf.mxu0
      %v1955 = vadd.f32 0.0, %v1954
      %v1956 = vpop.f32.mrf.mxu0
      %v1957 = vadd.f32 0.0, %v1956
      %1958 = vmatmul.bf16.gmra.mxu0 %v1813
      %v1959 = vpop.f32.mrf.mxu0
      %v1960 = vadd.f32 0.0, %v1959
      %v1961 = vpop.f32.mrf.mxu0
      %v1962 = vadd.f32 0.0, %v1961
      %1963 = vmatmul.bf16.gmra.mxu0 %v1816
      %v1964 = vpop.f32.mrf.mxu0
      %v1965 = vadd.f32 0.0, %v1964
      %v1966 = vpop.f32.mrf.mxu0
      %v1967 = vadd.f32 0.0, %v1966
      %1968 = vmatmul.bf16.gmra.mxu0 %v1819
      %v1969 = vpop.f32.mrf.mxu0
      %v1970 = vadd.f32 0.0, %v1969
      %v1971 = vpop.f32.mrf.mxu0
      %v1972 = vadd.f32 0.0, %v1971
      %1973 = vmatmul.bf16.gmra.mxu0 %v1822
      %v1974 = vpop.f32.mrf.mxu0
      %v1975 = vadd.f32 0.0, %v1974
      %v1976 = vpop.f32.mrf.mxu0
      %v1977 = vadd.f32 0.0, %v1976
      %1978 = vmatmul.bf16.gmra.mxu0 %v1825
      %v1979 = vpop.f32.mrf.mxu0
      %v1980 = vadd.f32 0.0, %v1979
      %v1981 = vpop.f32.mrf.mxu0
      %v1982 = vadd.f32 0.0, %v1981
      %1983 = vmatmul.bf16.gmra.mxu0 %v1828
      %v1984 = vpop.f32.mrf.mxu0
      %v1985 = vadd.f32 0.0, %v1984
      %v1986 = vpop.f32.mrf.mxu0
      %v1987 = vadd.f32 0.0, %v1986
      %1988 = vmatmul.bf16.gmra.mxu0 %v1831
      %v1989 = vpop.f32.mrf.mxu0
      %v1990 = vadd.f32 0.0, %v1989
      %v1991 = vpop.f32.mrf.mxu0
      %v1992 = vadd.f32 0.0, %v1991
      %1993 = vmatmul.bf16.gmra.mxu0 %v1834
      %v1994 = vpop.f32.mrf.mxu0
      %v1995 = vadd.f32 0.0, %v1994
      %v1996 = vpop.f32.mrf.mxu0
      %v1997 = vadd.f32 0.0, %v1996
      %1998 = vmatmul.bf16.gmra.mxu0 %v1837
      %v1999 = vpop.f32.mrf.mxu0
      %v2000 = vadd.f32 0.0, %v1999
      %v2001 = vpop.f32.mrf.mxu0
      %v2002 = vadd.f32 0.0, %v2001
      %2003 = vmatmul.bf16.gmra.mxu0 %v1840
      %v2004 = vpop.f32.mrf.mxu0
      %v2005 = vadd.f32 0.0, %v2004
      %v2006 = vpop.f32.mrf.mxu0
      %v2007 = vadd.f32 0.0, %v2006
      %2008 = vmatmul.bf16.gmra.mxu0 %v1843
      %v2009 = vpop.f32.mrf.mxu0
      %v2010 = vadd.f32 0.0, %v2009
      %v2011 = vpop.f32.mrf.mxu0
      %v2012 = vadd.f32 0.0, %v2011
      %2013 = vmatmul.bf16.gmra.mxu0 %v1846
      %v2014 = vpop.f32.mrf.mxu0
      %v2015 = vadd.f32 0.0, %v2014
      %v2016 = vpop.f32.mrf.mxu0
      %v2017 = vadd.f32 0.0, %v2016
      %2018 = vmatmul.bf16.gmra.mxu0 %v1849
      %v2019 = vpop.f32.mrf.mxu0
      %v2020 = vadd.f32 0.0, %v2019
      %v2021 = vpop.f32.mrf.mxu0
      %v2022 = vadd.f32 0.0, %v2021
      %2023 = vmatmul.bf16.gmra.mxu0 %v1852
      %v2024 = vpop.f32.mrf.mxu0
      %v2025 = vadd.f32 0.0, %v2024
      %v2026 = vpop.f32.mrf.mxu0
      %v2027 = vadd.f32 0.0, %v2026
      %2028 = vmatmul.bf16.gmra.mxu0 %v1855
      %v2029 = vpop.f32.mrf.mxu0
      %v2030 = vadd.f32 0.0, %v2029
      %v2031 = vpop.f32.mrf.mxu0
      %v2032 = vadd.f32 0.0, %v2031
      %2033 = vmatmul.bf16.gmra.mxu0 %v1858
      %v2034 = vpop.f32.mrf.mxu0
      %v2035 = vadd.f32 0.0, %v2034
      %v2036 = vpop.f32.mrf.mxu0
      %v2037 = vadd.f32 0.0, %v2036
      %2038 = vmatmul.bf16.gmra.mxu0 %v1861
      %v2039 = vpop.f32.mrf.mxu0
      %v2040 = vadd.f32 0.0, %v2039
      %v2041 = vpop.f32.mrf.mxu0
      %v2042 = vadd.f32 0.0, %v2041
      %2043 = vmatmul.bf16.gmra.mxu0 %v1864
      %v2044 = vpop.f32.mrf.mxu0
      %v2045 = vadd.f32 0.0, %v2044
      %v2046 = vpop.f32.mrf.mxu0
      %v2047 = vadd.f32 0.0, %v2046
      %2048 = vmatmul.bf16.gmra.mxu0 %v1867
      %v2049 = vpop.f32.mrf.mxu0
      %v2050 = vadd.f32 0.0, %v2049
      %v2051 = vpop.f32.mrf.mxu0
      %v2052 = vadd.f32 0.0, %v2051
      %2053 = vmatmul.bf16.gmra.mxu0 %v1870
      %v2054 = vpop.f32.mrf.mxu0
      %v2055 = vadd.f32 0.0, %v2054
      %v2056 = vpop.f32.mrf.mxu0
      %v2057 = vadd.f32 0.0, %v2056
      %2058 = vmatmul.bf16.gmra.mxu0 %v1873
      %v2059 = vpop.f32.mrf.mxu0
      %v2060 = vadd.f32 0.0, %v2059
      %v2061 = vpop.f32.mrf.mxu0
      %v2062 = vadd.f32 0.0, %v2061
      %2063 = vdwg.mxu0
      %v2064 = vmax.f32 %v1443, %v1885
      %v2065 = vmax.f32 %v1444, %v1887
      %v2066 = vmax.f32 %v1445, %v1890
      %v2067 = vmax.f32 %v1446, %v1892
      %v2068 = vmax.f32 %v1447, %v1895
      %v2069 = vmax.f32 %v1448, %v1897
      %v2070 = vmax.f32 %v1449, %v1900
      %v2071 = vmax.f32 %v1450, %v1902
      %v2072 = vmax.f32 %v1451, %v1905
      %v2073 = vmax.f32 %v1452, %v1907
      %v2074 = vmax.f32 %v1453, %v1910
      %v2075 = vmax.f32 %v1454, %v1912
      %v2076 = vmax.f32 %v1455, %v1915
      %v2077 = vmax.f32 %v1456, %v1917
      %v2078 = vmax.f32 %v1457, %v1920
      %v2079 = vmax.f32 %v1458, %v1922
      %v2080 = vmax.f32 %v1459, %v1925
      %v2081 = vmax.f32 %v1460, %v1927
      %v2082 = vmax.f32 %v1461, %v1930
      %v2083 = vmax.f32 %v1462, %v1932
      %v2084 = vmax.f32 %v1463, %v1935
      %v2085 = vmax.f32 %v1464, %v1937
      %v2086 = vmax.f32 %v1465, %v1940
      %v2087 = vmax.f32 %v1466, %v1942
      %v2088 = vmax.f32 %v1467, %v1945
      %v2089 = vmax.f32 %v1468, %v1947
      %v2090 = vmax.f32 %v1469, %v1950
      %v2091 = vmax.f32 %v1470, %v1952
      %v2092 = vmax.f32 %v1471, %v1955
      %v2093 = vmax.f32 %v1472, %v1957
      %v2094 = vmax.f32 %v1473, %v1960
      %v2095 = vmax.f32 %v1474, %v1962
      %v2096 = vmax.f32 %v1475, %v1965
      %v2097 = vmax.f32 %v1476, %v1967
      %v2098 = vmax.f32 %v1477, %v1970
      %v2099 = vmax.f32 %v1478, %v1972
      %v2100 = vmax.f32 %v1479, %v1975
      %v2101 = vmax.f32 %v1480, %v1977
      %v2102 = vmax.f32 %v1481, %v1980
      %v2103 = vmax.f32 %v1482, %v1982
      %v2104 = vmax.f32 %v1483, %v1985
      %v2105 = vmax.f32 %v1484, %v1987
      %v2106 = vmax.f32 %v1485, %v1990
      %v2107 = vmax.f32 %v1486, %v1992
      %v2108 = vmax.f32 %v1487, %v1995
      %v2109 = vmax.f32 %v1488, %v1997
      %v2110 = vmax.f32 %v1489, %v2000
      %v2111 = vmax.f32 %v1490, %v2002
      %v2112 = vmax.f32 %v1491, %v2005
      %v2113 = vmax.f32 %v1492, %v2007
      %v2114 = vmax.f32 %v1493, %v2010
      %v2115 = vmax.f32 %v1494, %v2012
      %v2116 = vmax.f32 %v1495, %v2015
      %v2117 = vmax.f32 %v1496, %v2017
      %v2118 = vmax.f32 %v1497, %v2020
      %v2119 = vmax.f32 %v1498, %v2022
      %v2120 = vmax.f32 %v1499, %v2025
      %v2121 = vmax.f32 %v1500, %v2027
      %v2122 = vmax.f32 %v1501, %v2030
      %v2123 = vmax.f32 %v1502, %v2032
      %v2124 = vmax.f32 %v1503, %v2035
      %v2125 = vmax.f32 %v1504, %v2037
      %v2126 = vmax.f32 %v1505, %v2040
      %v2127 = vmax.f32 %v1506, %v2042
      %v2128 = vmax.f32 %v1507, %v2045
      %v2129 = vmax.f32 %v1508, %v2047
      %v2130 = vmax.f32 %v1509, %v2050
      %v2131 = vmax.f32 %v1510, %v2052
      %v2132 = vmax.f32 %v1511, %v2055
      %v2133 = vmax.f32 %v1512, %v2057
      %v2134 = vmax.f32 %v1513, %v2060
      %v2135 = vmax.f32 %v1514, %v2062
      %v2136 = vld [vmem:[%s313] sm:$0xf]
      %v2137 = vld [vmem:[%s313 + $0x4] sm:$0xf]
      %v2138 = vld [vmem:[%s313 + $0x8] sm:$0xf]
      %v2139 = vld [vmem:[%s313 + $0xc] sm:$0xf]
      %v2140 = vld [vmem:[%s313 + $0x10] sm:$0xf]
      %v2141 = vld [vmem:[%s313 + $0x14] sm:$0xf]
      %v2142 = vld [vmem:[%s313 + $0x18] sm:$0xf]
      %v2143 = vld [vmem:[%s313 + $0x1c] sm:$0xf]
      %v2144 = vld [vmem:[%s313 + $0x20] sm:$0xf]
      %v2145 = vld [vmem:[%s313 + $0x24] sm:$0xf]
      %v2146 = vld [vmem:[%s313 + $0x28] sm:$0xf]
      %v2147 = vld [vmem:[%s313 + $0x2c] sm:$0xf]
      %v2148 = vld [vmem:[%s313 + $0x30] sm:$0xf]
      %v2149 = vld [vmem:[%s313 + $0x34] sm:$0xf]
      %v2150 = vld [vmem:[%s313 + $0x38] sm:$0xf]
      %v2151 = vld [vmem:[%s313 + $0x3c] sm:$0xf]
      %v2152 = vld [vmem:[%s313 + $0x40] sm:$0xf]
      %v2153 = vld [vmem:[%s313 + $0x44] sm:$0xf]
      %v2154 = vld [vmem:[%s313 + $0x48] sm:$0xf]
      %v2155 = vld [vmem:[%s313 + $0x4c] sm:$0xf]
      %v2156 = vld [vmem:[%s313 + $0x50] sm:$0xf]
      %v2157 = vld [vmem:[%s313 + $0x54] sm:$0xf]
      %v2158 = vld [vmem:[%s313 + $0x58] sm:$0xf]
      %v2159 = vld [vmem:[%s313 + $0x5c] sm:$0xf]
      %v2160 = vld [vmem:[%s313 + $0x60] sm:$0xf]
      %v2161 = vld [vmem:[%s313 + $0x64] sm:$0xf]
      %v2162 = vld [vmem:[%s313 + $0x68] sm:$0xf]
      %v2163 = vld [vmem:[%s313 + $0x6c] sm:$0xf]
      %v2164 = vld [vmem:[%s313 + $0x70] sm:$0xf]
      %v2165 = vld [vmem:[%s313 + $0x74] sm:$0xf]
      %v2166 = vld [vmem:[%s313 + $0x78] sm:$0xf]
      %v2167 = vld [vmem:[%s313 + $0x7c] sm:$0xf]
      %v2168 = vld [vmem:[%s313 + $0x80] sm:$0xf]
      %v2169 = vld [vmem:[%s313 + $0x84] sm:$0xf]
      %v2170 = vld [vmem:[%s313 + $0x88] sm:$0xf]
      %v2171 = vld [vmem:[%s313 + $0x8c] sm:$0xf]
      %v2172 = vld [vmem:[%s313 + $0x90] sm:$0xf]
      %v2173 = vld [vmem:[%s313 + $0x94] sm:$0xf]
      %v2174 = vld [vmem:[%s313 + $0x98] sm:$0xf]
      %v2175 = vld [vmem:[%s313 + $0x9c] sm:$0xf]
      %v2176 = vld [vmem:[%s313 + $0xa0] sm:$0xf]
      %v2177 = vld [vmem:[%s313 + $0xa4] sm:$0xf]
      %v2178 = vld [vmem:[%s313 + $0xa8] sm:$0xf]
      %v2179 = vld [vmem:[%s313 + $0xac] sm:$0xf]
      %v2180 = vld [vmem:[%s313 + $0xb0] sm:$0xf]
      %v2181 = vld [vmem:[%s313 + $0xb4] sm:$0xf]
      %v2182 = vld [vmem:[%s313 + $0xb8] sm:$0xf]
      %v2183 = vld [vmem:[%s313 + $0xbc] sm:$0xf]
      %v2184 = vld [vmem:[%s313 + $0xc0] sm:$0xf]
      %v2185 = vld [vmem:[%s313 + $0xc4] sm:$0xf]
      %v2186 = vld [vmem:[%s313 + $0xc8] sm:$0xf]
      %v2187 = vld [vmem:[%s313 + $0xcc] sm:$0xf]
      %v2188 = vld [vmem:[%s313 + $0xd0] sm:$0xf]
      %v2189 = vld [vmem:[%s313 + $0xd4] sm:$0xf]
      %v2190 = vld [vmem:[%s313 + $0xd8] sm:$0xf]
      %v2191 = vld [vmem:[%s313 + $0xdc] sm:$0xf]
      %v2192 = vld [vmem:[%s313 + $0xe0] sm:$0xf]
      %v2193 = vld [vmem:[%s313 + $0xe4] sm:$0xf]
      %v2194 = vld [vmem:[%s313 + $0xe8] sm:$0xf]
      %v2195 = vld [vmem:[%s313 + $0xec] sm:$0xf]
      %v2196 = vld [vmem:[%s313 + $0xf0] sm:$0xf]
      %v2197 = vld [vmem:[%s313 + $0xf4] sm:$0xf]
      %v2198 = vld [vmem:[%s313 + $0xf8] sm:$0xf]
      %v2199 = vld [vmem:[%s313 + $0xfc] sm:$0xf]
      %v2200 = vld [vmem:[%s313 + $0x100] sm:$0xf]
      %v2201 = vld [vmem:[%s313 + $0x104] sm:$0xf]
      %v2202 = vld [vmem:[%s313 + $0x108] sm:$0xf]
      %v2203 = vld [vmem:[%s313 + $0x10c] sm:$0xf]
      %v2204 = vld [vmem:[%s313 + $0x110] sm:$0xf]
      %v2205 = vld [vmem:[%s313 + $0x114] sm:$0xf]
      %v2206 = vld [vmem:[%s313 + $0x118] sm:$0xf]
      %v2207 = vld [vmem:[%s313 + $0x11c] sm:$0xf]
      %v2280 = vunpack.c.l.b16 %v2136
      %v2281 = vunpack.c.l.b16 %v2137
      %v2282 = vunpack.c.l.b16 %v2138
      %v2283 = vunpack.c.l.b16 %v2139
      %v2284 = vunpack.c.l.b16 %v2140
      %v2285 = vunpack.c.l.b16 %v2141
      %v2286 = vunpack.c.l.b16 %v2142
      %v2287 = vunpack.c.l.b16 %v2143
      %v2288 = vunpack.c.l.b16 %v2144
      %v2289 = vunpack.c.l.b16 %v2145
      %v2290 = vunpack.c.l.b16 %v2146
      %v2291 = vunpack.c.l.b16 %v2147
      %v2292 = vunpack.c.l.b16 %v2148
      %v2293 = vunpack.c.l.b16 %v2149
      %v2294 = vunpack.c.l.b16 %v2150
      %v2295 = vunpack.c.l.b16 %v2151
      %v2296 = vunpack.c.l.b16 %v2152
      %v2297 = vunpack.c.l.b16 %v2153
      %v2298 = vunpack.c.l.b16 %v2154
      %v2299 = vunpack.c.l.b16 %v2155
      %v2300 = vunpack.c.l.b16 %v2156
      %v2301 = vunpack.c.l.b16 %v2157
      %v2302 = vunpack.c.l.b16 %v2158
      %v2303 = vunpack.c.l.b16 %v2159
      %v2304 = vunpack.c.l.b16 %v2160
      %v2305 = vunpack.c.l.b16 %v2161
      %v2306 = vunpack.c.l.b16 %v2162
      %v2307 = vunpack.c.l.b16 %v2163
      %v2308 = vunpack.c.l.b16 %v2164
      %v2309 = vunpack.c.l.b16 %v2165
      %v2310 = vunpack.c.l.b16 %v2166
      %v2311 = vunpack.c.l.b16 %v2167
      %v2312 = vunpack.c.l.b16 %v2168
      %v2313 = vunpack.c.l.b16 %v2169
      %v2314 = vunpack.c.l.b16 %v2170
      %v2315 = vunpack.c.l.b16 %v2171
      %v2316 = vunpack.c.l.b16 %v2172
      %v2317 = vunpack.c.l.b16 %v2173
      %v2318 = vunpack.c.l.b16 %v2174
      %v2319 = vunpack.c.l.b16 %v2175
      %v2320 = vunpack.c.l.b16 %v2176
      %v2321 = vunpack.c.l.b16 %v2177
      %v2322 = vunpack.c.l.b16 %v2178
      %v2323 = vunpack.c.l.b16 %v2179
      %v2324 = vunpack.c.l.b16 %v2180
      %v2325 = vunpack.c.l.b16 %v2181
      %v2326 = vunpack.c.l.b16 %v2182
      %v2327 = vunpack.c.l.b16 %v2183
      %v2328 = vunpack.c.l.b16 %v2184
      %v2329 = vunpack.c.l.b16 %v2185
      %v2330 = vunpack.c.l.b16 %v2186
      %v2331 = vunpack.c.l.b16 %v2187
      %v2332 = vunpack.c.l.b16 %v2188
      %v2333 = vunpack.c.l.b16 %v2189
      %v2334 = vunpack.c.l.b16 %v2190
      %v2335 = vunpack.c.l.b16 %v2191
      %v2336 = vunpack.c.l.b16 %v2192
      %v2337 = vunpack.c.l.b16 %v2193
      %v2338 = vunpack.c.l.b16 %v2194
      %v2339 = vunpack.c.l.b16 %v2195
      %v2340 = vunpack.c.l.b16 %v2196
      %v2341 = vunpack.c.l.b16 %v2197
      %v2342 = vunpack.c.l.b16 %v2198
      %v2343 = vunpack.c.l.b16 %v2199
      %v2344 = vunpack.c.l.b16 %v2200
      %v2345 = vunpack.c.l.b16 %v2201
      %v2346 = vunpack.c.l.b16 %v2202
      %v2347 = vunpack.c.l.b16 %v2203
      %v2348 = vunpack.c.l.b16 %v2204
      %v2349 = vunpack.c.l.b16 %v2205
      %v2350 = vunpack.c.l.b16 %v2206
      %v2351 = vunpack.c.l.b16 %v2207
      %v2352 = vpack.c.b16 %v2281, %v2280
      %v2353 = vpack.c.b16 %v2283, %v2282
      %v2354 = vpack.c.b16 %v2285, %v2284
      %v2355 = vpack.c.b16 %v2287, %v2286
      %v2356 = vpack.c.b16 %v2289, %v2288
      %v2357 = vpack.c.b16 %v2291, %v2290
      %v2358 = vpack.c.b16 %v2293, %v2292
      %v2359 = vpack.c.b16 %v2295, %v2294
      %v2360 = vpack.c.b16 %v2297, %v2296
      %v2361 = vpack.c.b16 %v2299, %v2298
      %v2362 = vpack.c.b16 %v2301, %v2300
      %v2363 = vpack.c.b16 %v2303, %v2302
      %v2364 = vpack.c.b16 %v2305, %v2304
      %v2365 = vpack.c.b16 %v2307, %v2306
      %v2366 = vpack.c.b16 %v2309, %v2308
      %v2367 = vpack.c.b16 %v2311, %v2310
      %v2368 = vpack.c.b16 %v2313, %v2312
      %v2369 = vpack.c.b16 %v2315, %v2314
      %v2370 = vpack.c.b16 %v2317, %v2316
      %v2371 = vpack.c.b16 %v2319, %v2318
      %v2372 = vpack.c.b16 %v2321, %v2320
      %v2373 = vpack.c.b16 %v2323, %v2322
      %v2374 = vpack.c.b16 %v2325, %v2324
      %v2375 = vpack.c.b16 %v2327, %v2326
      %v2376 = vpack.c.b16 %v2329, %v2328
      %v2377 = vpack.c.b16 %v2331, %v2330
      %v2378 = vpack.c.b16 %v2333, %v2332
      %v2379 = vpack.c.b16 %v2335, %v2334
      %v2380 = vpack.c.b16 %v2337, %v2336
      %v2381 = vpack.c.b16 %v2339, %v2338
      %v2382 = vpack.c.b16 %v2341, %v2340
      %v2383 = vpack.c.b16 %v2343, %v2342
      %v2384 = vpack.c.b16 %v2345, %v2344
      %v2385 = vpack.c.b16 %v2347, %v2346
      %v2386 = vpack.c.b16 %v2349, %v2348
      %v2387 = vpack.c.b16 %v2351, %v2350
      %v2389 = vsel %vm589, %v2352, 0
      %v2392 = vsel %vm589, %v2353, 0
      %v2395 = vsel %vm589, %v2354, 0
      %v2398 = vsel %vm589, %v2355, 0
      %v2401 = vsel %vm589, %v2356, 0
      %v2404 = vsel %vm589, %v2357, 0
      %v2407 = vsel %vm589, %v2358, 0
      %v2410 = vsel %vm589, %v2359, 0
      %v2413 = vsel %vm589, %v2360, 0
      %v2416 = vsel %vm589, %v2361, 0
      %v2419 = vsel %vm589, %v2362, 0
      %v2422 = vsel %vm589, %v2363, 0
      %v2425 = vsel %vm589, %v2364, 0
      %v2428 = vsel %vm589, %v2365, 0
      %v2431 = vsel %vm589, %v2366, 0
      %v2434 = vsel %vm589, %v2367, 0
      %v2437 = vsel %vm589, %v2368, 0
      %v2440 = vsel %vm589, %v2369, 0
      %v2443 = vsel %vm589, %v2370, 0
      %v2446 = vsel %vm589, %v2371, 0
      %v2449 = vsel %vm589, %v2372, 0
      %v2452 = vsel %vm589, %v2373, 0
      %v2455 = vsel %vm589, %v2374, 0
      %v2458 = vsel %vm589, %v2375, 0
      %v2461 = vsel %vm589, %v2376, 0
      %v2464 = vsel %vm589, %v2377, 0
      %v2467 = vsel %vm589, %v2378, 0
      %v2470 = vsel %vm589, %v2379, 0
      %v2473 = vsel %vm589, %v2380, 0
      %v2476 = vsel %vm589, %v2381, 0
      %v2479 = vsel %vm589, %v2382, 0
      %v2482 = vsel %vm589, %v2383, 0
      %v2485 = vsel %vm589, %v2384, 0
      %v2488 = vsel %vm589, %v2385, 0
      %v2491 = vsel %vm589, %v2386, 0
      %v2494 = vsel %vm589, %v2387, 0
      %2496 = vmatpush.bf16.msra.mxu0 0
      %2497 = vmatpush.bf16.msra.mxu0 0
      %2498 = vmatpush.bf16.msra.mxu0 0
      %2499 = vmatpush.bf16.msra.mxu0 0
      %2500 = vmatpush.bf16.msra.mxu0 0
      %2501 = vmatpush.bf16.msra.mxu0 0
      %2502 = vmatpush.bf16.msra.mxu0 %v703
      %2503 = vmatpush.bf16.msra.mxu0 %v586
      %2504 = vmatmul.bf16.gmra.mxu0 %v2389
      %v2505 = vpop.f32.mrf.mxu0
      %v2506 = vadd.f32 0.0, %v2505
      %v2507 = vpop.f32.mrf.mxu0
      %v2508 = vadd.f32 0.0, %v2507
      %2509 = vmatmul.bf16.gmra.mxu0 %v2392
      %v2510 = vpop.f32.mrf.mxu0
      %v2511 = vadd.f32 0.0, %v2510
      %v2512 = vpop.f32.mrf.mxu0
      %v2513 = vadd.f32 0.0, %v2512
      %2514 = vmatmul.bf16.gmra.mxu0 %v2395
      %v2515 = vpop.f32.mrf.mxu0
      %v2516 = vadd.f32 0.0, %v2515
      %v2517 = vpop.f32.mrf.mxu0
      %v2518 = vadd.f32 0.0, %v2517
      %2519 = vmatmul.bf16.gmra.mxu0 %v2398
      %v2520 = vpop.f32.mrf.mxu0
      %v2521 = vadd.f32 0.0, %v2520
      %v2522 = vpop.f32.mrf.mxu0
      %v2523 = vadd.f32 0.0, %v2522
      %2524 = vmatmul.bf16.gmra.mxu0 %v2401
      %v2525 = vpop.f32.mrf.mxu0
      %v2526 = vadd.f32 0.0, %v2525
      %v2527 = vpop.f32.mrf.mxu0
      %v2528 = vadd.f32 0.0, %v2527
      %2529 = vmatmul.bf16.gmra.mxu0 %v2404
      %v2530 = vpop.f32.mrf.mxu0
      %v2531 = vadd.f32 0.0, %v2530
      %v2532 = vpop.f32.mrf.mxu0
      %v2533 = vadd.f32 0.0, %v2532
      %2534 = vmatmul.bf16.gmra.mxu0 %v2407
      %v2535 = vpop.f32.mrf.mxu0
      %v2536 = vadd.f32 0.0, %v2535
      %v2537 = vpop.f32.mrf.mxu0
      %v2538 = vadd.f32 0.0, %v2537
      %2539 = vmatmul.bf16.gmra.mxu0 %v2410
      %v2540 = vpop.f32.mrf.mxu0
      %v2541 = vadd.f32 0.0, %v2540
      %v2542 = vpop.f32.mrf.mxu0
      %v2543 = vadd.f32 0.0, %v2542
      %2544 = vmatmul.bf16.gmra.mxu0 %v2413
      %v2545 = vpop.f32.mrf.mxu0
      %v2546 = vadd.f32 0.0, %v2545
      %v2547 = vpop.f32.mrf.mxu0
      %v2548 = vadd.f32 0.0, %v2547
      %2549 = vmatmul.bf16.gmra.mxu0 %v2416
      %v2550 = vpop.f32.mrf.mxu0
      %v2551 = vadd.f32 0.0, %v2550
      %v2552 = vpop.f32.mrf.mxu0
      %v2553 = vadd.f32 0.0, %v2552
      %2554 = vmatmul.bf16.gmra.mxu0 %v2419
      %v2555 = vpop.f32.mrf.mxu0
      %v2556 = vadd.f32 0.0, %v2555
      %v2557 = vpop.f32.mrf.mxu0
      %v2558 = vadd.f32 0.0, %v2557
      %2559 = vmatmul.bf16.gmra.mxu0 %v2422
      %v2560 = vpop.f32.mrf.mxu0
      %v2561 = vadd.f32 0.0, %v2560
      %v2562 = vpop.f32.mrf.mxu0
      %v2563 = vadd.f32 0.0, %v2562
      %2564 = vmatmul.bf16.gmra.mxu0 %v2425
      %v2565 = vpop.f32.mrf.mxu0
      %v2566 = vadd.f32 0.0, %v2565
      %v2567 = vpop.f32.mrf.mxu0
      %v2568 = vadd.f32 0.0, %v2567
      %2569 = vmatmul.bf16.gmra.mxu0 %v2428
      %v2570 = vpop.f32.mrf.mxu0
      %v2571 = vadd.f32 0.0, %v2570
      %v2572 = vpop.f32.mrf.mxu0
      %v2573 = vadd.f32 0.0, %v2572
      %2574 = vmatmul.bf16.gmra.mxu0 %v2431
      %v2575 = vpop.f32.mrf.mxu0
      %v2576 = vadd.f32 0.0, %v2575
      %v2577 = vpop.f32.mrf.mxu0
      %v2578 = vadd.f32 0.0, %v2577
      %2579 = vmatmul.bf16.gmra.mxu0 %v2434
      %v2580 = vpop.f32.mrf.mxu0
      %v2581 = vadd.f32 0.0, %v2580
      %v2582 = vpop.f32.mrf.mxu0
      %v2583 = vadd.f32 0.0, %v2582
      %2584 = vmatmul.bf16.gmra.mxu0 %v2437
      %v2585 = vpop.f32.mrf.mxu0
      %v2586 = vadd.f32 0.0, %v2585
      %v2587 = vpop.f32.mrf.mxu0
      %v2588 = vadd.f32 0.0, %v2587
      %2589 = vmatmul.bf16.gmra.mxu0 %v2440
      %v2590 = vpop.f32.mrf.mxu0
      %v2591 = vadd.f32 0.0, %v2590
      %v2592 = vpop.f32.mrf.mxu0
      %v2593 = vadd.f32 0.0, %v2592
      %2594 = vmatmul.bf16.gmra.mxu0 %v2443
      %v2595 = vpop.f32.mrf.mxu0
      %v2596 = vadd.f32 0.0, %v2595
      %v2597 = vpop.f32.mrf.mxu0
      %v2598 = vadd.f32 0.0, %v2597
      %2599 = vmatmul.bf16.gmra.mxu0 %v2446
      %v2600 = vpop.f32.mrf.mxu0
      %v2601 = vadd.f32 0.0, %v2600
      %v2602 = vpop.f32.mrf.mxu0
      %v2603 = vadd.f32 0.0, %v2602
      %2604 = vmatmul.bf16.gmra.mxu0 %v2449
      %v2605 = vpop.f32.mrf.mxu0
      %v2606 = vadd.f32 0.0, %v2605
      %v2607 = vpop.f32.mrf.mxu0
      %v2608 = vadd.f32 0.0, %v2607
      %2609 = vmatmul.bf16.gmra.mxu0 %v2452
      %v2610 = vpop.f32.mrf.mxu0
      %v2611 = vadd.f32 0.0, %v2610
      %v2612 = vpop.f32.mrf.mxu0
      %v2613 = vadd.f32 0.0, %v2612
      %2614 = vmatmul.bf16.gmra.mxu0 %v2455
      %v2615 = vpop.f32.mrf.mxu0
      %v2616 = vadd.f32 0.0, %v2615
      %v2617 = vpop.f32.mrf.mxu0
      %v2618 = vadd.f32 0.0, %v2617
      %2619 = vmatmul.bf16.gmra.mxu0 %v2458
      %v2620 = vpop.f32.mrf.mxu0
      %v2621 = vadd.f32 0.0, %v2620
      %v2622 = vpop.f32.mrf.mxu0
      %v2623 = vadd.f32 0.0, %v2622
      %2624 = vmatmul.bf16.gmra.mxu0 %v2461
      %v2625 = vpop.f32.mrf.mxu0
      %v2626 = vadd.f32 0.0, %v2625
      %v2627 = vpop.f32.mrf.mxu0
      %v2628 = vadd.f32 0.0, %v2627
      %2629 = vmatmul.bf16.gmra.mxu0 %v2464
      %v2630 = vpop.f32.mrf.mxu0
      %v2631 = vadd.f32 0.0, %v2630
      %v2632 = vpop.f32.mrf.mxu0
      %v2633 = vadd.f32 0.0, %v2632
      %2634 = vmatmul.bf16.gmra.mxu0 %v2467
      %v2635 = vpop.f32.mrf.mxu0
      %v2636 = vadd.f32 0.0, %v2635
      %v2637 = vpop.f32.mrf.mxu0
      %v2638 = vadd.f32 0.0, %v2637
      %2639 = vmatmul.bf16.gmra.mxu0 %v2470
      %v2640 = vpop.f32.mrf.mxu0
      %v2641 = vadd.f32 0.0, %v2640
      %v2642 = vpop.f32.mrf.mxu0
      %v2643 = vadd.f32 0.0, %v2642
      %2644 = vmatmul.bf16.gmra.mxu0 %v2473
      %v2645 = vpop.f32.mrf.mxu0
      %v2646 = vadd.f32 0.0, %v2645
      %v2647 = vpop.f32.mrf.mxu0
      %v2648 = vadd.f32 0.0, %v2647
      %2649 = vmatmul.bf16.gmra.mxu0 %v2476
      %v2650 = vpop.f32.mrf.mxu0
      %v2651 = vadd.f32 0.0, %v2650
      %v2652 = vpop.f32.mrf.mxu0
      %v2653 = vadd.f32 0.0, %v2652
      %2654 = vmatmul.bf16.gmra.mxu0 %v2479
      %v2655 = vpop.f32.mrf.mxu0
      %v2656 = vadd.f32 0.0, %v2655
      %v2657 = vpop.f32.mrf.mxu0
      %v2658 = vadd.f32 0.0, %v2657
      %2659 = vmatmul.bf16.gmra.mxu0 %v2482
      %v2660 = vpop.f32.mrf.mxu0
      %v2661 = vadd.f32 0.0, %v2660
      %v2662 = vpop.f32.mrf.mxu0
      %v2663 = vadd.f32 0.0, %v2662
      %2664 = vmatmul.bf16.gmra.mxu0 %v2485
      %v2665 = vpop.f32.mrf.mxu0
      %v2666 = vadd.f32 0.0, %v2665
      %v2667 = vpop.f32.mrf.mxu0
      %v2668 = vadd.f32 0.0, %v2667
      %2669 = vmatmul.bf16.gmra.mxu0 %v2488
      %v2670 = vpop.f32.mrf.mxu0
      %v2671 = vadd.f32 0.0, %v2670
      %v2672 = vpop.f32.mrf.mxu0
      %v2673 = vadd.f32 0.0, %v2672
      %2674 = vmatmul.bf16.gmra.mxu0 %v2491
      %v2675 = vpop.f32.mrf.mxu0
      %v2676 = vadd.f32 0.0, %v2675
      %v2677 = vpop.f32.mrf.mxu0
      %v2678 = vadd.f32 0.0, %v2677
      %2679 = vmatmul.bf16.gmra.mxu0 %v2494
      %v2680 = vpop.f32.mrf.mxu0
      %v2681 = vadd.f32 0.0, %v2680
      %v2682 = vpop.f32.mrf.mxu0
      %v2683 = vadd.f32 0.0, %v2682
      %2684 = vdwg.mxu0
      %v2685 = vmax.f32 %v2064, %v2506
      %v2686 = vmax.f32 %v2065, %v2508
      %v2687 = vmax.f32 %v2066, %v2511
      %v2688 = vmax.f32 %v2067, %v2513
      %v2689 = vmax.f32 %v2068, %v2516
      %v2690 = vmax.f32 %v2069, %v2518
      %v2691 = vmax.f32 %v2070, %v2521
      %v2692 = vmax.f32 %v2071, %v2523
      %v2693 = vmax.f32 %v2072, %v2526
      %v2694 = vmax.f32 %v2073, %v2528
      %v2695 = vmax.f32 %v2074, %v2531
      %v2696 = vmax.f32 %v2075, %v2533
      %v2697 = vmax.f32 %v2076, %v2536
      %v2698 = vmax.f32 %v2077, %v2538
      %v2699 = vmax.f32 %v2078, %v2541
      %v2700 = vmax.f32 %v2079, %v2543
      %v2701 = vmax.f32 %v2080, %v2546
      %v2702 = vmax.f32 %v2081, %v2548
      %v2703 = vmax.f32 %v2082, %v2551
      %v2704 = vmax.f32 %v2083, %v2553
      %v2705 = vmax.f32 %v2084, %v2556
      %v2706 = vmax.f32 %v2085, %v2558
      %v2707 = vmax.f32 %v2086, %v2561
      %v2708 = vmax.f32 %v2087, %v2563
      %v2709 = vmax.f32 %v2088, %v2566
      %v2710 = vmax.f32 %v2089, %v2568
      %v2711 = vmax.f32 %v2090, %v2571
      %v2712 = vmax.f32 %v2091, %v2573
      %v2713 = vmax.f32 %v2092, %v2576
      %v2714 = vmax.f32 %v2093, %v2578
      %v2715 = vmax.f32 %v2094, %v2581
      %v2716 = vmax.f32 %v2095, %v2583
      %v2717 = vmax.f32 %v2096, %v2586
      %v2718 = vmax.f32 %v2097, %v2588
      %v2719 = vmax.f32 %v2098, %v2591
      %v2720 = vmax.f32 %v2099, %v2593
      %v2721 = vmax.f32 %v2100, %v2596
      %v2722 = vmax.f32 %v2101, %v2598
      %v2723 = vmax.f32 %v2102, %v2601
      %v2724 = vmax.f32 %v2103, %v2603
      %v2725 = vmax.f32 %v2104, %v2606
      %v2726 = vmax.f32 %v2105, %v2608
      %v2727 = vmax.f32 %v2106, %v2611
      %v2728 = vmax.f32 %v2107, %v2613
      %v2729 = vmax.f32 %v2108, %v2616
      %v2730 = vmax.f32 %v2109, %v2618
      %v2731 = vmax.f32 %v2110, %v2621
      %v2732 = vmax.f32 %v2111, %v2623
      %v2733 = vmax.f32 %v2112, %v2626
      %v2734 = vmax.f32 %v2113, %v2628
      %v2735 = vmax.f32 %v2114, %v2631
      %v2736 = vmax.f32 %v2115, %v2633
      %v2737 = vmax.f32 %v2116, %v2636
      %v2738 = vmax.f32 %v2117, %v2638
      %v2739 = vmax.f32 %v2118, %v2641
      %v2740 = vmax.f32 %v2119, %v2643
      %v2741 = vmax.f32 %v2120, %v2646
      %v2742 = vmax.f32 %v2121, %v2648
      %v2743 = vmax.f32 %v2122, %v2651
      %v2744 = vmax.f32 %v2123, %v2653
      %v2745 = vmax.f32 %v2124, %v2656
      %v2746 = vmax.f32 %v2125, %v2658
      %v2747 = vmax.f32 %v2126, %v2661
      %v2748 = vmax.f32 %v2127, %v2663
      %v2749 = vmax.f32 %v2128, %v2666
      %v2750 = vmax.f32 %v2129, %v2668
      %v2751 = vmax.f32 %v2130, %v2671
      %v2752 = vmax.f32 %v2131, %v2673
      %v2753 = vmax.f32 %v2132, %v2676
      %v2754 = vmax.f32 %v2133, %v2678
      %v2755 = vmax.f32 %v2134, %v2681
      %v2756 = vmax.f32 %v2135, %v2683
      %v2757 = vld [vmem:[%s5] sm:$0x1]
      %v2759 = vperm.slane %v2757, 0
      %v2761 = vadd.f32 %v2685, %v2759
      %v2762 = vadd.f32 %v2686, %v2759
      %v2763 = vadd.f32 %v2687, %v2759
      %v2764 = vadd.f32 %v2688, %v2759
      %v2765 = vadd.f32 %v2689, %v2759
      %v2766 = vadd.f32 %v2690, %v2759
      %v2767 = vadd.f32 %v2691, %v2759
      %v2768 = vadd.f32 %v2692, %v2759
      %v2769 = vadd.f32 %v2693, %v2759
      %v2770 = vadd.f32 %v2694, %v2759
      %v2771 = vadd.f32 %v2695, %v2759
      %v2772 = vadd.f32 %v2696, %v2759
      %v2773 = vadd.f32 %v2697, %v2759
      %v2774 = vadd.f32 %v2698, %v2759
      %v2775 = vadd.f32 %v2699, %v2759
      %v2776 = vadd.f32 %v2700, %v2759
      %v2777 = vadd.f32 %v2701, %v2759
      %v2778 = vadd.f32 %v2702, %v2759
      %v2779 = vadd.f32 %v2703, %v2759
      %v2780 = vadd.f32 %v2704, %v2759
      %v2781 = vadd.f32 %v2705, %v2759
      %v2782 = vadd.f32 %v2706, %v2759
      %v2783 = vadd.f32 %v2707, %v2759
      %v2784 = vadd.f32 %v2708, %v2759
      %v2785 = vadd.f32 %v2709, %v2759
      %v2786 = vadd.f32 %v2710, %v2759
      %v2787 = vadd.f32 %v2711, %v2759
      %v2788 = vadd.f32 %v2712, %v2759
      %v2789 = vadd.f32 %v2713, %v2759
      %v2790 = vadd.f32 %v2714, %v2759
      %v2791 = vadd.f32 %v2715, %v2759
      %v2792 = vadd.f32 %v2716, %v2759
      %v2793 = vadd.f32 %v2717, %v2759
      %v2794 = vadd.f32 %v2718, %v2759
      %v2795 = vadd.f32 %v2719, %v2759
      %v2796 = vadd.f32 %v2720, %v2759
      %v2797 = vadd.f32 %v2721, %v2759
      %v2798 = vadd.f32 %v2722, %v2759
      %v2799 = vadd.f32 %v2723, %v2759
      %v2800 = vadd.f32 %v2724, %v2759
      %v2801 = vadd.f32 %v2725, %v2759
      %v2802 = vadd.f32 %v2726, %v2759
      %v2803 = vadd.f32 %v2727, %v2759
      %v2804 = vadd.f32 %v2728, %v2759
      %v2805 = vadd.f32 %v2729, %v2759
      %v2806 = vadd.f32 %v2730, %v2759
      %v2807 = vadd.f32 %v2731, %v2759
      %v2808 = vadd.f32 %v2732, %v2759
      %v2809 = vadd.f32 %v2733, %v2759
      %v2810 = vadd.f32 %v2734, %v2759
      %v2811 = vadd.f32 %v2735, %v2759
      %v2812 = vadd.f32 %v2736, %v2759
      %v2813 = vadd.f32 %v2737, %v2759
      %v2814 = vadd.f32 %v2738, %v2759
      %v2815 = vadd.f32 %v2739, %v2759
      %v2816 = vadd.f32 %v2740, %v2759
      %v2817 = vadd.f32 %v2741, %v2759
      %v2818 = vadd.f32 %v2742, %v2759
      %v2819 = vadd.f32 %v2743, %v2759
      %v2820 = vadd.f32 %v2744, %v2759
      %v2821 = vadd.f32 %v2745, %v2759
      %v2822 = vadd.f32 %v2746, %v2759
      %v2823 = vadd.f32 %v2747, %v2759
      %v2824 = vadd.f32 %v2748, %v2759
      %v2825 = vadd.f32 %v2749, %v2759
      %v2826 = vadd.f32 %v2750, %v2759
      %v2827 = vadd.f32 %v2751, %v2759
      %v2828 = vadd.f32 %v2752, %v2759
      %v2829 = vadd.f32 %v2753, %v2759
      %v2830 = vadd.f32 %v2754, %v2759
      %v2831 = vadd.f32 %v2755, %v2759
      %v2832 = vadd.f32 %v2756, %v2759
      %v2833 = vmax.f32 %v2761, 0.0
      %v2834 = vmax.f32 %v2762, 0.0
      %v2835 = vmax.f32 %v2763, 0.0
      %v2836 = vmax.f32 %v2764, 0.0
      %v2837 = vmax.f32 %v2765, 0.0
      %v2838 = vmax.f32 %v2766, 0.0
      %v2839 = vmax.f32 %v2767, 0.0
      %v2840 = vmax.f32 %v2768, 0.0
      %v2841 = vmax.f32 %v2769, 0.0
      %v2842 = vmax.f32 %v2770, 0.0
      %v2843 = vmax.f32 %v2771, 0.0
      %v2844 = vmax.f32 %v2772, 0.0
      %v2845 = vmax.f32 %v2773, 0.0
      %v2846 = vmax.f32 %v2774, 0.0
      %v2847 = vmax.f32 %v2775, 0.0
      %v2848 = vmax.f32 %v2776, 0.0
      %v2849 = vmax.f32 %v2777, 0.0
      %v2850 = vmax.f32 %v2778, 0.0
      %v2851 = vmax.f32 %v2779, 0.0
      %v2852 = vmax.f32 %v2780, 0.0
      %v2853 = vmax.f32 %v2781, 0.0
      %v2854 = vmax.f32 %v2782, 0.0
      %v2855 = vmax.f32 %v2783, 0.0
      %v2856 = vmax.f32 %v2784, 0.0
      %v2857 = vmax.f32 %v2785, 0.0
      %v2858 = vmax.f32 %v2786, 0.0
      %v2859 = vmax.f32 %v2787, 0.0
      %v2860 = vmax.f32 %v2788, 0.0
      %v2861 = vmax.f32 %v2789, 0.0
      %v2862 = vmax.f32 %v2790, 0.0
      %v2863 = vmax.f32 %v2791, 0.0
      %v2864 = vmax.f32 %v2792, 0.0
      %v2865 = vmax.f32 %v2793, 0.0
      %v2866 = vmax.f32 %v2794, 0.0
      %v2867 = vmax.f32 %v2795, 0.0
      %v2868 = vmax.f32 %v2796, 0.0
      %v2869 = vmax.f32 %v2797, 0.0
      %v2870 = vmax.f32 %v2798, 0.0
      %v2871 = vmax.f32 %v2799, 0.0
      %v2872 = vmax.f32 %v2800, 0.0
      %v2873 = vmax.f32 %v2801, 0.0
      %v2874 = vmax.f32 %v2802, 0.0
      %v2875 = vmax.f32 %v2803, 0.0
      %v2876 = vmax.f32 %v2804, 0.0
      %v2877 = vmax.f32 %v2805, 0.0
      %v2878 = vmax.f32 %v2806, 0.0
      %v2879 = vmax.f32 %v2807, 0.0
      %v2880 = vmax.f32 %v2808, 0.0
      %v2881 = vmax.f32 %v2809, 0.0
      %v2882 = vmax.f32 %v2810, 0.0
      %v2883 = vmax.f32 %v2811, 0.0
      %v2884 = vmax.f32 %v2812, 0.0
      %v2885 = vmax.f32 %v2813, 0.0
      %v2886 = vmax.f32 %v2814, 0.0
      %v2887 = vmax.f32 %v2815, 0.0
      %v2888 = vmax.f32 %v2816, 0.0
      %v2889 = vmax.f32 %v2817, 0.0
      %v2890 = vmax.f32 %v2818, 0.0
      %v2891 = vmax.f32 %v2819, 0.0
      %v2892 = vmax.f32 %v2820, 0.0
      %v2893 = vmax.f32 %v2821, 0.0
      %v2894 = vmax.f32 %v2822, 0.0
      %v2895 = vmax.f32 %v2823, 0.0
      %v2896 = vmax.f32 %v2824, 0.0
      %v2897 = vmax.f32 %v2825, 0.0
      %v2898 = vmax.f32 %v2826, 0.0
      %v2899 = vmax.f32 %v2827, 0.0
      %v2900 = vmax.f32 %v2828, 0.0
      %v2901 = vmax.f32 %v2829, 0.0
      %v2902 = vmax.f32 %v2830, 0.0
      %v2903 = vmax.f32 %v2831, 0.0
      %v2904 = vmax.f32 %v2832, 0.0
      %v2905 = vpack.c.bf16 %v2833, %v2833
      %v2906 = vpack.c.bf16 %v2834, %v2834
      %v2907 = vpack.c.bf16 %v2835, %v2835
      %v2908 = vpack.c.bf16 %v2836, %v2836
      %v2909 = vpack.c.bf16 %v2837, %v2837
      %v2910 = vpack.c.bf16 %v2838, %v2838
      %v2911 = vpack.c.bf16 %v2839, %v2839
      %v2912 = vpack.c.bf16 %v2840, %v2840
      %v2913 = vpack.c.bf16 %v2841, %v2841
      %v2914 = vpack.c.bf16 %v2842, %v2842
      %v2915 = vpack.c.bf16 %v2843, %v2843
      %v2916 = vpack.c.bf16 %v2844, %v2844
      %v2917 = vpack.c.bf16 %v2845, %v2845
      %v2918 = vpack.c.bf16 %v2846, %v2846
      %v2919 = vpack.c.bf16 %v2847, %v2847
      %v2920 = vpack.c.bf16 %v2848, %v2848
      %v2921 = vpack.c.bf16 %v2849, %v2849
      %v2922 = vpack.c.bf16 %v2850, %v2850
      %v2923 = vpack.c.bf16 %v2851, %v2851
      %v2924 = vpack.c.bf16 %v2852, %v2852
      %v2925 = vpack.c.bf16 %v2853, %v2853
      %v2926 = vpack.c.bf16 %v2854, %v2854
      %v2927 = vpack.c.bf16 %v2855, %v2855
      %v2928 = vpack.c.bf16 %v2856, %v2856
      %v2929 = vpack.c.bf16 %v2857, %v2857
      %v2930 = vpack.c.bf16 %v2858, %v2858
      %v2931 = vpack.c.bf16 %v2859, %v2859
      %v2932 = vpack.c.bf16 %v2860, %v2860
      %v2933 = vpack.c.bf16 %v2861, %v2861
      %v2934 = vpack.c.bf16 %v2862, %v2862
      %v2935 = vpack.c.bf16 %v2863, %v2863
      %v2936 = vpack.c.bf16 %v2864, %v2864
      %v2937 = vpack.c.bf16 %v2865, %v2865
      %v2938 = vpack.c.bf16 %v2866, %v2866
      %v2939 = vpack.c.bf16 %v2867, %v2867
      %v2940 = vpack.c.bf16 %v2868, %v2868
      %v2941 = vpack.c.bf16 %v2869, %v2869
      %v2942 = vpack.c.bf16 %v2870, %v2870
      %v2943 = vpack.c.bf16 %v2871, %v2871
      %v2944 = vpack.c.bf16 %v2872, %v2872
      %v2945 = vpack.c.bf16 %v2873, %v2873
      %v2946 = vpack.c.bf16 %v2874, %v2874
      %v2947 = vpack.c.bf16 %v2875, %v2875
      %v2948 = vpack.c.bf16 %v2876, %v2876
      %v2949 = vpack.c.bf16 %v2877, %v2877
      %v2950 = vpack.c.bf16 %v2878, %v2878
      %v2951 = vpack.c.bf16 %v2879, %v2879
      %v2952 = vpack.c.bf16 %v2880, %v2880
      %v2953 = vpack.c.bf16 %v2881, %v2881
      %v2954 = vpack.c.bf16 %v2882, %v2882
      %v2955 = vpack.c.bf16 %v2883, %v2883
      %v2956 = vpack.c.bf16 %v2884, %v2884
      %v2957 = vpack.c.bf16 %v2885, %v2885
      %v2958 = vpack.c.bf16 %v2886, %v2886
      %v2959 = vpack.c.bf16 %v2887, %v2887
      %v2960 = vpack.c.bf16 %v2888, %v2888
      %v2961 = vpack.c.bf16 %v2889, %v2889
      %v2962 = vpack.c.bf16 %v2890, %v2890
      %v2963 = vpack.c.bf16 %v2891, %v2891
      %v2964 = vpack.c.bf16 %v2892, %v2892
      %v2965 = vpack.c.bf16 %v2893, %v2893
      %v2966 = vpack.c.bf16 %v2894, %v2894
      %v2967 = vpack.c.bf16 %v2895, %v2895
      %v2968 = vpack.c.bf16 %v2896, %v2896
      %v2969 = vpack.c.bf16 %v2897, %v2897
      %v2970 = vpack.c.bf16 %v2898, %v2898
      %v2971 = vpack.c.bf16 %v2899, %v2899
      %v2972 = vpack.c.bf16 %v2900, %v2900
      %v2973 = vpack.c.bf16 %v2901, %v2901
      %v2974 = vpack.c.bf16 %v2902, %v2902
      %v2975 = vpack.c.bf16 %v2903, %v2903
      %v2976 = vpack.c.bf16 %v2904, %v2904
      %2977 = vst [vmem:[%s319] sm:$0xf] %v2905
      %2978 = vst [vmem:[%s319 + $0x4] sm:$0xf] %v2906
      %2979 = vst [vmem:[%s319 + $0x8] sm:$0xf] %v2907
      %2980 = vst [vmem:[%s319 + $0xc] sm:$0xf] %v2908
      %2981 = vst [vmem:[%s319 + $0x10] sm:$0xf] %v2909
      %2982 = vst [vmem:[%s319 + $0x14] sm:$0xf] %v2910
      %2983 = vst [vmem:[%s319 + $0x18] sm:$0xf] %v2911
      %2984 = vst [vmem:[%s319 + $0x1c] sm:$0xf] %v2912
      %2985 = vst [vmem:[%s319 + $0x20] sm:$0xf] %v2913
      %2986 = vst [vmem:[%s319 + $0x24] sm:$0xf] %v2914
      %2987 = vst [vmem:[%s319 + $0x28] sm:$0xf] %v2915
      %2988 = vst [vmem:[%s319 + $0x2c] sm:$0xf] %v2916
      %2989 = vst [vmem:[%s319 + $0x30] sm:$0xf] %v2917
      %2990 = vst [vmem:[%s319 + $0x34] sm:$0xf] %v2918
      %2991 = vst [vmem:[%s319 + $0x38] sm:$0xf] %v2919
      %2992 = vst [vmem:[%s319 + $0x3c] sm:$0xf] %v2920
      %2993 = vst [vmem:[%s319 + $0x40] sm:$0xf] %v2921
      %2994 = vst [vmem:[%s319 + $0x44] sm:$0xf] %v2922
      %2995 = vst [vmem:[%s319 + $0x48] sm:$0xf] %v2923
      %2996 = vst [vmem:[%s319 + $0x4c] sm:$0xf] %v2924
      %2997 = vst [vmem:[%s319 + $0x50] sm:$0xf] %v2925
      %2998 = vst [vmem:[%s319 + $0x54] sm:$0xf] %v2926
      %2999 = vst [vmem:[%s319 + $0x58] sm:$0xf] %v2927
      %3000 = vst [vmem:[%s319 + $0x5c] sm:$0xf] %v2928
      %3001 = vst [vmem:[%s319 + $0x60] sm:$0xf] %v2929
      %3002 = vst [vmem:[%s319 + $0x64] sm:$0xf] %v2930
      %3003 = vst [vmem:[%s319 + $0x68] sm:$0xf] %v2931
      %3004 = vst [vmem:[%s319 + $0x6c] sm:$0xf] %v2932
      %3005 = vst [vmem:[%s319 + $0x70] sm:$0xf] %v2933
      %3006 = vst [vmem:[%s319 + $0x74] sm:$0xf] %v2934
      %3007 = vst [vmem:[%s319 + $0x78] sm:$0xf] %v2935
      %3008 = vst [vmem:[%s319 + $0x7c] sm:$0xf] %v2936
      %3009 = vst [vmem:[%s319 + $0x80] sm:$0xf] %v2937
      %3010 = vst [vmem:[%s319 + $0x84] sm:$0xf] %v2938
      %3011 = vst [vmem:[%s319 + $0x88] sm:$0xf] %v2939
      %3012 = vst [vmem:[%s319 + $0x8c] sm:$0xf] %v2940
      %3013 = vst [vmem:[%s319 + $0x90] sm:$0xf] %v2941
      %3014 = vst [vmem:[%s319 + $0x94] sm:$0xf] %v2942
      %3015 = vst [vmem:[%s319 + $0x98] sm:$0xf] %v2943
      %3016 = vst [vmem:[%s319 + $0x9c] sm:$0xf] %v2944
      %3017 = vst [vmem:[%s319 + $0xa0] sm:$0xf] %v2945
      %3018 = vst [vmem:[%s319 + $0xa4] sm:$0xf] %v2946
      %3019 = vst [vmem:[%s319 + $0xa8] sm:$0xf] %v2947
      %3020 = vst [vmem:[%s319 + $0xac] sm:$0xf] %v2948
      %3021 = vst [vmem:[%s319 + $0xb0] sm:$0xf] %v2949
      %3022 = vst [vmem:[%s319 + $0xb4] sm:$0xf] %v2950
      %3023 = vst [vmem:[%s319 + $0xb8] sm:$0xf] %v2951
      %3024 = vst [vmem:[%s319 + $0xbc] sm:$0xf] %v2952
      %3025 = vst [vmem:[%s319 + $0xc0] sm:$0xf] %v2953
      %3026 = vst [vmem:[%s319 + $0xc4] sm:$0xf] %v2954
      %3027 = vst [vmem:[%s319 + $0xc8] sm:$0xf] %v2955
      %3028 = vst [vmem:[%s319 + $0xcc] sm:$0xf] %v2956
      %3029 = vst [vmem:[%s319 + $0xd0] sm:$0xf] %v2957
      %3030 = vst [vmem:[%s319 + $0xd4] sm:$0xf] %v2958
      %3031 = vst [vmem:[%s319 + $0xd8] sm:$0xf] %v2959
      %3032 = vst [vmem:[%s319 + $0xdc] sm:$0xf] %v2960
      %3033 = vst [vmem:[%s319 + $0xe0] sm:$0xf] %v2961
      %3034 = vst [vmem:[%s319 + $0xe4] sm:$0xf] %v2962
      %3035 = vst [vmem:[%s319 + $0xe8] sm:$0xf] %v2963
      %3036 = vst [vmem:[%s319 + $0xec] sm:$0xf] %v2964
      %3037 = vst [vmem:[%s319 + $0xf0] sm:$0xf] %v2965
      %3038 = vst [vmem:[%s319 + $0xf4] sm:$0xf] %v2966
      %3039 = vst [vmem:[%s319 + $0xf8] sm:$0xf] %v2967
      %3040 = vst [vmem:[%s319 + $0xfc] sm:$0xf] %v2968
      %3041 = vst [vmem:[%s319 + $0x100] sm:$0xf] %v2969
      %3042 = vst [vmem:[%s319 + $0x104] sm:$0xf] %v2970
      %3043 = vst [vmem:[%s319 + $0x108] sm:$0xf] %v2971
      %3044 = vst [vmem:[%s319 + $0x10c] sm:$0xf] %v2972
      %3045 = vst [vmem:[%s319 + $0x110] sm:$0xf] %v2973
      %3046 = vst [vmem:[%s319 + $0x114] sm:$0xf] %v2974
      %3047 = vst [vmem:[%s319 + $0x118] sm:$0xf] %v2975
      %3048 = vst [vmem:[%s319 + $0x11c] sm:$0xf] %v2976
      %s3049 = smul.u32 72, %s17
      %p3050 = scmp.lt.s32.totalorder %s3049, 143
      %s3051 = scalar_select %p3050, %s3049, 143
      %s3052 = smul.addr %s3051, 4
      %s3053 = scalar_lea.vmem %s6, %s3052
      // Predicated region
      $region45: #{captcha_forward.3} parent=43 // pred_check
        %p3054 = pneg %p181
      $region46: #{captcha_forward.3} parent=43 // pred_check_branch
        %3056 = sbr.rel (%p3054) target = $region48
      $region47: #{captcha_forward.3} parent=43 // pred_region
        %s3057 = smul.u32 72, %s17
      $region48: #{captcha_forward.3} parent=43 // pred_fallthru
        _
    $region44: #{captcha_forward.3} parent=5 // pred_fallthru
      _
    %p3058 = scmp.le.s32.totalorder 2, %s12
    // Predicated region
    $region49: #{captcha_forward.3} parent=5 // pred_check
      %p3059 = pneg %p3058
    $region50: #{captcha_forward.3} parent=5 // pred_check_branch
      %3061 = sbr.rel (%p3059) target = $region52
    $region51: #{captcha_forward.3} parent=5 // pred_region
      %s3062 = ssub.s32 %s12, 2
      // Predicated region
      $region53: #{captcha_forward.3} parent=51 // pred_check
        %p3063 = pneg %p187
      $region54: #{captcha_forward.3} parent=51 // pred_check_branch
        %3065 = sbr.rel (%p3063) target = $region56
      $region55: #{captcha_forward.3} parent=51 // pred_region
        %s3066 = smul.u32 72, %s18
        %p3067 = scmp.lt.s32.totalorder %s3066, 143
        %s3068 = scalar_select %p3067, %s3066, 143
        %s3069 = smul.addr %s3068, 4
        %s3070 = scalar_lea.vmem %s6, %s3069
      $region56: #{captcha_forward.3} parent=51 // pred_fallthru
        _
    $region52: #{captcha_forward.3} parent=5 // pred_fallthru
      _
  $region6: #{captcha_forward.3} parent=0 // loop_footer
    %s16 = sadd.s32 1, %s12
  $region7: #{captcha_forward.3} parent=0 // loop_footer_branch
    %11 = sbr.rel target = $region3
  $region8: #{captcha_forward.3} parent=0 // loop_exit
    _

// kernel: captcha_forward.5
$region0: #{captcha_forward.5}
  #allocation0 [shape = 'u32[]', space=smem, size = 0x4, offset = 0x4, fixed_abs, tag = 'smem constant byte address 0x4 - core index']
  #allocation1 [shape = 'u32[72,128]{1,0:T(1,128)}', space=vmem, size = 0x9000, scoped, tag = 'internal scratch']
  %s0 = inlined_call_operand.vmem [shape: bf16[2,8,1152], index: 0, kind: input, shape index: {}]
  %s1 = inlined_call_operand.vmem [shape: bf16[1152,64], index: 1, kind: input, shape index: {}]
  %s2 = inlined_call_operand.vmem [shape: f32[1,64], index: 2, kind: input, shape index: {}]
  %s3 = inlined_call_operand.vmem [shape: bf16[64,192], index: 3, kind: input, shape index: {}]
  %s4 = inlined_call_operand.vmem [shape: f32[1,192], index: 4, kind: input, shape index: {}]
  %s5 = inlined_call_operand.vmem [shape: bf16[64,192], index: 5, kind: input, shape index: {}]
  %s6 = inlined_call_operand.vmem [shape: f32[1,192], index: 6, kind: input, shape index: {}]
  %s7 = inlined_call_operand.vmem [shape: bf16[64,192], index: 7, kind: input, shape index: {}]
  %s8 = inlined_call_operand.vmem [shape: f32[1,192], index: 8, kind: input, shape index: {}]
  %s9 = inlined_call_operand.vmem [shape: bf16[64,192], index: 9, kind: input, shape index: {}]
  %s10 = inlined_call_operand.vmem [shape: f32[1,192], index: 10, kind: input, shape index: {}]
  %s11 = inlined_call_operand.vmem [shape: bf16[64,128], index: 11, kind: input, shape index: {}]
  %s12 = inlined_call_operand.vmem [shape: f32[1,128], index: 12, kind: input, shape index: {}]
  %s13 = inlined_call_operand.vmem [shape: f32[2,8,128], index: 13, kind: output, shape index: {}]
  %s14 = sld [smem:[#allocation0]]
  $region62: #{captcha_forward.5} parent=0
    _
  %s16 = ssub.s32 1, %s14
  %s17 = scalar_select 0, %s16, %s14
  // Predicated region
  $region2: #{captcha_forward.5} parent=0 // pred_check
    _
  $region3: #{captcha_forward.5} parent=0 // pred_check_branch
    %19 = sbr.rel (0) target = $region5
  $region4: #{captcha_forward.5} parent=0 // pred_region
    _
  $region5: #{captcha_forward.5} parent=0 // pred_fallthru
    _
  // Predicated region
  $region6: #{captcha_forward.5} parent=0 // pred_check
    _
  $region7: #{captcha_forward.5} parent=0 // pred_check_branch
    %21 = sbr.rel (0) target = $region9
  $region8: #{captcha_forward.5} parent=0 // pred_region
    _
  $region9: #{captcha_forward.5} parent=0 // pred_fallthru
    _
  // Predicated region
  $region10: #{captcha_forward.5} parent=0 // pred_check
    _
  $region11: #{captcha_forward.5} parent=0 // pred_check_branch
    %23 = sbr.rel (0) target = $region13
  $region12: #{captcha_forward.5} parent=0 // pred_region
    _
  $region13: #{captcha_forward.5} parent=0 // pred_fallthru
    _
  // Predicated region
  $region14: #{captcha_forward.5} parent=0 // pred_check
    _
  $region15: #{captcha_forward.5} parent=0 // pred_check_branch
    %25 = sbr.rel (0) target = $region17
  $region16: #{captcha_forward.5} parent=0 // pred_region
    _
  $region17: #{captcha_forward.5} parent=0 // pred_fallthru
    _
  // Predicated region
  $region18: #{captcha_forward.5} parent=0 // pred_check
    _
  $region19: #{captcha_forward.5} parent=0 // pred_check_branch
    %27 = sbr.rel (0) target = $region21
  $region20: #{captcha_forward.5} parent=0 // pred_region
    _
  $region21: #{captcha_forward.5} parent=0 // pred_fallthru
    _
  // Predicated region
  $region22: #{captcha_forward.5} parent=0 // pred_check
    _
  $region23: #{captcha_forward.5} parent=0 // pred_check_branch
    %29 = sbr.rel (0) target = $region25
  $region24: #{captcha_forward.5} parent=0 // pred_region
    _
  $region25: #{captcha_forward.5} parent=0 // pred_fallthru
    _
  // Predicated region
  $region26: #{captcha_forward.5} parent=0 // pred_check
    _
  $region27: #{captcha_forward.5} parent=0 // pred_check_branch
    %31 = sbr.rel (0) target = $region29
  $region28: #{captcha_forward.5} parent=0 // pred_region
    _
  $region29: #{captcha_forward.5} parent=0 // pred_fallthru
    _
  // Predicated region
  $region30: #{captcha_forward.5} parent=0 // pred_check
    _
  $region31: #{captcha_forward.5} parent=0 // pred_check_branch
    %33 = sbr.rel (0) target = $region33
  $region32: #{captcha_forward.5} parent=0 // pred_region
    _
  $region33: #{captcha_forward.5} parent=0 // pred_fallthru
    _
  // Predicated region
  $region34: #{captcha_forward.5} parent=0 // pred_check
    _
  $region35: #{captcha_forward.5} parent=0 // pred_check_branch
    %35 = sbr.rel (0) target = $region37
  $region36: #{captcha_forward.5} parent=0 // pred_region
    _
  $region37: #{captcha_forward.5} parent=0 // pred_fallthru
    _
  // Predicated region
  $region38: #{captcha_forward.5} parent=0 // pred_check
    _
  $region39: #{captcha_forward.5} parent=0 // pred_check_branch
    %37 = sbr.rel (0) target = $region41
  $region40: #{captcha_forward.5} parent=0 // pred_region
    _
  $region41: #{captcha_forward.5} parent=0 // pred_fallthru
    _
  // Predicated region
  $region42: #{captcha_forward.5} parent=0 // pred_check
    _
  $region43: #{captcha_forward.5} parent=0 // pred_check_branch
    %39 = sbr.rel (0) target = $region45
  $region44: #{captcha_forward.5} parent=0 // pred_region
    _
  $region45: #{captcha_forward.5} parent=0 // pred_fallthru
    _
  // Predicated region
  $region46: #{captcha_forward.5} parent=0 // pred_check
    _
  $region47: #{captcha_forward.5} parent=0 // pred_check_branch
    %41 = sbr.rel (0) target = $region49
  $region48: #{captcha_forward.5} parent=0 // pred_region
    _
  $region49: #{captcha_forward.5} parent=0 // pred_fallthru
    _
  // Predicated region
  $region50: #{captcha_forward.5} parent=0 // pred_check
    _
  $region51: #{captcha_forward.5} parent=0 // pred_check_branch
    %43 = sbr.rel (0) target = $region53
  $region52: #{captcha_forward.5} parent=0 // pred_region
    _
  $region53: #{captcha_forward.5} parent=0 // pred_fallthru
    _
  %v45 = vld [vmem:[%s0] sm:$0xff]
  %v46 = vld [vmem:[%s0 + $0x8] sm:$0xff]
  %v47 = vld [vmem:[%s0 + $0x10] sm:$0xff]
  %v48 = vld [vmem:[%s0 + $0x18] sm:$0xff]
  %v49 = vld [vmem:[%s0 + $0x20] sm:$0xf]
  %v50 = vld [vmem:[%s0 + $0x24] sm:$0xff]
  %v51 = vld [vmem:[%s0 + $0x2c] sm:$0xff]
  %v52 = vld [vmem:[%s0 + $0x34] sm:$0xff]
  %v53 = vld [vmem:[%s0 + $0x3c] sm:$0xff]
  %v54 = vld [vmem:[%s0 + $0x44] sm:$0xf]
  %v55 = vld [vmem:[%s1] sm:$0xf]
  %v56 = vld [vmem:[%s1 + $0x4] sm:$0xf]
  %v57 = vld [vmem:[%s1 + $0x8] sm:$0xf]
  %v58 = vld [vmem:[%s1 + $0xc] sm:$0xf]
  %v59 = vld [vmem:[%s1 + $0x10] sm:$0xf]
  %v60 = vld [vmem:[%s1 + $0x14] sm:$0xf]
  %v61 = vld [vmem:[%s1 + $0x18] sm:$0xf]
  %v62 = vld [vmem:[%s1 + $0x1c] sm:$0xf]
  %v63 = vld [vmem:[%s1 + $0x20] sm:$0xf]
  %v64 = vld [vmem:[%s1 + $0x24] sm:$0xf]
  %v65 = vld [vmem:[%s1 + $0x28] sm:$0xf]
  %v66 = vld [vmem:[%s1 + $0x2c] sm:$0xf]
  %v67 = vld [vmem:[%s1 + $0x30] sm:$0xf]
  %v68 = vld [vmem:[%s1 + $0x34] sm:$0xf]
  %v69 = vld [vmem:[%s1 + $0x38] sm:$0xf]
  %v70 = vld [vmem:[%s1 + $0x3c] sm:$0xf]
  %v71 = vld [vmem:[%s1 + $0x40] sm:$0xf]
  %v72 = vld [vmem:[%s1 + $0x44] sm:$0xf]
  %v73 = vld [vmem:[%s1 + $0x48] sm:$0xf]
  %v74 = vld [vmem:[%s1 + $0x4c] sm:$0xf]
  %v75 = vld [vmem:[%s1 + $0x50] sm:$0xf]
  %v76 = vld [vmem:[%s1 + $0x54] sm:$0xf]
  %v77 = vld [vmem:[%s1 + $0x58] sm:$0xf]
  %v78 = vld [vmem:[%s1 + $0x5c] sm:$0xf]
  %v79 = vld [vmem:[%s1 + $0x60] sm:$0xf]
  %v80 = vld [vmem:[%s1 + $0x64] sm:$0xf]
  %v81 = vld [vmem:[%s1 + $0x68] sm:$0xf]
  %v82 = vld [vmem:[%s1 + $0x6c] sm:$0xf]
  %v83 = vld [vmem:[%s1 + $0x70] sm:$0xf]
  %v84 = vld [vmem:[%s1 + $0x74] sm:$0xf]
  %v85 = vld [vmem:[%s1 + $0x78] sm:$0xf]
  %v86 = vld [vmem:[%s1 + $0x7c] sm:$0xf]
  %v87 = vld [vmem:[%s1 + $0x80] sm:$0xf]
  %v88 = vld [vmem:[%s1 + $0x84] sm:$0xf]
  %v89 = vld [vmem:[%s1 + $0x88] sm:$0xf]
  %v90 = vld [vmem:[%s1 + $0x8c] sm:$0xf]
  %v91 = vld [vmem:[%s1 + $0x90] sm:$0xf]
  %v92 = vld [vmem:[%s1 + $0x94] sm:$0xf]
  %v93 = vld [vmem:[%s1 + $0x98] sm:$0xf]
  %v94 = vld [vmem:[%s1 + $0x9c] sm:$0xf]
  %v95 = vld [vmem:[%s1 + $0xa0] sm:$0xf]
  %v96 = vld [vmem:[%s1 + $0xa4] sm:$0xf]
  %v97 = vld [vmem:[%s1 + $0xa8] sm:$0xf]
  %v98 = vld [vmem:[%s1 + $0xac] sm:$0xf]
  %v99 = vld [vmem:[%s1 + $0xb0] sm:$0xf]
  %v100 = vld [vmem:[%s1 + $0xb4] sm:$0xf]
  %v101 = vld [vmem:[%s1 + $0xb8] sm:$0xf]
  %v102 = vld [vmem:[%s1 + $0xbc] sm:$0xf]
  %v103 = vld [vmem:[%s1 + $0xc0] sm:$0xf]
  %v104 = vld [vmem:[%s1 + $0xc4] sm:$0xf]
  %v105 = vld [vmem:[%s1 + $0xc8] sm:$0xf]
  %v106 = vld [vmem:[%s1 + $0xcc] sm:$0xf]
  %v107 = vld [vmem:[%s1 + $0xd0] sm:$0xf]
  %v108 = vld [vmem:[%s1 + $0xd4] sm:$0xf]
  %v109 = vld [vmem:[%s1 + $0xd8] sm:$0xf]
  %v110 = vld [vmem:[%s1 + $0xdc] sm:$0xf]
  %v111 = vld [vmem:[%s1 + $0xe0] sm:$0xf]
  %v112 = vld [vmem:[%s1 + $0xe4] sm:$0xf]
  %v113 = vld [vmem:[%s1 + $0xe8] sm:$0xf]
  %v114 = vld [vmem:[%s1 + $0xec] sm:$0xf]
  %v115 = vld [vmem:[%s1 + $0xf0] sm:$0xf]
  %v116 = vld [vmem:[%s1 + $0xf4] sm:$0xf]
  %v117 = vld [vmem:[%s1 + $0xf8] sm:$0xf]
  %v118 = vld [vmem:[%s1 + $0xfc] sm:$0xf]
  %v119 = vld [vmem:[%s1 + $0x100] sm:$0xf]
  %v120 = vld [vmem:[%s1 + $0x104] sm:$0xf]
  %v121 = vld [vmem:[%s1 + $0x108] sm:$0xf]
  %v122 = vld [vmem:[%s1 + $0x10c] sm:$0xf]
  %v123 = vld [vmem:[%s1 + $0x110] sm:$0xf]
  %v124 = vld [vmem:[%s1 + $0x114] sm:$0xf]
  %v125 = vld [vmem:[%s1 + $0x118] sm:$0xf]
  %v126 = vld [vmem:[%s1 + $0x11c] sm:$0xf]
  %v127 = vld [vmem:[%s1 + $0x120] sm:$0xf]
  %v128 = vld [vmem:[%s1 + $0x124] sm:$0xf]
  %v129 = vld [vmem:[%s1 + $0x128] sm:$0xf]
  %v130 = vld [vmem:[%s1 + $0x12c] sm:$0xf]
  %v131 = vld [vmem:[%s1 + $0x130] sm:$0xf]
  %v132 = vld [vmem:[%s1 + $0x134] sm:$0xf]
  %v133 = vld [vmem:[%s1 + $0x138] sm:$0xf]
  %v134 = vld [vmem:[%s1 + $0x13c] sm:$0xf]
  %v135 = vld [vmem:[%s1 + $0x140] sm:$0xf]
  %v136 = vld [vmem:[%s1 + $0x144] sm:$0xf]
  %v137 = vld [vmem:[%s1 + $0x148] sm:$0xf]
  %v138 = vld [vmem:[%s1 + $0x14c] sm:$0xf]
  %v139 = vld [vmem:[%s1 + $0x150] sm:$0xf]
  %v140 = vld [vmem:[%s1 + $0x154] sm:$0xf]
  %v141 = vld [vmem:[%s1 + $0x158] sm:$0xf]
  %v142 = vld [vmem:[%s1 + $0x15c] sm:$0xf]
  %v143 = vld [vmem:[%s1 + $0x160] sm:$0xf]
  %v144 = vld [vmem:[%s1 + $0x164] sm:$0xf]
  %v145 = vld [vmem:[%s1 + $0x168] sm:$0xf]
  %v146 = vld [vmem:[%s1 + $0x16c] sm:$0xf]
  %v147 = vld [vmem:[%s1 + $0x170] sm:$0xf]
  %v148 = vld [vmem:[%s1 + $0x174] sm:$0xf]
  %v149 = vld [vmem:[%s1 + $0x178] sm:$0xf]
  %v150 = vld [vmem:[%s1 + $0x17c] sm:$0xf]
  %v151 = vld [vmem:[%s1 + $0x180] sm:$0xf]
  %v152 = vld [vmem:[%s1 + $0x184] sm:$0xf]
  %v153 = vld [vmem:[%s1 + $0x188] sm:$0xf]
  %v154 = vld [vmem:[%s1 + $0x18c] sm:$0xf]
  %v155 = vld [vmem:[%s1 + $0x190] sm:$0xf]
  %v156 = vld [vmem:[%s1 + $0x194] sm:$0xf]
  %v157 = vld [vmem:[%s1 + $0x198] sm:$0xf]
  %v158 = vld [vmem:[%s1 + $0x19c] sm:$0xf]
  %v159 = vld [vmem:[%s1 + $0x1a0] sm:$0xf]
  %v160 = vld [vmem:[%s1 + $0x1a4] sm:$0xf]
  %v161 = vld [vmem:[%s1 + $0x1a8] sm:$0xf]
  %v162 = vld [vmem:[%s1 + $0x1ac] sm:$0xf]
  %v163 = vld [vmem:[%s1 + $0x1b0] sm:$0xf]
  %v164 = vld [vmem:[%s1 + $0x1b4] sm:$0xf]
  %v165 = vld [vmem:[%s1 + $0x1b8] sm:$0xf]
  %v166 = vld [vmem:[%s1 + $0x1bc] sm:$0xf]
  %v167 = vld [vmem:[%s1 + $0x1c0] sm:$0xf]
  %v168 = vld [vmem:[%s1 + $0x1c4] sm:$0xf]
  %v169 = vld [vmem:[%s1 + $0x1c8] sm:$0xf]
  %v170 = vld [vmem:[%s1 + $0x1cc] sm:$0xf]
  %v171 = vld [vmem:[%s1 + $0x1d0] sm:$0xf]
  %v172 = vld [vmem:[%s1 + $0x1d4] sm:$0xf]
  %v173 = vld [vmem:[%s1 + $0x1d8] sm:$0xf]
  %v174 = vld [vmem:[%s1 + $0x1dc] sm:$0xf]
  %v175 = vld [vmem:[%s1 + $0x1e0] sm:$0xf]
  %v176 = vld [vmem:[%s1 + $0x1e4] sm:$0xf]
  %v177 = vld [vmem:[%s1 + $0x1e8] sm:$0xf]
  %v178 = vld [vmem:[%s1 + $0x1ec] sm:$0xf]
  %v179 = vld [vmem:[%s1 + $0x1f0] sm:$0xf]
  %v180 = vld [vmem:[%s1 + $0x1f4] sm:$0xf]
  %v181 = vld [vmem:[%s1 + $0x1f8] sm:$0xf]
  %v182 = vld [vmem:[%s1 + $0x1fc] sm:$0xf]
  %v183 = vld [vmem:[%s1 + $0x200] sm:$0xf]
  %v184 = vld [vmem:[%s1 + $0x204] sm:$0xf]
  %v185 = vld [vmem:[%s1 + $0x208] sm:$0xf]
  %v186 = vld [vmem:[%s1 + $0x20c] sm:$0xf]
  %v187 = vld [vmem:[%s1 + $0x210] sm:$0xf]
  %v188 = vld [vmem:[%s1 + $0x214] sm:$0xf]
  %v189 = vld [vmem:[%s1 + $0x218] sm:$0xf]
  %v190 = vld [vmem:[%s1 + $0x21c] sm:$0xf]
  %v191 = vld [vmem:[%s1 + $0x220] sm:$0xf]
  %v192 = vld [vmem:[%s1 + $0x224] sm:$0xf]
  %v193 = vld [vmem:[%s1 + $0x228] sm:$0xf]
  %v194 = vld [vmem:[%s1 + $0x22c] sm:$0xf]
  %v195 = vld [vmem:[%s1 + $0x230] sm:$0xf]
  %v196 = vld [vmem:[%s1 + $0x234] sm:$0xf]
  %v197 = vld [vmem:[%s1 + $0x238] sm:$0xf]
  %v198 = vld [vmem:[%s1 + $0x23c] sm:$0xf]
  %v199 = vld [vmem:[%s2] sm:$0x1]
  %v201 = vperm.slane %v199, 0
  %v213 = vunpack.c.l.b16 %v45
  %v214 = vunpack.c.h.b16 %v45
  %v215 = vunpack.c.l.b16 %v46
  %v216 = vunpack.c.h.b16 %v46
  %v217 = vunpack.c.l.b16 %v47
  %v218 = vunpack.c.h.b16 %v47
  %v219 = vunpack.c.l.b16 %v48
  %v220 = vunpack.c.h.b16 %v48
  %v221 = vunpack.c.l.b16 %v49
  %v222 = vunpack.c.l.b16 %v50
  %v223 = vunpack.c.h.b16 %v50
  %v224 = vunpack.c.l.b16 %v51
  %v225 = vunpack.c.h.b16 %v51
  %v226 = vunpack.c.l.b16 %v52
  %v227 = vunpack.c.h.b16 %v52
  %v228 = vunpack.c.l.b16 %v53
  %v229 = vunpack.c.h.b16 %v53
  %v230 = vunpack.c.l.b16 %v54
  %v231 = vpack.c.b16 %v222, %v213
  %v232 = vpack.c.b16 %v223, %v214
  %v233 = vpack.c.b16 %v224, %v215
  %v234 = vpack.c.b16 %v225, %v216
  %v235 = vpack.c.b16 %v226, %v217
  %v236 = vpack.c.b16 %v227, %v218
  %v237 = vpack.c.b16 %v228, %v219
  %v238 = vpack.c.b16 %v229, %v220
  %v239 = vpack.c.b16 %v230, %v221
  %v393 = vunpack.c.l.b16 %v55
  %v394 = vunpack.c.l.b16 %v56
  %v395 = vunpack.c.l.b16 %v57
  %v396 = vunpack.c.l.b16 %v58
  %v397 = vunpack.c.l.b16 %v59
  %v398 = vunpack.c.l.b16 %v60
  %v399 = vunpack.c.l.b16 %v61
  %v400 = vunpack.c.l.b16 %v62
  %v401 = vunpack.c.l.b16 %v63
  %v402 = vunpack.c.l.b16 %v64
  %v403 = vunpack.c.l.b16 %v65
  %v404 = vunpack.c.l.b16 %v66
  %v405 = vunpack.c.l.b16 %v67
  %v406 = vunpack.c.l.b16 %v68
  %v407 = vunpack.c.l.b16 %v69
  %v408 = vunpack.c.l.b16 %v70
  %v409 = vunpack.c.l.b16 %v71
  %v410 = vunpack.c.l.b16 %v72
  %v411 = vunpack.c.l.b16 %v73
  %v412 = vunpack.c.l.b16 %v74
  %v413 = vunpack.c.l.b16 %v75
  %v414 = vunpack.c.l.b16 %v76
  %v415 = vunpack.c.l.b16 %v77
  %v416 = vunpack.c.l.b16 %v78
  %v417 = vunpack.c.l.b16 %v79
  %v418 = vunpack.c.l.b16 %v80
  %v419 = vunpack.c.l.b16 %v81
  %v420 = vunpack.c.l.b16 %v82
  %v421 = vunpack.c.l.b16 %v83
  %v422 = vunpack.c.l.b16 %v84
  %v423 = vunpack.c.l.b16 %v85
  %v424 = vunpack.c.l.b16 %v86
  %v425 = vunpack.c.l.b16 %v87
  %v426 = vunpack.c.l.b16 %v88
  %v427 = vunpack.c.l.b16 %v89
  %v428 = vunpack.c.l.b16 %v90
  %v429 = vunpack.c.l.b16 %v91
  %v430 = vunpack.c.l.b16 %v92
  %v431 = vunpack.c.l.b16 %v93
  %v432 = vunpack.c.l.b16 %v94
  %v433 = vunpack.c.l.b16 %v95
  %v434 = vunpack.c.l.b16 %v96
  %v435 = vunpack.c.l.b16 %v97
  %v436 = vunpack.c.l.b16 %v98
  %v437 = vunpack.c.l.b16 %v99
  %v438 = vunpack.c.l.b16 %v100
  %v439 = vunpack.c.l.b16 %v101
  %v440 = vunpack.c.l.b16 %v102
  %v441 = vunpack.c.l.b16 %v103
  %v442 = vunpack.c.l.b16 %v104
  %v443 = vunpack.c.l.b16 %v105
  %v444 = vunpack.c.l.b16 %v106
  %v445 = vunpack.c.l.b16 %v107
  %v446 = vunpack.c.l.b16 %v108
  %v447 = vunpack.c.l.b16 %v109
  %v448 = vunpack.c.l.b16 %v110
  %v449 = vunpack.c.l.b16 %v111
  %v450 = vunpack.c.l.b16 %v112
  %v451 = vunpack.c.l.b16 %v113
  %v452 = vunpack.c.l.b16 %v114
  %v453 = vunpack.c.l.b16 %v115
  %v454 = vunpack.c.l.b16 %v116
  %v455 = vunpack.c.l.b16 %v117
  %v456 = vunpack.c.l.b16 %v118
  %v457 = vunpack.c.l.b16 %v119
  %v458 = vunpack.c.l.b16 %v120
  %v459 = vunpack.c.l.b16 %v121
  %v460 = vunpack.c.l.b16 %v122
  %v461 = vunpack.c.l.b16 %v123
  %v462 = vunpack.c.l.b16 %v124
  %v463 = vunpack.c.l.b16 %v125
  %v464 = vunpack.c.l.b16 %v126
  %v465 = vunpack.c.l.b16 %v127
  %v466 = vunpack.c.l.b16 %v128
  %v467 = vunpack.c.l.b16 %v129
  %v468 = vunpack.c.l.b16 %v130
  %v469 = vunpack.c.l.b16 %v131
  %v470 = vunpack.c.l.b16 %v132
  %v471 = vunpack.c.l.b16 %v133
  %v472 = vunpack.c.l.b16 %v134
  %v473 = vunpack.c.l.b16 %v135
  %v474 = vunpack.c.l.b16 %v136
  %v475 = vunpack.c.l.b16 %v137
  %v476 = vunpack.c.l.b16 %v138
  %v477 = vunpack.c.l.b16 %v139
  %v478 = vunpack.c.l.b16 %v140
  %v479 = vunpack.c.l.b16 %v141
  %v480 = vunpack.c.l.b16 %v142
  %v481 = vunpack.c.l.b16 %v143
  %v482 = vunpack.c.l.b16 %v144
  %v483 = vunpack.c.l.b16 %v145
  %v484 = vunpack.c.l.b16 %v146
  %v485 = vunpack.c.l.b16 %v147
  %v486 = vunpack.c.l.b16 %v148
  %v487 = vunpack.c.l.b16 %v149
  %v488 = vunpack.c.l.b16 %v150
  %v489 = vunpack.c.l.b16 %v151
  %v490 = vunpack.c.l.b16 %v152
  %v491 = vunpack.c.l.b16 %v153
  %v492 = vunpack.c.l.b16 %v154
  %v493 = vunpack.c.l.b16 %v155
  %v494 = vunpack.c.l.b16 %v156
  %v495 = vunpack.c.l.b16 %v157
  %v496 = vunpack.c.l.b16 %v158
  %v497 = vunpack.c.l.b16 %v159
  %v498 = vunpack.c.l.b16 %v160
  %v499 = vunpack.c.l.b16 %v161
  %v500 = vunpack.c.l.b16 %v162
  %v501 = vunpack.c.l.b16 %v163
  %v502 = vunpack.c.l.b16 %v164
  %v503 = vunpack.c.l.b16 %v165
  %v504 = vunpack.c.l.b16 %v166
  %v505 = vunpack.c.l.b16 %v167
  %v506 = vunpack.c.l.b16 %v168
  %v507 = vunpack.c.l.b16 %v169
  %v508 = vunpack.c.l.b16 %v170
  %v509 = vunpack.c.l.b16 %v171
  %v510 = vunpack.c.l.b16 %v172
  %v511 = vunpack.c.l.b16 %v173
  %v512 = vunpack.c.l.b16 %v174
  %v513 = vunpack.c.l.b16 %v175
  %v514 = vunpack.c.l.b16 %v176
  %v515 = vunpack.c.l.b16 %v177
  %v516 = vunpack.c.l.b16 %v178
  %v517 = vunpack.c.l.b16 %v179
  %v518 = vunpack.c.l.b16 %v180
  %v519 = vunpack.c.l.b16 %v181
  %v520 = vunpack.c.l.b16 %v182
  %v521 = vunpack.c.l.b16 %v183
  %v522 = vunpack.c.l.b16 %v184
  %v523 = vunpack.c.l.b16 %v185
  %v524 = vunpack.c.l.b16 %v186
  %v525 = vunpack.c.l.b16 %v187
  %v526 = vunpack.c.l.b16 %v188
  %v527 = vunpack.c.l.b16 %v189
  %v528 = vunpack.c.l.b16 %v190
  %v529 = vunpack.c.l.b16 %v191
  %v530 = vunpack.c.l.b16 %v192
  %v531 = vunpack.c.l.b16 %v193
  %v532 = vunpack.c.l.b16 %v194
  %v533 = vunpack.c.l.b16 %v195
  %v534 = vunpack.c.l.b16 %v196
  %v535 = vunpack.c.l.b16 %v197
  %v536 = vunpack.c.l.b16 %v198
  %v537 = vpack.c.b16 %v394, %v393
  %v538 = vpack.c.b16 %v396, %v395
  %v539 = vpack.c.b16 %v398, %v397
  %v540 = vpack.c.b16 %v400, %v399
  %v541 = vpack.c.b16 %v402, %v401
  %v542 = vpack.c.b16 %v404, %v403
  %v543 = vpack.c.b16 %v406, %v405
  %v544 = vpack.c.b16 %v408, %v407
  %v545 = vpack.c.b16 %v410, %v409
  %v546 = vpack.c.b16 %v412, %v411
  %v547 = vpack.c.b16 %v414, %v413
  %v548 = vpack.c.b16 %v416, %v415
  %v549 = vpack.c.b16 %v418, %v417
  %v550 = vpack.c.b16 %v420, %v419
  %v551 = vpack.c.b16 %v422, %v421
  %v552 = vpack.c.b16 %v424, %v423
  %v553 = vpack.c.b16 %v426, %v425
  %v554 = vpack.c.b16 %v428, %v427
  %v555 = vpack.c.b16 %v430, %v429
  %v556 = vpack.c.b16 %v432, %v431
  %v557 = vpack.c.b16 %v434, %v433
  %v558 = vpack.c.b16 %v436, %v435
  %v559 = vpack.c.b16 %v438, %v437
  %v560 = vpack.c.b16 %v440, %v439
  %v561 = vpack.c.b16 %v442, %v441
  %v562 = vpack.c.b16 %v444, %v443
  %v563 = vpack.c.b16 %v446, %v445
  %v564 = vpack.c.b16 %v448, %v447
  %v565 = vpack.c.b16 %v450, %v449
  %v566 = vpack.c.b16 %v452, %v451
  %v567 = vpack.c.b16 %v454, %v453
  %v568 = vpack.c.b16 %v456, %v455
  %v569 = vpack.c.b16 %v458, %v457
  %v570 = vpack.c.b16 %v460, %v459
  %v571 = vpack.c.b16 %v462, %v461
  %v572 = vpack.c.b16 %v464, %v463
  %v573 = vpack.c.b16 %v466, %v465
  %v574 = vpack.c.b16 %v468, %v467
  %v575 = vpack.c.b16 %v470, %v469
  %v576 = vpack.c.b16 %v472, %v471
  %v577 = vpack.c.b16 %v474, %v473
  %v578 = vpack.c.b16 %v476, %v475
  %v579 = vpack.c.b16 %v478, %v477
  %v580 = vpack.c.b16 %v480, %v479
  %v581 = vpack.c.b16 %v482, %v481
  %v582 = vpack.c.b16 %v484, %v483
  %v583 = vpack.c.b16 %v486, %v485
  %v584 = vpack.c.b16 %v488, %v487
  %v585 = vpack.c.b16 %v490, %v489
  %v586 = vpack.c.b16 %v492, %v491
  %v587 = vpack.c.b16 %v494, %v493
  %v588 = vpack.c.b16 %v496, %v495
  %v589 = vpack.c.b16 %v498, %v497
  %v590 = vpack.c.b16 %v500, %v499
  %v591 = vpack.c.b16 %v502, %v501
  %v592 = vpack.c.b16 %v504, %v503
  %v593 = vpack.c.b16 %v506, %v505
  %v594 = vpack.c.b16 %v508, %v507
  %v595 = vpack.c.b16 %v510, %v509
  %v596 = vpack.c.b16 %v512, %v511
  %v597 = vpack.c.b16 %v514, %v513
  %v598 = vpack.c.b16 %v516, %v515
  %v599 = vpack.c.b16 %v518, %v517
  %v600 = vpack.c.b16 %v520, %v519
  %v601 = vpack.c.b16 %v522, %v521
  %v602 = vpack.c.b16 %v524, %v523
  %v603 = vpack.c.b16 %v526, %v525
  %v604 = vpack.c.b16 %v528, %v527
  %v605 = vpack.c.b16 %v530, %v529
  %v606 = vpack.c.b16 %v532, %v531
  %v607 = vpack.c.b16 %v534, %v533
  %v608 = vpack.c.b16 %v536, %v535
  %681 = vmatpush.bf16.msra.mxu0 %v544
  %682 = vmatpush.bf16.msra.mxu0 %v543
  %683 = vmatpush.bf16.msra.mxu0 %v542
  %684 = vmatpush.bf16.msra.mxu0 %v541
  %685 = vmatpush.bf16.msra.mxu0 %v540
  %686 = vmatpush.bf16.msra.mxu0 %v539
  %687 = vmatpush.bf16.msra.mxu0 %v538
  %688 = vmatpush.bf16.msra.mxu0 %v537
  %689 = vmatmul.bf16.gmra.mxu0 %v231
  %v690 = vpop.f32.mrf.mxu0
  %v691 = vadd.f32 %v201, %v690
  %v692 = vpop.f32.mrf.mxu0
  %v693 = vadd.f32 %v201, %v692
  %694 = vdwg.mxu0
  %695 = vmatpush.bf16.msra.mxu0 %v552
  %696 = vmatpush.bf16.msra.mxu0 %v551
  %697 = vmatpush.bf16.msra.mxu0 %v550
  %698 = vmatpush.bf16.msra.mxu0 %v549
  %699 = vmatpush.bf16.msra.mxu0 %v548
  %700 = vmatpush.bf16.msra.mxu0 %v547
  %701 = vmatpush.bf16.msra.mxu0 %v546
  %702 = vmatpush.bf16.msra.mxu0 %v545
  %703 = vmatmul.bf16.gmra.mxu0 %v232
  %v704 = vpop.f32.mrf.mxu0
  %v705 = vadd.f32 %v691, %v704
  %v706 = vpop.f32.mrf.mxu0
  %v707 = vadd.f32 %v693, %v706
  %708 = vdwg.mxu0
  %709 = vmatpush.bf16.msra.mxu0 %v560
  %710 = vmatpush.bf16.msra.mxu0 %v559
  %711 = vmatpush.bf16.msra.mxu0 %v558
  %712 = vmatpush.bf16.msra.mxu0 %v557
  %713 = vmatpush.bf16.msra.mxu0 %v556
  %714 = vmatpush.bf16.msra.mxu0 %v555
  %715 = vmatpush.bf16.msra.mxu0 %v554
  %716 = vmatpush.bf16.msra.mxu0 %v553
  %717 = vmatmul.bf16.gmra.mxu0 %v233
  %v718 = vpop.f32.mrf.mxu0
  %v719 = vadd.f32 %v705, %v718
  %v720 = vpop.f32.mrf.mxu0
  %v721 = vadd.f32 %v707, %v720
  %722 = vdwg.mxu0
  %723 = vmatpush.bf16.msra.mxu0 %v568
  %724 = vmatpush.bf16.msra.mxu0 %v567
  %725 = vmatpush.bf16.msra.mxu0 %v566
  %726 = vmatpush.bf16.msra.mxu0 %v565
  %727 = vmatpush.bf16.msra.mxu0 %v564
  %728 = vmatpush.bf16.msra.mxu0 %v563
  %729 = vmatpush.bf16.msra.mxu0 %v562
  %730 = vmatpush.bf16.msra.mxu0 %v561
  %731 = vmatmul.bf16.gmra.mxu0 %v234
  %v732 = vpop.f32.mrf.mxu0
  %v733 = vadd.f32 %v719, %v732
  %v734 = vpop.f32.mrf.mxu0
  %v735 = vadd.f32 %v721, %v734
  %736 = vdwg.mxu0
  %737 = vmatpush.bf16.msra.mxu0 %v576
  %738 = vmatpush.bf16.msra.mxu0 %v575
  %739 = vmatpush.bf16.msra.mxu0 %v574
  %740 = vmatpush.bf16.msra.mxu0 %v573
  %741 = vmatpush.bf16.msra.mxu0 %v572
  %742 = vmatpush.bf16.msra.mxu0 %v571
  %743 = vmatpush.bf16.msra.mxu0 %v570
  %744 = vmatpush.bf16.msra.mxu0 %v569
  %745 = vmatmul.bf16.gmra.mxu0 %v235
  %v746 = vpop.f32.mrf.mxu0
  %v747 = vadd.f32 %v733, %v746
  %v748 = vpop.f32.mrf.mxu0
  %v749 = vadd.f32 %v735, %v748
  %750 = vdwg.mxu0
  %751 = vmatpush.bf16.msra.mxu0 %v584
  %752 = vmatpush.bf16.msra.mxu0 %v583
  %753 = vmatpush.bf16.msra.mxu0 %v582
  %754 = vmatpush.bf16.msra.mxu0 %v581
  %755 = vmatpush.bf16.msra.mxu0 %v580
  %756 = vmatpush.bf16.msra.mxu0 %v579
  %757 = vmatpush.bf16.msra.mxu0 %v578
  %758 = vmatpush.bf16.msra.mxu0 %v577
  %759 = vmatmul.bf16.gmra.mxu0 %v236
  %v760 = vpop.f32.mrf.mxu0
  %v761 = vadd.f32 %v747, %v760
  %v762 = vpop.f32.mrf.mxu0
  %v763 = vadd.f32 %v749, %v762
  %764 = vdwg.mxu0
  %765 = vmatpush.bf16.msra.mxu0 %v592
  %766 = vmatpush.bf16.msra.mxu0 %v591
  %767 = vmatpush.bf16.msra.mxu0 %v590
  %768 = vmatpush.bf16.msra.mxu0 %v589
  %769 = vmatpush.bf16.msra.mxu0 %v588
  %770 = vmatpush.bf16.msra.mxu0 %v587
  %771 = vmatpush.bf16.msra.mxu0 %v586
  %772 = vmatpush.bf16.msra.mxu0 %v585
  %773 = vmatmul.bf16.gmra.mxu0 %v237
  %v774 = vpop.f32.mrf.mxu0
  %v775 = vadd.f32 %v761, %v774
  %v776 = vpop.f32.mrf.mxu0
  %v777 = vadd.f32 %v763, %v776
  %778 = vdwg.mxu0
  %779 = vmatpush.bf16.msra.mxu0 %v600
  %780 = vmatpush.bf16.msra.mxu0 %v599
  %781 = vmatpush.bf16.msra.mxu0 %v598
  %782 = vmatpush.bf16.msra.mxu0 %v597
  %783 = vmatpush.bf16.msra.mxu0 %v596
  %784 = vmatpush.bf16.msra.mxu0 %v595
  %785 = vmatpush.bf16.msra.mxu0 %v594
  %786 = vmatpush.bf16.msra.mxu0 %v593
  %787 = vmatmul.bf16.gmra.mxu0 %v238
  %v788 = vpop.f32.mrf.mxu0
  %v789 = vadd.f32 %v775, %v788
  %v790 = vpop.f32.mrf.mxu0
  %v791 = vadd.f32 %v777, %v790
  %792 = vdwg.mxu0
  %793 = vmatpush.bf16.msra.mxu0 %v608
  %794 = vmatpush.bf16.msra.mxu0 %v607
  %795 = vmatpush.bf16.msra.mxu0 %v606
  %796 = vmatpush.bf16.msra.mxu0 %v605
  %797 = vmatpush.bf16.msra.mxu0 %v604
  %798 = vmatpush.bf16.msra.mxu0 %v603
  %799 = vmatpush.bf16.msra.mxu0 %v602
  %800 = vmatpush.bf16.msra.mxu0 %v601
  %801 = vmatmul.bf16.gmra.mxu0 %v239
  %v802 = vpop.f32.mrf.mxu0
  %v803 = vadd.f32 %v789, %v802
  %v804 = vpop.f32.mrf.mxu0
  %v805 = vadd.f32 %v791, %v804
  %806 = vdwg.mxu0
  %v807 = vpack.c.bf16 %v805, %v803
  %v808 = vld [vmem:[%s3] sm:$0xff]
  %v809 = vld [vmem:[%s3 + $0x8] sm:$0xff]
  %v810 = vld [vmem:[%s3 + $0x10] sm:$0xff]
  %v811 = vld [vmem:[%s3 + $0x18] sm:$0xff]
  %v812 = vld [vmem:[%s3 + $0x20] sm:$0xff]
  %v813 = vld [vmem:[%s3 + $0x28] sm:$0xff]
  %v814 = vld [vmem:[%s3 + $0x30] sm:$0xff]
  %v815 = vld [vmem:[%s3 + $0x38] sm:$0xff]
  %v816 = vld [vmem:[%s4] sm:$0x3]
  %v818 = vperm.slane %v816, 0
  %v819 = vperm.slane %v816, 1
  %v830 = vunpack.c.l.b16 %v808
  %v831 = vunpack.c.h.b16 %v808
  %v832 = vunpack.c.l.b16 %v809
  %v833 = vunpack.c.h.b16 %v809
  %v834 = vunpack.c.l.b16 %v810
  %v835 = vunpack.c.h.b16 %v810
  %v836 = vunpack.c.l.b16 %v811
  %v837 = vunpack.c.h.b16 %v811
  %v838 = vunpack.c.l.b16 %v812
  %v839 = vunpack.c.h.b16 %v812
  %v840 = vunpack.c.l.b16 %v813
  %v841 = vunpack.c.h.b16 %v813
  %v842 = vunpack.c.l.b16 %v814
  %v843 = vunpack.c.h.b16 %v814
  %v844 = vunpack.c.l.b16 %v815
  %v845 = vunpack.c.h.b16 %v815
  %v846 = vpack.c.b16 %v832, %v830
  %v847 = vpack.c.b16 %v833, %v831
  %v848 = vpack.c.b16 %v836, %v834
  %v849 = vpack.c.b16 %v837, %v835
  %v850 = vpack.c.b16 %v840, %v838
  %v851 = vpack.c.b16 %v841, %v839
  %v852 = vpack.c.b16 %v844, %v842
  %v853 = vpack.c.b16 %v845, %v843
  %vm862 = vcmask 523264
  %v864 = vsel %vm862, %v807, 0
  %866 = vmatpush.bf16.msra.mxu0 0
  %867 = vmatpush.bf16.msra.mxu0 0
  %868 = vmatpush.bf16.msra.mxu0 0
  %869 = vmatpush.bf16.msra.mxu0 0
  %870 = vmatpush.bf16.msra.mxu0 %v852
  %871 = vmatpush.bf16.msra.mxu0 %v850
  %872 = vmatpush.bf16.msra.mxu0 %v848
  %873 = vmatpush.bf16.msra.mxu0 %v846
  %874 = vmatmul.bf16.gmra.mxu0 %v864
  %v875 = vpop.f32.mrf.mxu0
  %v876 = vadd.f32 %v818, %v875
  %v877 = vpop.f32.mrf.mxu0
  %v878 = vadd.f32 %v818, %v877
  %879 = vdwg.mxu0
  %880 = vmatpush.bf16.msra.mxu0 0
  %881 = vmatpush.bf16.msra.mxu0 0
  %882 = vmatpush.bf16.msra.mxu0 0
  %883 = vmatpush.bf16.msra.mxu0 0
  %884 = vmatpush.bf16.msra.mxu0 %v853
  %885 = vmatpush.bf16.msra.mxu0 %v851
  %886 = vmatpush.bf16.msra.mxu0 %v849
  %887 = vmatpush.bf16.msra.mxu0 %v847
  %888 = vmatmul.bf16.gmra.mxu0 %v864
  %v889 = vpop.f32.mrf.mxu0
  %v890 = vadd.f32 %v819, %v889
  %v891 = vpop.f32.mrf.mxu0
  %v892 = vadd.f32 %v819, %v891
  %893 = vdwg.mxu0
  %v894 = vpack.c.bf16 0.0, 0.0
  %v895 = vld [vmem:[%s5] sm:$0xff]
  %v896 = vld [vmem:[%s5 + $0x8] sm:$0xff]
  %v897 = vld [vmem:[%s5 + $0x10] sm:$0xff]
  %v898 = vld [vmem:[%s5 + $0x18] sm:$0xff]
  %v899 = vld [vmem:[%s5 + $0x20] sm:$0xff]
  %v900 = vld [vmem:[%s5 + $0x28] sm:$0xff]
  %v901 = vld [vmem:[%s5 + $0x30] sm:$0xff]
  %v902 = vld [vmem:[%s5 + $0x38] sm:$0xff]
  %v903 = vld [vmem:[%s6] sm:$0x3]
  %v905 = vperm.slane %v903, 0
  %v906 = vperm.slane %v903, 1
  %v917 = vunpack.c.l.b16 %v895
  %v918 = vunpack.c.h.b16 %v895
  %v919 = vunpack.c.l.b16 %v896
  %v920 = vunpack.c.h.b16 %v896
  %v921 = vunpack.c.l.b16 %v897
  %v922 = vunpack.c.h.b16 %v897
  %v923 = vunpack.c.l.b16 %v898
  %v924 = vunpack.c.h.b16 %v898
  %v925 = vunpack.c.l.b16 %v899
  %v926 = vunpack.c.h.b16 %v899
  %v927 = vunpack.c.l.b16 %v900
  %v928 = vunpack.c.h.b16 %v900
  %v929 = vunpack.c.l.b16 %v901
  %v930 = vunpack.c.h.b16 %v901
  %v931 = vunpack.c.l.b16 %v902
  %v932 = vunpack.c.h.b16 %v902
  %v933 = vpack.c.b16 %v919, %v917
  %v934 = vpack.c.b16 %v920, %v918
  %v935 = vpack.c.b16 %v923, %v921
  %v936 = vpack.c.b16 %v924, %v922
  %v937 = vpack.c.b16 %v927, %v925
  %v938 = vpack.c.b16 %v928, %v926
  %v939 = vpack.c.b16 %v931, %v929
  %v940 = vpack.c.b16 %v932, %v930
  %v950 = vsel %vm862, %v894, 0
  %952 = vmatpush.bf16.msra.mxu0 0
  %953 = vmatpush.bf16.msra.mxu0 0
  %954 = vmatpush.bf16.msra.mxu0 0
  %955 = vmatpush.bf16.msra.mxu0 0
  %956 = vmatpush.bf16.msra.mxu0 %v939
  %957 = vmatpush.bf16.msra.mxu0 %v937
  %958 = vmatpush.bf16.msra.mxu0 %v935
  %959 = vmatpush.bf16.msra.mxu0 %v933
  %960 = vmatmul.bf16.gmra.mxu0 %v950
  %v961 = vpop.f32.mrf.mxu0
  %v962 = vadd.f32 %v905, %v961
  %v963 = vpop.f32.mrf.mxu0
  %964 = vdwg.mxu0
  %965 = vmatpush.bf16.msra.mxu0 0
  %966 = vmatpush.bf16.msra.mxu0 0
  %967 = vmatpush.bf16.msra.mxu0 0
  %968 = vmatpush.bf16.msra.mxu0 0
  %969 = vmatpush.bf16.msra.mxu0 %v940
  %970 = vmatpush.bf16.msra.mxu0 %v938
  %971 = vmatpush.bf16.msra.mxu0 %v936
  %972 = vmatpush.bf16.msra.mxu0 %v934
  %973 = vmatmul.bf16.gmra.mxu0 %v950
  %v974 = vpop.f32.mrf.mxu0
  %v975 = vadd.f32 %v906, %v974
  %v976 = vpop.f32.mrf.mxu0
  %977 = vdwg.mxu0
  %v978 = vadd.f32 %v876, %v962
  %v979 = vxor.u32 %v978, 2147483648
  %v980 = vmul.f32 %v979, 1.442695
  %v981 = vpow.pop %v980
  %v982 = vadd.f32 %v981, 1.0
  %v983 = vrcp.pop %v982
  %v984 = vmul.f32 %v982, %v983
  %v985 = vsub.f32 1.0, %v984
  %v986 = vmul.f32 %v983, %v985
  %v987 = vadd.f32 %v983, %v986
  %vm988 = vweird.f32 %v982
  %vm989 = vweird.f32 %v983
  %vm990 = vmor %vm988, %vm989
  %v991 = vsel %vm990, %v983, %v987
  %v992 = vand.u32 2147483647, %v982
  %vm993 = vcmp.eq.f32.partialorder %v992, 8.507059e+37
  %v994 = vand.u32 %v982, 2147483648
  %v995 = vor.u32 1.1754944e-38, %v994
  %v996 = vsel %vm993, %v995, %v991
  %v997 = vmul.f32 1.0, %v996
  %999 = vrot.lane.b32.xlu0 %v962, 64
  %v1000 = vpop.permute.xlu0 %999
  %v1002 = vmul.f32 %v997, %v1000
  %1004 = vrot.lane.b32.xlu0 %v1002, 64
  %v1005 = vpop.permute.xlu0 %1004
  %v1007 = vadd.f32 %v876, %v1005
  %v1008 = vtanh.pop %v1007
  %v1009 = vsub.f32 1.0, %v997
  %1011 = vrot.lane.b32.xlu0 %v1008, 96
  %v1012 = vpop.permute.xlu0 %1011
  %v1014 = vmul.f32 %v1009, %v1012
  %v1015 = vmul.f32 %v997, 0.0
  %v1016 = vadd.f32 %v1014, %v1015
  %v1017 = vadd.f32 %v878, %v962
  %v1018 = vxor.u32 %v1017, 2147483648
  %v1019 = vmul.f32 %v1018, 1.442695
  %v1020 = vpow.pop %v1019
  %v1021 = vadd.f32 %v1020, 1.0
  %v1022 = vrcp.pop %v1021
  %v1023 = vmul.f32 %v1021, %v1022
  %v1024 = vsub.f32 1.0, %v1023
  %v1025 = vmul.f32 %v1022, %v1024
  %v1026 = vadd.f32 %v1022, %v1025
  %vm1027 = vweird.f32 %v1021
  %vm1028 = vweird.f32 %v1022
  %vm1029 = vmor %vm1027, %vm1028
  %v1030 = vsel %vm1029, %v1022, %v1026
  %v1031 = vand.u32 2147483647, %v1021
  %vm1032 = vcmp.eq.f32.partialorder %v1031, 8.507059e+37
  %v1033 = vand.u32 %v1021, 2147483648
  %v1034 = vor.u32 1.1754944e-38, %v1033
  %v1035 = vsel %vm1032, %v1034, %v1030
  %v1036 = vmul.f32 1.0, %v1035
  %v1037 = vadd.f32 %v892, %v975
  %v1038 = vxor.u32 %v1037, 2147483648
  %v1039 = vmul.f32 %v1038, 1.442695
  %v1040 = vpow.pop %v1039
  %v1041 = vadd.f32 %v1040, 1.0
  %v1042 = vrcp.pop %v1041
  %v1043 = vmul.f32 %v1041, %v1042
  %v1044 = vsub.f32 1.0, %v1043
  %v1045 = vmul.f32 %v1042, %v1044
  %v1046 = vadd.f32 %v1042, %v1045
  %vm1047 = vweird.f32 %v1041
  %vm1048 = vweird.f32 %v1042
  %vm1049 = vmor %vm1047, %vm1048
  %v1050 = vsel %vm1049, %v1042, %v1046
  %v1051 = vand.u32 2147483647, %v1041
  %vm1052 = vcmp.eq.f32.partialorder %v1051, 8.507059e+37
  %v1053 = vand.u32 %v1041, 2147483648
  %v1054 = vor.u32 1.1754944e-38, %v1053
  %v1055 = vsel %vm1052, %v1054, %v1050
  %v1056 = vmul.f32 1.0, %v1055
  %1058 = vrot.lane.b32.xlu0 %v975, 64
  %v1059 = vpop.permute.xlu0 %1058
  %v1061 = vmul.f32 %v1036, %v1059
  %1063 = vrot.lane.b32.xlu0 %v1061, 64
  %v1064 = vpop.permute.xlu0 %1063
  %v1066 = vadd.f32 %v892, %v1064
  %v1067 = vtanh.pop %v1066
  %v1068 = vsub.f32 1.0, %v1056
  %1070 = vrot.lane.b32.xlu0 %v1067, 96
  %v1071 = vpop.permute.xlu0 %1070
  %v1073 = vmul.f32 %v1068, %v1071
  %v1074 = vmul.f32 %v1056, 0.0
  %v1075 = vadd.f32 %v1073, %v1074
  %1077 = vrot.lane.b32.xlu0 %v1016, 96
  %v1078 = vpop.permute.xlu0 %1077
  %1081 = vrot.lane.b32.xlu0 %v1075, 32
  %v1082 = vpop.permute.xlu0 %1081
  %vm1084 = vcmask 261120
  %v1085 = vsel %vm1084, %v1078, %v1082
  %v1086 = vpack.c.bf16 %v1085, %v1085
  %v1088 = vsel %vm862, %v1086, 0
  %1090 = vmatpush.bf16.msra.mxu0 0
  %1091 = vmatpush.bf16.msra.mxu0 0
  %1092 = vmatpush.bf16.msra.mxu0 0
  %1093 = vmatpush.bf16.msra.mxu0 0
  %1094 = vmatpush.bf16.msra.mxu0 %v939
  %1095 = vmatpush.bf16.msra.mxu0 %v937
  %1096 = vmatpush.bf16.msra.mxu0 %v935
  %1097 = vmatpush.bf16.msra.mxu0 %v933
  %1098 = vmatmul.bf16.gmra.mxu0 %v1088
  %v1099 = vpop.f32.mrf.mxu0
  %v1100 = vadd.f32 %v905, %v1099
  %v1101 = vpop.f32.mrf.mxu0
  %1102 = vdwg.mxu0
  %1103 = vmatpush.bf16.msra.mxu0 0
  %1104 = vmatpush.bf16.msra.mxu0 0
  %1105 = vmatpush.bf16.msra.mxu0 0
  %1106 = vmatpush.bf16.msra.mxu0 0
  %1107 = vmatpush.bf16.msra.mxu0 %v940
  %1108 = vmatpush.bf16.msra.mxu0 %v938
  %1109 = vmatpush.bf16.msra.mxu0 %v936
  %1110 = vmatpush.bf16.msra.mxu0 %v934
  %1111 = vmatmul.bf16.gmra.mxu0 %v1088
  %v1112 = vpop.f32.mrf.mxu0
  %v1113 = vadd.f32 %v906, %v1112
  %v1114 = vpop.f32.mrf.mxu0
  %1115 = vdwg.mxu0
  %v1116 = vadd.f32 %v878, %v1100
  %v1117 = vxor.u32 %v1116, 2147483648
  %v1118 = vmul.f32 %v1117, 1.442695
  %v1119 = vpow.pop %v1118
  %v1120 = vadd.f32 %v1119, 1.0
  %v1121 = vrcp.pop %v1120
  %v1122 = vmul.f32 %v1120, %v1121
  %v1123 = vsub.f32 1.0, %v1122
  %v1124 = vmul.f32 %v1121, %v1123
  %v1125 = vadd.f32 %v1121, %v1124
  %vm1126 = vweird.f32 %v1120
  %vm1127 = vweird.f32 %v1121
  %vm1128 = vmor %vm1126, %vm1127
  %v1129 = vsel %vm1128, %v1121, %v1125
  %v1130 = vand.u32 2147483647, %v1120
  %vm1131 = vcmp.eq.f32.partialorder %v1130, 8.507059e+37
  %v1132 = vand.u32 %v1120, 2147483648
  %v1133 = vor.u32 1.1754944e-38, %v1132
  %v1134 = vsel %vm1131, %v1133, %v1129
  %v1135 = vmul.f32 1.0, %v1134
  %1137 = vrot.lane.b32.xlu0 %v1100, 64
  %v1138 = vpop.permute.xlu0 %1137
  %v1140 = vmul.f32 %v1135, %v1138
  %1142 = vrot.lane.b32.xlu0 %v1140, 64
  %v1143 = vpop.permute.xlu0 %1142
  %v1145 = vadd.f32 %v878, %v1143
  %v1146 = vtanh.pop %v1145
  %v1147 = vsub.f32 1.0, %v1135
  %1149 = vrot.lane.b32.xlu0 %v1146, 96
  %v1150 = vpop.permute.xlu0 %1149
  %v1152 = vmul.f32 %v1147, %v1150
  %v1153 = vmul.f32 %v1135, %v1016
  %v1154 = vadd.f32 %v1152, %v1153
  %v1155 = vadd.f32 %v876, %v1100
  %v1156 = vxor.u32 %v1155, 2147483648
  %v1157 = vmul.f32 %v1156, 1.442695
  %v1158 = vpow.pop %v1157
  %v1159 = vadd.f32 %v1158, 1.0
  %v1160 = vrcp.pop %v1159
  %v1161 = vmul.f32 %v1159, %v1160
  %v1162 = vsub.f32 1.0, %v1161
  %v1163 = vmul.f32 %v1160, %v1162
  %v1164 = vadd.f32 %v1160, %v1163
  %vm1165 = vweird.f32 %v1159
  %vm1166 = vweird.f32 %v1160
  %vm1167 = vmor %vm1165, %vm1166
  %v1168 = vsel %vm1167, %v1160, %v1164
  %v1169 = vand.u32 2147483647, %v1159
  %vm1170 = vcmp.eq.f32.partialorder %v1169, 8.507059e+37
  %v1171 = vand.u32 %v1159, 2147483648
  %v1172 = vor.u32 1.1754944e-38, %v1171
  %v1173 = vsel %vm1170, %v1172, %v1168
  %v1174 = vmul.f32 1.0, %v1173
  %v1175 = vadd.f32 %v890, %v1113
  %v1176 = vxor.u32 %v1175, 2147483648
  %v1177 = vmul.f32 %v1176, 1.442695
  %v1178 = vpow.pop %v1177
  %v1179 = vadd.f32 %v1178, 1.0
  %v1180 = vrcp.pop %v1179
  %v1181 = vmul.f32 %v1179, %v1180
  %v1182 = vsub.f32 1.0, %v1181
  %v1183 = vmul.f32 %v1180, %v1182
  %v1184 = vadd.f32 %v1180, %v1183
  %vm1185 = vweird.f32 %v1179
  %vm1186 = vweird.f32 %v1180
  %vm1187 = vmor %vm1185, %vm1186
  %v1188 = vsel %vm1187, %v1180, %v1184
  %v1189 = vand.u32 2147483647, %v1179
  %vm1190 = vcmp.eq.f32.partialorder %v1189, 8.507059e+37
  %v1191 = vand.u32 %v1179, 2147483648
  %v1192 = vor.u32 1.1754944e-38, %v1191
  %v1193 = vsel %vm1190, %v1192, %v1188
  %v1194 = vmul.f32 1.0, %v1193
  %1196 = vrot.lane.b32.xlu0 %v1113, 64
  %v1197 = vpop.permute.xlu0 %1196
  %v1199 = vmul.f32 %v1174, %v1197
  %1201 = vrot.lane.b32.xlu0 %v1199, 64
  %v1202 = vpop.permute.xlu0 %1201
  %v1204 = vadd.f32 %v890, %v1202
  %v1205 = vtanh.pop %v1204
  %v1206 = vsub.f32 1.0, %v1194
  %1208 = vrot.lane.b32.xlu0 %v1205, 96
  %v1209 = vpop.permute.xlu0 %1208
  %v1211 = vmul.f32 %v1206, %v1209
  %v1212 = vmul.f32 %v1194, %v1075
  %v1213 = vadd.f32 %v1211, %v1212
  %1215 = vrot.lane.b32.xlu0 %v1213, 32
  %v1216 = vpop.permute.xlu0 %1215
  %v1218 = vsel %vm1084, %v1078, %v1216
  %1220 = vrot.lane.b32.xlu0 %v1154, 96
  %v1221 = vpop.permute.xlu0 %1220
  %v1223 = vsel %vm1084, %v1221, %v1082
  %v1224 = vpack.c.bf16 %v1223, %v1218
  %v1225 = vld [vmem:[%s7] sm:$0xff]
  %v1226 = vld [vmem:[%s7 + $0x8] sm:$0xff]
  %v1227 = vld [vmem:[%s7 + $0x10] sm:$0xff]
  %v1228 = vld [vmem:[%s7 + $0x18] sm:$0xff]
  %v1229 = vld [vmem:[%s7 + $0x20] sm:$0xff]
  %v1230 = vld [vmem:[%s7 + $0x28] sm:$0xff]
  %v1231 = vld [vmem:[%s7 + $0x30] sm:$0xff]
  %v1232 = vld [vmem:[%s7 + $0x38] sm:$0xff]
  %v1233 = vld [vmem:[%s8] sm:$0x3]
  %v1235 = vperm.slane %v1233, 0
  %v1236 = vperm.slane %v1233, 1
  %v1247 = vunpack.c.l.b16 %v1225
  %v1248 = vunpack.c.h.b16 %v1225
  %v1249 = vunpack.c.l.b16 %v1226
  %v1250 = vunpack.c.h.b16 %v1226
  %v1251 = vunpack.c.l.b16 %v1227
  %v1252 = vunpack.c.h.b16 %v1227
  %v1253 = vunpack.c.l.b16 %v1228
  %v1254 = vunpack.c.h.b16 %v1228
  %v1255 = vunpack.c.l.b16 %v1229
  %v1256 = vunpack.c.h.b16 %v1229
  %v1257 = vunpack.c.l.b16 %v1230
  %v1258 = vunpack.c.h.b16 %v1230
  %v1259 = vunpack.c.l.b16 %v1231
  %v1260 = vunpack.c.h.b16 %v1231
  %v1261 = vunpack.c.l.b16 %v1232
  %v1262 = vunpack.c.h.b16 %v1232
  %v1263 = vpack.c.b16 %v1249, %v1247
  %v1264 = vpack.c.b16 %v1250, %v1248
  %v1265 = vpack.c.b16 %v1253, %v1251
  %v1266 = vpack.c.b16 %v1254, %v1252
  %v1267 = vpack.c.b16 %v1257, %v1255
  %v1268 = vpack.c.b16 %v1258, %v1256
  %v1269 = vpack.c.b16 %v1261, %v1259
  %v1270 = vpack.c.b16 %v1262, %v1260
  %v1280 = vsel %vm862, %v1224, 0
  %1282 = vmatpush.bf16.msra.mxu0 0
  %1283 = vmatpush.bf16.msra.mxu0 0
  %1284 = vmatpush.bf16.msra.mxu0 0
  %1285 = vmatpush.bf16.msra.mxu0 0
  %1286 = vmatpush.bf16.msra.mxu0 %v1269
  %1287 = vmatpush.bf16.msra.mxu0 %v1267
  %1288 = vmatpush.bf16.msra.mxu0 %v1265
  %1289 = vmatpush.bf16.msra.mxu0 %v1263
  %1290 = vmatmul.bf16.gmra.mxu0 %v1280
  %v1291 = vpop.f32.mrf.mxu0
  %v1292 = vadd.f32 %v1235, %v1291
  %v1293 = vpop.f32.mrf.mxu0
  %v1294 = vadd.f32 %v1235, %v1293
  %1295 = vdwg.mxu0
  %1296 = vmatpush.bf16.msra.mxu0 0
  %1297 = vmatpush.bf16.msra.mxu0 0
  %1298 = vmatpush.bf16.msra.mxu0 0
  %1299 = vmatpush.bf16.msra.mxu0 0
  %1300 = vmatpush.bf16.msra.mxu0 %v1270
  %1301 = vmatpush.bf16.msra.mxu0 %v1268
  %1302 = vmatpush.bf16.msra.mxu0 %v1266
  %1303 = vmatpush.bf16.msra.mxu0 %v1264
  %1304 = vmatmul.bf16.gmra.mxu0 %v1280
  %v1305 = vpop.f32.mrf.mxu0
  %v1306 = vadd.f32 %v1236, %v1305
  %v1307 = vpop.f32.mrf.mxu0
  %v1308 = vadd.f32 %v1236, %v1307
  %1309 = vdwg.mxu0
  %v1310 = vld [vmem:[%s9] sm:$0xff]
  %v1311 = vld [vmem:[%s9 + $0x8] sm:$0xff]
  %v1312 = vld [vmem:[%s9 + $0x10] sm:$0xff]
  %v1313 = vld [vmem:[%s9 + $0x18] sm:$0xff]
  %v1314 = vld [vmem:[%s9 + $0x20] sm:$0xff]
  %v1315 = vld [vmem:[%s9 + $0x28] sm:$0xff]
  %v1316 = vld [vmem:[%s9 + $0x30] sm:$0xff]
  %v1317 = vld [vmem:[%s9 + $0x38] sm:$0xff]
  %v1318 = vld [vmem:[%s10] sm:$0x3]
  %v1320 = vperm.slane %v1318, 0
  %v1321 = vperm.slane %v1318, 1
  %v1332 = vunpack.c.l.b16 %v1310
  %v1333 = vunpack.c.h.b16 %v1310
  %v1334 = vunpack.c.l.b16 %v1311
  %v1335 = vunpack.c.h.b16 %v1311
  %v1336 = vunpack.c.l.b16 %v1312
  %v1337 = vunpack.c.h.b16 %v1312
  %v1338 = vunpack.c.l.b16 %v1313
  %v1339 = vunpack.c.h.b16 %v1313
  %v1340 = vunpack.c.l.b16 %v1314
  %v1341 = vunpack.c.h.b16 %v1314
  %v1342 = vunpack.c.l.b16 %v1315
  %v1343 = vunpack.c.h.b16 %v1315
  %v1344 = vunpack.c.l.b16 %v1316
  %v1345 = vunpack.c.h.b16 %v1316
  %v1346 = vunpack.c.l.b16 %v1317
  %v1347 = vunpack.c.h.b16 %v1317
  %v1348 = vpack.c.b16 %v1334, %v1332
  %v1349 = vpack.c.b16 %v1335, %v1333
  %v1350 = vpack.c.b16 %v1338, %v1336
  %v1351 = vpack.c.b16 %v1339, %v1337
  %v1352 = vpack.c.b16 %v1342, %v1340
  %v1353 = vpack.c.b16 %v1343, %v1341
  %v1354 = vpack.c.b16 %v1346, %v1344
  %v1355 = vpack.c.b16 %v1347, %v1345
  %1364 = vmatpush.bf16.msra.mxu0 0
  %1365 = vmatpush.bf16.msra.mxu0 0
  %1366 = vmatpush.bf16.msra.mxu0 0
  %1367 = vmatpush.bf16.msra.mxu0 0
  %1368 = vmatpush.bf16.msra.mxu0 %v1354
  %1369 = vmatpush.bf16.msra.mxu0 %v1352
  %1370 = vmatpush.bf16.msra.mxu0 %v1350
  %1371 = vmatpush.bf16.msra.mxu0 %v1348
  %1372 = vmatmul.bf16.gmra.mxu0 %v950
  %v1373 = vpop.f32.mrf.mxu0
  %v1374 = vadd.f32 %v1320, %v1373
  %v1375 = vpop.f32.mrf.mxu0
  %1376 = vdwg.mxu0
  %1377 = vmatpush.bf16.msra.mxu0 0
  %1378 = vmatpush.bf16.msra.mxu0 0
  %1379 = vmatpush.bf16.msra.mxu0 0
  %1380 = vmatpush.bf16.msra.mxu0 0
  %1381 = vmatpush.bf16.msra.mxu0 %v1355
  %1382 = vmatpush.bf16.msra.mxu0 %v1353
  %1383 = vmatpush.bf16.msra.mxu0 %v1351
  %1384 = vmatpush.bf16.msra.mxu0 %v1349
  %1385 = vmatmul.bf16.gmra.mxu0 %v950
  %v1386 = vpop.f32.mrf.mxu0
  %v1387 = vadd.f32 %v1321, %v1386
  %v1388 = vpop.f32.mrf.mxu0
  %1389 = vdwg.mxu0
  %v1390 = vadd.f32 %v1292, %v1374
  %v1391 = vxor.u32 %v1390, 2147483648
  %v1392 = vmul.f32 %v1391, 1.442695
  %v1393 = vpow.pop %v1392
  %v1394 = vadd.f32 %v1393, 1.0
  %v1395 = vrcp.pop %v1394
  %v1396 = vmul.f32 %v1394, %v1395
  %v1397 = vsub.f32 1.0, %v1396
  %v1398 = vmul.f32 %v1395, %v1397
  %v1399 = vadd.f32 %v1395, %v1398
  %vm1400 = vweird.f32 %v1394
  %vm1401 = vweird.f32 %v1395
  %vm1402 = vmor %vm1400, %vm1401
  %v1403 = vsel %vm1402, %v1395, %v1399
  %v1404 = vand.u32 2147483647, %v1394
  %vm1405 = vcmp.eq.f32.partialorder %v1404, 8.507059e+37
  %v1406 = vand.u32 %v1394, 2147483648
  %v1407 = vor.u32 1.1754944e-38, %v1406
  %v1408 = vsel %vm1405, %v1407, %v1403
  %v1409 = vmul.f32 1.0, %v1408
  %1411 = vrot.lane.b32.xlu0 %v1374, 64
  %v1412 = vpop.permute.xlu0 %1411
  %v1414 = vmul.f32 %v1409, %v1412
  %1416 = vrot.lane.b32.xlu0 %v1414, 64
  %v1417 = vpop.permute.xlu0 %1416
  %v1419 = vadd.f32 %v1292, %v1417
  %v1420 = vtanh.pop %v1419
  %v1421 = vsub.f32 1.0, %v1409
  %1423 = vrot.lane.b32.xlu0 %v1420, 96
  %v1424 = vpop.permute.xlu0 %1423
  %v1426 = vmul.f32 %v1421, %v1424
  %v1427 = vmul.f32 %v1409, 0.0
  %v1428 = vadd.f32 %v1426, %v1427
  %v1429 = vadd.f32 %v1294, %v1374
  %v1430 = vxor.u32 %v1429, 2147483648
  %v1431 = vmul.f32 %v1430, 1.442695
  %v1432 = vpow.pop %v1431
  %v1433 = vadd.f32 %v1432, 1.0
  %v1434 = vrcp.pop %v1433
  %v1435 = vmul.f32 %v1433, %v1434
  %v1436 = vsub.f32 1.0, %v1435
  %v1437 = vmul.f32 %v1434, %v1436
  %v1438 = vadd.f32 %v1434, %v1437
  %vm1439 = vweird.f32 %v1433
  %vm1440 = vweird.f32 %v1434
  %vm1441 = vmor %vm1439, %vm1440
  %v1442 = vsel %vm1441, %v1434, %v1438
  %v1443 = vand.u32 2147483647, %v1433
  %vm1444 = vcmp.eq.f32.partialorder %v1443, 8.507059e+37
  %v1445 = vand.u32 %v1433, 2147483648
  %v1446 = vor.u32 1.1754944e-38, %v1445
  %v1447 = vsel %vm1444, %v1446, %v1442
  %v1448 = vmul.f32 1.0, %v1447
  %v1449 = vadd.f32 %v1308, %v1387
  %v1450 = vxor.u32 %v1449, 2147483648
  %v1451 = vmul.f32 %v1450, 1.442695
  %v1452 = vpow.pop %v1451
  %v1453 = vadd.f32 %v1452, 1.0
  %v1454 = vrcp.pop %v1453
  %v1455 = vmul.f32 %v1453, %v1454
  %v1456 = vsub.f32 1.0, %v1455
  %v1457 = vmul.f32 %v1454, %v1456
  %v1458 = vadd.f32 %v1454, %v1457
  %vm1459 = vweird.f32 %v1453
  %vm1460 = vweird.f32 %v1454
  %vm1461 = vmor %vm1459, %vm1460
  %v1462 = vsel %vm1461, %v1454, %v1458
  %v1463 = vand.u32 2147483647, %v1453
  %vm1464 = vcmp.eq.f32.partialorder %v1463, 8.507059e+37
  %v1465 = vand.u32 %v1453, 2147483648
  %v1466 = vor.u32 1.1754944e-38, %v1465
  %v1467 = vsel %vm1464, %v1466, %v1462
  %v1468 = vmul.f32 1.0, %v1467
  %1470 = vrot.lane.b32.xlu0 %v1387, 64
  %v1471 = vpop.permute.xlu0 %1470
  %v1473 = vmul.f32 %v1448, %v1471
  %1475 = vrot.lane.b32.xlu0 %v1473, 64
  %v1476 = vpop.permute.xlu0 %1475
  %v1478 = vadd.f32 %v1308, %v1476
  %v1479 = vtanh.pop %v1478
  %v1480 = vsub.f32 1.0, %v1468
  %1482 = vrot.lane.b32.xlu0 %v1479, 96
  %v1483 = vpop.permute.xlu0 %1482
  %v1485 = vmul.f32 %v1480, %v1483
  %v1486 = vmul.f32 %v1468, 0.0
  %v1487 = vadd.f32 %v1485, %v1486
  %1489 = vrot.lane.b32.xlu0 %v1428, 96
  %v1490 = vpop.permute.xlu0 %1489
  %1493 = vrot.lane.b32.xlu0 %v1487, 32
  %v1494 = vpop.permute.xlu0 %1493
  %v1496 = vsel %vm1084, %v1490, %v1494
  %v1497 = vpack.c.bf16 %v1496, %v1496
  %v1499 = vsel %vm862, %v1497, 0
  %1501 = vmatpush.bf16.msra.mxu0 0
  %1502 = vmatpush.bf16.msra.mxu0 0
  %1503 = vmatpush.bf16.msra.mxu0 0
  %1504 = vmatpush.bf16.msra.mxu0 0
  %1505 = vmatpush.bf16.msra.mxu0 %v1354
  %1506 = vmatpush.bf16.msra.mxu0 %v1352
  %1507 = vmatpush.bf16.msra.mxu0 %v1350
  %1508 = vmatpush.bf16.msra.mxu0 %v1348
  %1509 = vmatmul.bf16.gmra.mxu0 %v1499
  %v1510 = vpop.f32.mrf.mxu0
  %v1511 = vadd.f32 %v1320, %v1510
  %v1512 = vpop.f32.mrf.mxu0
  %1513 = vdwg.mxu0
  %1514 = vmatpush.bf16.msra.mxu0 0
  %1515 = vmatpush.bf16.msra.mxu0 0
  %1516 = vmatpush.bf16.msra.mxu0 0
  %1517 = vmatpush.bf16.msra.mxu0 0
  %1518 = vmatpush.bf16.msra.mxu0 %v1355
  %1519 = vmatpush.bf16.msra.mxu0 %v1353
  %1520 = vmatpush.bf16.msra.mxu0 %v1351
  %1521 = vmatpush.bf16.msra.mxu0 %v1349
  %1522 = vmatmul.bf16.gmra.mxu0 %v1499
  %v1523 = vpop.f32.mrf.mxu0
  %v1524 = vadd.f32 %v1321, %v1523
  %v1525 = vpop.f32.mrf.mxu0
  %1526 = vdwg.mxu0
  %v1527 = vadd.f32 %v1294, %v1511
  %v1528 = vxor.u32 %v1527, 2147483648
  %v1529 = vmul.f32 %v1528, 1.442695
  %v1530 = vpow.pop %v1529
  %v1531 = vadd.f32 %v1530, 1.0
  %v1532 = vrcp.pop %v1531
  %v1533 = vmul.f32 %v1531, %v1532
  %v1534 = vsub.f32 1.0, %v1533
  %v1535 = vmul.f32 %v1532, %v1534
  %v1536 = vadd.f32 %v1532, %v1535
  %vm1537 = vweird.f32 %v1531
  %vm1538 = vweird.f32 %v1532
  %vm1539 = vmor %vm1537, %vm1538
  %v1540 = vsel %vm1539, %v1532, %v1536
  %v1541 = vand.u32 2147483647, %v1531
  %vm1542 = vcmp.eq.f32.partialorder %v1541, 8.507059e+37
  %v1543 = vand.u32 %v1531, 2147483648
  %v1544 = vor.u32 1.1754944e-38, %v1543
  %v1545 = vsel %vm1542, %v1544, %v1540
  %v1546 = vmul.f32 1.0, %v1545
  %1548 = vrot.lane.b32.xlu0 %v1511, 64
  %v1549 = vpop.permute.xlu0 %1548
  %v1551 = vmul.f32 %v1546, %v1549
  %1553 = vrot.lane.b32.xlu0 %v1551, 64
  %v1554 = vpop.permute.xlu0 %1553
  %v1556 = vadd.f32 %v1294, %v1554
  %v1557 = vtanh.pop %v1556
  %v1558 = vsub.f32 1.0, %v1546
  %1560 = vrot.lane.b32.xlu0 %v1557, 96
  %v1561 = vpop.permute.xlu0 %1560
  %v1563 = vmul.f32 %v1558, %v1561
  %v1564 = vmul.f32 %v1546, %v1428
  %v1565 = vadd.f32 %v1563, %v1564
  %v1566 = vadd.f32 %v1292, %v1511
  %v1567 = vxor.u32 %v1566, 2147483648
  %v1568 = vmul.f32 %v1567, 1.442695
  %v1569 = vpow.pop %v1568
  %v1570 = vadd.f32 %v1569, 1.0
  %v1571 = vrcp.pop %v1570
  %v1572 = vmul.f32 %v1570, %v1571
  %v1573 = vsub.f32 1.0, %v1572
  %v1574 = vmul.f32 %v1571, %v1573
  %v1575 = vadd.f32 %v1571, %v1574
  %vm1576 = vweird.f32 %v1570
  %vm1577 = vweird.f32 %v1571
  %vm1578 = vmor %vm1576, %vm1577
  %v1579 = vsel %vm1578, %v1571, %v1575
  %v1580 = vand.u32 2147483647, %v1570
  %vm1581 = vcmp.eq.f32.partialorder %v1580, 8.507059e+37
  %v1582 = vand.u32 %v1570, 2147483648
  %v1583 = vor.u32 1.1754944e-38, %v1582
  %v1584 = vsel %vm1581, %v1583, %v1579
  %v1585 = vmul.f32 1.0, %v1584
  %v1586 = vadd.f32 %v1306, %v1524
  %v1587 = vxor.u32 %v1586, 2147483648
  %v1588 = vmul.f32 %v1587, 1.442695
  %v1589 = vpow.pop %v1588
  %v1590 = vadd.f32 %v1589, 1.0
  %v1591 = vrcp.pop %v1590
  %v1592 = vmul.f32 %v1590, %v1591
  %v1593 = vsub.f32 1.0, %v1592
  %v1594 = vmul.f32 %v1591, %v1593
  %v1595 = vadd.f32 %v1591, %v1594
  %vm1596 = vweird.f32 %v1590
  %vm1597 = vweird.f32 %v1591
  %vm1598 = vmor %vm1596, %vm1597
  %v1599 = vsel %vm1598, %v1591, %v1595
  %v1600 = vand.u32 2147483647, %v1590
  %vm1601 = vcmp.eq.f32.partialorder %v1600, 8.507059e+37
  %v1602 = vand.u32 %v1590, 2147483648
  %v1603 = vor.u32 1.1754944e-38, %v1602
  %v1604 = vsel %vm1601, %v1603, %v1599
  %v1605 = vmul.f32 1.0, %v1604
  %1607 = vrot.lane.b32.xlu0 %v1524, 64
  %v1608 = vpop.permute.xlu0 %1607
  %v1610 = vmul.f32 %v1585, %v1608
  %1612 = vrot.lane.b32.xlu0 %v1610, 64
  %v1613 = vpop.permute.xlu0 %1612
  %v1615 = vadd.f32 %v1306, %v1613
  %v1616 = vtanh.pop %v1615
  %v1617 = vsub.f32 1.0, %v1605
  %1619 = vrot.lane.b32.xlu0 %v1616, 96
  %v1620 = vpop.permute.xlu0 %1619
  %v1622 = vmul.f32 %v1617, %v1620
  %v1623 = vmul.f32 %v1605, %v1487
  %v1624 = vadd.f32 %v1622, %v1623
  %1626 = vrot.lane.b32.xlu0 %v1624, 32
  %v1627 = vpop.permute.xlu0 %1626
  %v1629 = vsel %vm1084, %v1490, %v1627
  %1631 = vrot.lane.b32.xlu0 %v1565, 96
  %v1632 = vpop.permute.xlu0 %1631
  %v1634 = vsel %vm1084, %v1632, %v1494
  %v1635 = vpack.c.bf16 %v1634, %v1629
  %v1636 = vld [vmem:[%s11] sm:$0xf]
  %v1637 = vld [vmem:[%s11 + $0x4] sm:$0xf]
  %v1638 = vld [vmem:[%s11 + $0x8] sm:$0xf]
  %v1639 = vld [vmem:[%s11 + $0xc] sm:$0xf]
  %v1640 = vld [vmem:[%s11 + $0x10] sm:$0xf]
  %v1641 = vld [vmem:[%s11 + $0x14] sm:$0xf]
  %v1642 = vld [vmem:[%s11 + $0x18] sm:$0xf]
  %v1643 = vld [vmem:[%s11 + $0x1c] sm:$0xf]
  %v1644 = vld [vmem:[%s12] sm:$0x1]
  %v1646 = vperm.slane %v1644, 0
  %v1656 = vunpack.c.l.b16 %v1636
  %v1657 = vunpack.c.l.b16 %v1637
  %v1658 = vunpack.c.l.b16 %v1638
  %v1659 = vunpack.c.l.b16 %v1639
  %v1660 = vunpack.c.l.b16 %v1640
  %v1661 = vunpack.c.l.b16 %v1641
  %v1662 = vunpack.c.l.b16 %v1642
  %v1663 = vunpack.c.l.b16 %v1643
  %v1664 = vpack.c.b16 %v1657, %v1656
  %v1665 = vpack.c.b16 %v1659, %v1658
  %v1666 = vpack.c.b16 %v1661, %v1660
  %v1667 = vpack.c.b16 %v1663, %v1662
  %v1673 = vsel %vm862, %v1635, 0
  %1675 = vmatpush.bf16.msra.mxu0 0
  %1676 = vmatpush.bf16.msra.mxu0 0
  %1677 = vmatpush.bf16.msra.mxu0 0
  %1678 = vmatpush.bf16.msra.mxu0 0
  %1679 = vmatpush.bf16.msra.mxu0 %v1667
  %1680 = vmatpush.bf16.msra.mxu0 %v1666
  %1681 = vmatpush.bf16.msra.mxu0 %v1665
  %1682 = vmatpush.bf16.msra.mxu0 %v1664
  %1683 = vmatmul.bf16.gmra.mxu0 %v1673
  %v1684 = vpop.f32.mrf.mxu0
  %v1685 = vadd.f32 %v1646, %v1684
  %v1686 = vpop.f32.mrf.mxu0
  %v1687 = vadd.f32 %v1646, %v1686
  %1688 = vdwg.mxu0
  %1689 = vst [vmem:[%s13] sm:$0xff] %v1685
  %1690 = vst [vmem:[%s13 + $0x8] sm:$0xff] %v1687
  // Predicated region
  $region54: #{captcha_forward.5} parent=0 // pred_check
    _
  $region55: #{captcha_forward.5} parent=0 // pred_check_branch
    %1692 = sbr.rel (0) target = $region57
  $region56: #{captcha_forward.5} parent=0 // pred_region
    _
  $region57: #{captcha_forward.5} parent=0 // pred_fallthru
    _
  // Predicated region
  $region58: #{captcha_forward.5} parent=0 // pred_check
    _
  $region59: #{captcha_forward.5} parent=0 // pred_check_branch
    %1694 = sbr.rel (0) target = $region61
  $region60: #{captcha_forward.5} parent=0 // pred_region
    _
  $region61: #{captcha_forward.5} parent=0 // pred_fallthru
    _

// kernel: captcha_forward.4
$region0: #{captcha_forward.4}
  #allocation0 [shape = 'u32[]', space=smem, size = 0x4, offset = 0x4, fixed_abs, tag = 'smem constant byte address 0x4 - core index']
  #allocation1 [shape = 'u32[72,128]{1,0:T(1,128)}', space=vmem, size = 0x9000, scoped, tag = 'internal scratch']
  %s0 = inlined_call_operand.vmem [shape: bf16[288,1152], index: 0, kind: input, shape index: {}]
  %s1 = inlined_call_operand.vmem [shape: bf16[288,1152], index: 1, kind: input, shape index: {}]
  %s2 = inlined_call_operand.vmem [shape: bf16[288,1152], index: 2, kind: input, shape index: {}]
  %s3 = inlined_call_operand.vmem [shape: bf16[288,1152], index: 3, kind: input, shape index: {}]
  %s4 = inlined_call_operand.vmem [shape: bf16[1152,64], index: 4, kind: input, shape index: {}]
  %s5 = inlined_call_operand.vmem [shape: f32[1,64], index: 5, kind: input, shape index: {}]
  %s6 = inlined_call_operand.vmem [shape: bf16[288,64], index: 6, kind: output, shape index: {}]
  %s7 = sld [smem:[#allocation0]]
  $region57: #{captcha_forward.4} parent=0
    _
  %s9 = ssub.s32 1, %s7
  %s10 = scalar_select 0, %s9, %s7
  loop: start=0, step=1, limit=4
  $region2: #{captcha_forward.4} parent=0 // loop_pre_header
    _
  $region3: #{captcha_forward.4} parent=0 // loop_header
    %s12 = sphi 0, %s16
    %p13 = scmp.ge.s32.totalorder %s12, 4
    %s22 = sphi 0, %s24
    %s25 = sphi 0, %s22
    %s26 = sphi 0, %s25
    %s42 = sphi 0, %s26
    %s48 = sphi 0, %s50
    %s51 = sphi 0, %s48
    %s52 = sphi 0, %s51
    %s68 = sphi 0, %s52
    %s74 = sphi 0, %s76
    %s77 = sphi 0, %s74
    %s78 = sphi 0, %s77
    %s94 = sphi 0, %s78
    %s100 = sphi 0, %s102
    %s103 = sphi 0, %s100
    %s104 = sphi 0, %s103
    %s120 = sphi 0, %s104
    %s124 = sphi 0, %s124
    %s126 = sphi 0, %s124
    %s127 = sphi 0, %s126
    %s141 = sphi 0, %s127
    %s145 = sphi 0, %s145
    %s147 = sphi 0, %s145
    %s148 = sphi 0, %s147
    %s162 = sphi 0, %s148
    %s168 = sphi 0, %s170
    %s171 = sphi 0, %s168
    %s172 = sphi 0, %s171
    %s188 = sphi 0, %s172
  $region4: #{captcha_forward.4} parent=0 // loop_header_branch
    %15 = sbr.rel (%p13) target = $region8
  $region5: #{captcha_forward.4} parent=0 // loop_body
    %s17 = ssub.s32 %s12, 1
    %s18 = ssub.s32 %s12, 2
    %s19 = sadd.s32 %s12, 1
    %s20 = ssub.s32 %s12, %s19
    %p21 = scmp.eq.s32.totalorder %s20, 0
    %s23 = sadd.s32 %s22, 1
    %s24 = scalar_select %p21, %s22, %s23
    %p27 = pneg %p21
    %p28 = scmp.eq.s32.totalorder %s12, 1
    %p29 = por %p27, %p28
    %p30 = scmp.ne.s32.totalorder %s22, %s25
    %p31 = scmp.eq.s32.totalorder %s12, 0
    %p32 = por %p30, %p31
    %p33 = scmp.ne.s32.totalorder %s22, %s25
    %p34 = scmp.eq.s32.totalorder %s17, 1
    %p35 = por %p33, %p34
    %p36 = scmp.ne.s32.totalorder %s25, %s26
    %p37 = scmp.eq.s32.totalorder %s17, 0
    %p38 = por %p36, %p37
    %p39 = scmp.ne.s32.totalorder %s25, %s26
    %p40 = scmp.eq.s32.totalorder %s18, 1
    %p41 = por %p39, %p40
    %p43 = scmp.ne.s32.totalorder %s26, %s42
    %p44 = scmp.eq.s32.totalorder %s18, 0
    %p45 = por %p43, %p44
    %s46 = ssub.s32 %s12, %s19
    %p47 = scmp.eq.s32.totalorder %s46, 0
    %s49 = sadd.s32 %s48, 1
    %s50 = scalar_select %p47, %s48, %s49
    %p53 = pneg %p47
    %p54 = scmp.eq.s32.totalorder %s12, 1
    %p55 = por %p53, %p54
    %p56 = scmp.ne.s32.totalorder %s48, %s51
    %p57 = scmp.eq.s32.totalorder %s12, 0
    %p58 = por %p56, %p57
    %p59 = scmp.ne.s32.totalorder %s48, %s51
    %p60 = scmp.eq.s32.totalorder %s17, 1
    %p61 = por %p59, %p60
    %p62 = scmp.ne.s32.totalorder %s51, %s52
    %p63 = scmp.eq.s32.totalorder %s17, 0
    %p64 = por %p62, %p63
    %p65 = scmp.ne.s32.totalorder %s51, %s52
    %p66 = scmp.eq.s32.totalorder %s18, 1
    %p67 = por %p65, %p66
    %p69 = scmp.ne.s32.totalorder %s52, %s68
    %p70 = scmp.eq.s32.totalorder %s18, 0
    %p71 = por %p69, %p70
    %s72 = ssub.s32 %s12, %s19
    %p73 = scmp.eq.s32.totalorder %s72, 0
    %s75 = sadd.s32 %s74, 1
    %s76 = scalar_select %p73, %s74, %s75
    %p79 = pneg %p73
    %p80 = scmp.eq.s32.totalorder %s12, 1
    %p81 = por %p79, %p80
    %p82 = scmp.ne.s32.totalorder %s74, %s77
    %p83 = scmp.eq.s32.totalorder %s12, 0
    %p84 = por %p82, %p83
    %p85 = scmp.ne.s32.totalorder %s74, %s77
    %p86 = scmp.eq.s32.totalorder %s17, 1
    %p87 = por %p85, %p86
    %p88 = scmp.ne.s32.totalorder %s77, %s78
    %p89 = scmp.eq.s32.totalorder %s17, 0
    %p90 = por %p88, %p89
    %p91 = scmp.ne.s32.totalorder %s77, %s78
    %p92 = scmp.eq.s32.totalorder %s18, 1
    %p93 = por %p91, %p92
    %p95 = scmp.ne.s32.totalorder %s78, %s94
    %p96 = scmp.eq.s32.totalorder %s18, 0
    %p97 = por %p95, %p96
    %s98 = ssub.s32 %s12, %s19
    %p99 = scmp.eq.s32.totalorder %s98, 0
    %s101 = sadd.s32 %s100, 1
    %s102 = scalar_select %p99, %s100, %s101
    %p105 = pneg %p99
    %p106 = scmp.eq.s32.totalorder %s12, 1
    %p107 = por %p105, %p106
    %p108 = scmp.ne.s32.totalorder %s100, %s103
    %p109 = scmp.eq.s32.totalorder %s12, 0
    %p110 = por %p108, %p109
    %p111 = scmp.ne.s32.totalorder %s100, %s103
    %p112 = scmp.eq.s32.totalorder %s17, 1
    %p113 = por %p111, %p112
    %p114 = scmp.ne.s32.totalorder %s103, %s104
    %p115 = scmp.eq.s32.totalorder %s17, 0
    %p116 = por %p114, %p115
    %p117 = scmp.ne.s32.totalorder %s103, %s104
    %p118 = scmp.eq.s32.totalorder %s18, 1
    %p119 = por %p117, %p118
    %p121 = scmp.ne.s32.totalorder %s104, %s120
    %p122 = scmp.eq.s32.totalorder %s18, 0
    %p123 = por %p121, %p122
    %s125 = sadd.s32 %s124, 1
    %p128 = scmp.eq.s32.totalorder %s12, 1
    %p129 = scmp.ne.s32.totalorder %s124, %s126
    %p130 = scmp.eq.s32.totalorder %s12, 0
    %p131 = por %p129, %p130
    %p132 = scmp.ne.s32.totalorder %s124, %s126
    %p133 = scmp.eq.s32.totalorder %s17, 1
    %p134 = por %p132, %p133
    %p135 = scmp.ne.s32.totalorder %s126, %s127
    %p136 = scmp.eq.s32.totalorder %s17, 0
    %p137 = por %p135, %p136
    %p138 = scmp.ne.s32.totalorder %s126, %s127
    %p139 = scmp.eq.s32.totalorder %s18, 1
    %p140 = por %p138, %p139
    %p142 = scmp.ne.s32.totalorder %s127, %s141
    %p143 = scmp.eq.s32.totalorder %s18, 0
    %p144 = por %p142, %p143
    %s146 = sadd.s32 %s145, 1
    %p149 = scmp.eq.s32.totalorder %s12, 1
    %p150 = scmp.ne.s32.totalorder %s145, %s147
    %p151 = scmp.eq.s32.totalorder %s12, 0
    %p152 = por %p150, %p151
    %p153 = scmp.ne.s32.totalorder %s145, %s147
    %p154 = scmp.eq.s32.totalorder %s17, 1
    %p155 = por %p153, %p154
    %p156 = scmp.ne.s32.totalorder %s147, %s148
    %p157 = scmp.eq.s32.totalorder %s17, 0
    %p158 = por %p156, %p157
    %p159 = scmp.ne.s32.totalorder %s147, %s148
    %p160 = scmp.eq.s32.totalorder %s18, 1
    %p161 = por %p159, %p160
    %p163 = scmp.ne.s32.totalorder %s148, %s162
    %p164 = scmp.eq.s32.totalorder %s18, 0
    %p165 = por %p163, %p164
    %s166 = ssub.s32 %s12, %s19
    %p167 = scmp.eq.s32.totalorder %s166, 0
    %s169 = sadd.s32 %s168, 1
    %s170 = scalar_select %p167, %s168, %s169
    %p173 = pneg %p167
    %p174 = scmp.eq.s32.totalorder %s12, 1
    %p175 = por %p173, %p174
    %p176 = scmp.ne.s32.totalorder %s168, %s171
    %p177 = scmp.eq.s32.totalorder %s12, 0
    %p178 = por %p176, %p177
    %p179 = scmp.ne.s32.totalorder %s168, %s171
    %p180 = scmp.eq.s32.totalorder %s17, 1
    %p181 = por %p179, %p180
    %p182 = scmp.ne.s32.totalorder %s171, %s172
    %p183 = scmp.eq.s32.totalorder %s17, 0
    %p184 = por %p182, %p183
    %p185 = scmp.ne.s32.totalorder %s171, %s172
    %p186 = scmp.eq.s32.totalorder %s18, 1
    %p187 = por %p185, %p186
    %p189 = scmp.ne.s32.totalorder %s172, %s188
    %p190 = scmp.eq.s32.totalorder %s18, 0
    %p191 = por %p189, %p190
    %p192 = scmp.le.s32.totalorder 1, %s12
    %p193 = scmp.lt.s32.totalorder %s12, 3
    %p194 = pnand %p192, %p193
    %p195 = pneg %p194
    // Predicated region
    $region9: #{captcha_forward.4} parent=5 // pred_check
      _
    $region10: #{captcha_forward.4} parent=5 // pred_check_branch
      %197 = sbr.rel (%p194) target = $region12
    $region11: #{captcha_forward.4} parent=5 // pred_region
      %s198 = ssub.s32 %s12, 1
      // Predicated region
      $region13: #{captcha_forward.4} parent=11 // pred_check
        %p199 = pneg %p137
      $region14: #{captcha_forward.4} parent=11 // pred_check_branch
        %201 = sbr.rel (%p199) target = $region16
      $region15: #{captcha_forward.4} parent=11 // pred_region
        _
      $region16: #{captcha_forward.4} parent=11 // pred_fallthru
        _
      // Predicated region
      $region17: #{captcha_forward.4} parent=11 // pred_check
        %p202 = pneg %p158
      $region18: #{captcha_forward.4} parent=11 // pred_check_branch
        %204 = sbr.rel (%p202) target = $region20
      $region19: #{captcha_forward.4} parent=11 // pred_region
        _
      $region20: #{captcha_forward.4} parent=11 // pred_fallthru
        _
    $region12: #{captcha_forward.4} parent=5 // pred_fallthru
      _
    %p205 = scmp.lt.s32.totalorder %s12, 2
    // Predicated region
    $region21: #{captcha_forward.4} parent=5 // pred_check
      %p206 = pneg %p205
    $region22: #{captcha_forward.4} parent=5 // pred_check_branch
      %208 = sbr.rel (%p206) target = $region24
    $region23: #{captcha_forward.4} parent=5 // pred_region
      // Predicated region
      $region25: #{captcha_forward.4} parent=23 // pred_check
        %p209 = pneg %p32
      $region26: #{captcha_forward.4} parent=23 // pred_check_branch
        %211 = sbr.rel (%p209) target = $region28
      $region27: #{captcha_forward.4} parent=23 // pred_region
        %s212 = smul.u32 18, %s12
        %p213 = scmp.lt.s32.totalorder %s212, 35
        %s214 = scalar_select %p213, %s212, 35
        %s215 = smul.addr %s214, 9
        %s216 = smul.addr %s215, 4
        %s217 = scalar_lea.vmem %s0, %s216
        %s218 = smul.u32 18, %s12
      $region28: #{captcha_forward.4} parent=23 // pred_fallthru
        _
      // Predicated region
      $region29: #{captcha_forward.4} parent=23 // pred_check
        %p219 = pneg %p58
      $region30: #{captcha_forward.4} parent=23 // pred_check_branch
        %221 = sbr.rel (%p219) target = $region32
      $region31: #{captcha_forward.4} parent=23 // pred_region
        %s222 = smul.u32 18, %s12
        %p223 = scmp.lt.s32.totalorder %s222, 35
        %s224 = scalar_select %p223, %s222, 35
        %s225 = smul.addr %s224, 9
        %s226 = smul.addr %s225, 4
        %s227 = scalar_lea.vmem %s1, %s226
        %s228 = smul.u32 18, %s12
      $region32: #{captcha_forward.4} parent=23 // pred_fallthru
        _
      // Predicated region
      $region33: #{captcha_forward.4} parent=23 // pred_check
        %p229 = pneg %p84
      $region34: #{captcha_forward.4} parent=23 // pred_check_branch
        %231 = sbr.rel (%p229) target = $region36
      $region35: #{captcha_forward.4} parent=23 // pred_region
        %s232 = smul.u32 18, %s12
        %p233 = scmp.lt.s32.totalorder %s232, 35
        %s234 = scalar_select %p233, %s232, 35
        %s235 = smul.addr %s234, 9
        %s236 = smul.addr %s235, 4
        %s237 = scalar_lea.vmem %s2, %s236
        %s238 = smul.u32 18, %s12
      $region36: #{captcha_forward.4} parent=23 // pred_fallthru
        _
      // Predicated region
      $region37: #{captcha_forward.4} parent=23 // pred_check
        %p239 = pneg %p110
      $region38: #{captcha_forward.4} parent=23 // pred_check_branch
        %241 = sbr.rel (%p239) target = $region40
      $region39: #{captcha_forward.4} parent=23 // pred_region
        %s242 = smul.u32 18, %s12
        %p243 = scmp.lt.s32.totalorder %s242, 35
        %s244 = scalar_select %p243, %s242, 35
        %s245 = smul.addr %s244, 9
        %s246 = smul.addr %s245, 4
        %s247 = scalar_lea.vmem %s3, %s246
        %s248 = smul.u32 18, %s12
      $region40: #{captcha_forward.4} parent=23 // pred_fallthru
        _
    $region24: #{captcha_forward.4} parent=5 // pred_fallthru
      _
    %p249 = scmp.le.s32.totalorder 1, %s12
    %p250 = scmp.lt.s32.totalorder %s12, 3
    %p251 = pnand %p249, %p250
    %p252 = pneg %p251
    // Predicated region
    $region41: #{captcha_forward.4} parent=5 // pred_check
      _
    $region42: #{captcha_forward.4} parent=5 // pred_check_branch
      %254 = sbr.rel (%p251) target = $region44
    $region43: #{captcha_forward.4} parent=5 // pred_region
      %s255 = ssub.s32 %s12, 1
      %s256 = smul.u32 18, %s17
      %p257 = scmp.lt.s32.totalorder %s256, 35
      %s258 = scalar_select %p257, %s256, 35
      %s259 = smul.addr %s258, 9
      %s260 = smul.addr %s259, 4
      %s261 = scalar_lea.vmem %s0, %s260
      %p262 = pneg %p38
      %p263 = pneg %p35
      %s264 = smul.u32 18, %s17
      %p265 = scmp.lt.s32.totalorder %s264, 35
      %s266 = scalar_select %p265, %s264, 35
      %s267 = smul.addr %s266, 9
      %s268 = smul.addr %s267, 4
      %s269 = scalar_lea.vmem %s1, %s268
      %p270 = pneg %p64
      %p271 = pneg %p61
      %s272 = smul.u32 18, %s17
      %p273 = scmp.lt.s32.totalorder %s272, 35
      %s274 = scalar_select %p273, %s272, 35
      %s275 = smul.addr %s274, 9
      %s276 = smul.addr %s275, 4
      %s277 = scalar_lea.vmem %s2, %s276
      %p278 = pneg %p90
      %p279 = pneg %p87
      %s280 = smul.u32 18, %s17
      %p281 = scmp.lt.s32.totalorder %s280, 35
      %s282 = scalar_select %p281, %s280, 35
      %s283 = smul.addr %s282, 9
      %s284 = smul.addr %s283, 4
      %s285 = scalar_lea.vmem %s3, %s284
      %p286 = pneg %p116
      %p287 = pneg %p113
      %p288 = pneg %p137
      %p289 = pneg %p134
      %p290 = pneg %p158
      %p291 = pneg %p155
      %p292 = pneg %p184
      %p293 = pneg %p181
      %s294 = smul.u32 18, %s17
      %p295 = scmp.lt.s32.totalorder %s294, 35
      %s296 = scalar_select %p295, %s294, 35
      %s297 = smul.addr %s296, 4
      %s298 = scalar_lea.vmem %s6, %s297
      %s299 = smul.u32 18, %s17
      %p300 = scmp.lt.s32.totalorder %s299, 35
      %s301 = scalar_select %p300, %s299, 35
      %s302 = smul.addr %s301, 9
      %s303 = smul.addr %s302, 4
      %s304 = scalar_lea.vmem %s0, %s303
      %s305 = smul.u32 18, %s17
      %s306 = smul.u32 18, %s17
      %p307 = scmp.lt.s32.totalorder %s306, 35
      %s308 = scalar_select %p307, %s306, 35
      %s309 = smul.addr %s308, 9
      %s310 = smul.addr %s309, 4
      %s311 = scalar_lea.vmem %s1, %s310
      %s312 = smul.u32 18, %s17
      %s313 = smul.u32 18, %s17
      %p314 = scmp.lt.s32.totalorder %s313, 35
      %s315 = scalar_select %p314, %s313, 35
      %s316 = smul.addr %s315, 9
      %s317 = smul.addr %s316, 4
      %s318 = scalar_lea.vmem %s2, %s317
      %s319 = smul.u32 18, %s17
      %s320 = smul.u32 18, %s17
      %p321 = scmp.lt.s32.totalorder %s320, 35
      %s322 = scalar_select %p321, %s320, 35
      %s323 = smul.addr %s322, 9
      %s324 = smul.addr %s323, 4
      %s325 = scalar_lea.vmem %s3, %s324
      %s326 = smul.u32 18, %s17
      %s327 = smul.u32 18, %s17
      %p328 = scmp.lt.s32.totalorder %s327, 35
      %s329 = scalar_select %p328, %s327, 35
      %s330 = smul.addr %s329, 4
      %s331 = scalar_lea.vmem %s6, %s330
      %s332 = smul.u32 18, %s17
      %v333 = vld [vmem:[%s4] sm:$0xf]
      %v334 = vld [vmem:[%s4 + $0x4] sm:$0xf]
      %v335 = vld [vmem:[%s4 + $0x8] sm:$0xf]
      %v336 = vld [vmem:[%s4 + $0xc] sm:$0xf]
      %v337 = vld [vmem:[%s4 + $0x10] sm:$0xf]
      %v338 = vld [vmem:[%s4 + $0x14] sm:$0xf]
      %v339 = vld [vmem:[%s4 + $0x18] sm:$0xf]
      %v340 = vld [vmem:[%s4 + $0x1c] sm:$0xf]
      %v341 = vld [vmem:[%s4 + $0x20] sm:$0xf]
      %v342 = vld [vmem:[%s4 + $0x24] sm:$0xf]
      %v343 = vld [vmem:[%s4 + $0x28] sm:$0xf]
      %v344 = vld [vmem:[%s4 + $0x2c] sm:$0xf]
      %v345 = vld [vmem:[%s4 + $0x30] sm:$0xf]
      %v346 = vld [vmem:[%s4 + $0x34] sm:$0xf]
      %v347 = vld [vmem:[%s4 + $0x38] sm:$0xf]
      %v348 = vld [vmem:[%s4 + $0x3c] sm:$0xf]
      %v349 = vld [vmem:[%s4 + $0x40] sm:$0xf]
      %v350 = vld [vmem:[%s4 + $0x44] sm:$0xf]
      %v351 = vld [vmem:[%s4 + $0x48] sm:$0xf]
      %v352 = vld [vmem:[%s4 + $0x4c] sm:$0xf]
      %v353 = vld [vmem:[%s4 + $0x50] sm:$0xf]
      %v354 = vld [vmem:[%s4 + $0x54] sm:$0xf]
      %v355 = vld [vmem:[%s4 + $0x58] sm:$0xf]
      %v356 = vld [vmem:[%s4 + $0x5c] sm:$0xf]
      %v357 = vld [vmem:[%s4 + $0x60] sm:$0xf]
      %v358 = vld [vmem:[%s4 + $0x64] sm:$0xf]
      %v359 = vld [vmem:[%s4 + $0x68] sm:$0xf]
      %v360 = vld [vmem:[%s4 + $0x6c] sm:$0xf]
      %v361 = vld [vmem:[%s4 + $0x70] sm:$0xf]
      %v362 = vld [vmem:[%s4 + $0x74] sm:$0xf]
      %v363 = vld [vmem:[%s4 + $0x78] sm:$0xf]
      %v364 = vld [vmem:[%s4 + $0x7c] sm:$0xf]
      %v365 = vld [vmem:[%s4 + $0x80] sm:$0xf]
      %v366 = vld [vmem:[%s4 + $0x84] sm:$0xf]
      %v367 = vld [vmem:[%s4 + $0x88] sm:$0xf]
      %v368 = vld [vmem:[%s4 + $0x8c] sm:$0xf]
      %v369 = vld [vmem:[%s4 + $0x90] sm:$0xf]
      %v370 = vld [vmem:[%s4 + $0x94] sm:$0xf]
      %v371 = vld [vmem:[%s4 + $0x98] sm:$0xf]
      %v372 = vld [vmem:[%s4 + $0x9c] sm:$0xf]
      %v373 = vld [vmem:[%s4 + $0xa0] sm:$0xf]
      %v374 = vld [vmem:[%s4 + $0xa4] sm:$0xf]
      %v375 = vld [vmem:[%s4 + $0xa8] sm:$0xf]
      %v376 = vld [vmem:[%s4 + $0xac] sm:$0xf]
      %v377 = vld [vmem:[%s4 + $0xb0] sm:$0xf]
      %v378 = vld [vmem:[%s4 + $0xb4] sm:$0xf]
      %v379 = vld [vmem:[%s4 + $0xb8] sm:$0xf]
      %v380 = vld [vmem:[%s4 + $0xbc] sm:$0xf]
      %v381 = vld [vmem:[%s4 + $0xc0] sm:$0xf]
      %v382 = vld [vmem:[%s4 + $0xc4] sm:$0xf]
      %v383 = vld [vmem:[%s4 + $0xc8] sm:$0xf]
      %v384 = vld [vmem:[%s4 + $0xcc] sm:$0xf]
      %v385 = vld [vmem:[%s4 + $0xd0] sm:$0xf]
      %v386 = vld [vmem:[%s4 + $0xd4] sm:$0xf]
      %v387 = vld [vmem:[%s4 + $0xd8] sm:$0xf]
      %v388 = vld [vmem:[%s4 + $0xdc] sm:$0xf]
      %v389 = vld [vmem:[%s4 + $0xe0] sm:$0xf]
      %v390 = vld [vmem:[%s4 + $0xe4] sm:$0xf]
      %v391 = vld [vmem:[%s4 + $0xe8] sm:$0xf]
      %v392 = vld [vmem:[%s4 + $0xec] sm:$0xf]
      %v393 = vld [vmem:[%s4 + $0xf0] sm:$0xf]
      %v394 = vld [vmem:[%s4 + $0xf4] sm:$0xf]
      %v395 = vld [vmem:[%s4 + $0xf8] sm:$0xf]
      %v396 = vld [vmem:[%s4 + $0xfc] sm:$0xf]
      %v397 = vld [vmem:[%s4 + $0x100] sm:$0xf]
      %v398 = vld [vmem:[%s4 + $0x104] sm:$0xf]
      %v399 = vld [vmem:[%s4 + $0x108] sm:$0xf]
      %v400 = vld [vmem:[%s4 + $0x10c] sm:$0xf]
      %v401 = vld [vmem:[%s4 + $0x110] sm:$0xf]
      %v402 = vld [vmem:[%s4 + $0x114] sm:$0xf]
      %v403 = vld [vmem:[%s4 + $0x118] sm:$0xf]
      %v404 = vld [vmem:[%s4 + $0x11c] sm:$0xf]
      %v405 = vld [vmem:[%s4 + $0x120] sm:$0xf]
      %v406 = vld [vmem:[%s4 + $0x124] sm:$0xf]
      %v407 = vld [vmem:[%s4 + $0x128] sm:$0xf]
      %v408 = vld [vmem:[%s4 + $0x12c] sm:$0xf]
      %v409 = vld [vmem:[%s4 + $0x130] sm:$0xf]
      %v410 = vld [vmem:[%s4 + $0x134] sm:$0xf]
      %v411 = vld [vmem:[%s4 + $0x138] sm:$0xf]
      %v412 = vld [vmem:[%s4 + $0x13c] sm:$0xf]
      %v413 = vld [vmem:[%s4 + $0x140] sm:$0xf]
      %v414 = vld [vmem:[%s4 + $0x144] sm:$0xf]
      %v415 = vld [vmem:[%s4 + $0x148] sm:$0xf]
      %v416 = vld [vmem:[%s4 + $0x14c] sm:$0xf]
      %v417 = vld [vmem:[%s4 + $0x150] sm:$0xf]
      %v418 = vld [vmem:[%s4 + $0x154] sm:$0xf]
      %v419 = vld [vmem:[%s4 + $0x158] sm:$0xf]
      %v420 = vld [vmem:[%s4 + $0x15c] sm:$0xf]
      %v421 = vld [vmem:[%s4 + $0x160] sm:$0xf]
      %v422 = vld [vmem:[%s4 + $0x164] sm:$0xf]
      %v423 = vld [vmem:[%s4 + $0x168] sm:$0xf]
      %v424 = vld [vmem:[%s4 + $0x16c] sm:$0xf]
      %v425 = vld [vmem:[%s4 + $0x170] sm:$0xf]
      %v426 = vld [vmem:[%s4 + $0x174] sm:$0xf]
      %v427 = vld [vmem:[%s4 + $0x178] sm:$0xf]
      %v428 = vld [vmem:[%s4 + $0x17c] sm:$0xf]
      %v429 = vld [vmem:[%s4 + $0x180] sm:$0xf]
      %v430 = vld [vmem:[%s4 + $0x184] sm:$0xf]
      %v431 = vld [vmem:[%s4 + $0x188] sm:$0xf]
      %v432 = vld [vmem:[%s4 + $0x18c] sm:$0xf]
      %v433 = vld [vmem:[%s4 + $0x190] sm:$0xf]
      %v434 = vld [vmem:[%s4 + $0x194] sm:$0xf]
      %v435 = vld [vmem:[%s4 + $0x198] sm:$0xf]
      %v436 = vld [vmem:[%s4 + $0x19c] sm:$0xf]
      %v437 = vld [vmem:[%s4 + $0x1a0] sm:$0xf]
      %v438 = vld [vmem:[%s4 + $0x1a4] sm:$0xf]
      %v439 = vld [vmem:[%s4 + $0x1a8] sm:$0xf]
      %v440 = vld [vmem:[%s4 + $0x1ac] sm:$0xf]
      %v441 = vld [vmem:[%s4 + $0x1b0] sm:$0xf]
      %v442 = vld [vmem:[%s4 + $0x1b4] sm:$0xf]
      %v443 = vld [vmem:[%s4 + $0x1b8] sm:$0xf]
      %v444 = vld [vmem:[%s4 + $0x1bc] sm:$0xf]
      %v445 = vld [vmem:[%s4 + $0x1c0] sm:$0xf]
      %v446 = vld [vmem:[%s4 + $0x1c4] sm:$0xf]
      %v447 = vld [vmem:[%s4 + $0x1c8] sm:$0xf]
      %v448 = vld [vmem:[%s4 + $0x1cc] sm:$0xf]
      %v449 = vld [vmem:[%s4 + $0x1d0] sm:$0xf]
      %v450 = vld [vmem:[%s4 + $0x1d4] sm:$0xf]
      %v451 = vld [vmem:[%s4 + $0x1d8] sm:$0xf]
      %v452 = vld [vmem:[%s4 + $0x1dc] sm:$0xf]
      %v453 = vld [vmem:[%s4 + $0x1e0] sm:$0xf]
      %v454 = vld [vmem:[%s4 + $0x1e4] sm:$0xf]
      %v455 = vld [vmem:[%s4 + $0x1e8] sm:$0xf]
      %v456 = vld [vmem:[%s4 + $0x1ec] sm:$0xf]
      %v457 = vld [vmem:[%s4 + $0x1f0] sm:$0xf]
      %v458 = vld [vmem:[%s4 + $0x1f4] sm:$0xf]
      %v459 = vld [vmem:[%s4 + $0x1f8] sm:$0xf]
      %v460 = vld [vmem:[%s4 + $0x1fc] sm:$0xf]
      %v461 = vld [vmem:[%s4 + $0x200] sm:$0xf]
      %v462 = vld [vmem:[%s4 + $0x204] sm:$0xf]
      %v463 = vld [vmem:[%s4 + $0x208] sm:$0xf]
      %v464 = vld [vmem:[%s4 + $0x20c] sm:$0xf]
      %v465 = vld [vmem:[%s4 + $0x210] sm:$0xf]
      %v466 = vld [vmem:[%s4 + $0x214] sm:$0xf]
      %v467 = vld [vmem:[%s4 + $0x218] sm:$0xf]
      %v468 = vld [vmem:[%s4 + $0x21c] sm:$0xf]
      %v469 = vld [vmem:[%s4 + $0x220] sm:$0xf]
      %v470 = vld [vmem:[%s4 + $0x224] sm:$0xf]
      %v471 = vld [vmem:[%s4 + $0x228] sm:$0xf]
      %v472 = vld [vmem:[%s4 + $0x22c] sm:$0xf]
      %v473 = vld [vmem:[%s4 + $0x230] sm:$0xf]
      %v474 = vld [vmem:[%s4 + $0x234] sm:$0xf]
      %v475 = vld [vmem:[%s4 + $0x238] sm:$0xf]
      %v476 = vld [vmem:[%s4 + $0x23c] sm:$0xf]
      %v477 = vld [vmem:[%s304] sm:$0xff]
      %v478 = vld [vmem:[%s304 + $0x8] sm:$0xff]
      %v479 = vld [vmem:[%s304 + $0x10] sm:$0xff]
      %v480 = vld [vmem:[%s304 + $0x18] sm:$0xff]
      %v481 = vld [vmem:[%s304 + $0x20] sm:$0xf]
      %v482 = vld [vmem:[%s304 + $0x24] sm:$0xff]
      %v483 = vld [vmem:[%s304 + $0x2c] sm:$0xff]
      %v484 = vld [vmem:[%s304 + $0x34] sm:$0xff]
      %v485 = vld [vmem:[%s304 + $0x3c] sm:$0xff]
      %v486 = vld [vmem:[%s304 + $0x44] sm:$0xf]
      %v487 = vld [vmem:[%s304 + $0x48] sm:$0xff]
      %v488 = vld [vmem:[%s304 + $0x50] sm:$0xff]
      %v489 = vld [vmem:[%s304 + $0x58] sm:$0xff]
      %v490 = vld [vmem:[%s304 + $0x60] sm:$0xff]
      %v491 = vld [vmem:[%s304 + $0x68] sm:$0xf]
      %v492 = vld [vmem:[%s304 + $0x6c] sm:$0xff]
      %v493 = vld [vmem:[%s304 + $0x74] sm:$0xff]
      %v494 = vld [vmem:[%s304 + $0x7c] sm:$0xff]
      %v495 = vld [vmem:[%s304 + $0x84] sm:$0xff]
      %v496 = vld [vmem:[%s304 + $0x8c] sm:$0xf]
      %v497 = vld [vmem:[%s304 + $0x90] sm:$0xff]
      %v498 = vld [vmem:[%s304 + $0x98] sm:$0xff]
      %v499 = vld [vmem:[%s304 + $0xa0] sm:$0xff]
      %v500 = vld [vmem:[%s304 + $0xa8] sm:$0xff]
      %v501 = vld [vmem:[%s304 + $0xb0] sm:$0xf]
      %v502 = vld [vmem:[%s304 + $0xb4] sm:$0xff]
      %v503 = vld [vmem:[%s304 + $0xbc] sm:$0xff]
      %v504 = vld [vmem:[%s304 + $0xc4] sm:$0xff]
      %v505 = vld [vmem:[%s304 + $0xcc] sm:$0xff]
      %v506 = vld [vmem:[%s304 + $0xd4] sm:$0xf]
      %v507 = vld [vmem:[%s304 + $0xd8] sm:$0xff]
      %v508 = vld [vmem:[%s304 + $0xe0] sm:$0xff]
      %v509 = vld [vmem:[%s304 + $0xe8] sm:$0xff]
      %v510 = vld [vmem:[%s304 + $0xf0] sm:$0xff]
      %v511 = vld [vmem:[%s304 + $0xf8] sm:$0xf]
      %v512 = vld [vmem:[%s304 + $0xfc] sm:$0xff]
      %v513 = vld [vmem:[%s304 + $0x104] sm:$0xff]
      %v514 = vld [vmem:[%s304 + $0x10c] sm:$0xff]
      %v515 = vld [vmem:[%s304 + $0x114] sm:$0xff]
      %v516 = vld [vmem:[%s304 + $0x11c] sm:$0xf]
      %v517 = vld [vmem:[%s304 + $0x120] sm:$0xff]
      %v518 = vld [vmem:[%s304 + $0x128] sm:$0xff]
      %v519 = vld [vmem:[%s304 + $0x130] sm:$0xff]
      %v520 = vld [vmem:[%s304 + $0x138] sm:$0xff]
      %v521 = vld [vmem:[%s304 + $0x140] sm:$0xf]
      %v522 = vld [vmem:[%s304 + $0x144] sm:$0xff]
      %v523 = vld [vmem:[%s304 + $0x14c] sm:$0xff]
      %v524 = vld [vmem:[%s304 + $0x154] sm:$0xff]
      %v525 = vld [vmem:[%s304 + $0x15c] sm:$0xff]
      %v526 = vld [vmem:[%s304 + $0x164] sm:$0xf]
      %v527 = vld [vmem:[%s304 + $0x168] sm:$0xff]
      %v528 = vld [vmem:[%s304 + $0x170] sm:$0xff]
      %v529 = vld [vmem:[%s304 + $0x178] sm:$0xff]
      %v530 = vld [vmem:[%s304 + $0x180] sm:$0xff]
      %v531 = vld [vmem:[%s304 + $0x188] sm:$0xf]
      %v532 = vld [vmem:[%s304 + $0x18c] sm:$0xff]
      %v533 = vld [vmem:[%s304 + $0x194] sm:$0xff]
      %v534 = vld [vmem:[%s304 + $0x19c] sm:$0xff]
      %v535 = vld [vmem:[%s304 + $0x1a4] sm:$0xff]
      %v536 = vld [vmem:[%s304 + $0x1ac] sm:$0xf]
      %v537 = vld [vmem:[%s304 + $0x1b0] sm:$0xff]
      %v538 = vld [vmem:[%s304 + $0x1b8] sm:$0xff]
      %v539 = vld [vmem:[%s304 + $0x1c0] sm:$0xff]
      %v540 = vld [vmem:[%s304 + $0x1c8] sm:$0xff]
      %v541 = vld [vmem:[%s304 + $0x1d0] sm:$0xf]
      %v542 = vld [vmem:[%s304 + $0x1d4] sm:$0xff]
      %v543 = vld [vmem:[%s304 + $0x1dc] sm:$0xff]
      %v544 = vld [vmem:[%s304 + $0x1e4] sm:$0xff]
      %v545 = vld [vmem:[%s304 + $0x1ec] sm:$0xff]
      %v546 = vld [vmem:[%s304 + $0x1f4] sm:$0xf]
      %v547 = vld [vmem:[%s304 + $0x1f8] sm:$0xff]
      %v548 = vld [vmem:[%s304 + $0x200] sm:$0xff]
      %v549 = vld [vmem:[%s304 + $0x208] sm:$0xff]
      %v550 = vld [vmem:[%s304 + $0x210] sm:$0xff]
      %v551 = vld [vmem:[%s304 + $0x218] sm:$0xf]
      %v552 = vld [vmem:[%s304 + $0x21c] sm:$0xff]
      %v553 = vld [vmem:[%s304 + $0x224] sm:$0xff]
      %v554 = vld [vmem:[%s304 + $0x22c] sm:$0xff]
      %v555 = vld [vmem:[%s304 + $0x234] sm:$0xff]
      %v556 = vld [vmem:[%s304 + $0x23c] sm:$0xf]
      %v557 = vld [vmem:[%s304 + $0x240] sm:$0xff]
      %v558 = vld [vmem:[%s304 + $0x248] sm:$0xff]
      %v559 = vld [vmem:[%s304 + $0x250] sm:$0xff]
      %v560 = vld [vmem:[%s304 + $0x258] sm:$0xff]
      %v561 = vld [vmem:[%s304 + $0x260] sm:$0xf]
      %v562 = vld [vmem:[%s304 + $0x264] sm:$0xff]
      %v563 = vld [vmem:[%s304 + $0x26c] sm:$0xff]
      %v564 = vld [vmem:[%s304 + $0x274] sm:$0xff]
      %v565 = vld [vmem:[%s304 + $0x27c] sm:$0xff]
      %v566 = vld [vmem:[%s304 + $0x284] sm:$0xf]
      %v657 = vunpack.c.l.b16 %v477
      %v658 = vunpack.c.h.b16 %v477
      %v659 = vunpack.c.l.b16 %v478
      %v660 = vunpack.c.h.b16 %v478
      %v661 = vunpack.c.l.b16 %v479
      %v662 = vunpack.c.h.b16 %v479
      %v663 = vunpack.c.l.b16 %v480
      %v664 = vunpack.c.h.b16 %v480
      %v665 = vunpack.c.l.b16 %v481
      %v666 = vunpack.c.l.b16 %v482
      %v667 = vunpack.c.h.b16 %v482
      %v668 = vunpack.c.l.b16 %v483
      %v669 = vunpack.c.h.b16 %v483
      %v670 = vunpack.c.l.b16 %v484
      %v671 = vunpack.c.h.b16 %v484
      %v672 = vunpack.c.l.b16 %v485
      %v673 = vunpack.c.h.b16 %v485
      %v674 = vunpack.c.l.b16 %v486
      %v675 = vunpack.c.l.b16 %v487
      %v676 = vunpack.c.h.b16 %v487
      %v677 = vunpack.c.l.b16 %v488
      %v678 = vunpack.c.h.b16 %v488
      %v679 = vunpack.c.l.b16 %v489
      %v680 = vunpack.c.h.b16 %v489
      %v681 = vunpack.c.l.b16 %v490
      %v682 = vunpack.c.h.b16 %v490
      %v683 = vunpack.c.l.b16 %v491
      %v684 = vunpack.c.l.b16 %v492
      %v685 = vunpack.c.h.b16 %v492
      %v686 = vunpack.c.l.b16 %v493
      %v687 = vunpack.c.h.b16 %v493
      %v688 = vunpack.c.l.b16 %v494
      %v689 = vunpack.c.h.b16 %v494
      %v690 = vunpack.c.l.b16 %v495
      %v691 = vunpack.c.h.b16 %v495
      %v692 = vunpack.c.l.b16 %v496
      %v693 = vunpack.c.l.b16 %v497
      %v694 = vunpack.c.h.b16 %v497
      %v695 = vunpack.c.l.b16 %v498
      %v696 = vunpack.c.h.b16 %v498
      %v697 = vunpack.c.l.b16 %v499
      %v698 = vunpack.c.h.b16 %v499
      %v699 = vunpack.c.l.b16 %v500
      %v700 = vunpack.c.h.b16 %v500
      %v701 = vunpack.c.l.b16 %v501
      %v702 = vunpack.c.l.b16 %v502
      %v703 = vunpack.c.h.b16 %v502
      %v704 = vunpack.c.l.b16 %v503
      %v705 = vunpack.c.h.b16 %v503
      %v706 = vunpack.c.l.b16 %v504
      %v707 = vunpack.c.h.b16 %v504
      %v708 = vunpack.c.l.b16 %v505
      %v709 = vunpack.c.h.b16 %v505
      %v710 = vunpack.c.l.b16 %v506
      %v711 = vunpack.c.l.b16 %v507
      %v712 = vunpack.c.h.b16 %v507
      %v713 = vunpack.c.l.b16 %v508
      %v714 = vunpack.c.h.b16 %v508
      %v715 = vunpack.c.l.b16 %v509
      %v716 = vunpack.c.h.b16 %v509
      %v717 = vunpack.c.l.b16 %v510
      %v718 = vunpack.c.h.b16 %v510
      %v719 = vunpack.c.l.b16 %v511
      %v720 = vunpack.c.l.b16 %v512
      %v721 = vunpack.c.h.b16 %v512
      %v722 = vunpack.c.l.b16 %v513
      %v723 = vunpack.c.h.b16 %v513
      %v724 = vunpack.c.l.b16 %v514
      %v725 = vunpack.c.h.b16 %v514
      %v726 = vunpack.c.l.b16 %v515
      %v727 = vunpack.c.h.b16 %v515
      %v728 = vunpack.c.l.b16 %v516
      %v729 = vunpack.c.l.b16 %v517
      %v730 = vunpack.c.h.b16 %v517
      %v731 = vunpack.c.l.b16 %v518
      %v732 = vunpack.c.h.b16 %v518
      %v733 = vunpack.c.l.b16 %v519
      %v734 = vunpack.c.h.b16 %v519
      %v735 = vunpack.c.l.b16 %v520
      %v736 = vunpack.c.h.b16 %v520
      %v737 = vunpack.c.l.b16 %v521
      %v738 = vunpack.c.l.b16 %v522
      %v739 = vunpack.c.h.b16 %v522
      %v740 = vunpack.c.l.b16 %v523
      %v741 = vunpack.c.h.b16 %v523
      %v742 = vunpack.c.l.b16 %v524
      %v743 = vunpack.c.h.b16 %v524
      %v744 = vunpack.c.l.b16 %v525
      %v745 = vunpack.c.h.b16 %v525
      %v746 = vunpack.c.l.b16 %v526
      %v747 = vunpack.c.l.b16 %v527
      %v748 = vunpack.c.h.b16 %v527
      %v749 = vunpack.c.l.b16 %v528
      %v750 = vunpack.c.h.b16 %v528
      %v751 = vunpack.c.l.b16 %v529
      %v752 = vunpack.c.h.b16 %v529
      %v753 = vunpack.c.l.b16 %v530
      %v754 = vunpack.c.h.b16 %v530
      %v755 = vunpack.c.l.b16 %v531
      %v756 = vunpack.c.l.b16 %v532
      %v757 = vunpack.c.h.b16 %v532
      %v758 = vunpack.c.l.b16 %v533
      %v759 = vunpack.c.h.b16 %v533
      %v760 = vunpack.c.l.b16 %v534
      %v761 = vunpack.c.h.b16 %v534
      %v762 = vunpack.c.l.b16 %v535
      %v763 = vunpack.c.h.b16 %v535
      %v764 = vunpack.c.l.b16 %v536
      %v765 = vunpack.c.l.b16 %v537
      %v766 = vunpack.c.h.b16 %v537
      %v767 = vunpack.c.l.b16 %v538
      %v768 = vunpack.c.h.b16 %v538
      %v769 = vunpack.c.l.b16 %v539
      %v770 = vunpack.c.h.b16 %v539
      %v771 = vunpack.c.l.b16 %v540
      %v772 = vunpack.c.h.b16 %v540
      %v773 = vunpack.c.l.b16 %v541
      %v774 = vunpack.c.l.b16 %v542
      %v775 = vunpack.c.h.b16 %v542
      %v776 = vunpack.c.l.b16 %v543
      %v777 = vunpack.c.h.b16 %v543
      %v778 = vunpack.c.l.b16 %v544
      %v779 = vunpack.c.h.b16 %v544
      %v780 = vunpack.c.l.b16 %v545
      %v781 = vunpack.c.h.b16 %v545
      %v782 = vunpack.c.l.b16 %v546
      %v783 = vunpack.c.l.b16 %v547
      %v784 = vunpack.c.h.b16 %v547
      %v785 = vunpack.c.l.b16 %v548
      %v786 = vunpack.c.h.b16 %v548
      %v787 = vunpack.c.l.b16 %v549
      %v788 = vunpack.c.h.b16 %v549
      %v789 = vunpack.c.l.b16 %v550
      %v790 = vunpack.c.h.b16 %v550
      %v791 = vunpack.c.l.b16 %v551
      %v792 = vunpack.c.l.b16 %v552
      %v793 = vunpack.c.h.b16 %v552
      %v794 = vunpack.c.l.b16 %v553
      %v795 = vunpack.c.h.b16 %v553
      %v796 = vunpack.c.l.b16 %v554
      %v797 = vunpack.c.h.b16 %v554
      %v798 = vunpack.c.l.b16 %v555
      %v799 = vunpack.c.h.b16 %v555
      %v800 = vunpack.c.l.b16 %v556
      %v801 = vunpack.c.l.b16 %v557
      %v802 = vunpack.c.h.b16 %v557
      %v803 = vunpack.c.l.b16 %v558
      %v804 = vunpack.c.h.b16 %v558
      %v805 = vunpack.c.l.b16 %v559
      %v806 = vunpack.c.h.b16 %v559
      %v807 = vunpack.c.l.b16 %v560
      %v808 = vunpack.c.h.b16 %v560
      %v809 = vunpack.c.l.b16 %v561
      %v810 = vunpack.c.l.b16 %v562
      %v811 = vunpack.c.h.b16 %v562
      %v812 = vunpack.c.l.b16 %v563
      %v813 = vunpack.c.h.b16 %v563
      %v814 = vunpack.c.l.b16 %v564
      %v815 = vunpack.c.h.b16 %v564
      %v816 = vunpack.c.l.b16 %v565
      %v817 = vunpack.c.h.b16 %v565
      %v818 = vunpack.c.l.b16 %v566
      %v819 = vpack.c.b16 %v666, %v657
      %v820 = vpack.c.b16 %v667, %v658
      %v821 = vpack.c.b16 %v668, %v659
      %v822 = vpack.c.b16 %v669, %v660
      %v823 = vpack.c.b16 %v670, %v661
      %v824 = vpack.c.b16 %v671, %v662
      %v825 = vpack.c.b16 %v672, %v663
      %v826 = vpack.c.b16 %v673, %v664
      %v827 = vpack.c.b16 %v674, %v665
      %v828 = vpack.c.b16 %v684, %v675
      %v829 = vpack.c.b16 %v685, %v676
      %v830 = vpack.c.b16 %v686, %v677
      %v831 = vpack.c.b16 %v687, %v678
      %v832 = vpack.c.b16 %v688, %v679
      %v833 = vpack.c.b16 %v689, %v680
      %v834 = vpack.c.b16 %v690, %v681
      %v835 = vpack.c.b16 %v691, %v682
      %v836 = vpack.c.b16 %v692, %v683
      %v837 = vpack.c.b16 %v702, %v693
      %v838 = vpack.c.b16 %v703, %v694
      %v839 = vpack.c.b16 %v704, %v695
      %v840 = vpack.c.b16 %v705, %v696
      %v841 = vpack.c.b16 %v706, %v697
      %v842 = vpack.c.b16 %v707, %v698
      %v843 = vpack.c.b16 %v708, %v699
      %v844 = vpack.c.b16 %v709, %v700
      %v845 = vpack.c.b16 %v710, %v701
      %v846 = vpack.c.b16 %v720, %v711
      %v847 = vpack.c.b16 %v721, %v712
      %v848 = vpack.c.b16 %v722, %v713
      %v849 = vpack.c.b16 %v723, %v714
      %v850 = vpack.c.b16 %v724, %v715
      %v851 = vpack.c.b16 %v725, %v716
      %v852 = vpack.c.b16 %v726, %v717
      %v853 = vpack.c.b16 %v727, %v718
      %v854 = vpack.c.b16 %v728, %v719
      %v855 = vpack.c.b16 %v738, %v729
      %v856 = vpack.c.b16 %v739, %v730
      %v857 = vpack.c.b16 %v740, %v731
      %v858 = vpack.c.b16 %v741, %v732
      %v859 = vpack.c.b16 %v742, %v733
      %v860 = vpack.c.b16 %v743, %v734
      %v861 = vpack.c.b16 %v744, %v735
      %v862 = vpack.c.b16 %v745, %v736
      %v863 = vpack.c.b16 %v746, %v737
      %v864 = vpack.c.b16 %v756, %v747
      %v865 = vpack.c.b16 %v757, %v748
      %v866 = vpack.c.b16 %v758, %v749
      %v867 = vpack.c.b16 %v759, %v750
      %v868 = vpack.c.b16 %v760, %v751
      %v869 = vpack.c.b16 %v761, %v752
      %v870 = vpack.c.b16 %v762, %v753
      %v871 = vpack.c.b16 %v763, %v754
      %v872 = vpack.c.b16 %v764, %v755
      %v873 = vpack.c.b16 %v774, %v765
      %v874 = vpack.c.b16 %v775, %v766
      %v875 = vpack.c.b16 %v776, %v767
      %v876 = vpack.c.b16 %v777, %v768
      %v877 = vpack.c.b16 %v778, %v769
      %v878 = vpack.c.b16 %v779, %v770
      %v879 = vpack.c.b16 %v780, %v771
      %v880 = vpack.c.b16 %v781, %v772
      %v881 = vpack.c.b16 %v782, %v773
      %v882 = vpack.c.b16 %v792, %v783
      %v883 = vpack.c.b16 %v793, %v784
      %v884 = vpack.c.b16 %v794, %v785
      %v885 = vpack.c.b16 %v795, %v786
      %v886 = vpack.c.b16 %v796, %v787
      %v887 = vpack.c.b16 %v797, %v788
      %v888 = vpack.c.b16 %v798, %v789
      %v889 = vpack.c.b16 %v799, %v790
      %v890 = vpack.c.b16 %v800, %v791
      %v891 = vpack.c.b16 %v810, %v801
      %v892 = vpack.c.b16 %v811, %v802
      %v893 = vpack.c.b16 %v812, %v803
      %v894 = vpack.c.b16 %v813, %v804
      %v895 = vpack.c.b16 %v814, %v805
      %v896 = vpack.c.b16 %v815, %v806
      %v897 = vpack.c.b16 %v816, %v807
      %v898 = vpack.c.b16 %v817, %v808
      %v899 = vpack.c.b16 %v818, %v809
      %v1125 = vunpack.c.l.b16 %v333
      %v1126 = vunpack.c.l.b16 %v334
      %v1127 = vunpack.c.l.b16 %v335
      %v1128 = vunpack.c.l.b16 %v336
      %v1129 = vunpack.c.l.b16 %v337
      %v1130 = vunpack.c.l.b16 %v338
      %v1131 = vunpack.c.l.b16 %v339
      %v1132 = vunpack.c.l.b16 %v340
      %v1133 = vunpack.c.l.b16 %v341
      %v1134 = vunpack.c.l.b16 %v342
      %v1135 = vunpack.c.l.b16 %v343
      %v1136 = vunpack.c.l.b16 %v344
      %v1137 = vunpack.c.l.b16 %v345
      %v1138 = vunpack.c.l.b16 %v346
      %v1139 = vunpack.c.l.b16 %v347
      %v1140 = vunpack.c.l.b16 %v348
      %v1141 = vunpack.c.l.b16 %v349
      %v1142 = vunpack.c.l.b16 %v350
      %v1143 = vunpack.c.l.b16 %v351
      %v1144 = vunpack.c.l.b16 %v352
      %v1145 = vunpack.c.l.b16 %v353
      %v1146 = vunpack.c.l.b16 %v354
      %v1147 = vunpack.c.l.b16 %v355
      %v1148 = vunpack.c.l.b16 %v356
      %v1149 = vunpack.c.l.b16 %v357
      %v1150 = vunpack.c.l.b16 %v358
      %v1151 = vunpack.c.l.b16 %v359
      %v1152 = vunpack.c.l.b16 %v360
      %v1153 = vunpack.c.l.b16 %v361
      %v1154 = vunpack.c.l.b16 %v362
      %v1155 = vunpack.c.l.b16 %v363
      %v1156 = vunpack.c.l.b16 %v364
      %v1157 = vunpack.c.l.b16 %v365
      %v1158 = vunpack.c.l.b16 %v366
      %v1159 = vunpack.c.l.b16 %v367
      %v1160 = vunpack.c.l.b16 %v368
      %v1161 = vunpack.c.l.b16 %v369
      %v1162 = vunpack.c.l.b16 %v370
      %v1163 = vunpack.c.l.b16 %v371
      %v1164 = vunpack.c.l.b16 %v372
      %v1165 = vunpack.c.l.b16 %v373
      %v1166 = vunpack.c.l.b16 %v374
      %v1167 = vunpack.c.l.b16 %v375
      %v1168 = vunpack.c.l.b16 %v376
      %v1169 = vunpack.c.l.b16 %v377
      %v1170 = vunpack.c.l.b16 %v378
      %v1171 = vunpack.c.l.b16 %v379
      %v1172 = vunpack.c.l.b16 %v380
      %v1173 = vunpack.c.l.b16 %v381
      %v1174 = vunpack.c.l.b16 %v382
      %v1175 = vunpack.c.l.b16 %v383
      %v1176 = vunpack.c.l.b16 %v384
      %v1177 = vunpack.c.l.b16 %v385
      %v1178 = vunpack.c.l.b16 %v386
      %v1179 = vunpack.c.l.b16 %v387
      %v1180 = vunpack.c.l.b16 %v388
      %v1181 = vunpack.c.l.b16 %v389
      %v1182 = vunpack.c.l.b16 %v390
      %v1183 = vunpack.c.l.b16 %v391
      %v1184 = vunpack.c.l.b16 %v392
      %v1185 = vunpack.c.l.b16 %v393
      %v1186 = vunpack.c.l.b16 %v394
      %v1187 = vunpack.c.l.b16 %v395
      %v1188 = vunpack.c.l.b16 %v396
      %v1189 = vunpack.c.l.b16 %v397
      %v1190 = vunpack.c.l.b16 %v398
      %v1191 = vunpack.c.l.b16 %v399
      %v1192 = vunpack.c.l.b16 %v400
      %v1193 = vunpack.c.l.b16 %v401
      %v1194 = vunpack.c.l.b16 %v402
      %v1195 = vunpack.c.l.b16 %v403
      %v1196 = vunpack.c.l.b16 %v404
      %v1197 = vunpack.c.l.b16 %v405
      %v1198 = vunpack.c.l.b16 %v406
      %v1199 = vunpack.c.l.b16 %v407
      %v1200 = vunpack.c.l.b16 %v408
      %v1201 = vunpack.c.l.b16 %v409
      %v1202 = vunpack.c.l.b16 %v410
      %v1203 = vunpack.c.l.b16 %v411
      %v1204 = vunpack.c.l.b16 %v412
      %v1205 = vunpack.c.l.b16 %v413
      %v1206 = vunpack.c.l.b16 %v414
      %v1207 = vunpack.c.l.b16 %v415
      %v1208 = vunpack.c.l.b16 %v416
      %v1209 = vunpack.c.l.b16 %v417
      %v1210 = vunpack.c.l.b16 %v418
      %v1211 = vunpack.c.l.b16 %v419
      %v1212 = vunpack.c.l.b16 %v420
      %v1213 = vunpack.c.l.b16 %v421
      %v1214 = vunpack.c.l.b16 %v422
      %v1215 = vunpack.c.l.b16 %v423
      %v1216 = vunpack.c.l.b16 %v424
      %v1217 = vunpack.c.l.b16 %v425
      %v1218 = vunpack.c.l.b16 %v426
      %v1219 = vunpack.c.l.b16 %v427
      %v1220 = vunpack.c.l.b16 %v428
      %v1221 = vunpack.c.l.b16 %v429
      %v1222 = vunpack.c.l.b16 %v430
      %v1223 = vunpack.c.l.b16 %v431
      %v1224 = vunpack.c.l.b16 %v432
      %v1225 = vunpack.c.l.b16 %v433
      %v1226 = vunpack.c.l.b16 %v434
      %v1227 = vunpack.c.l.b16 %v435
      %v1228 = vunpack.c.l.b16 %v436
      %v1229 = vunpack.c.l.b16 %v437
      %v1230 = vunpack.c.l.b16 %v438
      %v1231 = vunpack.c.l.b16 %v439
      %v1232 = vunpack.c.l.b16 %v440
      %v1233 = vunpack.c.l.b16 %v441
      %v1234 = vunpack.c.l.b16 %v442
      %v1235 = vunpack.c.l.b16 %v443
      %v1236 = vunpack.c.l.b16 %v444
      %v1237 = vunpack.c.l.b16 %v445
      %v1238 = vunpack.c.l.b16 %v446
      %v1239 = vunpack.c.l.b16 %v447
      %v1240 = vunpack.c.l.b16 %v448
      %v1241 = vunpack.c.l.b16 %v449
      %v1242 = vunpack.c.l.b16 %v450
      %v1243 = vunpack.c.l.b16 %v451
      %v1244 = vunpack.c.l.b16 %v452
      %v1245 = vunpack.c.l.b16 %v453
      %v1246 = vunpack.c.l.b16 %v454
      %v1247 = vunpack.c.l.b16 %v455
      %v1248 = vunpack.c.l.b16 %v456
      %v1249 = vunpack.c.l.b16 %v457
      %v1250 = vunpack.c.l.b16 %v458
      %v1251 = vunpack.c.l.b16 %v459
      %v1252 = vunpack.c.l.b16 %v460
      %v1253 = vunpack.c.l.b16 %v461
      %v1254 = vunpack.c.l.b16 %v462
      %v1255 = vunpack.c.l.b16 %v463
      %v1256 = vunpack.c.l.b16 %v464
      %v1257 = vunpack.c.l.b16 %v465
      %v1258 = vunpack.c.l.b16 %v466
      %v1259 = vunpack.c.l.b16 %v467
      %v1260 = vunpack.c.l.b16 %v468
      %v1261 = vunpack.c.l.b16 %v469
      %v1262 = vunpack.c.l.b16 %v470
      %v1263 = vunpack.c.l.b16 %v471
      %v1264 = vunpack.c.l.b16 %v472
      %v1265 = vunpack.c.l.b16 %v473
      %v1266 = vunpack.c.l.b16 %v474
      %v1267 = vunpack.c.l.b16 %v475
      %v1268 = vunpack.c.l.b16 %v476
      %v1269 = vpack.c.b16 %v1126, %v1125
      %v1270 = vpack.c.b16 %v1128, %v1127
      %v1271 = vpack.c.b16 %v1130, %v1129
      %v1272 = vpack.c.b16 %v1132, %v1131
      %v1273 = vpack.c.b16 %v1134, %v1133
      %v1274 = vpack.c.b16 %v1136, %v1135
      %v1275 = vpack.c.b16 %v1138, %v1137
      %v1276 = vpack.c.b16 %v1140, %v1139
      %v1277 = vpack.c.b16 %v1142, %v1141
      %v1278 = vpack.c.b16 %v1144, %v1143
      %v1279 = vpack.c.b16 %v1146, %v1145
      %v1280 = vpack.c.b16 %v1148, %v1147
      %v1281 = vpack.c.b16 %v1150, %v1149
      %v1282 = vpack.c.b16 %v1152, %v1151
      %v1283 = vpack.c.b16 %v1154, %v1153
      %v1284 = vpack.c.b16 %v1156, %v1155
      %v1285 = vpack.c.b16 %v1158, %v1157
      %v1286 = vpack.c.b16 %v1160, %v1159
      %v1287 = vpack.c.b16 %v1162, %v1161
      %v1288 = vpack.c.b16 %v1164, %v1163
      %v1289 = vpack.c.b16 %v1166, %v1165
      %v1290 = vpack.c.b16 %v1168, %v1167
      %v1291 = vpack.c.b16 %v1170, %v1169
      %v1292 = vpack.c.b16 %v1172, %v1171
      %v1293 = vpack.c.b16 %v1174, %v1173
      %v1294 = vpack.c.b16 %v1176, %v1175
      %v1295 = vpack.c.b16 %v1178, %v1177
      %v1296 = vpack.c.b16 %v1180, %v1179
      %v1297 = vpack.c.b16 %v1182, %v1181
      %v1298 = vpack.c.b16 %v1184, %v1183
      %v1299 = vpack.c.b16 %v1186, %v1185
      %v1300 = vpack.c.b16 %v1188, %v1187
      %v1301 = vpack.c.b16 %v1190, %v1189
      %v1302 = vpack.c.b16 %v1192, %v1191
      %v1303 = vpack.c.b16 %v1194, %v1193
      %v1304 = vpack.c.b16 %v1196, %v1195
      %v1305 = vpack.c.b16 %v1198, %v1197
      %v1306 = vpack.c.b16 %v1200, %v1199
      %v1307 = vpack.c.b16 %v1202, %v1201
      %v1308 = vpack.c.b16 %v1204, %v1203
      %v1309 = vpack.c.b16 %v1206, %v1205
      %v1310 = vpack.c.b16 %v1208, %v1207
      %v1311 = vpack.c.b16 %v1210, %v1209
      %v1312 = vpack.c.b16 %v1212, %v1211
      %v1313 = vpack.c.b16 %v1214, %v1213
      %v1314 = vpack.c.b16 %v1216, %v1215
      %v1315 = vpack.c.b16 %v1218, %v1217
      %v1316 = vpack.c.b16 %v1220, %v1219
      %v1317 = vpack.c.b16 %v1222, %v1221
      %v1318 = vpack.c.b16 %v1224, %v1223
      %v1319 = vpack.c.b16 %v1226, %v1225
      %v1320 = vpack.c.b16 %v1228, %v1227
      %v1321 = vpack.c.b16 %v1230, %v1229
      %v1322 = vpack.c.b16 %v1232, %v1231
      %v1323 = vpack.c.b16 %v1234, %v1233
      %v1324 = vpack.c.b16 %v1236, %v1235
      %v1325 = vpack.c.b16 %v1238, %v1237
      %v1326 = vpack.c.b16 %v1240, %v1239
      %v1327 = vpack.c.b16 %v1242, %v1241
      %v1328 = vpack.c.b16 %v1244, %v1243
      %v1329 = vpack.c.b16 %v1246, %v1245
      %v1330 = vpack.c.b16 %v1248, %v1247
      %v1331 = vpack.c.b16 %v1250, %v1249
      %v1332 = vpack.c.b16 %v1252, %v1251
      %v1333 = vpack.c.b16 %v1254, %v1253
      %v1334 = vpack.c.b16 %v1256, %v1255
      %v1335 = vpack.c.b16 %v1258, %v1257
      %v1336 = vpack.c.b16 %v1260, %v1259
      %v1337 = vpack.c.b16 %v1262, %v1261
      %v1338 = vpack.c.b16 %v1264, %v1263
      %v1339 = vpack.c.b16 %v1266, %v1265
      %v1340 = vpack.c.b16 %v1268, %v1267
      %1413 = vmatpush.bf16.msra.mxu0 %v1276
      %1414 = vmatpush.bf16.msra.mxu0 %v1275
      %1415 = vmatpush.bf16.msra.mxu0 %v1274
      %1416 = vmatpush.bf16.msra.mxu0 %v1273
      %1417 = vmatpush.bf16.msra.mxu0 %v1272
      %1418 = vmatpush.bf16.msra.mxu0 %v1271
      %1419 = vmatpush.bf16.msra.mxu0 %v1270
      %1420 = vmatpush.bf16.msra.mxu0 %v1269
      %1421 = vmatmul.bf16.gmra.mxu0 %v819
      %v1422 = vpop.f32.mrf.mxu0
      %v1423 = vadd.f32 0.0, %v1422
      %v1424 = vpop.f32.mrf.mxu0
      %v1425 = vadd.f32 0.0, %v1424
      %1426 = vmatmul.bf16.gmra.mxu0 %v828
      %v1427 = vpop.f32.mrf.mxu0
      %v1428 = vadd.f32 0.0, %v1427
      %v1429 = vpop.f32.mrf.mxu0
      %v1430 = vadd.f32 0.0, %v1429
      %1431 = vmatmul.bf16.gmra.mxu0 %v837
      %v1432 = vpop.f32.mrf.mxu0
      %v1433 = vadd.f32 0.0, %v1432
      %v1434 = vpop.f32.mrf.mxu0
      %v1435 = vadd.f32 0.0, %v1434
      %1436 = vmatmul.bf16.gmra.mxu0 %v846
      %v1437 = vpop.f32.mrf.mxu0
      %v1438 = vadd.f32 0.0, %v1437
      %v1439 = vpop.f32.mrf.mxu0
      %v1440 = vadd.f32 0.0, %v1439
      %1441 = vmatmul.bf16.gmra.mxu0 %v855
      %v1442 = vpop.f32.mrf.mxu0
      %v1443 = vadd.f32 0.0, %v1442
      %v1444 = vpop.f32.mrf.mxu0
      %v1445 = vadd.f32 0.0, %v1444
      %1446 = vmatmul.bf16.gmra.mxu0 %v864
      %v1447 = vpop.f32.mrf.mxu0
      %v1448 = vadd.f32 0.0, %v1447
      %v1449 = vpop.f32.mrf.mxu0
      %v1450 = vadd.f32 0.0, %v1449
      %1451 = vmatmul.bf16.gmra.mxu0 %v873
      %v1452 = vpop.f32.mrf.mxu0
      %v1453 = vadd.f32 0.0, %v1452
      %v1454 = vpop.f32.mrf.mxu0
      %v1455 = vadd.f32 0.0, %v1454
      %1456 = vmatmul.bf16.gmra.mxu0 %v882
      %v1457 = vpop.f32.mrf.mxu0
      %v1458 = vadd.f32 0.0, %v1457
      %v1459 = vpop.f32.mrf.mxu0
      %v1460 = vadd.f32 0.0, %v1459
      %1461 = vmatmul.bf16.gmra.mxu0 %v891
      %v1462 = vpop.f32.mrf.mxu0
      %v1463 = vadd.f32 0.0, %v1462
      %v1464 = vpop.f32.mrf.mxu0
      %v1465 = vadd.f32 0.0, %v1464
      %1466 = vdwg.mxu0
      %1467 = vmatpush.bf16.msra.mxu0 %v1284
      %1468 = vmatpush.bf16.msra.mxu0 %v1283
      %1469 = vmatpush.bf16.msra.mxu0 %v1282
      %1470 = vmatpush.bf16.msra.mxu0 %v1281
      %1471 = vmatpush.bf16.msra.mxu0 %v1280
      %1472 = vmatpush.bf16.msra.mxu0 %v1279
      %1473 = vmatpush.bf16.msra.mxu0 %v1278
      %1474 = vmatpush.bf16.msra.mxu0 %v1277
      %1475 = vmatmul.bf16.gmra.mxu0 %v820
      %v1476 = vpop.f32.mrf.mxu0
      %v1477 = vadd.f32 %v1423, %v1476
      %v1478 = vpop.f32.mrf.mxu0
      %v1479 = vadd.f32 %v1425, %v1478
      %1480 = vmatmul.bf16.gmra.mxu0 %v829
      %v1481 = vpop.f32.mrf.mxu0
      %v1482 = vadd.f32 %v1428, %v1481
      %v1483 = vpop.f32.mrf.mxu0
      %v1484 = vadd.f32 %v1430, %v1483
      %1485 = vmatmul.bf16.gmra.mxu0 %v838
      %v1486 = vpop.f32.mrf.mxu0
      %v1487 = vadd.f32 %v1433, %v1486
      %v1488 = vpop.f32.mrf.mxu0
      %v1489 = vadd.f32 %v1435, %v1488
      %1490 = vmatmul.bf16.gmra.mxu0 %v847
      %v1491 = vpop.f32.mrf.mxu0
      %v1492 = vadd.f32 %v1438, %v1491
      %v1493 = vpop.f32.mrf.mxu0
      %v1494 = vadd.f32 %v1440, %v1493
      %1495 = vmatmul.bf16.gmra.mxu0 %v856
      %v1496 = vpop.f32.mrf.mxu0
      %v1497 = vadd.f32 %v1443, %v1496
      %v1498 = vpop.f32.mrf.mxu0
      %v1499 = vadd.f32 %v1445, %v1498
      %1500 = vmatmul.bf16.gmra.mxu0 %v865
      %v1501 = vpop.f32.mrf.mxu0
      %v1502 = vadd.f32 %v1448, %v1501
      %v1503 = vpop.f32.mrf.mxu0
      %v1504 = vadd.f32 %v1450, %v1503
      %1505 = vmatmul.bf16.gmra.mxu0 %v874
      %v1506 = vpop.f32.mrf.mxu0
      %v1507 = vadd.f32 %v1453, %v1506
      %v1508 = vpop.f32.mrf.mxu0
      %v1509 = vadd.f32 %v1455, %v1508
      %1510 = vmatmul.bf16.gmra.mxu0 %v883
      %v1511 = vpop.f32.mrf.mxu0
      %v1512 = vadd.f32 %v1458, %v1511
      %v1513 = vpop.f32.mrf.mxu0
      %v1514 = vadd.f32 %v1460, %v1513
      %1515 = vmatmul.bf16.gmra.mxu0 %v892
      %v1516 = vpop.f32.mrf.mxu0
      %v1517 = vadd.f32 %v1463, %v1516
      %v1518 = vpop.f32.mrf.mxu0
      %v1519 = vadd.f32 %v1465, %v1518
      %1520 = vdwg.mxu0
      %1521 = vmatpush.bf16.msra.mxu0 %v1292
      %1522 = vmatpush.bf16.msra.mxu0 %v1291
      %1523 = vmatpush.bf16.msra.mxu0 %v1290
      %1524 = vmatpush.bf16.msra.mxu0 %v1289
      %1525 = vmatpush.bf16.msra.mxu0 %v1288
      %1526 = vmatpush.bf16.msra.mxu0 %v1287
      %1527 = vmatpush.bf16.msra.mxu0 %v1286
      %1528 = vmatpush.bf16.msra.mxu0 %v1285
      %1529 = vmatmul.bf16.gmra.mxu0 %v821
      %v1530 = vpop.f32.mrf.mxu0
      %v1531 = vadd.f32 %v1477, %v1530
      %v1532 = vpop.f32.mrf.mxu0
      %v1533 = vadd.f32 %v1479, %v1532
      %1534 = vmatmul.bf16.gmra.mxu0 %v830
      %v1535 = vpop.f32.mrf.mxu0
      %v1536 = vadd.f32 %v1482, %v1535
      %v1537 = vpop.f32.mrf.mxu0
      %v1538 = vadd.f32 %v1484, %v1537
      %1539 = vmatmul.bf16.gmra.mxu0 %v839
      %v1540 = vpop.f32.mrf.mxu0
      %v1541 = vadd.f32 %v1487, %v1540
      %v1542 = vpop.f32.mrf.mxu0
      %v1543 = vadd.f32 %v1489, %v1542
      %1544 = vmatmul.bf16.gmra.mxu0 %v848
      %v1545 = vpop.f32.mrf.mxu0
      %v1546 = vadd.f32 %v1492, %v1545
      %v1547 = vpop.f32.mrf.mxu0
      %v1548 = vadd.f32 %v1494, %v1547
      %1549 = vmatmul.bf16.gmra.mxu0 %v857
      %v1550 = vpop.f32.mrf.mxu0
      %v1551 = vadd.f32 %v1497, %v1550
      %v1552 = vpop.f32.mrf.mxu0
      %v1553 = vadd.f32 %v1499, %v1552
      %1554 = vmatmul.bf16.gmra.mxu0 %v866
      %v1555 = vpop.f32.mrf.mxu0
      %v1556 = vadd.f32 %v1502, %v1555
      %v1557 = vpop.f32.mrf.mxu0
      %v1558 = vadd.f32 %v1504, %v1557
      %1559 = vmatmul.bf16.gmra.mxu0 %v875
      %v1560 = vpop.f32.mrf.mxu0
      %v1561 = vadd.f32 %v1507, %v1560
      %v1562 = vpop.f32.mrf.mxu0
      %v1563 = vadd.f32 %v1509, %v1562
      %1564 = vmatmul.bf16.gmra.mxu0 %v884
      %v1565 = vpop.f32.mrf.mxu0
      %v1566 = vadd.f32 %v1512, %v1565
      %v1567 = vpop.f32.mrf.mxu0
      %v1568 = vadd.f32 %v1514, %v1567
      %1569 = vmatmul.bf16.gmra.mxu0 %v893
      %v1570 = vpop.f32.mrf.mxu0
      %v1571 = vadd.f32 %v1517, %v1570
      %v1572 = vpop.f32.mrf.mxu0
      %v1573 = vadd.f32 %v1519, %v1572
      %1574 = vdwg.mxu0
      %1575 = vmatpush.bf16.msra.mxu0 %v1300
      %1576 = vmatpush.bf16.msra.mxu0 %v1299
      %1577 = vmatpush.bf16.msra.mxu0 %v1298
      %1578 = vmatpush.bf16.msra.mxu0 %v1297
      %1579 = vmatpush.bf16.msra.mxu0 %v1296
      %1580 = vmatpush.bf16.msra.mxu0 %v1295
      %1581 = vmatpush.bf16.msra.mxu0 %v1294
      %1582 = vmatpush.bf16.msra.mxu0 %v1293
      %1583 = vmatmul.bf16.gmra.mxu0 %v822
      %v1584 = vpop.f32.mrf.mxu0
      %v1585 = vadd.f32 %v1531, %v1584
      %v1586 = vpop.f32.mrf.mxu0
      %v1587 = vadd.f32 %v1533, %v1586
      %1588 = vmatmul.bf16.gmra.mxu0 %v831
      %v1589 = vpop.f32.mrf.mxu0
      %v1590 = vadd.f32 %v1536, %v1589
      %v1591 = vpop.f32.mrf.mxu0
      %v1592 = vadd.f32 %v1538, %v1591
      %1593 = vmatmul.bf16.gmra.mxu0 %v840
      %v1594 = vpop.f32.mrf.mxu0
      %v1595 = vadd.f32 %v1541, %v1594
      %v1596 = vpop.f32.mrf.mxu0
      %v1597 = vadd.f32 %v1543, %v1596
      %1598 = vmatmul.bf16.gmra.mxu0 %v849
      %v1599 = vpop.f32.mrf.mxu0
      %v1600 = vadd.f32 %v1546, %v1599
      %v1601 = vpop.f32.mrf.mxu0
      %v1602 = vadd.f32 %v1548, %v1601
      %1603 = vmatmul.bf16.gmra.mxu0 %v858
      %v1604 = vpop.f32.mrf.mxu0
      %v1605 = vadd.f32 %v1551, %v1604
      %v1606 = vpop.f32.mrf.mxu0
      %v1607 = vadd.f32 %v1553, %v1606
      %1608 = vmatmul.bf16.gmra.mxu0 %v867
      %v1609 = vpop.f32.mrf.mxu0
      %v1610 = vadd.f32 %v1556, %v1609
      %v1611 = vpop.f32.mrf.mxu0
      %v1612 = vadd.f32 %v1558, %v1611
      %1613 = vmatmul.bf16.gmra.mxu0 %v876
      %v1614 = vpop.f32.mrf.mxu0
      %v1615 = vadd.f32 %v1561, %v1614
      %v1616 = vpop.f32.mrf.mxu0
      %v1617 = vadd.f32 %v1563, %v1616
      %1618 = vmatmul.bf16.gmra.mxu0 %v885
      %v1619 = vpop.f32.mrf.mxu0
      %v1620 = vadd.f32 %v1566, %v1619
      %v1621 = vpop.f32.mrf.mxu0
      %v1622 = vadd.f32 %v1568, %v1621
      %1623 = vmatmul.bf16.gmra.mxu0 %v894
      %v1624 = vpop.f32.mrf.mxu0
      %v1625 = vadd.f32 %v1571, %v1624
      %v1626 = vpop.f32.mrf.mxu0
      %v1627 = vadd.f32 %v1573, %v1626
      %1628 = vdwg.mxu0
      %1629 = vmatpush.bf16.msra.mxu0 %v1308
      %1630 = vmatpush.bf16.msra.mxu0 %v1307
      %1631 = vmatpush.bf16.msra.mxu0 %v1306
      %1632 = vmatpush.bf16.msra.mxu0 %v1305
      %1633 = vmatpush.bf16.msra.mxu0 %v1304
      %1634 = vmatpush.bf16.msra.mxu0 %v1303
      %1635 = vmatpush.bf16.msra.mxu0 %v1302
      %1636 = vmatpush.bf16.msra.mxu0 %v1301
      %1637 = vmatmul.bf16.gmra.mxu0 %v823
      %v1638 = vpop.f32.mrf.mxu0
      %v1639 = vadd.f32 %v1585, %v1638
      %v1640 = vpop.f32.mrf.mxu0
      %v1641 = vadd.f32 %v1587, %v1640
      %1642 = vmatmul.bf16.gmra.mxu0 %v832
      %v1643 = vpop.f32.mrf.mxu0
      %v1644 = vadd.f32 %v1590, %v1643
      %v1645 = vpop.f32.mrf.mxu0
      %v1646 = vadd.f32 %v1592, %v1645
      %1647 = vmatmul.bf16.gmra.mxu0 %v841
      %v1648 = vpop.f32.mrf.mxu0
      %v1649 = vadd.f32 %v1595, %v1648
      %v1650 = vpop.f32.mrf.mxu0
      %v1651 = vadd.f32 %v1597, %v1650
      %1652 = vmatmul.bf16.gmra.mxu0 %v850
      %v1653 = vpop.f32.mrf.mxu0
      %v1654 = vadd.f32 %v1600, %v1653
      %v1655 = vpop.f32.mrf.mxu0
      %v1656 = vadd.f32 %v1602, %v1655
      %1657 = vmatmul.bf16.gmra.mxu0 %v859
      %v1658 = vpop.f32.mrf.mxu0
      %v1659 = vadd.f32 %v1605, %v1658
      %v1660 = vpop.f32.mrf.mxu0
      %v1661 = vadd.f32 %v1607, %v1660
      %1662 = vmatmul.bf16.gmra.mxu0 %v868
      %v1663 = vpop.f32.mrf.mxu0
      %v1664 = vadd.f32 %v1610, %v1663
      %v1665 = vpop.f32.mrf.mxu0
      %v1666 = vadd.f32 %v1612, %v1665
      %1667 = vmatmul.bf16.gmra.mxu0 %v877
      %v1668 = vpop.f32.mrf.mxu0
      %v1669 = vadd.f32 %v1615, %v1668
      %v1670 = vpop.f32.mrf.mxu0
      %v1671 = vadd.f32 %v1617, %v1670
      %1672 = vmatmul.bf16.gmra.mxu0 %v886
      %v1673 = vpop.f32.mrf.mxu0
      %v1674 = vadd.f32 %v1620, %v1673
      %v1675 = vpop.f32.mrf.mxu0
      %v1676 = vadd.f32 %v1622, %v1675
      %1677 = vmatmul.bf16.gmra.mxu0 %v895
      %v1678 = vpop.f32.mrf.mxu0
      %v1679 = vadd.f32 %v1625, %v1678
      %v1680 = vpop.f32.mrf.mxu0
      %v1681 = vadd.f32 %v1627, %v1680
      %1682 = vdwg.mxu0
      %1683 = vmatpush.bf16.msra.mxu0 %v1316
      %1684 = vmatpush.bf16.msra.mxu0 %v1315
      %1685 = vmatpush.bf16.msra.mxu0 %v1314
      %1686 = vmatpush.bf16.msra.mxu0 %v1313
      %1687 = vmatpush.bf16.msra.mxu0 %v1312
      %1688 = vmatpush.bf16.msra.mxu0 %v1311
      %1689 = vmatpush.bf16.msra.mxu0 %v1310
      %1690 = vmatpush.bf16.msra.mxu0 %v1309
      %1691 = vmatmul.bf16.gmra.mxu0 %v824
      %v1692 = vpop.f32.mrf.mxu0
      %v1693 = vadd.f32 %v1639, %v1692
      %v1694 = vpop.f32.mrf.mxu0
      %v1695 = vadd.f32 %v1641, %v1694
      %1696 = vmatmul.bf16.gmra.mxu0 %v833
      %v1697 = vpop.f32.mrf.mxu0
      %v1698 = vadd.f32 %v1644, %v1697
      %v1699 = vpop.f32.mrf.mxu0
      %v1700 = vadd.f32 %v1646, %v1699
      %1701 = vmatmul.bf16.gmra.mxu0 %v842
      %v1702 = vpop.f32.mrf.mxu0
      %v1703 = vadd.f32 %v1649, %v1702
      %v1704 = vpop.f32.mrf.mxu0
      %v1705 = vadd.f32 %v1651, %v1704
      %1706 = vmatmul.bf16.gmra.mxu0 %v851
      %v1707 = vpop.f32.mrf.mxu0
      %v1708 = vadd.f32 %v1654, %v1707
      %v1709 = vpop.f32.mrf.mxu0
      %v1710 = vadd.f32 %v1656, %v1709
      %1711 = vmatmul.bf16.gmra.mxu0 %v860
      %v1712 = vpop.f32.mrf.mxu0
      %v1713 = vadd.f32 %v1659, %v1712
      %v1714 = vpop.f32.mrf.mxu0
      %v1715 = vadd.f32 %v1661, %v1714
      %1716 = vmatmul.bf16.gmra.mxu0 %v869
      %v1717 = vpop.f32.mrf.mxu0
      %v1718 = vadd.f32 %v1664, %v1717
      %v1719 = vpop.f32.mrf.mxu0
      %v1720 = vadd.f32 %v1666, %v1719
      %1721 = vmatmul.bf16.gmra.mxu0 %v878
      %v1722 = vpop.f32.mrf.mxu0
      %v1723 = vadd.f32 %v1669, %v1722
      %v1724 = vpop.f32.mrf.mxu0
      %v1725 = vadd.f32 %v1671, %v1724
      %1726 = vmatmul.bf16.gmra.mxu0 %v887
      %v1727 = vpop.f32.mrf.mxu0
      %v1728 = vadd.f32 %v1674, %v1727
      %v1729 = vpop.f32.mrf.mxu0
      %v1730 = vadd.f32 %v1676, %v1729
      %1731 = vmatmul.bf16.gmra.mxu0 %v896
      %v1732 = vpop.f32.mrf.mxu0
      %v1733 = vadd.f32 %v1679, %v1732
      %v1734 = vpop.f32.mrf.mxu0
      %v1735 = vadd.f32 %v1681, %v1734
      %1736 = vdwg.mxu0
      %1737 = vmatpush.bf16.msra.mxu0 %v1324
      %1738 = vmatpush.bf16.msra.mxu0 %v1323
      %1739 = vmatpush.bf16.msra.mxu0 %v1322
      %1740 = vmatpush.bf16.msra.mxu0 %v1321
      %1741 = vmatpush.bf16.msra.mxu0 %v1320
      %1742 = vmatpush.bf16.msra.mxu0 %v1319
      %1743 = vmatpush.bf16.msra.mxu0 %v1318
      %1744 = vmatpush.bf16.msra.mxu0 %v1317
      %1745 = vmatmul.bf16.gmra.mxu0 %v825
      %v1746 = vpop.f32.mrf.mxu0
      %v1747 = vadd.f32 %v1693, %v1746
      %v1748 = vpop.f32.mrf.mxu0
      %v1749 = vadd.f32 %v1695, %v1748
      %1750 = vmatmul.bf16.gmra.mxu0 %v834
      %v1751 = vpop.f32.mrf.mxu0
      %v1752 = vadd.f32 %v1698, %v1751
      %v1753 = vpop.f32.mrf.mxu0
      %v1754 = vadd.f32 %v1700, %v1753
      %1755 = vmatmul.bf16.gmra.mxu0 %v843
      %v1756 = vpop.f32.mrf.mxu0
      %v1757 = vadd.f32 %v1703, %v1756
      %v1758 = vpop.f32.mrf.mxu0
      %v1759 = vadd.f32 %v1705, %v1758
      %1760 = vmatmul.bf16.gmra.mxu0 %v852
      %v1761 = vpop.f32.mrf.mxu0
      %v1762 = vadd.f32 %v1708, %v1761
      %v1763 = vpop.f32.mrf.mxu0
      %v1764 = vadd.f32 %v1710, %v1763
      %1765 = vmatmul.bf16.gmra.mxu0 %v861
      %v1766 = vpop.f32.mrf.mxu0
      %v1767 = vadd.f32 %v1713, %v1766
      %v1768 = vpop.f32.mrf.mxu0
      %v1769 = vadd.f32 %v1715, %v1768
      %1770 = vmatmul.bf16.gmra.mxu0 %v870
      %v1771 = vpop.f32.mrf.mxu0
      %v1772 = vadd.f32 %v1718, %v1771
      %v1773 = vpop.f32.mrf.mxu0
      %v1774 = vadd.f32 %v1720, %v1773
      %1775 = vmatmul.bf16.gmra.mxu0 %v879
      %v1776 = vpop.f32.mrf.mxu0
      %v1777 = vadd.f32 %v1723, %v1776
      %v1778 = vpop.f32.mrf.mxu0
      %v1779 = vadd.f32 %v1725, %v1778
      %1780 = vmatmul.bf16.gmra.mxu0 %v888
      %v1781 = vpop.f32.mrf.mxu0
      %v1782 = vadd.f32 %v1728, %v1781
      %v1783 = vpop.f32.mrf.mxu0
      %v1784 = vadd.f32 %v1730, %v1783
      %1785 = vmatmul.bf16.gmra.mxu0 %v897
      %v1786 = vpop.f32.mrf.mxu0
      %v1787 = vadd.f32 %v1733, %v1786
      %v1788 = vpop.f32.mrf.mxu0
      %v1789 = vadd.f32 %v1735, %v1788
      %1790 = vdwg.mxu0
      %1791 = vmatpush.bf16.msra.mxu0 %v1332
      %1792 = vmatpush.bf16.msra.mxu0 %v1331
      %1793 = vmatpush.bf16.msra.mxu0 %v1330
      %1794 = vmatpush.bf16.msra.mxu0 %v1329
      %1795 = vmatpush.bf16.msra.mxu0 %v1328
      %1796 = vmatpush.bf16.msra.mxu0 %v1327
      %1797 = vmatpush.bf16.msra.mxu0 %v1326
      %1798 = vmatpush.bf16.msra.mxu0 %v1325
      %1799 = vmatmul.bf16.gmra.mxu0 %v826
      %v1800 = vpop.f32.mrf.mxu0
      %v1801 = vadd.f32 %v1747, %v1800
      %v1802 = vpop.f32.mrf.mxu0
      %v1803 = vadd.f32 %v1749, %v1802
      %1804 = vmatmul.bf16.gmra.mxu0 %v835
      %v1805 = vpop.f32.mrf.mxu0
      %v1806 = vadd.f32 %v1752, %v1805
      %v1807 = vpop.f32.mrf.mxu0
      %v1808 = vadd.f32 %v1754, %v1807
      %1809 = vmatmul.bf16.gmra.mxu0 %v844
      %v1810 = vpop.f32.mrf.mxu0
      %v1811 = vadd.f32 %v1757, %v1810
      %v1812 = vpop.f32.mrf.mxu0
      %v1813 = vadd.f32 %v1759, %v1812
      %1814 = vmatmul.bf16.gmra.mxu0 %v853
      %v1815 = vpop.f32.mrf.mxu0
      %v1816 = vadd.f32 %v1762, %v1815
      %v1817 = vpop.f32.mrf.mxu0
      %v1818 = vadd.f32 %v1764, %v1817
      %1819 = vmatmul.bf16.gmra.mxu0 %v862
      %v1820 = vpop.f32.mrf.mxu0
      %v1821 = vadd.f32 %v1767, %v1820
      %v1822 = vpop.f32.mrf.mxu0
      %v1823 = vadd.f32 %v1769, %v1822
      %1824 = vmatmul.bf16.gmra.mxu0 %v871
      %v1825 = vpop.f32.mrf.mxu0
      %v1826 = vadd.f32 %v1772, %v1825
      %v1827 = vpop.f32.mrf.mxu0
      %v1828 = vadd.f32 %v1774, %v1827
      %1829 = vmatmul.bf16.gmra.mxu0 %v880
      %v1830 = vpop.f32.mrf.mxu0
      %v1831 = vadd.f32 %v1777, %v1830
      %v1832 = vpop.f32.mrf.mxu0
      %v1833 = vadd.f32 %v1779, %v1832
      %1834 = vmatmul.bf16.gmra.mxu0 %v889
      %v1835 = vpop.f32.mrf.mxu0
      %v1836 = vadd.f32 %v1782, %v1835
      %v1837 = vpop.f32.mrf.mxu0
      %v1838 = vadd.f32 %v1784, %v1837
      %1839 = vmatmul.bf16.gmra.mxu0 %v898
      %v1840 = vpop.f32.mrf.mxu0
      %v1841 = vadd.f32 %v1787, %v1840
      %v1842 = vpop.f32.mrf.mxu0
      %v1843 = vadd.f32 %v1789, %v1842
      %1844 = vdwg.mxu0
      %1845 = vmatpush.bf16.msra.mxu0 %v1340
      %1846 = vmatpush.bf16.msra.mxu0 %v1339
      %1847 = vmatpush.bf16.msra.mxu0 %v1338
      %1848 = vmatpush.bf16.msra.mxu0 %v1337
      %1849 = vmatpush.bf16.msra.mxu0 %v1336
      %1850 = vmatpush.bf16.msra.mxu0 %v1335
      %1851 = vmatpush.bf16.msra.mxu0 %v1334
      %1852 = vmatpush.bf16.msra.mxu0 %v1333
      %1853 = vmatmul.bf16.gmra.mxu0 %v827
      %v1854 = vpop.f32.mrf.mxu0
      %v1855 = vadd.f32 %v1801, %v1854
      %v1856 = vpop.f32.mrf.mxu0
      %v1857 = vadd.f32 %v1803, %v1856
      %1858 = vmatmul.bf16.gmra.mxu0 %v836
      %v1859 = vpop.f32.mrf.mxu0
      %v1860 = vadd.f32 %v1806, %v1859
      %v1861 = vpop.f32.mrf.mxu0
      %v1862 = vadd.f32 %v1808, %v1861
      %1863 = vmatmul.bf16.gmra.mxu0 %v845
      %v1864 = vpop.f32.mrf.mxu0
      %v1865 = vadd.f32 %v1811, %v1864
      %v1866 = vpop.f32.mrf.mxu0
      %v1867 = vadd.f32 %v1813, %v1866
      %1868 = vmatmul.bf16.gmra.mxu0 %v854
      %v1869 = vpop.f32.mrf.mxu0
      %v1870 = vadd.f32 %v1816, %v1869
      %v1871 = vpop.f32.mrf.mxu0
      %v1872 = vadd.f32 %v1818, %v1871
      %1873 = vmatmul.bf16.gmra.mxu0 %v863
      %v1874 = vpop.f32.mrf.mxu0
      %v1875 = vadd.f32 %v1821, %v1874
      %v1876 = vpop.f32.mrf.mxu0
      %v1877 = vadd.f32 %v1823, %v1876
      %1878 = vmatmul.bf16.gmra.mxu0 %v872
      %v1879 = vpop.f32.mrf.mxu0
      %v1880 = vadd.f32 %v1826, %v1879
      %v1881 = vpop.f32.mrf.mxu0
      %v1882 = vadd.f32 %v1828, %v1881
      %1883 = vmatmul.bf16.gmra.mxu0 %v881
      %v1884 = vpop.f32.mrf.mxu0
      %v1885 = vadd.f32 %v1831, %v1884
      %v1886 = vpop.f32.mrf.mxu0
      %v1887 = vadd.f32 %v1833, %v1886
      %1888 = vmatmul.bf16.gmra.mxu0 %v890
      %v1889 = vpop.f32.mrf.mxu0
      %v1890 = vadd.f32 %v1836, %v1889
      %v1891 = vpop.f32.mrf.mxu0
      %v1892 = vadd.f32 %v1838, %v1891
      %1893 = vmatmul.bf16.gmra.mxu0 %v899
      %v1894 = vpop.f32.mrf.mxu0
      %v1895 = vadd.f32 %v1841, %v1894
      %v1896 = vpop.f32.mrf.mxu0
      %v1897 = vadd.f32 %v1843, %v1896
      %1898 = vdwg.mxu0
      %v1899 = vld [vmem:[%s311] sm:$0xff]
      %v1900 = vld [vmem:[%s311 + $0x8] sm:$0xff]
      %v1901 = vld [vmem:[%s311 + $0x10] sm:$0xff]
      %v1902 = vld [vmem:[%s311 + $0x18] sm:$0xff]
      %v1903 = vld [vmem:[%s311 + $0x20] sm:$0xf]
      %v1904 = vld [vmem:[%s311 + $0x24] sm:$0xff]
      %v1905 = vld [vmem:[%s311 + $0x2c] sm:$0xff]
      %v1906 = vld [vmem:[%s311 + $0x34] sm:$0xff]
      %v1907 = vld [vmem:[%s311 + $0x3c] sm:$0xff]
      %v1908 = vld [vmem:[%s311 + $0x44] sm:$0xf]
      %v1909 = vld [vmem:[%s311 + $0x48] sm:$0xff]
      %v1910 = vld [vmem:[%s311 + $0x50] sm:$0xff]
      %v1911 = vld [vmem:[%s311 + $0x58] sm:$0xff]
      %v1912 = vld [vmem:[%s311 + $0x60] sm:$0xff]
      %v1913 = vld [vmem:[%s311 + $0x68] sm:$0xf]
      %v1914 = vld [vmem:[%s311 + $0x6c] sm:$0xff]
      %v1915 = vld [vmem:[%s311 + $0x74] sm:$0xff]
      %v1916 = vld [vmem:[%s311 + $0x7c] sm:$0xff]
      %v1917 = vld [vmem:[%s311 + $0x84] sm:$0xff]
      %v1918 = vld [vmem:[%s311 + $0x8c] sm:$0xf]
      %v1919 = vld [vmem:[%s311 + $0x90] sm:$0xff]
      %v1920 = vld [vmem:[%s311 + $0x98] sm:$0xff]
      %v1921 = vld [vmem:[%s311 + $0xa0] sm:$0xff]
      %v1922 = vld [vmem:[%s311 + $0xa8] sm:$0xff]
      %v1923 = vld [vmem:[%s311 + $0xb0] sm:$0xf]
      %v1924 = vld [vmem:[%s311 + $0xb4] sm:$0xff]
      %v1925 = vld [vmem:[%s311 + $0xbc] sm:$0xff]
      %v1926 = vld [vmem:[%s311 + $0xc4] sm:$0xff]
      %v1927 = vld [vmem:[%s311 + $0xcc] sm:$0xff]
      %v1928 = vld [vmem:[%s311 + $0xd4] sm:$0xf]
      %v1929 = vld [vmem:[%s311 + $0xd8] sm:$0xff]
      %v1930 = vld [vmem:[%s311 + $0xe0] sm:$0xff]
      %v1931 = vld [vmem:[%s311 + $0xe8] sm:$0xff]
      %v1932 = vld [vmem:[%s311 + $0xf0] sm:$0xff]
      %v1933 = vld [vmem:[%s311 + $0xf8] sm:$0xf]
      %v1934 = vld [vmem:[%s311 + $0xfc] sm:$0xff]
      %v1935 = vld [vmem:[%s311 + $0x104] sm:$0xff]
      %v1936 = vld [vmem:[%s311 + $0x10c] sm:$0xff]
      %v1937 = vld [vmem:[%s311 + $0x114] sm:$0xff]
      %v1938 = vld [vmem:[%s311 + $0x11c] sm:$0xf]
      %v1939 = vld [vmem:[%s311 + $0x120] sm:$0xff]
      %v1940 = vld [vmem:[%s311 + $0x128] sm:$0xff]
      %v1941 = vld [vmem:[%s311 + $0x130] sm:$0xff]
      %v1942 = vld [vmem:[%s311 + $0x138] sm:$0xff]
      %v1943 = vld [vmem:[%s311 + $0x140] sm:$0xf]
      %v1944 = vld [vmem:[%s311 + $0x144] sm:$0xff]
      %v1945 = vld [vmem:[%s311 + $0x14c] sm:$0xff]
      %v1946 = vld [vmem:[%s311 + $0x154] sm:$0xff]
      %v1947 = vld [vmem:[%s311 + $0x15c] sm:$0xff]
      %v1948 = vld [vmem:[%s311 + $0x164] sm:$0xf]
      %v1949 = vld [vmem:[%s311 + $0x168] sm:$0xff]
      %v1950 = vld [vmem:[%s311 + $0x170] sm:$0xff]
      %v1951 = vld [vmem:[%s311 + $0x178] sm:$0xff]
      %v1952 = vld [vmem:[%s311 + $0x180] sm:$0xff]
      %v1953 = vld [vmem:[%s311 + $0x188] sm:$0xf]
      %v1954 = vld [vmem:[%s311 + $0x18c] sm:$0xff]
      %v1955 = vld [vmem:[%s311 + $0x194] sm:$0xff]
      %v1956 = vld [vmem:[%s311 + $0x19c] sm:$0xff]
      %v1957 = vld [vmem:[%s311 + $0x1a4] sm:$0xff]
      %v1958 = vld [vmem:[%s311 + $0x1ac] sm:$0xf]
      %v1959 = vld [vmem:[%s311 + $0x1b0] sm:$0xff]
      %v1960 = vld [vmem:[%s311 + $0x1b8] sm:$0xff]
      %v1961 = vld [vmem:[%s311 + $0x1c0] sm:$0xff]
      %v1962 = vld [vmem:[%s311 + $0x1c8] sm:$0xff]
      %v1963 = vld [vmem:[%s311 + $0x1d0] sm:$0xf]
      %v1964 = vld [vmem:[%s311 + $0x1d4] sm:$0xff]
      %v1965 = vld [vmem:[%s311 + $0x1dc] sm:$0xff]
      %v1966 = vld [vmem:[%s311 + $0x1e4] sm:$0xff]
      %v1967 = vld [vmem:[%s311 + $0x1ec] sm:$0xff]
      %v1968 = vld [vmem:[%s311 + $0x1f4] sm:$0xf]
      %v1969 = vld [vmem:[%s311 + $0x1f8] sm:$0xff]
      %v1970 = vld [vmem:[%s311 + $0x200] sm:$0xff]
      %v1971 = vld [vmem:[%s311 + $0x208] sm:$0xff]
      %v1972 = vld [vmem:[%s311 + $0x210] sm:$0xff]
      %v1973 = vld [vmem:[%s311 + $0x218] sm:$0xf]
      %v1974 = vld [vmem:[%s311 + $0x21c] sm:$0xff]
      %v1975 = vld [vmem:[%s311 + $0x224] sm:$0xff]
      %v1976 = vld [vmem:[%s311 + $0x22c] sm:$0xff]
      %v1977 = vld [vmem:[%s311 + $0x234] sm:$0xff]
      %v1978 = vld [vmem:[%s311 + $0x23c] sm:$0xf]
      %v1979 = vld [vmem:[%s311 + $0x240] sm:$0xff]
      %v1980 = vld [vmem:[%s311 + $0x248] sm:$0xff]
      %v1981 = vld [vmem:[%s311 + $0x250] sm:$0xff]
      %v1982 = vld [vmem:[%s311 + $0x258] sm:$0xff]
      %v1983 = vld [vmem:[%s311 + $0x260] sm:$0xf]
      %v1984 = vld [vmem:[%s311 + $0x264] sm:$0xff]
      %v1985 = vld [vmem:[%s311 + $0x26c] sm:$0xff]
      %v1986 = vld [vmem:[%s311 + $0x274] sm:$0xff]
      %v1987 = vld [vmem:[%s311 + $0x27c] sm:$0xff]
      %v1988 = vld [vmem:[%s311 + $0x284] sm:$0xf]
      %v2079 = vunpack.c.l.b16 %v1899
      %v2080 = vunpack.c.h.b16 %v1899
      %v2081 = vunpack.c.l.b16 %v1900
      %v2082 = vunpack.c.h.b16 %v1900
      %v2083 = vunpack.c.l.b16 %v1901
      %v2084 = vunpack.c.h.b16 %v1901
      %v2085 = vunpack.c.l.b16 %v1902
      %v2086 = vunpack.c.h.b16 %v1902
      %v2087 = vunpack.c.l.b16 %v1903
      %v2088 = vunpack.c.l.b16 %v1904
      %v2089 = vunpack.c.h.b16 %v1904
      %v2090 = vunpack.c.l.b16 %v1905
      %v2091 = vunpack.c.h.b16 %v1905
      %v2092 = vunpack.c.l.b16 %v1906
      %v2093 = vunpack.c.h.b16 %v1906
      %v2094 = vunpack.c.l.b16 %v1907
      %v2095 = vunpack.c.h.b16 %v1907
      %v2096 = vunpack.c.l.b16 %v1908
      %v2097 = vunpack.c.l.b16 %v1909
      %v2098 = vunpack.c.h.b16 %v1909
      %v2099 = vunpack.c.l.b16 %v1910
      %v2100 = vunpack.c.h.b16 %v1910
      %v2101 = vunpack.c.l.b16 %v1911
      %v2102 = vunpack.c.h.b16 %v1911
      %v2103 = vunpack.c.l.b16 %v1912
      %v2104 = vunpack.c.h.b16 %v1912
      %v2105 = vunpack.c.l.b16 %v1913
      %v2106 = vunpack.c.l.b16 %v1914
      %v2107 = vunpack.c.h.b16 %v1914
      %v2108 = vunpack.c.l.b16 %v1915
      %v2109 = vunpack.c.h.b16 %v1915
      %v2110 = vunpack.c.l.b16 %v1916
      %v2111 = vunpack.c.h.b16 %v1916
      %v2112 = vunpack.c.l.b16 %v1917
      %v2113 = vunpack.c.h.b16 %v1917
      %v2114 = vunpack.c.l.b16 %v1918
      %v2115 = vunpack.c.l.b16 %v1919
      %v2116 = vunpack.c.h.b16 %v1919
      %v2117 = vunpack.c.l.b16 %v1920
      %v2118 = vunpack.c.h.b16 %v1920
      %v2119 = vunpack.c.l.b16 %v1921
      %v2120 = vunpack.c.h.b16 %v1921
      %v2121 = vunpack.c.l.b16 %v1922
      %v2122 = vunpack.c.h.b16 %v1922
      %v2123 = vunpack.c.l.b16 %v1923
      %v2124 = vunpack.c.l.b16 %v1924
      %v2125 = vunpack.c.h.b16 %v1924
      %v2126 = vunpack.c.l.b16 %v1925
      %v2127 = vunpack.c.h.b16 %v1925
      %v2128 = vunpack.c.l.b16 %v1926
      %v2129 = vunpack.c.h.b16 %v1926
      %v2130 = vunpack.c.l.b16 %v1927
      %v2131 = vunpack.c.h.b16 %v1927
      %v2132 = vunpack.c.l.b16 %v1928
      %v2133 = vunpack.c.l.b16 %v1929
      %v2134 = vunpack.c.h.b16 %v1929
      %v2135 = vunpack.c.l.b16 %v1930
      %v2136 = vunpack.c.h.b16 %v1930
      %v2137 = vunpack.c.l.b16 %v1931
      %v2138 = vunpack.c.h.b16 %v1931
      %v2139 = vunpack.c.l.b16 %v1932
      %v2140 = vunpack.c.h.b16 %v1932
      %v2141 = vunpack.c.l.b16 %v1933
      %v2142 = vunpack.c.l.b16 %v1934
      %v2143 = vunpack.c.h.b16 %v1934
      %v2144 = vunpack.c.l.b16 %v1935
      %v2145 = vunpack.c.h.b16 %v1935
      %v2146 = vunpack.c.l.b16 %v1936
      %v2147 = vunpack.c.h.b16 %v1936
      %v2148 = vunpack.c.l.b16 %v1937
      %v2149 = vunpack.c.h.b16 %v1937
      %v2150 = vunpack.c.l.b16 %v1938
      %v2151 = vunpack.c.l.b16 %v1939
      %v2152 = vunpack.c.h.b16 %v1939
      %v2153 = vunpack.c.l.b16 %v1940
      %v2154 = vunpack.c.h.b16 %v1940
      %v2155 = vunpack.c.l.b16 %v1941
      %v2156 = vunpack.c.h.b16 %v1941
      %v2157 = vunpack.c.l.b16 %v1942
      %v2158 = vunpack.c.h.b16 %v1942
      %v2159 = vunpack.c.l.b16 %v1943
      %v2160 = vunpack.c.l.b16 %v1944
      %v2161 = vunpack.c.h.b16 %v1944
      %v2162 = vunpack.c.l.b16 %v1945
      %v2163 = vunpack.c.h.b16 %v1945
      %v2164 = vunpack.c.l.b16 %v1946
      %v2165 = vunpack.c.h.b16 %v1946
      %v2166 = vunpack.c.l.b16 %v1947
      %v2167 = vunpack.c.h.b16 %v1947
      %v2168 = vunpack.c.l.b16 %v1948
      %v2169 = vunpack.c.l.b16 %v1949
      %v2170 = vunpack.c.h.b16 %v1949
      %v2171 = vunpack.c.l.b16 %v1950
      %v2172 = vunpack.c.h.b16 %v1950
      %v2173 = vunpack.c.l.b16 %v1951
      %v2174 = vunpack.c.h.b16 %v1951
      %v2175 = vunpack.c.l.b16 %v1952
      %v2176 = vunpack.c.h.b16 %v1952
      %v2177 = vunpack.c.l.b16 %v1953
      %v2178 = vunpack.c.l.b16 %v1954
      %v2179 = vunpack.c.h.b16 %v1954
      %v2180 = vunpack.c.l.b16 %v1955
      %v2181 = vunpack.c.h.b16 %v1955
      %v2182 = vunpack.c.l.b16 %v1956
      %v2183 = vunpack.c.h.b16 %v1956
      %v2184 = vunpack.c.l.b16 %v1957
      %v2185 = vunpack.c.h.b16 %v1957
      %v2186 = vunpack.c.l.b16 %v1958
      %v2187 = vunpack.c.l.b16 %v1959
      %v2188 = vunpack.c.h.b16 %v1959
      %v2189 = vunpack.c.l.b16 %v1960
      %v2190 = vunpack.c.h.b16 %v1960
      %v2191 = vunpack.c.l.b16 %v1961
      %v2192 = vunpack.c.h.b16 %v1961
      %v2193 = vunpack.c.l.b16 %v1962
      %v2194 = vunpack.c.h.b16 %v1962
      %v2195 = vunpack.c.l.b16 %v1963
      %v2196 = vunpack.c.l.b16 %v1964
      %v2197 = vunpack.c.h.b16 %v1964
      %v2198 = vunpack.c.l.b16 %v1965
      %v2199 = vunpack.c.h.b16 %v1965
      %v2200 = vunpack.c.l.b16 %v1966
      %v2201 = vunpack.c.h.b16 %v1966
      %v2202 = vunpack.c.l.b16 %v1967
      %v2203 = vunpack.c.h.b16 %v1967
      %v2204 = vunpack.c.l.b16 %v1968
      %v2205 = vunpack.c.l.b16 %v1969
      %v2206 = vunpack.c.h.b16 %v1969
      %v2207 = vunpack.c.l.b16 %v1970
      %v2208 = vunpack.c.h.b16 %v1970
      %v2209 = vunpack.c.l.b16 %v1971
      %v2210 = vunpack.c.h.b16 %v1971
      %v2211 = vunpack.c.l.b16 %v1972
      %v2212 = vunpack.c.h.b16 %v1972
      %v2213 = vunpack.c.l.b16 %v1973
      %v2214 = vunpack.c.l.b16 %v1974
      %v2215 = vunpack.c.h.b16 %v1974
      %v2216 = vunpack.c.l.b16 %v1975
      %v2217 = vunpack.c.h.b16 %v1975
      %v2218 = vunpack.c.l.b16 %v1976
      %v2219 = vunpack.c.h.b16 %v1976
      %v2220 = vunpack.c.l.b16 %v1977
      %v2221 = vunpack.c.h.b16 %v1977
      %v2222 = vunpack.c.l.b16 %v1978
      %v2223 = vunpack.c.l.b16 %v1979
      %v2224 = vunpack.c.h.b16 %v1979
      %v2225 = vunpack.c.l.b16 %v1980
      %v2226 = vunpack.c.h.b16 %v1980
      %v2227 = vunpack.c.l.b16 %v1981
      %v2228 = vunpack.c.h.b16 %v1981
      %v2229 = vunpack.c.l.b16 %v1982
      %v2230 = vunpack.c.h.b16 %v1982
      %v2231 = vunpack.c.l.b16 %v1983
      %v2232 = vunpack.c.l.b16 %v1984
      %v2233 = vunpack.c.h.b16 %v1984
      %v2234 = vunpack.c.l.b16 %v1985
      %v2235 = vunpack.c.h.b16 %v1985
      %v2236 = vunpack.c.l.b16 %v1986
      %v2237 = vunpack.c.h.b16 %v1986
      %v2238 = vunpack.c.l.b16 %v1987
      %v2239 = vunpack.c.h.b16 %v1987
      %v2240 = vunpack.c.l.b16 %v1988
      %v2241 = vpack.c.b16 %v2088, %v2079
      %v2242 = vpack.c.b16 %v2089, %v2080
      %v2243 = vpack.c.b16 %v2090, %v2081
      %v2244 = vpack.c.b16 %v2091, %v2082
      %v2245 = vpack.c.b16 %v2092, %v2083
      %v2246 = vpack.c.b16 %v2093, %v2084
      %v2247 = vpack.c.b16 %v2094, %v2085
      %v2248 = vpack.c.b16 %v2095, %v2086
      %v2249 = vpack.c.b16 %v2096, %v2087
      %v2250 = vpack.c.b16 %v2106, %v2097
      %v2251 = vpack.c.b16 %v2107, %v2098
      %v2252 = vpack.c.b16 %v2108, %v2099
      %v2253 = vpack.c.b16 %v2109, %v2100
      %v2254 = vpack.c.b16 %v2110, %v2101
      %v2255 = vpack.c.b16 %v2111, %v2102
      %v2256 = vpack.c.b16 %v2112, %v2103
      %v2257 = vpack.c.b16 %v2113, %v2104
      %v2258 = vpack.c.b16 %v2114, %v2105
      %v2259 = vpack.c.b16 %v2124, %v2115
      %v2260 = vpack.c.b16 %v2125, %v2116
      %v2261 = vpack.c.b16 %v2126, %v2117
      %v2262 = vpack.c.b16 %v2127, %v2118
      %v2263 = vpack.c.b16 %v2128, %v2119
      %v2264 = vpack.c.b16 %v2129, %v2120
      %v2265 = vpack.c.b16 %v2130, %v2121
      %v2266 = vpack.c.b16 %v2131, %v2122
      %v2267 = vpack.c.b16 %v2132, %v2123
      %v2268 = vpack.c.b16 %v2142, %v2133
      %v2269 = vpack.c.b16 %v2143, %v2134
      %v2270 = vpack.c.b16 %v2144, %v2135
      %v2271 = vpack.c.b16 %v2145, %v2136
      %v2272 = vpack.c.b16 %v2146, %v2137
      %v2273 = vpack.c.b16 %v2147, %v2138
      %v2274 = vpack.c.b16 %v2148, %v2139
      %v2275 = vpack.c.b16 %v2149, %v2140
      %v2276 = vpack.c.b16 %v2150, %v2141
      %v2277 = vpack.c.b16 %v2160, %v2151
      %v2278 = vpack.c.b16 %v2161, %v2152
      %v2279 = vpack.c.b16 %v2162, %v2153
      %v2280 = vpack.c.b16 %v2163, %v2154
      %v2281 = vpack.c.b16 %v2164, %v2155
      %v2282 = vpack.c.b16 %v2165, %v2156
      %v2283 = vpack.c.b16 %v2166, %v2157
      %v2284 = vpack.c.b16 %v2167, %v2158
      %v2285 = vpack.c.b16 %v2168, %v2159
      %v2286 = vpack.c.b16 %v2178, %v2169
      %v2287 = vpack.c.b16 %v2179, %v2170
      %v2288 = vpack.c.b16 %v2180, %v2171
      %v2289 = vpack.c.b16 %v2181, %v2172
      %v2290 = vpack.c.b16 %v2182, %v2173
      %v2291 = vpack.c.b16 %v2183, %v2174
      %v2292 = vpack.c.b16 %v2184, %v2175
      %v2293 = vpack.c.b16 %v2185, %v2176
      %v2294 = vpack.c.b16 %v2186, %v2177
      %v2295 = vpack.c.b16 %v2196, %v2187
      %v2296 = vpack.c.b16 %v2197, %v2188
      %v2297 = vpack.c.b16 %v2198, %v2189
      %v2298 = vpack.c.b16 %v2199, %v2190
      %v2299 = vpack.c.b16 %v2200, %v2191
      %v2300 = vpack.c.b16 %v2201, %v2192
      %v2301 = vpack.c.b16 %v2202, %v2193
      %v2302 = vpack.c.b16 %v2203, %v2194
      %v2303 = vpack.c.b16 %v2204, %v2195
      %v2304 = vpack.c.b16 %v2214, %v2205
      %v2305 = vpack.c.b16 %v2215, %v2206
      %v2306 = vpack.c.b16 %v2216, %v2207
      %v2307 = vpack.c.b16 %v2217, %v2208
      %v2308 = vpack.c.b16 %v2218, %v2209
      %v2309 = vpack.c.b16 %v2219, %v2210
      %v2310 = vpack.c.b16 %v2220, %v2211
      %v2311 = vpack.c.b16 %v2221, %v2212
      %v2312 = vpack.c.b16 %v2222, %v2213
      %v2313 = vpack.c.b16 %v2232, %v2223
      %v2314 = vpack.c.b16 %v2233, %v2224
      %v2315 = vpack.c.b16 %v2234, %v2225
      %v2316 = vpack.c.b16 %v2235, %v2226
      %v2317 = vpack.c.b16 %v2236, %v2227
      %v2318 = vpack.c.b16 %v2237, %v2228
      %v2319 = vpack.c.b16 %v2238, %v2229
      %v2320 = vpack.c.b16 %v2239, %v2230
      %v2321 = vpack.c.b16 %v2240, %v2231
      %2403 = vmatpush.bf16.msra.mxu0 %v1276
      %2404 = vmatpush.bf16.msra.mxu0 %v1275
      %2405 = vmatpush.bf16.msra.mxu0 %v1274
      %2406 = vmatpush.bf16.msra.mxu0 %v1273
      %2407 = vmatpush.bf16.msra.mxu0 %v1272
      %2408 = vmatpush.bf16.msra.mxu0 %v1271
      %2409 = vmatpush.bf16.msra.mxu0 %v1270
      %2410 = vmatpush.bf16.msra.mxu0 %v1269
      %2411 = vmatmul.bf16.gmra.mxu0 %v2241
      %v2412 = vpop.f32.mrf.mxu0
      %v2413 = vadd.f32 0.0, %v2412
      %v2414 = vpop.f32.mrf.mxu0
      %v2415 = vadd.f32 0.0, %v2414
      %2416 = vmatmul.bf16.gmra.mxu0 %v2250
      %v2417 = vpop.f32.mrf.mxu0
      %v2418 = vadd.f32 0.0, %v2417
      %v2419 = vpop.f32.mrf.mxu0
      %v2420 = vadd.f32 0.0, %v2419
      %2421 = vmatmul.bf16.gmra.mxu0 %v2259
      %v2422 = vpop.f32.mrf.mxu0
      %v2423 = vadd.f32 0.0, %v2422
      %v2424 = vpop.f32.mrf.mxu0
      %v2425 = vadd.f32 0.0, %v2424
      %2426 = vmatmul.bf16.gmra.mxu0 %v2268
      %v2427 = vpop.f32.mrf.mxu0
      %v2428 = vadd.f32 0.0, %v2427
      %v2429 = vpop.f32.mrf.mxu0
      %v2430 = vadd.f32 0.0, %v2429
      %2431 = vmatmul.bf16.gmra.mxu0 %v2277
      %v2432 = vpop.f32.mrf.mxu0
      %v2433 = vadd.f32 0.0, %v2432
      %v2434 = vpop.f32.mrf.mxu0
      %v2435 = vadd.f32 0.0, %v2434
      %2436 = vmatmul.bf16.gmra.mxu0 %v2286
      %v2437 = vpop.f32.mrf.mxu0
      %v2438 = vadd.f32 0.0, %v2437
      %v2439 = vpop.f32.mrf.mxu0
      %v2440 = vadd.f32 0.0, %v2439
      %2441 = vmatmul.bf16.gmra.mxu0 %v2295
      %v2442 = vpop.f32.mrf.mxu0
      %v2443 = vadd.f32 0.0, %v2442
      %v2444 = vpop.f32.mrf.mxu0
      %v2445 = vadd.f32 0.0, %v2444
      %2446 = vmatmul.bf16.gmra.mxu0 %v2304
      %v2447 = vpop.f32.mrf.mxu0
      %v2448 = vadd.f32 0.0, %v2447
      %v2449 = vpop.f32.mrf.mxu0
      %v2450 = vadd.f32 0.0, %v2449
      %2451 = vmatmul.bf16.gmra.mxu0 %v2313
      %v2452 = vpop.f32.mrf.mxu0
      %v2453 = vadd.f32 0.0, %v2452
      %v2454 = vpop.f32.mrf.mxu0
      %v2455 = vadd.f32 0.0, %v2454
      %2456 = vdwg.mxu0
      %2457 = vmatpush.bf16.msra.mxu0 %v1284
      %2458 = vmatpush.bf16.msra.mxu0 %v1283
      %2459 = vmatpush.bf16.msra.mxu0 %v1282
      %2460 = vmatpush.bf16.msra.mxu0 %v1281
      %2461 = vmatpush.bf16.msra.mxu0 %v1280
      %2462 = vmatpush.bf16.msra.mxu0 %v1279
      %2463 = vmatpush.bf16.msra.mxu0 %v1278
      %2464 = vmatpush.bf16.msra.mxu0 %v1277
      %2465 = vmatmul.bf16.gmra.mxu0 %v2242
      %v2466 = vpop.f32.mrf.mxu0
      %v2467 = vadd.f32 %v2413, %v2466
      %v2468 = vpop.f32.mrf.mxu0
      %v2469 = vadd.f32 %v2415, %v2468
      %2470 = vmatmul.bf16.gmra.mxu0 %v2251
      %v2471 = vpop.f32.mrf.mxu0
      %v2472 = vadd.f32 %v2418, %v2471
      %v2473 = vpop.f32.mrf.mxu0
      %v2474 = vadd.f32 %v2420, %v2473
      %2475 = vmatmul.bf16.gmra.mxu0 %v2260
      %v2476 = vpop.f32.mrf.mxu0
      %v2477 = vadd.f32 %v2423, %v2476
      %v2478 = vpop.f32.mrf.mxu0
      %v2479 = vadd.f32 %v2425, %v2478
      %2480 = vmatmul.bf16.gmra.mxu0 %v2269
      %v2481 = vpop.f32.mrf.mxu0
      %v2482 = vadd.f32 %v2428, %v2481
      %v2483 = vpop.f32.mrf.mxu0
      %v2484 = vadd.f32 %v2430, %v2483
      %2485 = vmatmul.bf16.gmra.mxu0 %v2278
      %v2486 = vpop.f32.mrf.mxu0
      %v2487 = vadd.f32 %v2433, %v2486
      %v2488 = vpop.f32.mrf.mxu0
      %v2489 = vadd.f32 %v2435, %v2488
      %2490 = vmatmul.bf16.gmra.mxu0 %v2287
      %v2491 = vpop.f32.mrf.mxu0
      %v2492 = vadd.f32 %v2438, %v2491
      %v2493 = vpop.f32.mrf.mxu0
      %v2494 = vadd.f32 %v2440, %v2493
      %2495 = vmatmul.bf16.gmra.mxu0 %v2296
      %v2496 = vpop.f32.mrf.mxu0
      %v2497 = vadd.f32 %v2443, %v2496
      %v2498 = vpop.f32.mrf.mxu0
      %v2499 = vadd.f32 %v2445, %v2498
      %2500 = vmatmul.bf16.gmra.mxu0 %v2305
      %v2501 = vpop.f32.mrf.mxu0
      %v2502 = vadd.f32 %v2448, %v2501
      %v2503 = vpop.f32.mrf.mxu0
      %v2504 = vadd.f32 %v2450, %v2503
      %2505 = vmatmul.bf16.gmra.mxu0 %v2314
      %v2506 = vpop.f32.mrf.mxu0
      %v2507 = vadd.f32 %v2453, %v2506
      %v2508 = vpop.f32.mrf.mxu0
      %v2509 = vadd.f32 %v2455, %v2508
      %2510 = vdwg.mxu0
      %2511 = vmatpush.bf16.msra.mxu0 %v1292
      %2512 = vmatpush.bf16.msra.mxu0 %v1291
      %2513 = vmatpush.bf16.msra.mxu0 %v1290
      %2514 = vmatpush.bf16.msra.mxu0 %v1289
      %2515 = vmatpush.bf16.msra.mxu0 %v1288
      %2516 = vmatpush.bf16.msra.mxu0 %v1287
      %2517 = vmatpush.bf16.msra.mxu0 %v1286
      %2518 = vmatpush.bf16.msra.mxu0 %v1285
      %2519 = vmatmul.bf16.gmra.mxu0 %v2243
      %v2520 = vpop.f32.mrf.mxu0
      %v2521 = vadd.f32 %v2467, %v2520
      %v2522 = vpop.f32.mrf.mxu0
      %v2523 = vadd.f32 %v2469, %v2522
      %2524 = vmatmul.bf16.gmra.mxu0 %v2252
      %v2525 = vpop.f32.mrf.mxu0
      %v2526 = vadd.f32 %v2472, %v2525
      %v2527 = vpop.f32.mrf.mxu0
      %v2528 = vadd.f32 %v2474, %v2527
      %2529 = vmatmul.bf16.gmra.mxu0 %v2261
      %v2530 = vpop.f32.mrf.mxu0
      %v2531 = vadd.f32 %v2477, %v2530
      %v2532 = vpop.f32.mrf.mxu0
      %v2533 = vadd.f32 %v2479, %v2532
      %2534 = vmatmul.bf16.gmra.mxu0 %v2270
      %v2535 = vpop.f32.mrf.mxu0
      %v2536 = vadd.f32 %v2482, %v2535
      %v2537 = vpop.f32.mrf.mxu0
      %v2538 = vadd.f32 %v2484, %v2537
      %2539 = vmatmul.bf16.gmra.mxu0 %v2279
      %v2540 = vpop.f32.mrf.mxu0
      %v2541 = vadd.f32 %v2487, %v2540
      %v2542 = vpop.f32.mrf.mxu0
      %v2543 = vadd.f32 %v2489, %v2542
      %2544 = vmatmul.bf16.gmra.mxu0 %v2288
      %v2545 = vpop.f32.mrf.mxu0
      %v2546 = vadd.f32 %v2492, %v2545
      %v2547 = vpop.f32.mrf.mxu0
      %v2548 = vadd.f32 %v2494, %v2547
      %2549 = vmatmul.bf16.gmra.mxu0 %v2297
      %v2550 = vpop.f32.mrf.mxu0
      %v2551 = vadd.f32 %v2497, %v2550
      %v2552 = vpop.f32.mrf.mxu0
      %v2553 = vadd.f32 %v2499, %v2552
      %2554 = vmatmul.bf16.gmra.mxu0 %v2306
      %v2555 = vpop.f32.mrf.mxu0
      %v2556 = vadd.f32 %v2502, %v2555
      %v2557 = vpop.f32.mrf.mxu0
      %v2558 = vadd.f32 %v2504, %v2557
      %2559 = vmatmul.bf16.gmra.mxu0 %v2315
      %v2560 = vpop.f32.mrf.mxu0
      %v2561 = vadd.f32 %v2507, %v2560
      %v2562 = vpop.f32.mrf.mxu0
      %v2563 = vadd.f32 %v2509, %v2562
      %2564 = vdwg.mxu0
      %2565 = vmatpush.bf16.msra.mxu0 %v1300
      %2566 = vmatpush.bf16.msra.mxu0 %v1299
      %2567 = vmatpush.bf16.msra.mxu0 %v1298
      %2568 = vmatpush.bf16.msra.mxu0 %v1297
      %2569 = vmatpush.bf16.msra.mxu0 %v1296
      %2570 = vmatpush.bf16.msra.mxu0 %v1295
      %2571 = vmatpush.bf16.msra.mxu0 %v1294
      %2572 = vmatpush.bf16.msra.mxu0 %v1293
      %2573 = vmatmul.bf16.gmra.mxu0 %v2244
      %v2574 = vpop.f32.mrf.mxu0
      %v2575 = vadd.f32 %v2521, %v2574
      %v2576 = vpop.f32.mrf.mxu0
      %v2577 = vadd.f32 %v2523, %v2576
      %2578 = vmatmul.bf16.gmra.mxu0 %v2253
      %v2579 = vpop.f32.mrf.mxu0
      %v2580 = vadd.f32 %v2526, %v2579
      %v2581 = vpop.f32.mrf.mxu0
      %v2582 = vadd.f32 %v2528, %v2581
      %2583 = vmatmul.bf16.gmra.mxu0 %v2262
      %v2584 = vpop.f32.mrf.mxu0
      %v2585 = vadd.f32 %v2531, %v2584
      %v2586 = vpop.f32.mrf.mxu0
      %v2587 = vadd.f32 %v2533, %v2586
      %2588 = vmatmul.bf16.gmra.mxu0 %v2271
      %v2589 = vpop.f32.mrf.mxu0
      %v2590 = vadd.f32 %v2536, %v2589
      %v2591 = vpop.f32.mrf.mxu0
      %v2592 = vadd.f32 %v2538, %v2591
      %2593 = vmatmul.bf16.gmra.mxu0 %v2280
      %v2594 = vpop.f32.mrf.mxu0
      %v2595 = vadd.f32 %v2541, %v2594
      %v2596 = vpop.f32.mrf.mxu0
      %v2597 = vadd.f32 %v2543, %v2596
      %2598 = vmatmul.bf16.gmra.mxu0 %v2289
      %v2599 = vpop.f32.mrf.mxu0
      %v2600 = vadd.f32 %v2546, %v2599
      %v2601 = vpop.f32.mrf.mxu0
      %v2602 = vadd.f32 %v2548, %v2601
      %2603 = vmatmul.bf16.gmra.mxu0 %v2298
      %v2604 = vpop.f32.mrf.mxu0
      %v2605 = vadd.f32 %v2551, %v2604
      %v2606 = vpop.f32.mrf.mxu0
      %v2607 = vadd.f32 %v2553, %v2606
      %2608 = vmatmul.bf16.gmra.mxu0 %v2307
      %v2609 = vpop.f32.mrf.mxu0
      %v2610 = vadd.f32 %v2556, %v2609
      %v2611 = vpop.f32.mrf.mxu0
      %v2612 = vadd.f32 %v2558, %v2611
      %2613 = vmatmul.bf16.gmra.mxu0 %v2316
      %v2614 = vpop.f32.mrf.mxu0
      %v2615 = vadd.f32 %v2561, %v2614
      %v2616 = vpop.f32.mrf.mxu0
      %v2617 = vadd.f32 %v2563, %v2616
      %2618 = vdwg.mxu0
      %2619 = vmatpush.bf16.msra.mxu0 %v1308
      %2620 = vmatpush.bf16.msra.mxu0 %v1307
      %2621 = vmatpush.bf16.msra.mxu0 %v1306
      %2622 = vmatpush.bf16.msra.mxu0 %v1305
      %2623 = vmatpush.bf16.msra.mxu0 %v1304
      %2624 = vmatpush.bf16.msra.mxu0 %v1303
      %2625 = vmatpush.bf16.msra.mxu0 %v1302
      %2626 = vmatpush.bf16.msra.mxu0 %v1301
      %2627 = vmatmul.bf16.gmra.mxu0 %v2245
      %v2628 = vpop.f32.mrf.mxu0
      %v2629 = vadd.f32 %v2575, %v2628
      %v2630 = vpop.f32.mrf.mxu0
      %v2631 = vadd.f32 %v2577, %v2630
      %2632 = vmatmul.bf16.gmra.mxu0 %v2254
      %v2633 = vpop.f32.mrf.mxu0
      %v2634 = vadd.f32 %v2580, %v2633
      %v2635 = vpop.f32.mrf.mxu0
      %v2636 = vadd.f32 %v2582, %v2635
      %2637 = vmatmul.bf16.gmra.mxu0 %v2263
      %v2638 = vpop.f32.mrf.mxu0
      %v2639 = vadd.f32 %v2585, %v2638
      %v2640 = vpop.f32.mrf.mxu0
      %v2641 = vadd.f32 %v2587, %v2640
      %2642 = vmatmul.bf16.gmra.mxu0 %v2272
      %v2643 = vpop.f32.mrf.mxu0
      %v2644 = vadd.f32 %v2590, %v2643
      %v2645 = vpop.f32.mrf.mxu0
      %v2646 = vadd.f32 %v2592, %v2645
      %2647 = vmatmul.bf16.gmra.mxu0 %v2281
      %v2648 = vpop.f32.mrf.mxu0
      %v2649 = vadd.f32 %v2595, %v2648
      %v2650 = vpop.f32.mrf.mxu0
      %v2651 = vadd.f32 %v2597, %v2650
      %2652 = vmatmul.bf16.gmra.mxu0 %v2290
      %v2653 = vpop.f32.mrf.mxu0
      %v2654 = vadd.f32 %v2600, %v2653
      %v2655 = vpop.f32.mrf.mxu0
      %v2656 = vadd.f32 %v2602, %v2655
      %2657 = vmatmul.bf16.gmra.mxu0 %v2299
      %v2658 = vpop.f32.mrf.mxu0
      %v2659 = vadd.f32 %v2605, %v2658
      %v2660 = vpop.f32.mrf.mxu0
      %v2661 = vadd.f32 %v2607, %v2660
      %2662 = vmatmul.bf16.gmra.mxu0 %v2308
      %v2663 = vpop.f32.mrf.mxu0
      %v2664 = vadd.f32 %v2610, %v2663
      %v2665 = vpop.f32.mrf.mxu0
      %v2666 = vadd.f32 %v2612, %v2665
      %2667 = vmatmul.bf16.gmra.mxu0 %v2317
      %v2668 = vpop.f32.mrf.mxu0
      %v2669 = vadd.f32 %v2615, %v2668
      %v2670 = vpop.f32.mrf.mxu0
      %v2671 = vadd.f32 %v2617, %v2670
      %2672 = vdwg.mxu0
      %2673 = vmatpush.bf16.msra.mxu0 %v1316
      %2674 = vmatpush.bf16.msra.mxu0 %v1315
      %2675 = vmatpush.bf16.msra.mxu0 %v1314
      %2676 = vmatpush.bf16.msra.mxu0 %v1313
      %2677 = vmatpush.bf16.msra.mxu0 %v1312
      %2678 = vmatpush.bf16.msra.mxu0 %v1311
      %2679 = vmatpush.bf16.msra.mxu0 %v1310
      %2680 = vmatpush.bf16.msra.mxu0 %v1309
      %2681 = vmatmul.bf16.gmra.mxu0 %v2246
      %v2682 = vpop.f32.mrf.mxu0
      %v2683 = vadd.f32 %v2629, %v2682
      %v2684 = vpop.f32.mrf.mxu0
      %v2685 = vadd.f32 %v2631, %v2684
      %2686 = vmatmul.bf16.gmra.mxu0 %v2255
      %v2687 = vpop.f32.mrf.mxu0
      %v2688 = vadd.f32 %v2634, %v2687
      %v2689 = vpop.f32.mrf.mxu0
      %v2690 = vadd.f32 %v2636, %v2689
      %2691 = vmatmul.bf16.gmra.mxu0 %v2264
      %v2692 = vpop.f32.mrf.mxu0
      %v2693 = vadd.f32 %v2639, %v2692
      %v2694 = vpop.f32.mrf.mxu0
      %v2695 = vadd.f32 %v2641, %v2694
      %2696 = vmatmul.bf16.gmra.mxu0 %v2273
      %v2697 = vpop.f32.mrf.mxu0
      %v2698 = vadd.f32 %v2644, %v2697
      %v2699 = vpop.f32.mrf.mxu0
      %v2700 = vadd.f32 %v2646, %v2699
      %2701 = vmatmul.bf16.gmra.mxu0 %v2282
      %v2702 = vpop.f32.mrf.mxu0
      %v2703 = vadd.f32 %v2649, %v2702
      %v2704 = vpop.f32.mrf.mxu0
      %v2705 = vadd.f32 %v2651, %v2704
      %2706 = vmatmul.bf16.gmra.mxu0 %v2291
      %v2707 = vpop.f32.mrf.mxu0
      %v2708 = vadd.f32 %v2654, %v2707
      %v2709 = vpop.f32.mrf.mxu0
      %v2710 = vadd.f32 %v2656, %v2709
      %2711 = vmatmul.bf16.gmra.mxu0 %v2300
      %v2712 = vpop.f32.mrf.mxu0
      %v2713 = vadd.f32 %v2659, %v2712
      %v2714 = vpop.f32.mrf.mxu0
      %v2715 = vadd.f32 %v2661, %v2714
      %2716 = vmatmul.bf16.gmra.mxu0 %v2309
      %v2717 = vpop.f32.mrf.mxu0
      %v2718 = vadd.f32 %v2664, %v2717
      %v2719 = vpop.f32.mrf.mxu0
      %v2720 = vadd.f32 %v2666, %v2719
      %2721 = vmatmul.bf16.gmra.mxu0 %v2318
      %v2722 = vpop.f32.mrf.mxu0
      %v2723 = vadd.f32 %v2669, %v2722
      %v2724 = vpop.f32.mrf.mxu0
      %v2725 = vadd.f32 %v2671, %v2724
      %2726 = vdwg.mxu0
      %2727 = vmatpush.bf16.msra.mxu0 %v1324
      %2728 = vmatpush.bf16.msra.mxu0 %v1323
      %2729 = vmatpush.bf16.msra.mxu0 %v1322
      %2730 = vmatpush.bf16.msra.mxu0 %v1321
      %2731 = vmatpush.bf16.msra.mxu0 %v1320
      %2732 = vmatpush.bf16.msra.mxu0 %v1319
      %2733 = vmatpush.bf16.msra.mxu0 %v1318
      %2734 = vmatpush.bf16.msra.mxu0 %v1317
      %2735 = vmatmul.bf16.gmra.mxu0 %v2247
      %v2736 = vpop.f32.mrf.mxu0
      %v2737 = vadd.f32 %v2683, %v2736
      %v2738 = vpop.f32.mrf.mxu0
      %v2739 = vadd.f32 %v2685, %v2738
      %2740 = vmatmul.bf16.gmra.mxu0 %v2256
      %v2741 = vpop.f32.mrf.mxu0
      %v2742 = vadd.f32 %v2688, %v2741
      %v2743 = vpop.f32.mrf.mxu0
      %v2744 = vadd.f32 %v2690, %v2743
      %2745 = vmatmul.bf16.gmra.mxu0 %v2265
      %v2746 = vpop.f32.mrf.mxu0
      %v2747 = vadd.f32 %v2693, %v2746
      %v2748 = vpop.f32.mrf.mxu0
      %v2749 = vadd.f32 %v2695, %v2748
      %2750 = vmatmul.bf16.gmra.mxu0 %v2274
      %v2751 = vpop.f32.mrf.mxu0
      %v2752 = vadd.f32 %v2698, %v2751
      %v2753 = vpop.f32.mrf.mxu0
      %v2754 = vadd.f32 %v2700, %v2753
      %2755 = vmatmul.bf16.gmra.mxu0 %v2283
      %v2756 = vpop.f32.mrf.mxu0
      %v2757 = vadd.f32 %v2703, %v2756
      %v2758 = vpop.f32.mrf.mxu0
      %v2759 = vadd.f32 %v2705, %v2758
      %2760 = vmatmul.bf16.gmra.mxu0 %v2292
      %v2761 = vpop.f32.mrf.mxu0
      %v2762 = vadd.f32 %v2708, %v2761
      %v2763 = vpop.f32.mrf.mxu0
      %v2764 = vadd.f32 %v2710, %v2763
      %2765 = vmatmul.bf16.gmra.mxu0 %v2301
      %v2766 = vpop.f32.mrf.mxu0
      %v2767 = vadd.f32 %v2713, %v2766
      %v2768 = vpop.f32.mrf.mxu0
      %v2769 = vadd.f32 %v2715, %v2768
      %2770 = vmatmul.bf16.gmra.mxu0 %v2310
      %v2771 = vpop.f32.mrf.mxu0
      %v2772 = vadd.f32 %v2718, %v2771
      %v2773 = vpop.f32.mrf.mxu0
      %v2774 = vadd.f32 %v2720, %v2773
      %2775 = vmatmul.bf16.gmra.mxu0 %v2319
      %v2776 = vpop.f32.mrf.mxu0
      %v2777 = vadd.f32 %v2723, %v2776
      %v2778 = vpop.f32.mrf.mxu0
      %v2779 = vadd.f32 %v2725, %v2778
      %2780 = vdwg.mxu0
      %2781 = vmatpush.bf16.msra.mxu0 %v1332
      %2782 = vmatpush.bf16.msra.mxu0 %v1331
      %2783 = vmatpush.bf16.msra.mxu0 %v1330
      %2784 = vmatpush.bf16.msra.mxu0 %v1329
      %2785 = vmatpush.bf16.msra.mxu0 %v1328
      %2786 = vmatpush.bf16.msra.mxu0 %v1327
      %2787 = vmatpush.bf16.msra.mxu0 %v1326
      %2788 = vmatpush.bf16.msra.mxu0 %v1325
      %2789 = vmatmul.bf16.gmra.mxu0 %v2248
      %v2790 = vpop.f32.mrf.mxu0
      %v2791 = vadd.f32 %v2737, %v2790
      %v2792 = vpop.f32.mrf.mxu0
      %v2793 = vadd.f32 %v2739, %v2792
      %2794 = vmatmul.bf16.gmra.mxu0 %v2257
      %v2795 = vpop.f32.mrf.mxu0
      %v2796 = vadd.f32 %v2742, %v2795
      %v2797 = vpop.f32.mrf.mxu0
      %v2798 = vadd.f32 %v2744, %v2797
      %2799 = vmatmul.bf16.gmra.mxu0 %v2266
      %v2800 = vpop.f32.mrf.mxu0
      %v2801 = vadd.f32 %v2747, %v2800
      %v2802 = vpop.f32.mrf.mxu0
      %v2803 = vadd.f32 %v2749, %v2802
      %2804 = vmatmul.bf16.gmra.mxu0 %v2275
      %v2805 = vpop.f32.mrf.mxu0
      %v2806 = vadd.f32 %v2752, %v2805
      %v2807 = vpop.f32.mrf.mxu0
      %v2808 = vadd.f32 %v2754, %v2807
      %2809 = vmatmul.bf16.gmra.mxu0 %v2284
      %v2810 = vpop.f32.mrf.mxu0
      %v2811 = vadd.f32 %v2757, %v2810
      %v2812 = vpop.f32.mrf.mxu0
      %v2813 = vadd.f32 %v2759, %v2812
      %2814 = vmatmul.bf16.gmra.mxu0 %v2293
      %v2815 = vpop.f32.mrf.mxu0
      %v2816 = vadd.f32 %v2762, %v2815
      %v2817 = vpop.f32.mrf.mxu0
      %v2818 = vadd.f32 %v2764, %v2817
      %2819 = vmatmul.bf16.gmra.mxu0 %v2302
      %v2820 = vpop.f32.mrf.mxu0
      %v2821 = vadd.f32 %v2767, %v2820
      %v2822 = vpop.f32.mrf.mxu0
      %v2823 = vadd.f32 %v2769, %v2822
      %2824 = vmatmul.bf16.gmra.mxu0 %v2311
      %v2825 = vpop.f32.mrf.mxu0
      %v2826 = vadd.f32 %v2772, %v2825
      %v2827 = vpop.f32.mrf.mxu0
      %v2828 = vadd.f32 %v2774, %v2827
      %2829 = vmatmul.bf16.gmra.mxu0 %v2320
      %v2830 = vpop.f32.mrf.mxu0
      %v2831 = vadd.f32 %v2777, %v2830
      %v2832 = vpop.f32.mrf.mxu0
      %v2833 = vadd.f32 %v2779, %v2832
      %2834 = vdwg.mxu0
      %2835 = vmatpush.bf16.msra.mxu0 %v1340
      %2836 = vmatpush.bf16.msra.mxu0 %v1339
      %2837 = vmatpush.bf16.msra.mxu0 %v1338
      %2838 = vmatpush.bf16.msra.mxu0 %v1337
      %2839 = vmatpush.bf16.msra.mxu0 %v1336
      %2840 = vmatpush.bf16.msra.mxu0 %v1335
      %2841 = vmatpush.bf16.msra.mxu0 %v1334
      %2842 = vmatpush.bf16.msra.mxu0 %v1333
      %2843 = vmatmul.bf16.gmra.mxu0 %v2249
      %v2844 = vpop.f32.mrf.mxu0
      %v2845 = vadd.f32 %v2791, %v2844
      %v2846 = vpop.f32.mrf.mxu0
      %v2847 = vadd.f32 %v2793, %v2846
      %2848 = vmatmul.bf16.gmra.mxu0 %v2258
      %v2849 = vpop.f32.mrf.mxu0
      %v2850 = vadd.f32 %v2796, %v2849
      %v2851 = vpop.f32.mrf.mxu0
      %v2852 = vadd.f32 %v2798, %v2851
      %2853 = vmatmul.bf16.gmra.mxu0 %v2267
      %v2854 = vpop.f32.mrf.mxu0
      %v2855 = vadd.f32 %v2801, %v2854
      %v2856 = vpop.f32.mrf.mxu0
      %v2857 = vadd.f32 %v2803, %v2856
      %2858 = vmatmul.bf16.gmra.mxu0 %v2276
      %v2859 = vpop.f32.mrf.mxu0
      %v2860 = vadd.f32 %v2806, %v2859
      %v2861 = vpop.f32.mrf.mxu0
      %v2862 = vadd.f32 %v2808, %v2861
      %2863 = vmatmul.bf16.gmra.mxu0 %v2285
      %v2864 = vpop.f32.mrf.mxu0
      %v2865 = vadd.f32 %v2811, %v2864
      %v2866 = vpop.f32.mrf.mxu0
      %v2867 = vadd.f32 %v2813, %v2866
      %2868 = vmatmul.bf16.gmra.mxu0 %v2294
      %v2869 = vpop.f32.mrf.mxu0
      %v2870 = vadd.f32 %v2816, %v2869
      %v2871 = vpop.f32.mrf.mxu0
      %v2872 = vadd.f32 %v2818, %v2871
      %2873 = vmatmul.bf16.gmra.mxu0 %v2303
      %v2874 = vpop.f32.mrf.mxu0
      %v2875 = vadd.f32 %v2821, %v2874
      %v2876 = vpop.f32.mrf.mxu0
      %v2877 = vadd.f32 %v2823, %v2876
      %2878 = vmatmul.bf16.gmra.mxu0 %v2312
      %v2879 = vpop.f32.mrf.mxu0
      %v2880 = vadd.f32 %v2826, %v2879
      %v2881 = vpop.f32.mrf.mxu0
      %v2882 = vadd.f32 %v2828, %v2881
      %2883 = vmatmul.bf16.gmra.mxu0 %v2321
      %v2884 = vpop.f32.mrf.mxu0
      %v2885 = vadd.f32 %v2831, %v2884
      %v2886 = vpop.f32.mrf.mxu0
      %v2887 = vadd.f32 %v2833, %v2886
      %2888 = vdwg.mxu0
      %v2889 = vmax.f32 %v1855, %v2845
      %v2890 = vmax.f32 %v1857, %v2847
      %v2891 = vmax.f32 %v1860, %v2850
      %v2892 = vmax.f32 %v1862, %v2852
      %v2893 = vmax.f32 %v1865, %v2855
      %v2894 = vmax.f32 %v1867, %v2857
      %v2895 = vmax.f32 %v1870, %v2860
      %v2896 = vmax.f32 %v1872, %v2862
      %v2897 = vmax.f32 %v1875, %v2865
      %v2898 = vmax.f32 %v1877, %v2867
      %v2899 = vmax.f32 %v1880, %v2870
      %v2900 = vmax.f32 %v1882, %v2872
      %v2901 = vmax.f32 %v1885, %v2875
      %v2902 = vmax.f32 %v1887, %v2877
      %v2903 = vmax.f32 %v1890, %v2880
      %v2904 = vmax.f32 %v1892, %v2882
      %v2905 = vmax.f32 %v1895, %v2885
      %v2906 = vmax.f32 %v1897, %v2887
      %v2907 = vld [vmem:[%s318] sm:$0xff]
      %v2908 = vld [vmem:[%s318 + $0x8] sm:$0xff]
      %v2909 = vld [vmem:[%s318 + $0x10] sm:$0xff]
      %v2910 = vld [vmem:[%s318 + $0x18] sm:$0xff]
      %v2911 = vld [vmem:[%s318 + $0x20] sm:$0xf]
      %v2912 = vld [vmem:[%s318 + $0x24] sm:$0xff]
      %v2913 = vld [vmem:[%s318 + $0x2c] sm:$0xff]
      %v2914 = vld [vmem:[%s318 + $0x34] sm:$0xff]
      %v2915 = vld [vmem:[%s318 + $0x3c] sm:$0xff]
      %v2916 = vld [vmem:[%s318 + $0x44] sm:$0xf]
      %v2917 = vld [vmem:[%s318 + $0x48] sm:$0xff]
      %v2918 = vld [vmem:[%s318 + $0x50] sm:$0xff]
      %v2919 = vld [vmem:[%s318 + $0x58] sm:$0xff]
      %v2920 = vld [vmem:[%s318 + $0x60] sm:$0xff]
      %v2921 = vld [vmem:[%s318 + $0x68] sm:$0xf]
      %v2922 = vld [vmem:[%s318 + $0x6c] sm:$0xff]
      %v2923 = vld [vmem:[%s318 + $0x74] sm:$0xff]
      %v2924 = vld [vmem:[%s318 + $0x7c] sm:$0xff]
      %v2925 = vld [vmem:[%s318 + $0x84] sm:$0xff]
      %v2926 = vld [vmem:[%s318 + $0x8c] sm:$0xf]
      %v2927 = vld [vmem:[%s318 + $0x90] sm:$0xff]
      %v2928 = vld [vmem:[%s318 + $0x98] sm:$0xff]
      %v2929 = vld [vmem:[%s318 + $0xa0] sm:$0xff]
      %v2930 = vld [vmem:[%s318 + $0xa8] sm:$0xff]
      %v2931 = vld [vmem:[%s318 + $0xb0] sm:$0xf]
      %v2932 = vld [vmem:[%s318 + $0xb4] sm:$0xff]
      %v2933 = vld [vmem:[%s318 + $0xbc] sm:$0xff]
      %v2934 = vld [vmem:[%s318 + $0xc4] sm:$0xff]
      %v2935 = vld [vmem:[%s318 + $0xcc] sm:$0xff]
      %v2936 = vld [vmem:[%s318 + $0xd4] sm:$0xf]
      %v2937 = vld [vmem:[%s318 + $0xd8] sm:$0xff]
      %v2938 = vld [vmem:[%s318 + $0xe0] sm:$0xff]
      %v2939 = vld [vmem:[%s318 + $0xe8] sm:$0xff]
      %v2940 = vld [vmem:[%s318 + $0xf0] sm:$0xff]
      %v2941 = vld [vmem:[%s318 + $0xf8] sm:$0xf]
      %v2942 = vld [vmem:[%s318 + $0xfc] sm:$0xff]
      %v2943 = vld [vmem:[%s318 + $0x104] sm:$0xff]
      %v2944 = vld [vmem:[%s318 + $0x10c] sm:$0xff]
      %v2945 = vld [vmem:[%s318 + $0x114] sm:$0xff]
      %v2946 = vld [vmem:[%s318 + $0x11c] sm:$0xf]
      %v2947 = vld [vmem:[%s318 + $0x120] sm:$0xff]
      %v2948 = vld [vmem:[%s318 + $0x128] sm:$0xff]
      %v2949 = vld [vmem:[%s318 + $0x130] sm:$0xff]
      %v2950 = vld [vmem:[%s318 + $0x138] sm:$0xff]
      %v2951 = vld [vmem:[%s318 + $0x140] sm:$0xf]
      %v2952 = vld [vmem:[%s318 + $0x144] sm:$0xff]
      %v2953 = vld [vmem:[%s318 + $0x14c] sm:$0xff]
      %v2954 = vld [vmem:[%s318 + $0x154] sm:$0xff]
      %v2955 = vld [vmem:[%s318 + $0x15c] sm:$0xff]
      %v2956 = vld [vmem:[%s318 + $0x164] sm:$0xf]
      %v2957 = vld [vmem:[%s318 + $0x168] sm:$0xff]
      %v2958 = vld [vmem:[%s318 + $0x170] sm:$0xff]
      %v2959 = vld [vmem:[%s318 + $0x178] sm:$0xff]
      %v2960 = vld [vmem:[%s318 + $0x180] sm:$0xff]
      %v2961 = vld [vmem:[%s318 + $0x188] sm:$0xf]
      %v2962 = vld [vmem:[%s318 + $0x18c] sm:$0xff]
      %v2963 = vld [vmem:[%s318 + $0x194] sm:$0xff]
      %v2964 = vld [vmem:[%s318 + $0x19c] sm:$0xff]
      %v2965 = vld [vmem:[%s318 + $0x1a4] sm:$0xff]
      %v2966 = vld [vmem:[%s318 + $0x1ac] sm:$0xf]
      %v2967 = vld [vmem:[%s318 + $0x1b0] sm:$0xff]
      %v2968 = vld [vmem:[%s318 + $0x1b8] sm:$0xff]
      %v2969 = vld [vmem:[%s318 + $0x1c0] sm:$0xff]
      %v2970 = vld [vmem:[%s318 + $0x1c8] sm:$0xff]
      %v2971 = vld [vmem:[%s318 + $0x1d0] sm:$0xf]
      %v2972 = vld [vmem:[%s318 + $0x1d4] sm:$0xff]
      %v2973 = vld [vmem:[%s318 + $0x1dc] sm:$0xff]
      %v2974 = vld [vmem:[%s318 + $0x1e4] sm:$0xff]
      %v2975 = vld [vmem:[%s318 + $0x1ec] sm:$0xff]
      %v2976 = vld [vmem:[%s318 + $0x1f4] sm:$0xf]
      %v2977 = vld [vmem:[%s318 + $0x1f8] sm:$0xff]
      %v2978 = vld [vmem:[%s318 + $0x200] sm:$0xff]
      %v2979 = vld [vmem:[%s318 + $0x208] sm:$0xff]
      %v2980 = vld [vmem:[%s318 + $0x210] sm:$0xff]
      %v2981 = vld [vmem:[%s318 + $0x218] sm:$0xf]
      %v2982 = vld [vmem:[%s318 + $0x21c] sm:$0xff]
      %v2983 = vld [vmem:[%s318 + $0x224] sm:$0xff]
      %v2984 = vld [vmem:[%s318 + $0x22c] sm:$0xff]
      %v2985 = vld [vmem:[%s318 + $0x234] sm:$0xff]
      %v2986 = vld [vmem:[%s318 + $0x23c] sm:$0xf]
      %v2987 = vld [vmem:[%s318 + $0x240] sm:$0xff]
      %v2988 = vld [vmem:[%s318 + $0x248] sm:$0xff]
      %v2989 = vld [vmem:[%s318 + $0x250] sm:$0xff]
      %v2990 = vld [vmem:[%s318 + $0x258] sm:$0xff]
      %v2991 = vld [vmem:[%s318 + $0x260] sm:$0xf]
      %v2992 = vld [vmem:[%s318 + $0x264] sm:$0xff]
      %v2993 = vld [vmem:[%s318 + $0x26c] sm:$0xff]
      %v2994 = vld [vmem:[%s318 + $0x274] sm:$0xff]
      %v2995 = vld [vmem:[%s318 + $0x27c] sm:$0xff]
      %v2996 = vld [vmem:[%s318 + $0x284] sm:$0xf]
      %v3087 = vunpack.c.l.b16 %v2907
      %v3088 = vunpack.c.h.b16 %v2907
      %v3089 = vunpack.c.l.b16 %v2908
      %v3090 = vunpack.c.h.b16 %v2908
      %v3091 = vunpack.c.l.b16 %v2909
      %v3092 = vunpack.c.h.b16 %v2909
      %v3093 = vunpack.c.l.b16 %v2910
      %v3094 = vunpack.c.h.b16 %v2910
      %v3095 = vunpack.c.l.b16 %v2911
      %v3096 = vunpack.c.l.b16 %v2912
      %v3097 = vunpack.c.h.b16 %v2912
      %v3098 = vunpack.c.l.b16 %v2913
      %v3099 = vunpack.c.h.b16 %v2913
      %v3100 = vunpack.c.l.b16 %v2914
      %v3101 = vunpack.c.h.b16 %v2914
      %v3102 = vunpack.c.l.b16 %v2915
      %v3103 = vunpack.c.h.b16 %v2915
      %v3104 = vunpack.c.l.b16 %v2916
      %v3105 = vunpack.c.l.b16 %v2917
      %v3106 = vunpack.c.h.b16 %v2917
      %v3107 = vunpack.c.l.b16 %v2918
      %v3108 = vunpack.c.h.b16 %v2918
      %v3109 = vunpack.c.l.b16 %v2919
      %v3110 = vunpack.c.h.b16 %v2919
      %v3111 = vunpack.c.l.b16 %v2920
      %v3112 = vunpack.c.h.b16 %v2920
      %v3113 = vunpack.c.l.b16 %v2921
      %v3114 = vunpack.c.l.b16 %v2922
      %v3115 = vunpack.c.h.b16 %v2922
      %v3116 = vunpack.c.l.b16 %v2923
      %v3117 = vunpack.c.h.b16 %v2923
      %v3118 = vunpack.c.l.b16 %v2924
      %v3119 = vunpack.c.h.b16 %v2924
      %v3120 = vunpack.c.l.b16 %v2925
      %v3121 = vunpack.c.h.b16 %v2925
      %v3122 = vunpack.c.l.b16 %v2926
      %v3123 = vunpack.c.l.b16 %v2927
      %v3124 = vunpack.c.h.b16 %v2927
      %v3125 = vunpack.c.l.b16 %v2928
      %v3126 = vunpack.c.h.b16 %v2928
      %v3127 = vunpack.c.l.b16 %v2929
      %v3128 = vunpack.c.h.b16 %v2929
      %v3129 = vunpack.c.l.b16 %v2930
      %v3130 = vunpack.c.h.b16 %v2930
      %v3131 = vunpack.c.l.b16 %v2931
      %v3132 = vunpack.c.l.b16 %v2932
      %v3133 = vunpack.c.h.b16 %v2932
      %v3134 = vunpack.c.l.b16 %v2933
      %v3135 = vunpack.c.h.b16 %v2933
      %v3136 = vunpack.c.l.b16 %v2934
      %v3137 = vunpack.c.h.b16 %v2934
      %v3138 = vunpack.c.l.b16 %v2935
      %v3139 = vunpack.c.h.b16 %v2935
      %v3140 = vunpack.c.l.b16 %v2936
      %v3141 = vunpack.c.l.b16 %v2937
      %v3142 = vunpack.c.h.b16 %v2937
      %v3143 = vunpack.c.l.b16 %v2938
      %v3144 = vunpack.c.h.b16 %v2938
      %v3145 = vunpack.c.l.b16 %v2939
      %v3146 = vunpack.c.h.b16 %v2939
      %v3147 = vunpack.c.l.b16 %v2940
      %v3148 = vunpack.c.h.b16 %v2940
      %v3149 = vunpack.c.l.b16 %v2941
      %v3150 = vunpack.c.l.b16 %v2942
      %v3151 = vunpack.c.h.b16 %v2942
      %v3152 = vunpack.c.l.b16 %v2943
      %v3153 = vunpack.c.h.b16 %v2943
      %v3154 = vunpack.c.l.b16 %v2944
      %v3155 = vunpack.c.h.b16 %v2944
      %v3156 = vunpack.c.l.b16 %v2945
      %v3157 = vunpack.c.h.b16 %v2945
      %v3158 = vunpack.c.l.b16 %v2946
      %v3159 = vunpack.c.l.b16 %v2947
      %v3160 = vunpack.c.h.b16 %v2947
      %v3161 = vunpack.c.l.b16 %v2948
      %v3162 = vunpack.c.h.b16 %v2948
      %v3163 = vunpack.c.l.b16 %v2949
      %v3164 = vunpack.c.h.b16 %v2949
      %v3165 = vunpack.c.l.b16 %v2950
      %v3166 = vunpack.c.h.b16 %v2950
      %v3167 = vunpack.c.l.b16 %v2951
      %v3168 = vunpack.c.l.b16 %v2952
      %v3169 = vunpack.c.h.b16 %v2952
      %v3170 = vunpack.c.l.b16 %v2953
      %v3171 = vunpack.c.h.b16 %v2953
      %v3172 = vunpack.c.l.b16 %v2954
      %v3173 = vunpack.c.h.b16 %v2954
      %v3174 = vunpack.c.l.b16 %v2955
      %v3175 = vunpack.c.h.b16 %v2955
      %v3176 = vunpack.c.l.b16 %v2956
      %v3177 = vunpack.c.l.b16 %v2957
      %v3178 = vunpack.c.h.b16 %v2957
      %v3179 = vunpack.c.l.b16 %v2958
      %v3180 = vunpack.c.h.b16 %v2958
      %v3181 = vunpack.c.l.b16 %v2959
      %v3182 = vunpack.c.h.b16 %v2959
      %v3183 = vunpack.c.l.b16 %v2960
      %v3184 = vunpack.c.h.b16 %v2960
      %v3185 = vunpack.c.l.b16 %v2961
      %v3186 = vunpack.c.l.b16 %v2962
      %v3187 = vunpack.c.h.b16 %v2962
      %v3188 = vunpack.c.l.b16 %v2963
      %v3189 = vunpack.c.h.b16 %v2963
      %v3190 = vunpack.c.l.b16 %v2964
      %v3191 = vunpack.c.h.b16 %v2964
      %v3192 = vunpack.c.l.b16 %v2965
      %v3193 = vunpack.c.h.b16 %v2965
      %v3194 = vunpack.c.l.b16 %v2966
      %v3195 = vunpack.c.l.b16 %v2967
      %v3196 = vunpack.c.h.b16 %v2967
      %v3197 = vunpack.c.l.b16 %v2968
      %v3198 = vunpack.c.h.b16 %v2968
      %v3199 = vunpack.c.l.b16 %v2969
      %v3200 = vunpack.c.h.b16 %v2969
      %v3201 = vunpack.c.l.b16 %v2970
      %v3202 = vunpack.c.h.b16 %v2970
      %v3203 = vunpack.c.l.b16 %v2971
      %v3204 = vunpack.c.l.b16 %v2972
      %v3205 = vunpack.c.h.b16 %v2972
      %v3206 = vunpack.c.l.b16 %v2973
      %v3207 = vunpack.c.h.b16 %v2973
      %v3208 = vunpack.c.l.b16 %v2974
      %v3209 = vunpack.c.h.b16 %v2974
      %v3210 = vunpack.c.l.b16 %v2975
      %v3211 = vunpack.c.h.b16 %v2975
      %v3212 = vunpack.c.l.b16 %v2976
      %v3213 = vunpack.c.l.b16 %v2977
      %v3214 = vunpack.c.h.b16 %v2977
      %v3215 = vunpack.c.l.b16 %v2978
      %v3216 = vunpack.c.h.b16 %v2978
      %v3217 = vunpack.c.l.b16 %v2979
      %v3218 = vunpack.c.h.b16 %v2979
      %v3219 = vunpack.c.l.b16 %v2980
      %v3220 = vunpack.c.h.b16 %v2980
      %v3221 = vunpack.c.l.b16 %v2981
      %v3222 = vunpack.c.l.b16 %v2982
      %v3223 = vunpack.c.h.b16 %v2982
      %v3224 = vunpack.c.l.b16 %v2983
      %v3225 = vunpack.c.h.b16 %v2983
      %v3226 = vunpack.c.l.b16 %v2984
      %v3227 = vunpack.c.h.b16 %v2984
      %v3228 = vunpack.c.l.b16 %v2985
      %v3229 = vunpack.c.h.b16 %v2985
      %v3230 = vunpack.c.l.b16 %v2986
      %v3231 = vunpack.c.l.b16 %v2987
      %v3232 = vunpack.c.h.b16 %v2987
      %v3233 = vunpack.c.l.b16 %v2988
      %v3234 = vunpack.c.h.b16 %v2988
      %v3235 = vunpack.c.l.b16 %v2989
      %v3236 = vunpack.c.h.b16 %v2989
      %v3237 = vunpack.c.l.b16 %v2990
      %v3238 = vunpack.c.h.b16 %v2990
      %v3239 = vunpack.c.l.b16 %v2991
      %v3240 = vunpack.c.l.b16 %v2992
      %v3241 = vunpack.c.h.b16 %v2992
      %v3242 = vunpack.c.l.b16 %v2993
      %v3243 = vunpack.c.h.b16 %v2993
      %v3244 = vunpack.c.l.b16 %v2994
      %v3245 = vunpack.c.h.b16 %v2994
      %v3246 = vunpack.c.l.b16 %v2995
      %v3247 = vunpack.c.h.b16 %v2995
      %v3248 = vunpack.c.l.b16 %v2996
      %v3249 = vpack.c.b16 %v3096, %v3087
      %v3250 = vpack.c.b16 %v3097, %v3088
      %v3251 = vpack.c.b16 %v3098, %v3089
      %v3252 = vpack.c.b16 %v3099, %v3090
      %v3253 = vpack.c.b16 %v3100, %v3091
      %v3254 = vpack.c.b16 %v3101, %v3092
      %v3255 = vpack.c.b16 %v3102, %v3093
      %v3256 = vpack.c.b16 %v3103, %v3094
      %v3257 = vpack.c.b16 %v3104, %v3095
      %v3258 = vpack.c.b16 %v3114, %v3105
      %v3259 = vpack.c.b16 %v3115, %v3106
      %v3260 = vpack.c.b16 %v3116, %v3107
      %v3261 = vpack.c.b16 %v3117, %v3108
      %v3262 = vpack.c.b16 %v3118, %v3109
      %v3263 = vpack.c.b16 %v3119, %v3110
      %v3264 = vpack.c.b16 %v3120, %v3111
      %v3265 = vpack.c.b16 %v3121, %v3112
      %v3266 = vpack.c.b16 %v3122, %v3113
      %v3267 = vpack.c.b16 %v3132, %v3123
      %v3268 = vpack.c.b16 %v3133, %v3124
      %v3269 = vpack.c.b16 %v3134, %v3125
      %v3270 = vpack.c.b16 %v3135, %v3126
      %v3271 = vpack.c.b16 %v3136, %v3127
      %v3272 = vpack.c.b16 %v3137, %v3128
      %v3273 = vpack.c.b16 %v3138, %v3129
      %v3274 = vpack.c.b16 %v3139, %v3130
      %v3275 = vpack.c.b16 %v3140, %v3131
      %v3276 = vpack.c.b16 %v3150, %v3141
      %v3277 = vpack.c.b16 %v3151, %v3142
      %v3278 = vpack.c.b16 %v3152, %v3143
      %v3279 = vpack.c.b16 %v3153, %v3144
      %v3280 = vpack.c.b16 %v3154, %v3145
      %v3281 = vpack.c.b16 %v3155, %v3146
      %v3282 = vpack.c.b16 %v3156, %v3147
      %v3283 = vpack.c.b16 %v3157, %v3148
      %v3284 = vpack.c.b16 %v3158, %v3149
      %v3285 = vpack.c.b16 %v3168, %v3159
      %v3286 = vpack.c.b16 %v3169, %v3160
      %v3287 = vpack.c.b16 %v3170, %v3161
      %v3288 = vpack.c.b16 %v3171, %v3162
      %v3289 = vpack.c.b16 %v3172, %v3163
      %v3290 = vpack.c.b16 %v3173, %v3164
      %v3291 = vpack.c.b16 %v3174, %v3165
      %v3292 = vpack.c.b16 %v3175, %v3166
      %v3293 = vpack.c.b16 %v3176, %v3167
      %v3294 = vpack.c.b16 %v3186, %v3177
      %v3295 = vpack.c.b16 %v3187, %v3178
      %v3296 = vpack.c.b16 %v3188, %v3179
      %v3297 = vpack.c.b16 %v3189, %v3180
      %v3298 = vpack.c.b16 %v3190, %v3181
      %v3299 = vpack.c.b16 %v3191, %v3182
      %v3300 = vpack.c.b16 %v3192, %v3183
      %v3301 = vpack.c.b16 %v3193, %v3184
      %v3302 = vpack.c.b16 %v3194, %v3185
      %v3303 = vpack.c.b16 %v3204, %v3195
      %v3304 = vpack.c.b16 %v3205, %v3196
      %v3305 = vpack.c.b16 %v3206, %v3197
      %v3306 = vpack.c.b16 %v3207, %v3198
      %v3307 = vpack.c.b16 %v3208, %v3199
      %v3308 = vpack.c.b16 %v3209, %v3200
      %v3309 = vpack.c.b16 %v3210, %v3201
      %v3310 = vpack.c.b16 %v3211, %v3202
      %v3311 = vpack.c.b16 %v3212, %v3203
      %v3312 = vpack.c.b16 %v3222, %v3213
      %v3313 = vpack.c.b16 %v3223, %v3214
      %v3314 = vpack.c.b16 %v3224, %v3215
      %v3315 = vpack.c.b16 %v3225, %v3216
      %v3316 = vpack.c.b16 %v3226, %v3217
      %v3317 = vpack.c.b16 %v3227, %v3218
      %v3318 = vpack.c.b16 %v3228, %v3219
      %v3319 = vpack.c.b16 %v3229, %v3220
      %v3320 = vpack.c.b16 %v3230, %v3221
      %v3321 = vpack.c.b16 %v3240, %v3231
      %v3322 = vpack.c.b16 %v3241, %v3232
      %v3323 = vpack.c.b16 %v3242, %v3233
      %v3324 = vpack.c.b16 %v3243, %v3234
      %v3325 = vpack.c.b16 %v3244, %v3235
      %v3326 = vpack.c.b16 %v3245, %v3236
      %v3327 = vpack.c.b16 %v3246, %v3237
      %v3328 = vpack.c.b16 %v3247, %v3238
      %v3329 = vpack.c.b16 %v3248, %v3239
      %3411 = vmatpush.bf16.msra.mxu0 %v1276
      %3412 = vmatpush.bf16.msra.mxu0 %v1275
      %3413 = vmatpush.bf16.msra.mxu0 %v1274
      %3414 = vmatpush.bf16.msra.mxu0 %v1273
      %3415 = vmatpush.bf16.msra.mxu0 %v1272
      %3416 = vmatpush.bf16.msra.mxu0 %v1271
      %3417 = vmatpush.bf16.msra.mxu0 %v1270
      %3418 = vmatpush.bf16.msra.mxu0 %v1269
      %3419 = vmatmul.bf16.gmra.mxu0 %v3249
      %v3420 = vpop.f32.mrf.mxu0
      %v3421 = vadd.f32 0.0, %v3420
      %v3422 = vpop.f32.mrf.mxu0
      %v3423 = vadd.f32 0.0, %v3422
      %3424 = vmatmul.bf16.gmra.mxu0 %v3258
      %v3425 = vpop.f32.mrf.mxu0
      %v3426 = vadd.f32 0.0, %v3425
      %v3427 = vpop.f32.mrf.mxu0
      %v3428 = vadd.f32 0.0, %v3427
      %3429 = vmatmul.bf16.gmra.mxu0 %v3267
      %v3430 = vpop.f32.mrf.mxu0
      %v3431 = vadd.f32 0.0, %v3430
      %v3432 = vpop.f32.mrf.mxu0
      %v3433 = vadd.f32 0.0, %v3432
      %3434 = vmatmul.bf16.gmra.mxu0 %v3276
      %v3435 = vpop.f32.mrf.mxu0
      %v3436 = vadd.f32 0.0, %v3435
      %v3437 = vpop.f32.mrf.mxu0
      %v3438 = vadd.f32 0.0, %v3437
      %3439 = vmatmul.bf16.gmra.mxu0 %v3285
      %v3440 = vpop.f32.mrf.mxu0
      %v3441 = vadd.f32 0.0, %v3440
      %v3442 = vpop.f32.mrf.mxu0
      %v3443 = vadd.f32 0.0, %v3442
      %3444 = vmatmul.bf16.gmra.mxu0 %v3294
      %v3445 = vpop.f32.mrf.mxu0
      %v3446 = vadd.f32 0.0, %v3445
      %v3447 = vpop.f32.mrf.mxu0
      %v3448 = vadd.f32 0.0, %v3447
      %3449 = vmatmul.bf16.gmra.mxu0 %v3303
      %v3450 = vpop.f32.mrf.mxu0
      %v3451 = vadd.f32 0.0, %v3450
      %v3452 = vpop.f32.mrf.mxu0
      %v3453 = vadd.f32 0.0, %v3452
      %3454 = vmatmul.bf16.gmra.mxu0 %v3312
      %v3455 = vpop.f32.mrf.mxu0
      %v3456 = vadd.f32 0.0, %v3455
      %v3457 = vpop.f32.mrf.mxu0
      %v3458 = vadd.f32 0.0, %v3457
      %3459 = vmatmul.bf16.gmra.mxu0 %v3321
      %v3460 = vpop.f32.mrf.mxu0
      %v3461 = vadd.f32 0.0, %v3460
      %v3462 = vpop.f32.mrf.mxu0
      %v3463 = vadd.f32 0.0, %v3462
      %3464 = vdwg.mxu0
      %3465 = vmatpush.bf16.msra.mxu0 %v1284
      %3466 = vmatpush.bf16.msra.mxu0 %v1283
      %3467 = vmatpush.bf16.msra.mxu0 %v1282
      %3468 = vmatpush.bf16.msra.mxu0 %v1281
      %3469 = vmatpush.bf16.msra.mxu0 %v1280
      %3470 = vmatpush.bf16.msra.mxu0 %v1279
      %3471 = vmatpush.bf16.msra.mxu0 %v1278
      %3472 = vmatpush.bf16.msra.mxu0 %v1277
      %3473 = vmatmul.bf16.gmra.mxu0 %v3250
      %v3474 = vpop.f32.mrf.mxu0
      %v3475 = vadd.f32 %v3421, %v3474
      %v3476 = vpop.f32.mrf.mxu0
      %v3477 = vadd.f32 %v3423, %v3476
      %3478 = vmatmul.bf16.gmra.mxu0 %v3259
      %v3479 = vpop.f32.mrf.mxu0
      %v3480 = vadd.f32 %v3426, %v3479
      %v3481 = vpop.f32.mrf.mxu0
      %v3482 = vadd.f32 %v3428, %v3481
      %3483 = vmatmul.bf16.gmra.mxu0 %v3268
      %v3484 = vpop.f32.mrf.mxu0
      %v3485 = vadd.f32 %v3431, %v3484
      %v3486 = vpop.f32.mrf.mxu0
      %v3487 = vadd.f32 %v3433, %v3486
      %3488 = vmatmul.bf16.gmra.mxu0 %v3277
      %v3489 = vpop.f32.mrf.mxu0
      %v3490 = vadd.f32 %v3436, %v3489
      %v3491 = vpop.f32.mrf.mxu0
      %v3492 = vadd.f32 %v3438, %v3491
      %3493 = vmatmul.bf16.gmra.mxu0 %v3286
      %v3494 = vpop.f32.mrf.mxu0
      %v3495 = vadd.f32 %v3441, %v3494
      %v3496 = vpop.f32.mrf.mxu0
      %v3497 = vadd.f32 %v3443, %v3496
      %3498 = vmatmul.bf16.gmra.mxu0 %v3295
      %v3499 = vpop.f32.mrf.mxu0
      %v3500 = vadd.f32 %v3446, %v3499
      %v3501 = vpop.f32.mrf.mxu0
      %v3502 = vadd.f32 %v3448, %v3501
      %3503 = vmatmul.bf16.gmra.mxu0 %v3304
      %v3504 = vpop.f32.mrf.mxu0
      %v3505 = vadd.f32 %v3451, %v3504
      %v3506 = vpop.f32.mrf.mxu0
      %v3507 = vadd.f32 %v3453, %v3506
      %3508 = vmatmul.bf16.gmra.mxu0 %v3313
      %v3509 = vpop.f32.mrf.mxu0
      %v3510 = vadd.f32 %v3456, %v3509
      %v3511 = vpop.f32.mrf.mxu0
      %v3512 = vadd.f32 %v3458, %v3511
      %3513 = vmatmul.bf16.gmra.mxu0 %v3322
      %v3514 = vpop.f32.mrf.mxu0
      %v3515 = vadd.f32 %v3461, %v3514
      %v3516 = vpop.f32.mrf.mxu0
      %v3517 = vadd.f32 %v3463, %v3516
      %3518 = vdwg.mxu0
      %3519 = vmatpush.bf16.msra.mxu0 %v1292
      %3520 = vmatpush.bf16.msra.mxu0 %v1291
      %3521 = vmatpush.bf16.msra.mxu0 %v1290
      %3522 = vmatpush.bf16.msra.mxu0 %v1289
      %3523 = vmatpush.bf16.msra.mxu0 %v1288
      %3524 = vmatpush.bf16.msra.mxu0 %v1287
      %3525 = vmatpush.bf16.msra.mxu0 %v1286
      %3526 = vmatpush.bf16.msra.mxu0 %v1285
      %3527 = vmatmul.bf16.gmra.mxu0 %v3251
      %v3528 = vpop.f32.mrf.mxu0
      %v3529 = vadd.f32 %v3475, %v3528
      %v3530 = vpop.f32.mrf.mxu0
      %v3531 = vadd.f32 %v3477, %v3530
      %3532 = vmatmul.bf16.gmra.mxu0 %v3260
      %v3533 = vpop.f32.mrf.mxu0
      %v3534 = vadd.f32 %v3480, %v3533
      %v3535 = vpop.f32.mrf.mxu0
      %v3536 = vadd.f32 %v3482, %v3535
      %3537 = vmatmul.bf16.gmra.mxu0 %v3269
      %v3538 = vpop.f32.mrf.mxu0
      %v3539 = vadd.f32 %v3485, %v3538
      %v3540 = vpop.f32.mrf.mxu0
      %v3541 = vadd.f32 %v3487, %v3540
      %3542 = vmatmul.bf16.gmra.mxu0 %v3278
      %v3543 = vpop.f32.mrf.mxu0
      %v3544 = vadd.f32 %v3490, %v3543
      %v3545 = vpop.f32.mrf.mxu0
      %v3546 = vadd.f32 %v3492, %v3545
      %3547 = vmatmul.bf16.gmra.mxu0 %v3287
      %v3548 = vpop.f32.mrf.mxu0
      %v3549 = vadd.f32 %v3495, %v3548
      %v3550 = vpop.f32.mrf.mxu0
      %v3551 = vadd.f32 %v3497, %v3550
      %3552 = vmatmul.bf16.gmra.mxu0 %v3296
      %v3553 = vpop.f32.mrf.mxu0
      %v3554 = vadd.f32 %v3500, %v3553
      %v3555 = vpop.f32.mrf.mxu0
      %v3556 = vadd.f32 %v3502, %v3555
      %3557 = vmatmul.bf16.gmra.mxu0 %v3305
      %v3558 = vpop.f32.mrf.mxu0
      %v3559 = vadd.f32 %v3505, %v3558
      %v3560 = vpop.f32.mrf.mxu0
      %v3561 = vadd.f32 %v3507, %v3560
      %3562 = vmatmul.bf16.gmra.mxu0 %v3314
      %v3563 = vpop.f32.mrf.mxu0
      %v3564 = vadd.f32 %v3510, %v3563
      %v3565 = vpop.f32.mrf.mxu0
      %v3566 = vadd.f32 %v3512, %v3565
      %3567 = vmatmul.bf16.gmra.mxu0 %v3323
      %v3568 = vpop.f32.mrf.mxu0
      %v3569 = vadd.f32 %v3515, %v3568
      %v3570 = vpop.f32.mrf.mxu0
      %v3571 = vadd.f32 %v3517, %v3570
      %3572 = vdwg.mxu0
      %3573 = vmatpush.bf16.msra.mxu0 %v1300
      %3574 = vmatpush.bf16.msra.mxu0 %v1299
      %3575 = vmatpush.bf16.msra.mxu0 %v1298
      %3576 = vmatpush.bf16.msra.mxu0 %v1297
      %3577 = vmatpush.bf16.msra.mxu0 %v1296
      %3578 = vmatpush.bf16.msra.mxu0 %v1295
      %3579 = vmatpush.bf16.msra.mxu0 %v1294
      %3580 = vmatpush.bf16.msra.mxu0 %v1293
      %3581 = vmatmul.bf16.gmra.mxu0 %v3252
      %v3582 = vpop.f32.mrf.mxu0
      %v3583 = vadd.f32 %v3529, %v3582
      %v3584 = vpop.f32.mrf.mxu0
      %v3585 = vadd.f32 %v3531, %v3584
      %3586 = vmatmul.bf16.gmra.mxu0 %v3261
      %v3587 = vpop.f32.mrf.mxu0
      %v3588 = vadd.f32 %v3534, %v3587
      %v3589 = vpop.f32.mrf.mxu0
      %v3590 = vadd.f32 %v3536, %v3589
      %3591 = vmatmul.bf16.gmra.mxu0 %v3270
      %v3592 = vpop.f32.mrf.mxu0
      %v3593 = vadd.f32 %v3539, %v3592
      %v3594 = vpop.f32.mrf.mxu0
      %v3595 = vadd.f32 %v3541, %v3594
      %3596 = vmatmul.bf16.gmra.mxu0 %v3279
      %v3597 = vpop.f32.mrf.mxu0
      %v3598 = vadd.f32 %v3544, %v3597
      %v3599 = vpop.f32.mrf.mxu0
      %v3600 = vadd.f32 %v3546, %v3599
      %3601 = vmatmul.bf16.gmra.mxu0 %v3288
      %v3602 = vpop.f32.mrf.mxu0
      %v3603 = vadd.f32 %v3549, %v3602
      %v3604 = vpop.f32.mrf.mxu0
      %v3605 = vadd.f32 %v3551, %v3604
      %3606 = vmatmul.bf16.gmra.mxu0 %v3297
      %v3607 = vpop.f32.mrf.mxu0
      %v3608 = vadd.f32 %v3554, %v3607
      %v3609 = vpop.f32.mrf.mxu0
      %v3610 = vadd.f32 %v3556, %v3609
      %3611 = vmatmul.bf16.gmra.mxu0 %v3306
      %v3612 = vpop.f32.mrf.mxu0
      %v3613 = vadd.f32 %v3559, %v3612
      %v3614 = vpop.f32.mrf.mxu0
      %v3615 = vadd.f32 %v3561, %v3614
      %3616 = vmatmul.bf16.gmra.mxu0 %v3315
      %v3617 = vpop.f32.mrf.mxu0
      %v3618 = vadd.f32 %v3564, %v3617
      %v3619 = vpop.f32.mrf.mxu0
      %v3620 = vadd.f32 %v3566, %v3619
      %3621 = vmatmul.bf16.gmra.mxu0 %v3324
      %v3622 = vpop.f32.mrf.mxu0
      %v3623 = vadd.f32 %v3569, %v3622
      %v3624 = vpop.f32.mrf.mxu0
      %v3625 = vadd.f32 %v3571, %v3624
      %3626 = vdwg.mxu0
      %3627 = vmatpush.bf16.msra.mxu0 %v1308
      %3628 = vmatpush.bf16.msra.mxu0 %v1307
      %3629 = vmatpush.bf16.msra.mxu0 %v1306
      %3630 = vmatpush.bf16.msra.mxu0 %v1305
      %3631 = vmatpush.bf16.msra.mxu0 %v1304
      %3632 = vmatpush.bf16.msra.mxu0 %v1303
      %3633 = vmatpush.bf16.msra.mxu0 %v1302
      %3634 = vmatpush.bf16.msra.mxu0 %v1301
      %3635 = vmatmul.bf16.gmra.mxu0 %v3253
      %v3636 = vpop.f32.mrf.mxu0
      %v3637 = vadd.f32 %v3583, %v3636
      %v3638 = vpop.f32.mrf.mxu0
      %v3639 = vadd.f32 %v3585, %v3638
      %3640 = vmatmul.bf16.gmra.mxu0 %v3262
      %v3641 = vpop.f32.mrf.mxu0
      %v3642 = vadd.f32 %v3588, %v3641
      %v3643 = vpop.f32.mrf.mxu0
      %v3644 = vadd.f32 %v3590, %v3643
      %3645 = vmatmul.bf16.gmra.mxu0 %v3271
      %v3646 = vpop.f32.mrf.mxu0
      %v3647 = vadd.f32 %v3593, %v3646
      %v3648 = vpop.f32.mrf.mxu0
      %v3649 = vadd.f32 %v3595, %v3648
      %3650 = vmatmul.bf16.gmra.mxu0 %v3280
      %v3651 = vpop.f32.mrf.mxu0
      %v3652 = vadd.f32 %v3598, %v3651
      %v3653 = vpop.f32.mrf.mxu0
      %v3654 = vadd.f32 %v3600, %v3653
      %3655 = vmatmul.bf16.gmra.mxu0 %v3289
      %v3656 = vpop.f32.mrf.mxu0
      %v3657 = vadd.f32 %v3603, %v3656
      %v3658 = vpop.f32.mrf.mxu0
      %v3659 = vadd.f32 %v3605, %v3658
      %3660 = vmatmul.bf16.gmra.mxu0 %v3298
      %v3661 = vpop.f32.mrf.mxu0
      %v3662 = vadd.f32 %v3608, %v3661
      %v3663 = vpop.f32.mrf.mxu0
      %v3664 = vadd.f32 %v3610, %v3663
      %3665 = vmatmul.bf16.gmra.mxu0 %v3307
      %v3666 = vpop.f32.mrf.mxu0
      %v3667 = vadd.f32 %v3613, %v3666
      %v3668 = vpop.f32.mrf.mxu0
      %v3669 = vadd.f32 %v3615, %v3668
      %3670 = vmatmul.bf16.gmra.mxu0 %v3316
      %v3671 = vpop.f32.mrf.mxu0
      %v3672 = vadd.f32 %v3618, %v3671
      %v3673 = vpop.f32.mrf.mxu0
      %v3674 = vadd.f32 %v3620, %v3673
      %3675 = vmatmul.bf16.gmra.mxu0 %v3325
      %v3676 = vpop.f32.mrf.mxu0
      %v3677 = vadd.f32 %v3623, %v3676
      %v3678 = vpop.f32.mrf.mxu0
      %v3679 = vadd.f32 %v3625, %v3678
      %3680 = vdwg.mxu0
      %3681 = vmatpush.bf16.msra.mxu0 %v1316
      %3682 = vmatpush.bf16.msra.mxu0 %v1315
      %3683 = vmatpush.bf16.msra.mxu0 %v1314
      %3684 = vmatpush.bf16.msra.mxu0 %v1313
      %3685 = vmatpush.bf16.msra.mxu0 %v1312
      %3686 = vmatpush.bf16.msra.mxu0 %v1311
      %3687 = vmatpush.bf16.msra.mxu0 %v1310
      %3688 = vmatpush.bf16.msra.mxu0 %v1309
      %3689 = vmatmul.bf16.gmra.mxu0 %v3254
      %v3690 = vpop.f32.mrf.mxu0
      %v3691 = vadd.f32 %v3637, %v3690
      %v3692 = vpop.f32.mrf.mxu0
      %v3693 = vadd.f32 %v3639, %v3692
      %3694 = vmatmul.bf16.gmra.mxu0 %v3263
      %v3695 = vpop.f32.mrf.mxu0
      %v3696 = vadd.f32 %v3642, %v3695
      %v3697 = vpop.f32.mrf.mxu0
      %v3698 = vadd.f32 %v3644, %v3697
      %3699 = vmatmul.bf16.gmra.mxu0 %v3272
      %v3700 = vpop.f32.mrf.mxu0
      %v3701 = vadd.f32 %v3647, %v3700
      %v3702 = vpop.f32.mrf.mxu0
      %v3703 = vadd.f32 %v3649, %v3702
      %3704 = vmatmul.bf16.gmra.mxu0 %v3281
      %v3705 = vpop.f32.mrf.mxu0
      %v3706 = vadd.f32 %v3652, %v3705
      %v3707 = vpop.f32.mrf.mxu0
      %v3708 = vadd.f32 %v3654, %v3707
      %3709 = vmatmul.bf16.gmra.mxu0 %v3290
      %v3710 = vpop.f32.mrf.mxu0
      %v3711 = vadd.f32 %v3657, %v3710
      %v3712 = vpop.f32.mrf.mxu0
      %v3713 = vadd.f32 %v3659, %v3712
      %3714 = vmatmul.bf16.gmra.mxu0 %v3299
      %v3715 = vpop.f32.mrf.mxu0
      %v3716 = vadd.f32 %v3662, %v3715
      %v3717 = vpop.f32.mrf.mxu0
      %v3718 = vadd.f32 %v3664, %v3717
      %3719 = vmatmul.bf16.gmra.mxu0 %v3308
      %v3720 = vpop.f32.mrf.mxu0
      %v3721 = vadd.f32 %v3667, %v3720
      %v3722 = vpop.f32.mrf.mxu0
      %v3723 = vadd.f32 %v3669, %v3722
      %3724 = vmatmul.bf16.gmra.mxu0 %v3317
      %v3725 = vpop.f32.mrf.mxu0
      %v3726 = vadd.f32 %v3672, %v3725
      %v3727 = vpop.f32.mrf.mxu0
      %v3728 = vadd.f32 %v3674, %v3727
      %3729 = vmatmul.bf16.gmra.mxu0 %v3326
      %v3730 = vpop.f32.mrf.mxu0
      %v3731 = vadd.f32 %v3677, %v3730
      %v3732 = vpop.f32.mrf.mxu0
      %v3733 = vadd.f32 %v3679, %v3732
      %3734 = vdwg.mxu0
      %3735 = vmatpush.bf16.msra.mxu0 %v1324
      %3736 = vmatpush.bf16.msra.mxu0 %v1323
      %3737 = vmatpush.bf16.msra.mxu0 %v1322
      %3738 = vmatpush.bf16.msra.mxu0 %v1321
      %3739 = vmatpush.bf16.msra.mxu0 %v1320
      %3740 = vmatpush.bf16.msra.mxu0 %v1319
      %3741 = vmatpush.bf16.msra.mxu0 %v1318
      %3742 = vmatpush.bf16.msra.mxu0 %v1317
      %3743 = vmatmul.bf16.gmra.mxu0 %v3255
      %v3744 = vpop.f32.mrf.mxu0
      %v3745 = vadd.f32 %v3691, %v3744
      %v3746 = vpop.f32.mrf.mxu0
      %v3747 = vadd.f32 %v3693, %v3746
      %3748 = vmatmul.bf16.gmra.mxu0 %v3264
      %v3749 = vpop.f32.mrf.mxu0
      %v3750 = vadd.f32 %v3696, %v3749
      %v3751 = vpop.f32.mrf.mxu0
      %v3752 = vadd.f32 %v3698, %v3751
      %3753 = vmatmul.bf16.gmra.mxu0 %v3273
      %v3754 = vpop.f32.mrf.mxu0
      %v3755 = vadd.f32 %v3701, %v3754
      %v3756 = vpop.f32.mrf.mxu0
      %v3757 = vadd.f32 %v3703, %v3756
      %3758 = vmatmul.bf16.gmra.mxu0 %v3282
      %v3759 = vpop.f32.mrf.mxu0
      %v3760 = vadd.f32 %v3706, %v3759
      %v3761 = vpop.f32.mrf.mxu0
      %v3762 = vadd.f32 %v3708, %v3761
      %3763 = vmatmul.bf16.gmra.mxu0 %v3291
      %v3764 = vpop.f32.mrf.mxu0
      %v3765 = vadd.f32 %v3711, %v3764
      %v3766 = vpop.f32.mrf.mxu0
      %v3767 = vadd.f32 %v3713, %v3766
      %3768 = vmatmul.bf16.gmra.mxu0 %v3300
      %v3769 = vpop.f32.mrf.mxu0
      %v3770 = vadd.f32 %v3716, %v3769
      %v3771 = vpop.f32.mrf.mxu0
      %v3772 = vadd.f32 %v3718, %v3771
      %3773 = vmatmul.bf16.gmra.mxu0 %v3309
      %v3774 = vpop.f32.mrf.mxu0
      %v3775 = vadd.f32 %v3721, %v3774
      %v3776 = vpop.f32.mrf.mxu0
      %v3777 = vadd.f32 %v3723, %v3776
      %3778 = vmatmul.bf16.gmra.mxu0 %v3318
      %v3779 = vpop.f32.mrf.mxu0
      %v3780 = vadd.f32 %v3726, %v3779
      %v3781 = vpop.f32.mrf.mxu0
      %v3782 = vadd.f32 %v3728, %v3781
      %3783 = vmatmul.bf16.gmra.mxu0 %v3327
      %v3784 = vpop.f32.mrf.mxu0
      %v3785 = vadd.f32 %v3731, %v3784
      %v3786 = vpop.f32.mrf.mxu0
      %v3787 = vadd.f32 %v3733, %v3786
      %3788 = vdwg.mxu0
      %3789 = vmatpush.bf16.msra.mxu0 %v1332
      %3790 = vmatpush.bf16.msra.mxu0 %v1331
      %3791 = vmatpush.bf16.msra.mxu0 %v1330
      %3792 = vmatpush.bf16.msra.mxu0 %v1329
      %3793 = vmatpush.bf16.msra.mxu0 %v1328
      %3794 = vmatpush.bf16.msra.mxu0 %v1327
      %3795 = vmatpush.bf16.msra.mxu0 %v1326
      %3796 = vmatpush.bf16.msra.mxu0 %v1325
      %3797 = vmatmul.bf16.gmra.mxu0 %v3256
      %v3798 = vpop.f32.mrf.mxu0
      %v3799 = vadd.f32 %v3745, %v3798
      %v3800 = vpop.f32.mrf.mxu0
      %v3801 = vadd.f32 %v3747, %v3800
      %3802 = vmatmul.bf16.gmra.mxu0 %v3265
      %v3803 = vpop.f32.mrf.mxu0
      %v3804 = vadd.f32 %v3750, %v3803
      %v3805 = vpop.f32.mrf.mxu0
      %v3806 = vadd.f32 %v3752, %v3805
      %3807 = vmatmul.bf16.gmra.mxu0 %v3274
      %v3808 = vpop.f32.mrf.mxu0
      %v3809 = vadd.f32 %v3755, %v3808
      %v3810 = vpop.f32.mrf.mxu0
      %v3811 = vadd.f32 %v3757, %v3810
      %3812 = vmatmul.bf16.gmra.mxu0 %v3283
      %v3813 = vpop.f32.mrf.mxu0
      %v3814 = vadd.f32 %v3760, %v3813
      %v3815 = vpop.f32.mrf.mxu0
      %v3816 = vadd.f32 %v3762, %v3815
      %3817 = vmatmul.bf16.gmra.mxu0 %v3292
      %v3818 = vpop.f32.mrf.mxu0
      %v3819 = vadd.f32 %v3765, %v3818
      %v3820 = vpop.f32.mrf.mxu0
      %v3821 = vadd.f32 %v3767, %v3820
      %3822 = vmatmul.bf16.gmra.mxu0 %v3301
      %v3823 = vpop.f32.mrf.mxu0
      %v3824 = vadd.f32 %v3770, %v3823
      %v3825 = vpop.f32.mrf.mxu0
      %v3826 = vadd.f32 %v3772, %v3825
      %3827 = vmatmul.bf16.gmra.mxu0 %v3310
      %v3828 = vpop.f32.mrf.mxu0
      %v3829 = vadd.f32 %v3775, %v3828
      %v3830 = vpop.f32.mrf.mxu0
      %v3831 = vadd.f32 %v3777, %v3830
      %3832 = vmatmul.bf16.gmra.mxu0 %v3319
      %v3833 = vpop.f32.mrf.mxu0
      %v3834 = vadd.f32 %v3780, %v3833
      %v3835 = vpop.f32.mrf.mxu0
      %v3836 = vadd.f32 %v3782, %v3835
      %3837 = vmatmul.bf16.gmra.mxu0 %v3328
      %v3838 = vpop.f32.mrf.mxu0
      %v3839 = vadd.f32 %v3785, %v3838
      %v3840 = vpop.f32.mrf.mxu0
      %v3841 = vadd.f32 %v3787, %v3840
      %3842 = vdwg.mxu0
      %3843 = vmatpush.bf16.msra.mxu0 %v1340
      %3844 = vmatpush.bf16.msra.mxu0 %v1339
      %3845 = vmatpush.bf16.msra.mxu0 %v1338
      %3846 = vmatpush.bf16.msra.mxu0 %v1337
      %3847 = vmatpush.bf16.msra.mxu0 %v1336
      %3848 = vmatpush.bf16.msra.mxu0 %v1335
      %3849 = vmatpush.bf16.msra.mxu0 %v1334
      %3850 = vmatpush.bf16.msra.mxu0 %v1333
      %3851 = vmatmul.bf16.gmra.mxu0 %v3257
      %v3852 = vpop.f32.mrf.mxu0
      %v3853 = vadd.f32 %v3799, %v3852
      %v3854 = vpop.f32.mrf.mxu0
      %v3855 = vadd.f32 %v3801, %v3854
      %3856 = vmatmul.bf16.gmra.mxu0 %v3266
      %v3857 = vpop.f32.mrf.mxu0
      %v3858 = vadd.f32 %v3804, %v3857
      %v3859 = vpop.f32.mrf.mxu0
      %v3860 = vadd.f32 %v3806, %v3859
      %3861 = vmatmul.bf16.gmra.mxu0 %v3275
      %v3862 = vpop.f32.mrf.mxu0
      %v3863 = vadd.f32 %v3809, %v3862
      %v3864 = vpop.f32.mrf.mxu0
      %v3865 = vadd.f32 %v3811, %v3864
      %3866 = vmatmul.bf16.gmra.mxu0 %v3284
      %v3867 = vpop.f32.mrf.mxu0
      %v3868 = vadd.f32 %v3814, %v3867
      %v3869 = vpop.f32.mrf.mxu0
      %v3870 = vadd.f32 %v3816, %v3869
      %3871 = vmatmul.bf16.gmra.mxu0 %v3293
      %v3872 = vpop.f32.mrf.mxu0
      %v3873 = vadd.f32 %v3819, %v3872
      %v3874 = vpop.f32.mrf.mxu0
      %v3875 = vadd.f32 %v3821, %v3874
      %3876 = vmatmul.bf16.gmra.mxu0 %v3302
      %v3877 = vpop.f32.mrf.mxu0
      %v3878 = vadd.f32 %v3824, %v3877
      %v3879 = vpop.f32.mrf.mxu0
      %v3880 = vadd.f32 %v3826, %v3879
      %3881 = vmatmul.bf16.gmra.mxu0 %v3311
      %v3882 = vpop.f32.mrf.mxu0
      %v3883 = vadd.f32 %v3829, %v3882
      %v3884 = vpop.f32.mrf.mxu0
      %v3885 = vadd.f32 %v3831, %v3884
      %3886 = vmatmul.bf16.gmra.mxu0 %v3320
      %v3887 = vpop.f32.mrf.mxu0
      %v3888 = vadd.f32 %v3834, %v3887
      %v3889 = vpop.f32.mrf.mxu0
      %v3890 = vadd.f32 %v3836, %v3889
      %3891 = vmatmul.bf16.gmra.mxu0 %v3329
      %v3892 = vpop.f32.mrf.mxu0
      %v3893 = vadd.f32 %v3839, %v3892
      %v3894 = vpop.f32.mrf.mxu0
      %v3895 = vadd.f32 %v3841, %v3894
      %3896 = vdwg.mxu0
      %v3897 = vmax.f32 %v2889, %v3853
      %v3898 = vmax.f32 %v2890, %v3855
      %v3899 = vmax.f32 %v2891, %v3858
      %v3900 = vmax.f32 %v2892, %v3860
      %v3901 = vmax.f32 %v2893, %v3863
      %v3902 = vmax.f32 %v2894, %v3865
      %v3903 = vmax.f32 %v2895, %v3868
      %v3904 = vmax.f32 %v2896, %v3870
      %v3905 = vmax.f32 %v2897, %v3873
      %v3906 = vmax.f32 %v2898, %v3875
      %v3907 = vmax.f32 %v2899, %v3878
      %v3908 = vmax.f32 %v2900, %v3880
      %v3909 = vmax.f32 %v2901, %v3883
      %v3910 = vmax.f32 %v2902, %v3885
      %v3911 = vmax.f32 %v2903, %v3888
      %v3912 = vmax.f32 %v2904, %v3890
      %v3913 = vmax.f32 %v2905, %v3893
      %v3914 = vmax.f32 %v2906, %v3895
      %v3915 = vld [vmem:[%s325] sm:$0xff]
      %v3916 = vld [vmem:[%s325 + $0x8] sm:$0xff]
      %v3917 = vld [vmem:[%s325 + $0x10] sm:$0xff]
      %v3918 = vld [vmem:[%s325 + $0x18] sm:$0xff]
      %v3919 = vld [vmem:[%s325 + $0x20] sm:$0xf]
      %v3920 = vld [vmem:[%s325 + $0x24] sm:$0xff]
      %v3921 = vld [vmem:[%s325 + $0x2c] sm:$0xff]
      %v3922 = vld [vmem:[%s325 + $0x34] sm:$0xff]
      %v3923 = vld [vmem:[%s325 + $0x3c] sm:$0xff]
      %v3924 = vld [vmem:[%s325 + $0x44] sm:$0xf]
      %v3925 = vld [vmem:[%s325 + $0x48] sm:$0xff]
      %v3926 = vld [vmem:[%s325 + $0x50] sm:$0xff]
      %v3927 = vld [vmem:[%s325 + $0x58] sm:$0xff]
      %v3928 = vld [vmem:[%s325 + $0x60] sm:$0xff]
      %v3929 = vld [vmem:[%s325 + $0x68] sm:$0xf]
      %v3930 = vld [vmem:[%s325 + $0x6c] sm:$0xff]
      %v3931 = vld [vmem:[%s325 + $0x74] sm:$0xff]
      %v3932 = vld [vmem:[%s325 + $0x7c] sm:$0xff]
      %v3933 = vld [vmem:[%s325 + $0x84] sm:$0xff]
      %v3934 = vld [vmem:[%s325 + $0x8c] sm:$0xf]
      %v3935 = vld [vmem:[%s325 + $0x90] sm:$0xff]
      %v3936 = vld [vmem:[%s325 + $0x98] sm:$0xff]
      %v3937 = vld [vmem:[%s325 + $0xa0] sm:$0xff]
      %v3938 = vld [vmem:[%s325 + $0xa8] sm:$0xff]
      %v3939 = vld [vmem:[%s325 + $0xb0] sm:$0xf]
      %v3940 = vld [vmem:[%s325 + $0xb4] sm:$0xff]
      %v3941 = vld [vmem:[%s325 + $0xbc] sm:$0xff]
      %v3942 = vld [vmem:[%s325 + $0xc4] sm:$0xff]
      %v3943 = vld [vmem:[%s325 + $0xcc] sm:$0xff]
      %v3944 = vld [vmem:[%s325 + $0xd4] sm:$0xf]
      %v3945 = vld [vmem:[%s325 + $0xd8] sm:$0xff]
      %v3946 = vld [vmem:[%s325 + $0xe0] sm:$0xff]
      %v3947 = vld [vmem:[%s325 + $0xe8] sm:$0xff]
      %v3948 = vld [vmem:[%s325 + $0xf0] sm:$0xff]
      %v3949 = vld [vmem:[%s325 + $0xf8] sm:$0xf]
      %v3950 = vld [vmem:[%s325 + $0xfc] sm:$0xff]
      %v3951 = vld [vmem:[%s325 + $0x104] sm:$0xff]
      %v3952 = vld [vmem:[%s325 + $0x10c] sm:$0xff]
      %v3953 = vld [vmem:[%s325 + $0x114] sm:$0xff]
      %v3954 = vld [vmem:[%s325 + $0x11c] sm:$0xf]
      %v3955 = vld [vmem:[%s325 + $0x120] sm:$0xff]
      %v3956 = vld [vmem:[%s325 + $0x128] sm:$0xff]
      %v3957 = vld [vmem:[%s325 + $0x130] sm:$0xff]
      %v3958 = vld [vmem:[%s325 + $0x138] sm:$0xff]
      %v3959 = vld [vmem:[%s325 + $0x140] sm:$0xf]
      %v3960 = vld [vmem:[%s325 + $0x144] sm:$0xff]
      %v3961 = vld [vmem:[%s325 + $0x14c] sm:$0xff]
      %v3962 = vld [vmem:[%s325 + $0x154] sm:$0xff]
      %v3963 = vld [vmem:[%s325 + $0x15c] sm:$0xff]
      %v3964 = vld [vmem:[%s325 + $0x164] sm:$0xf]
      %v3965 = vld [vmem:[%s325 + $0x168] sm:$0xff]
      %v3966 = vld [vmem:[%s325 + $0x170] sm:$0xff]
      %v3967 = vld [vmem:[%s325 + $0x178] sm:$0xff]
      %v3968 = vld [vmem:[%s325 + $0x180] sm:$0xff]
      %v3969 = vld [vmem:[%s325 + $0x188] sm:$0xf]
      %v3970 = vld [vmem:[%s325 + $0x18c] sm:$0xff]
      %v3971 = vld [vmem:[%s325 + $0x194] sm:$0xff]
      %v3972 = vld [vmem:[%s325 + $0x19c] sm:$0xff]
      %v3973 = vld [vmem:[%s325 + $0x1a4] sm:$0xff]
      %v3974 = vld [vmem:[%s325 + $0x1ac] sm:$0xf]
      %v3975 = vld [vmem:[%s325 + $0x1b0] sm:$0xff]
      %v3976 = vld [vmem:[%s325 + $0x1b8] sm:$0xff]
      %v3977 = vld [vmem:[%s325 + $0x1c0] sm:$0xff]
      %v3978 = vld [vmem:[%s325 + $0x1c8] sm:$0xff]
      %v3979 = vld [vmem:[%s325 + $0x1d0] sm:$0xf]
      %v3980 = vld [vmem:[%s325 + $0x1d4] sm:$0xff]
      %v3981 = vld [vmem:[%s325 + $0x1dc] sm:$0xff]
      %v3982 = vld [vmem:[%s325 + $0x1e4] sm:$0xff]
      %v3983 = vld [vmem:[%s325 + $0x1ec] sm:$0xff]
      %v3984 = vld [vmem:[%s325 + $0x1f4] sm:$0xf]
      %v3985 = vld [vmem:[%s325 + $0x1f8] sm:$0xff]
      %v3986 = vld [vmem:[%s325 + $0x200] sm:$0xff]
      %v3987 = vld [vmem:[%s325 + $0x208] sm:$0xff]
      %v3988 = vld [vmem:[%s325 + $0x210] sm:$0xff]
      %v3989 = vld [vmem:[%s325 + $0x218] sm:$0xf]
      %v3990 = vld [vmem:[%s325 + $0x21c] sm:$0xff]
      %v3991 = vld [vmem:[%s325 + $0x224] sm:$0xff]
      %v3992 = vld [vmem:[%s325 + $0x22c] sm:$0xff]
      %v3993 = vld [vmem:[%s325 + $0x234] sm:$0xff]
      %v3994 = vld [vmem:[%s325 + $0x23c] sm:$0xf]
      %v3995 = vld [vmem:[%s325 + $0x240] sm:$0xff]
      %v3996 = vld [vmem:[%s325 + $0x248] sm:$0xff]
      %v3997 = vld [vmem:[%s325 + $0x250] sm:$0xff]
      %v3998 = vld [vmem:[%s325 + $0x258] sm:$0xff]
      %v3999 = vld [vmem:[%s325 + $0x260] sm:$0xf]
      %v4000 = vld [vmem:[%s325 + $0x264] sm:$0xff]
      %v4001 = vld [vmem:[%s325 + $0x26c] sm:$0xff]
      %v4002 = vld [vmem:[%s325 + $0x274] sm:$0xff]
      %v4003 = vld [vmem:[%s325 + $0x27c] sm:$0xff]
      %v4004 = vld [vmem:[%s325 + $0x284] sm:$0xf]
      %v4095 = vunpack.c.l.b16 %v3915
      %v4096 = vunpack.c.h.b16 %v3915
      %v4097 = vunpack.c.l.b16 %v3916
      %v4098 = vunpack.c.h.b16 %v3916
      %v4099 = vunpack.c.l.b16 %v3917
      %v4100 = vunpack.c.h.b16 %v3917
      %v4101 = vunpack.c.l.b16 %v3918
      %v4102 = vunpack.c.h.b16 %v3918
      %v4103 = vunpack.c.l.b16 %v3919
      %v4104 = vunpack.c.l.b16 %v3920
      %v4105 = vunpack.c.h.b16 %v3920
      %v4106 = vunpack.c.l.b16 %v3921
      %v4107 = vunpack.c.h.b16 %v3921
      %v4108 = vunpack.c.l.b16 %v3922
      %v4109 = vunpack.c.h.b16 %v3922
      %v4110 = vunpack.c.l.b16 %v3923
      %v4111 = vunpack.c.h.b16 %v3923
      %v4112 = vunpack.c.l.b16 %v3924
      %v4113 = vunpack.c.l.b16 %v3925
      %v4114 = vunpack.c.h.b16 %v3925
      %v4115 = vunpack.c.l.b16 %v3926
      %v4116 = vunpack.c.h.b16 %v3926
      %v4117 = vunpack.c.l.b16 %v3927
      %v4118 = vunpack.c.h.b16 %v3927
      %v4119 = vunpack.c.l.b16 %v3928
      %v4120 = vunpack.c.h.b16 %v3928
      %v4121 = vunpack.c.l.b16 %v3929
      %v4122 = vunpack.c.l.b16 %v3930
      %v4123 = vunpack.c.h.b16 %v3930
      %v4124 = vunpack.c.l.b16 %v3931
      %v4125 = vunpack.c.h.b16 %v3931
      %v4126 = vunpack.c.l.b16 %v3932
      %v4127 = vunpack.c.h.b16 %v3932
      %v4128 = vunpack.c.l.b16 %v3933
      %v4129 = vunpack.c.h.b16 %v3933
      %v4130 = vunpack.c.l.b16 %v3934
      %v4131 = vunpack.c.l.b16 %v3935
      %v4132 = vunpack.c.h.b16 %v3935
      %v4133 = vunpack.c.l.b16 %v3936
      %v4134 = vunpack.c.h.b16 %v3936
      %v4135 = vunpack.c.l.b16 %v3937
      %v4136 = vunpack.c.h.b16 %v3937
      %v4137 = vunpack.c.l.b16 %v3938
      %v4138 = vunpack.c.h.b16 %v3938
      %v4139 = vunpack.c.l.b16 %v3939
      %v4140 = vunpack.c.l.b16 %v3940
      %v4141 = vunpack.c.h.b16 %v3940
      %v4142 = vunpack.c.l.b16 %v3941
      %v4143 = vunpack.c.h.b16 %v3941
      %v4144 = vunpack.c.l.b16 %v3942
      %v4145 = vunpack.c.h.b16 %v3942
      %v4146 = vunpack.c.l.b16 %v3943
      %v4147 = vunpack.c.h.b16 %v3943
      %v4148 = vunpack.c.l.b16 %v3944
      %v4149 = vunpack.c.l.b16 %v3945
      %v4150 = vunpack.c.h.b16 %v3945
      %v4151 = vunpack.c.l.b16 %v3946
      %v4152 = vunpack.c.h.b16 %v3946
      %v4153 = vunpack.c.l.b16 %v3947
      %v4154 = vunpack.c.h.b16 %v3947
      %v4155 = vunpack.c.l.b16 %v3948
      %v4156 = vunpack.c.h.b16 %v3948
      %v4157 = vunpack.c.l.b16 %v3949
      %v4158 = vunpack.c.l.b16 %v3950
      %v4159 = vunpack.c.h.b16 %v3950
      %v4160 = vunpack.c.l.b16 %v3951
      %v4161 = vunpack.c.h.b16 %v3951
      %v4162 = vunpack.c.l.b16 %v3952
      %v4163 = vunpack.c.h.b16 %v3952
      %v4164 = vunpack.c.l.b16 %v3953
      %v4165 = vunpack.c.h.b16 %v3953
      %v4166 = vunpack.c.l.b16 %v3954
      %v4167 = vunpack.c.l.b16 %v3955
      %v4168 = vunpack.c.h.b16 %v3955
      %v4169 = vunpack.c.l.b16 %v3956
      %v4170 = vunpack.c.h.b16 %v3956
      %v4171 = vunpack.c.l.b16 %v3957
      %v4172 = vunpack.c.h.b16 %v3957
      %v4173 = vunpack.c.l.b16 %v3958
      %v4174 = vunpack.c.h.b16 %v3958
      %v4175 = vunpack.c.l.b16 %v3959
      %v4176 = vunpack.c.l.b16 %v3960
      %v4177 = vunpack.c.h.b16 %v3960
      %v4178 = vunpack.c.l.b16 %v3961
      %v4179 = vunpack.c.h.b16 %v3961
      %v4180 = vunpack.c.l.b16 %v3962
      %v4181 = vunpack.c.h.b16 %v3962
      %v4182 = vunpack.c.l.b16 %v3963
      %v4183 = vunpack.c.h.b16 %v3963
      %v4184 = vunpack.c.l.b16 %v3964
      %v4185 = vunpack.c.l.b16 %v3965
      %v4186 = vunpack.c.h.b16 %v3965
      %v4187 = vunpack.c.l.b16 %v3966
      %v4188 = vunpack.c.h.b16 %v3966
      %v4189 = vunpack.c.l.b16 %v3967
      %v4190 = vunpack.c.h.b16 %v3967
      %v4191 = vunpack.c.l.b16 %v3968
      %v4192 = vunpack.c.h.b16 %v3968
      %v4193 = vunpack.c.l.b16 %v3969
      %v4194 = vunpack.c.l.b16 %v3970
      %v4195 = vunpack.c.h.b16 %v3970
      %v4196 = vunpack.c.l.b16 %v3971
      %v4197 = vunpack.c.h.b16 %v3971
      %v4198 = vunpack.c.l.b16 %v3972
      %v4199 = vunpack.c.h.b16 %v3972
      %v4200 = vunpack.c.l.b16 %v3973
      %v4201 = vunpack.c.h.b16 %v3973
      %v4202 = vunpack.c.l.b16 %v3974
      %v4203 = vunpack.c.l.b16 %v3975
      %v4204 = vunpack.c.h.b16 %v3975
      %v4205 = vunpack.c.l.b16 %v3976
      %v4206 = vunpack.c.h.b16 %v3976
      %v4207 = vunpack.c.l.b16 %v3977
      %v4208 = vunpack.c.h.b16 %v3977
      %v4209 = vunpack.c.l.b16 %v3978
      %v4210 = vunpack.c.h.b16 %v3978
      %v4211 = vunpack.c.l.b16 %v3979
      %v4212 = vunpack.c.l.b16 %v3980
      %v4213 = vunpack.c.h.b16 %v3980
      %v4214 = vunpack.c.l.b16 %v3981
      %v4215 = vunpack.c.h.b16 %v3981
      %v4216 = vunpack.c.l.b16 %v3982
      %v4217 = vunpack.c.h.b16 %v3982
      %v4218 = vunpack.c.l.b16 %v3983
      %v4219 = vunpack.c.h.b16 %v3983
      %v4220 = vunpack.c.l.b16 %v3984
      %v4221 = vunpack.c.l.b16 %v3985
      %v4222 = vunpack.c.h.b16 %v3985
      %v4223 = vunpack.c.l.b16 %v3986
      %v4224 = vunpack.c.h.b16 %v3986
      %v4225 = vunpack.c.l.b16 %v3987
      %v4226 = vunpack.c.h.b16 %v3987
      %v4227 = vunpack.c.l.b16 %v3988
      %v4228 = vunpack.c.h.b16 %v3988
      %v4229 = vunpack.c.l.b16 %v3989
      %v4230 = vunpack.c.l.b16 %v3990
      %v4231 = vunpack.c.h.b16 %v3990
      %v4232 = vunpack.c.l.b16 %v3991
      %v4233 = vunpack.c.h.b16 %v3991
      %v4234 = vunpack.c.l.b16 %v3992
      %v4235 = vunpack.c.h.b16 %v3992
      %v4236 = vunpack.c.l.b16 %v3993
      %v4237 = vunpack.c.h.b16 %v3993
      %v4238 = vunpack.c.l.b16 %v3994
      %v4239 = vunpack.c.l.b16 %v3995
      %v4240 = vunpack.c.h.b16 %v3995
      %v4241 = vunpack.c.l.b16 %v3996
      %v4242 = vunpack.c.h.b16 %v3996
      %v4243 = vunpack.c.l.b16 %v3997
      %v4244 = vunpack.c.h.b16 %v3997
      %v4245 = vunpack.c.l.b16 %v3998
      %v4246 = vunpack.c.h.b16 %v3998
      %v4247 = vunpack.c.l.b16 %v3999
      %v4248 = vunpack.c.l.b16 %v4000
      %v4249 = vunpack.c.h.b16 %v4000
      %v4250 = vunpack.c.l.b16 %v4001
      %v4251 = vunpack.c.h.b16 %v4001
      %v4252 = vunpack.c.l.b16 %v4002
      %v4253 = vunpack.c.h.b16 %v4002
      %v4254 = vunpack.c.l.b16 %v4003
      %v4255 = vunpack.c.h.b16 %v4003
      %v4256 = vunpack.c.l.b16 %v4004
      %v4257 = vpack.c.b16 %v4104, %v4095
      %v4258 = vpack.c.b16 %v4105, %v4096
      %v4259 = vpack.c.b16 %v4106, %v4097
      %v4260 = vpack.c.b16 %v4107, %v4098
      %v4261 = vpack.c.b16 %v4108, %v4099
      %v4262 = vpack.c.b16 %v4109, %v4100
      %v4263 = vpack.c.b16 %v4110, %v4101
      %v4264 = vpack.c.b16 %v4111, %v4102
      %v4265 = vpack.c.b16 %v4112, %v4103
      %v4266 = vpack.c.b16 %v4122, %v4113
      %v4267 = vpack.c.b16 %v4123, %v4114
      %v4268 = vpack.c.b16 %v4124, %v4115
      %v4269 = vpack.c.b16 %v4125, %v4116
      %v4270 = vpack.c.b16 %v4126, %v4117
      %v4271 = vpack.c.b16 %v4127, %v4118
      %v4272 = vpack.c.b16 %v4128, %v4119
      %v4273 = vpack.c.b16 %v4129, %v4120
      %v4274 = vpack.c.b16 %v4130, %v4121
      %v4275 = vpack.c.b16 %v4140, %v4131
      %v4276 = vpack.c.b16 %v4141, %v4132
      %v4277 = vpack.c.b16 %v4142, %v4133
      %v4278 = vpack.c.b16 %v4143, %v4134
      %v4279 = vpack.c.b16 %v4144, %v4135
      %v4280 = vpack.c.b16 %v4145, %v4136
      %v4281 = vpack.c.b16 %v4146, %v4137
      %v4282 = vpack.c.b16 %v4147, %v4138
      %v4283 = vpack.c.b16 %v4148, %v4139
      %v4284 = vpack.c.b16 %v4158, %v4149
      %v4285 = vpack.c.b16 %v4159, %v4150
      %v4286 = vpack.c.b16 %v4160, %v4151
      %v4287 = vpack.c.b16 %v4161, %v4152
      %v4288 = vpack.c.b16 %v4162, %v4153
      %v4289 = vpack.c.b16 %v4163, %v4154
      %v4290 = vpack.c.b16 %v4164, %v4155
      %v4291 = vpack.c.b16 %v4165, %v4156
      %v4292 = vpack.c.b16 %v4166, %v4157
      %v4293 = vpack.c.b16 %v4176, %v4167
      %v4294 = vpack.c.b16 %v4177, %v4168
      %v4295 = vpack.c.b16 %v4178, %v4169
      %v4296 = vpack.c.b16 %v4179, %v4170
      %v4297 = vpack.c.b16 %v4180, %v4171
      %v4298 = vpack.c.b16 %v4181, %v4172
      %v4299 = vpack.c.b16 %v4182, %v4173
      %v4300 = vpack.c.b16 %v4183, %v4174
      %v4301 = vpack.c.b16 %v4184, %v4175
      %v4302 = vpack.c.b16 %v4194, %v4185
      %v4303 = vpack.c.b16 %v4195, %v4186
      %v4304 = vpack.c.b16 %v4196, %v4187
      %v4305 = vpack.c.b16 %v4197, %v4188
      %v4306 = vpack.c.b16 %v4198, %v4189
      %v4307 = vpack.c.b16 %v4199, %v4190
      %v4308 = vpack.c.b16 %v4200, %v4191
      %v4309 = vpack.c.b16 %v4201, %v4192
      %v4310 = vpack.c.b16 %v4202, %v4193
      %v4311 = vpack.c.b16 %v4212, %v4203
      %v4312 = vpack.c.b16 %v4213, %v4204
      %v4313 = vpack.c.b16 %v4214, %v4205
      %v4314 = vpack.c.b16 %v4215, %v4206
      %v4315 = vpack.c.b16 %v4216, %v4207
      %v4316 = vpack.c.b16 %v4217, %v4208
      %v4317 = vpack.c.b16 %v4218, %v4209
      %v4318 = vpack.c.b16 %v4219, %v4210
      %v4319 = vpack.c.b16 %v4220, %v4211
      %v4320 = vpack.c.b16 %v4230, %v4221
      %v4321 = vpack.c.b16 %v4231, %v4222
      %v4322 = vpack.c.b16 %v4232, %v4223
      %v4323 = vpack.c.b16 %v4233, %v4224
      %v4324 = vpack.c.b16 %v4234, %v4225
      %v4325 = vpack.c.b16 %v4235, %v4226
      %v4326 = vpack.c.b16 %v4236, %v4227
      %v4327 = vpack.c.b16 %v4237, %v4228
      %v4328 = vpack.c.b16 %v4238, %v4229
      %v4329 = vpack.c.b16 %v4248, %v4239
      %v4330 = vpack.c.b16 %v4249, %v4240
      %v4331 = vpack.c.b16 %v4250, %v4241
      %v4332 = vpack.c.b16 %v4251, %v4242
      %v4333 = vpack.c.b16 %v4252, %v4243
      %v4334 = vpack.c.b16 %v4253, %v4244
      %v4335 = vpack.c.b16 %v4254, %v4245
      %v4336 = vpack.c.b16 %v4255, %v4246
      %v4337 = vpack.c.b16 %v4256, %v4247
      %4419 = vmatpush.bf16.msra.mxu0 %v1276
      %4420 = vmatpush.bf16.msra.mxu0 %v1275
      %4421 = vmatpush.bf16.msra.mxu0 %v1274
      %4422 = vmatpush.bf16.msra.mxu0 %v1273
      %4423 = vmatpush.bf16.msra.mxu0 %v1272
      %4424 = vmatpush.bf16.msra.mxu0 %v1271
      %4425 = vmatpush.bf16.msra.mxu0 %v1270
      %4426 = vmatpush.bf16.msra.mxu0 %v1269
      %4427 = vmatmul.bf16.gmra.mxu0 %v4257
      %v4428 = vpop.f32.mrf.mxu0
      %v4429 = vadd.f32 0.0, %v4428
      %v4430 = vpop.f32.mrf.mxu0
      %v4431 = vadd.f32 0.0, %v4430
      %4432 = vmatmul.bf16.gmra.mxu0 %v4266
      %v4433 = vpop.f32.mrf.mxu0
      %v4434 = vadd.f32 0.0, %v4433
      %v4435 = vpop.f32.mrf.mxu0
      %v4436 = vadd.f32 0.0, %v4435
      %4437 = vmatmul.bf16.gmra.mxu0 %v4275
      %v4438 = vpop.f32.mrf.mxu0
      %v4439 = vadd.f32 0.0, %v4438
      %v4440 = vpop.f32.mrf.mxu0
      %v4441 = vadd.f32 0.0, %v4440
      %4442 = vmatmul.bf16.gmra.mxu0 %v4284
      %v4443 = vpop.f32.mrf.mxu0
      %v4444 = vadd.f32 0.0, %v4443
      %v4445 = vpop.f32.mrf.mxu0
      %v4446 = vadd.f32 0.0, %v4445
      %4447 = vmatmul.bf16.gmra.mxu0 %v4293
      %v4448 = vpop.f32.mrf.mxu0
      %v4449 = vadd.f32 0.0, %v4448
      %v4450 = vpop.f32.mrf.mxu0
      %v4451 = vadd.f32 0.0, %v4450
      %4452 = vmatmul.bf16.gmra.mxu0 %v4302
      %v4453 = vpop.f32.mrf.mxu0
      %v4454 = vadd.f32 0.0, %v4453
      %v4455 = vpop.f32.mrf.mxu0
      %v4456 = vadd.f32 0.0, %v4455
      %4457 = vmatmul.bf16.gmra.mxu0 %v4311
      %v4458 = vpop.f32.mrf.mxu0
      %v4459 = vadd.f32 0.0, %v4458
      %v4460 = vpop.f32.mrf.mxu0
      %v4461 = vadd.f32 0.0, %v4460
      %4462 = vmatmul.bf16.gmra.mxu0 %v4320
      %v4463 = vpop.f32.mrf.mxu0
      %v4464 = vadd.f32 0.0, %v4463
      %v4465 = vpop.f32.mrf.mxu0
      %v4466 = vadd.f32 0.0, %v4465
      %4467 = vmatmul.bf16.gmra.mxu0 %v4329
      %v4468 = vpop.f32.mrf.mxu0
      %v4469 = vadd.f32 0.0, %v4468
      %v4470 = vpop.f32.mrf.mxu0
      %v4471 = vadd.f32 0.0, %v4470
      %4472 = vdwg.mxu0
      %4473 = vmatpush.bf16.msra.mxu0 %v1284
      %4474 = vmatpush.bf16.msra.mxu0 %v1283
      %4475 = vmatpush.bf16.msra.mxu0 %v1282
      %4476 = vmatpush.bf16.msra.mxu0 %v1281
      %4477 = vmatpush.bf16.msra.mxu0 %v1280
      %4478 = vmatpush.bf16.msra.mxu0 %v1279
      %4479 = vmatpush.bf16.msra.mxu0 %v1278
      %4480 = vmatpush.bf16.msra.mxu0 %v1277
      %4481 = vmatmul.bf16.gmra.mxu0 %v4258
      %v4482 = vpop.f32.mrf.mxu0
      %v4483 = vadd.f32 %v4429, %v4482
      %v4484 = vpop.f32.mrf.mxu0
      %v4485 = vadd.f32 %v4431, %v4484
      %4486 = vmatmul.bf16.gmra.mxu0 %v4267
      %v4487 = vpop.f32.mrf.mxu0
      %v4488 = vadd.f32 %v4434, %v4487
      %v4489 = vpop.f32.mrf.mxu0
      %v4490 = vadd.f32 %v4436, %v4489
      %4491 = vmatmul.bf16.gmra.mxu0 %v4276
      %v4492 = vpop.f32.mrf.mxu0
      %v4493 = vadd.f32 %v4439, %v4492
      %v4494 = vpop.f32.mrf.mxu0
      %v4495 = vadd.f32 %v4441, %v4494
      %4496 = vmatmul.bf16.gmra.mxu0 %v4285
      %v4497 = vpop.f32.mrf.mxu0
      %v4498 = vadd.f32 %v4444, %v4497
      %v4499 = vpop.f32.mrf.mxu0
      %v4500 = vadd.f32 %v4446, %v4499
      %4501 = vmatmul.bf16.gmra.mxu0 %v4294
      %v4502 = vpop.f32.mrf.mxu0
      %v4503 = vadd.f32 %v4449, %v4502
      %v4504 = vpop.f32.mrf.mxu0
      %v4505 = vadd.f32 %v4451, %v4504
      %4506 = vmatmul.bf16.gmra.mxu0 %v4303
      %v4507 = vpop.f32.mrf.mxu0
      %v4508 = vadd.f32 %v4454, %v4507
      %v4509 = vpop.f32.mrf.mxu0
      %v4510 = vadd.f32 %v4456, %v4509
      %4511 = vmatmul.bf16.gmra.mxu0 %v4312
      %v4512 = vpop.f32.mrf.mxu0
      %v4513 = vadd.f32 %v4459, %v4512
      %v4514 = vpop.f32.mrf.mxu0
      %v4515 = vadd.f32 %v4461, %v4514
      %4516 = vmatmul.bf16.gmra.mxu0 %v4321
      %v4517 = vpop.f32.mrf.mxu0
      %v4518 = vadd.f32 %v4464, %v4517
      %v4519 = vpop.f32.mrf.mxu0
      %v4520 = vadd.f32 %v4466, %v4519
      %4521 = vmatmul.bf16.gmra.mxu0 %v4330
      %v4522 = vpop.f32.mrf.mxu0
      %v4523 = vadd.f32 %v4469, %v4522
      %v4524 = vpop.f32.mrf.mxu0
      %v4525 = vadd.f32 %v4471, %v4524
      %4526 = vdwg.mxu0
      %4527 = vmatpush.bf16.msra.mxu0 %v1292
      %4528 = vmatpush.bf16.msra.mxu0 %v1291
      %4529 = vmatpush.bf16.msra.mxu0 %v1290
      %4530 = vmatpush.bf16.msra.mxu0 %v1289
      %4531 = vmatpush.bf16.msra.mxu0 %v1288
      %4532 = vmatpush.bf16.msra.mxu0 %v1287
      %4533 = vmatpush.bf16.msra.mxu0 %v1286
      %4534 = vmatpush.bf16.msra.mxu0 %v1285
      %4535 = vmatmul.bf16.gmra.mxu0 %v4259
      %v4536 = vpop.f32.mrf.mxu0
      %v4537 = vadd.f32 %v4483, %v4536
      %v4538 = vpop.f32.mrf.mxu0
      %v4539 = vadd.f32 %v4485, %v4538
      %4540 = vmatmul.bf16.gmra.mxu0 %v4268
      %v4541 = vpop.f32.mrf.mxu0
      %v4542 = vadd.f32 %v4488, %v4541
      %v4543 = vpop.f32.mrf.mxu0
      %v4544 = vadd.f32 %v4490, %v4543
      %4545 = vmatmul.bf16.gmra.mxu0 %v4277
      %v4546 = vpop.f32.mrf.mxu0
      %v4547 = vadd.f32 %v4493, %v4546
      %v4548 = vpop.f32.mrf.mxu0
      %v4549 = vadd.f32 %v4495, %v4548
      %4550 = vmatmul.bf16.gmra.mxu0 %v4286
      %v4551 = vpop.f32.mrf.mxu0
      %v4552 = vadd.f32 %v4498, %v4551
      %v4553 = vpop.f32.mrf.mxu0
      %v4554 = vadd.f32 %v4500, %v4553
      %4555 = vmatmul.bf16.gmra.mxu0 %v4295
      %v4556 = vpop.f32.mrf.mxu0
      %v4557 = vadd.f32 %v4503, %v4556
      %v4558 = vpop.f32.mrf.mxu0
      %v4559 = vadd.f32 %v4505, %v4558
      %4560 = vmatmul.bf16.gmra.mxu0 %v4304
      %v4561 = vpop.f32.mrf.mxu0
      %v4562 = vadd.f32 %v4508, %v4561
      %v4563 = vpop.f32.mrf.mxu0
      %v4564 = vadd.f32 %v4510, %v4563
      %4565 = vmatmul.bf16.gmra.mxu0 %v4313
      %v4566 = vpop.f32.mrf.mxu0
      %v4567 = vadd.f32 %v4513, %v4566
      %v4568 = vpop.f32.mrf.mxu0
      %v4569 = vadd.f32 %v4515, %v4568
      %4570 = vmatmul.bf16.gmra.mxu0 %v4322
      %v4571 = vpop.f32.mrf.mxu0
      %v4572 = vadd.f32 %v4518, %v4571
      %v4573 = vpop.f32.mrf.mxu0
      %v4574 = vadd.f32 %v4520, %v4573
      %4575 = vmatmul.bf16.gmra.mxu0 %v4331
      %v4576 = vpop.f32.mrf.mxu0
      %v4577 = vadd.f32 %v4523, %v4576
      %v4578 = vpop.f32.mrf.mxu0
      %v4579 = vadd.f32 %v4525, %v4578
      %4580 = vdwg.mxu0
      %4581 = vmatpush.bf16.msra.mxu0 %v1300
      %4582 = vmatpush.bf16.msra.mxu0 %v1299
      %4583 = vmatpush.bf16.msra.mxu0 %v1298
      %4584 = vmatpush.bf16.msra.mxu0 %v1297
      %4585 = vmatpush.bf16.msra.mxu0 %v1296
      %4586 = vmatpush.bf16.msra.mxu0 %v1295
      %4587 = vmatpush.bf16.msra.mxu0 %v1294
      %4588 = vmatpush.bf16.msra.mxu0 %v1293
      %4589 = vmatmul.bf16.gmra.mxu0 %v4260
      %v4590 = vpop.f32.mrf.mxu0
      %v4591 = vadd.f32 %v4537, %v4590
      %v4592 = vpop.f32.mrf.mxu0
      %v4593 = vadd.f32 %v4539, %v4592
      %4594 = vmatmul.bf16.gmra.mxu0 %v4269
      %v4595 = vpop.f32.mrf.mxu0
      %v4596 = vadd.f32 %v4542, %v4595
      %v4597 = vpop.f32.mrf.mxu0
      %v4598 = vadd.f32 %v4544, %v4597
      %4599 = vmatmul.bf16.gmra.mxu0 %v4278
      %v4600 = vpop.f32.mrf.mxu0
      %v4601 = vadd.f32 %v4547, %v4600
      %v4602 = vpop.f32.mrf.mxu0
      %v4603 = vadd.f32 %v4549, %v4602
      %4604 = vmatmul.bf16.gmra.mxu0 %v4287
      %v4605 = vpop.f32.mrf.mxu0
      %v4606 = vadd.f32 %v4552, %v4605
      %v4607 = vpop.f32.mrf.mxu0
      %v4608 = vadd.f32 %v4554, %v4607
      %4609 = vmatmul.bf16.gmra.mxu0 %v4296
      %v4610 = vpop.f32.mrf.mxu0
      %v4611 = vadd.f32 %v4557, %v4610
      %v4612 = vpop.f32.mrf.mxu0
      %v4613 = vadd.f32 %v4559, %v4612
      %4614 = vmatmul.bf16.gmra.mxu0 %v4305
      %v4615 = vpop.f32.mrf.mxu0
      %v4616 = vadd.f32 %v4562, %v4615
      %v4617 = vpop.f32.mrf.mxu0
      %v4618 = vadd.f32 %v4564, %v4617
      %4619 = vmatmul.bf16.gmra.mxu0 %v4314
      %v4620 = vpop.f32.mrf.mxu0
      %v4621 = vadd.f32 %v4567, %v4620
      %v4622 = vpop.f32.mrf.mxu0
      %v4623 = vadd.f32 %v4569, %v4622
      %4624 = vmatmul.bf16.gmra.mxu0 %v4323
      %v4625 = vpop.f32.mrf.mxu0
      %v4626 = vadd.f32 %v4572, %v4625
      %v4627 = vpop.f32.mrf.mxu0
      %v4628 = vadd.f32 %v4574, %v4627
      %4629 = vmatmul.bf16.gmra.mxu0 %v4332
      %v4630 = vpop.f32.mrf.mxu0
      %v4631 = vadd.f32 %v4577, %v4630
      %v4632 = vpop.f32.mrf.mxu0
      %v4633 = vadd.f32 %v4579, %v4632
      %4634 = vdwg.mxu0
      %4635 = vmatpush.bf16.msra.mxu0 %v1308
      %4636 = vmatpush.bf16.msra.mxu0 %v1307
      %4637 = vmatpush.bf16.msra.mxu0 %v1306
      %4638 = vmatpush.bf16.msra.mxu0 %v1305
      %4639 = vmatpush.bf16.msra.mxu0 %v1304
      %4640 = vmatpush.bf16.msra.mxu0 %v1303
      %4641 = vmatpush.bf16.msra.mxu0 %v1302
      %4642 = vmatpush.bf16.msra.mxu0 %v1301
      %4643 = vmatmul.bf16.gmra.mxu0 %v4261
      %v4644 = vpop.f32.mrf.mxu0
      %v4645 = vadd.f32 %v4591, %v4644
      %v4646 = vpop.f32.mrf.mxu0
      %v4647 = vadd.f32 %v4593, %v4646
      %4648 = vmatmul.bf16.gmra.mxu0 %v4270
      %v4649 = vpop.f32.mrf.mxu0
      %v4650 = vadd.f32 %v4596, %v4649
      %v4651 = vpop.f32.mrf.mxu0
      %v4652 = vadd.f32 %v4598, %v4651
      %4653 = vmatmul.bf16.gmra.mxu0 %v4279
      %v4654 = vpop.f32.mrf.mxu0
      %v4655 = vadd.f32 %v4601, %v4654
      %v4656 = vpop.f32.mrf.mxu0
      %v4657 = vadd.f32 %v4603, %v4656
      %4658 = vmatmul.bf16.gmra.mxu0 %v4288
      %v4659 = vpop.f32.mrf.mxu0
      %v4660 = vadd.f32 %v4606, %v4659
      %v4661 = vpop.f32.mrf.mxu0
      %v4662 = vadd.f32 %v4608, %v4661
      %4663 = vmatmul.bf16.gmra.mxu0 %v4297
      %v4664 = vpop.f32.mrf.mxu0
      %v4665 = vadd.f32 %v4611, %v4664
      %v4666 = vpop.f32.mrf.mxu0
      %v4667 = vadd.f32 %v4613, %v4666
      %4668 = vmatmul.bf16.gmra.mxu0 %v4306
      %v4669 = vpop.f32.mrf.mxu0
      %v4670 = vadd.f32 %v4616, %v4669
      %v4671 = vpop.f32.mrf.mxu0
      %v4672 = vadd.f32 %v4618, %v4671
      %4673 = vmatmul.bf16.gmra.mxu0 %v4315
      %v4674 = vpop.f32.mrf.mxu0
      %v4675 = vadd.f32 %v4621, %v4674
      %v4676 = vpop.f32.mrf.mxu0
      %v4677 = vadd.f32 %v4623, %v4676
      %4678 = vmatmul.bf16.gmra.mxu0 %v4324
      %v4679 = vpop.f32.mrf.mxu0
      %v4680 = vadd.f32 %v4626, %v4679
      %v4681 = vpop.f32.mrf.mxu0
      %v4682 = vadd.f32 %v4628, %v4681
      %4683 = vmatmul.bf16.gmra.mxu0 %v4333
      %v4684 = vpop.f32.mrf.mxu0
      %v4685 = vadd.f32 %v4631, %v4684
      %v4686 = vpop.f32.mrf.mxu0
      %v4687 = vadd.f32 %v4633, %v4686
      %4688 = vdwg.mxu0
      %4689 = vmatpush.bf16.msra.mxu0 %v1316
      %4690 = vmatpush.bf16.msra.mxu0 %v1315
      %4691 = vmatpush.bf16.msra.mxu0 %v1314
      %4692 = vmatpush.bf16.msra.mxu0 %v1313
      %4693 = vmatpush.bf16.msra.mxu0 %v1312
      %4694 = vmatpush.bf16.msra.mxu0 %v1311
      %4695 = vmatpush.bf16.msra.mxu0 %v1310
      %4696 = vmatpush.bf16.msra.mxu0 %v1309
      %4697 = vmatmul.bf16.gmra.mxu0 %v4262
      %v4698 = vpop.f32.mrf.mxu0
      %v4699 = vadd.f32 %v4645, %v4698
      %v4700 = vpop.f32.mrf.mxu0
      %v4701 = vadd.f32 %v4647, %v4700
      %4702 = vmatmul.bf16.gmra.mxu0 %v4271
      %v4703 = vpop.f32.mrf.mxu0
      %v4704 = vadd.f32 %v4650, %v4703
      %v4705 = vpop.f32.mrf.mxu0
      %v4706 = vadd.f32 %v4652, %v4705
      %4707 = vmatmul.bf16.gmra.mxu0 %v4280
      %v4708 = vpop.f32.mrf.mxu0
      %v4709 = vadd.f32 %v4655, %v4708
      %v4710 = vpop.f32.mrf.mxu0
      %v4711 = vadd.f32 %v4657, %v4710
      %4712 = vmatmul.bf16.gmra.mxu0 %v4289
      %v4713 = vpop.f32.mrf.mxu0
      %v4714 = vadd.f32 %v4660, %v4713
      %v4715 = vpop.f32.mrf.mxu0
      %v4716 = vadd.f32 %v4662, %v4715
      %4717 = vmatmul.bf16.gmra.mxu0 %v4298
      %v4718 = vpop.f32.mrf.mxu0
      %v4719 = vadd.f32 %v4665, %v4718
      %v4720 = vpop.f32.mrf.mxu0
      %v4721 = vadd.f32 %v4667, %v4720
      %4722 = vmatmul.bf16.gmra.mxu0 %v4307
      %v4723 = vpop.f32.mrf.mxu0
      %v4724 = vadd.f32 %v4670, %v4723
      %v4725 = vpop.f32.mrf.mxu0
      %v4726 = vadd.f32 %v4672, %v4725
      %4727 = vmatmul.bf16.gmra.mxu0 %v4316
      %v4728 = vpop.f32.mrf.mxu0
      %v4729 = vadd.f32 %v4675, %v4728
      %v4730 = vpop.f32.mrf.mxu0
      %v4731 = vadd.f32 %v4677, %v4730
      %4732 = vmatmul.bf16.gmra.mxu0 %v4325
      %v4733 = vpop.f32.mrf.mxu0
      %v4734 = vadd.f32 %v4680, %v4733
      %v4735 = vpop.f32.mrf.mxu0
      %v4736 = vadd.f32 %v4682, %v4735
      %4737 = vmatmul.bf16.gmra.mxu0 %v4334
      %v4738 = vpop.f32.mrf.mxu0
      %v4739 = vadd.f32 %v4685, %v4738
      %v4740 = vpop.f32.mrf.mxu0
      %v4741 = vadd.f32 %v4687, %v4740
      %4742 = vdwg.mxu0
      %4743 = vmatpush.bf16.msra.mxu0 %v1324
      %4744 = vmatpush.bf16.msra.mxu0 %v1323
      %4745 = vmatpush.bf16.msra.mxu0 %v1322
      %4746 = vmatpush.bf16.msra.mxu0 %v1321
      %4747 = vmatpush.bf16.msra.mxu0 %v1320
      %4748 = vmatpush.bf16.msra.mxu0 %v1319
      %4749 = vmatpush.bf16.msra.mxu0 %v1318
      %4750 = vmatpush.bf16.msra.mxu0 %v1317
      %4751 = vmatmul.bf16.gmra.mxu0 %v4263
      %v4752 = vpop.f32.mrf.mxu0
      %v4753 = vadd.f32 %v4699, %v4752
      %v4754 = vpop.f32.mrf.mxu0
      %v4755 = vadd.f32 %v4701, %v4754
      %4756 = vmatmul.bf16.gmra.mxu0 %v4272
      %v4757 = vpop.f32.mrf.mxu0
      %v4758 = vadd.f32 %v4704, %v4757
      %v4759 = vpop.f32.mrf.mxu0
      %v4760 = vadd.f32 %v4706, %v4759
      %4761 = vmatmul.bf16.gmra.mxu0 %v4281
      %v4762 = vpop.f32.mrf.mxu0
      %v4763 = vadd.f32 %v4709, %v4762
      %v4764 = vpop.f32.mrf.mxu0
      %v4765 = vadd.f32 %v4711, %v4764
      %4766 = vmatmul.bf16.gmra.mxu0 %v4290
      %v4767 = vpop.f32.mrf.mxu0
      %v4768 = vadd.f32 %v4714, %v4767
      %v4769 = vpop.f32.mrf.mxu0
      %v4770 = vadd.f32 %v4716, %v4769
      %4771 = vmatmul.bf16.gmra.mxu0 %v4299
      %v4772 = vpop.f32.mrf.mxu0
      %v4773 = vadd.f32 %v4719, %v4772
      %v4774 = vpop.f32.mrf.mxu0
      %v4775 = vadd.f32 %v4721, %v4774
      %4776 = vmatmul.bf16.gmra.mxu0 %v4308
      %v4777 = vpop.f32.mrf.mxu0
      %v4778 = vadd.f32 %v4724, %v4777
      %v4779 = vpop.f32.mrf.mxu0
      %v4780 = vadd.f32 %v4726, %v4779
      %4781 = vmatmul.bf16.gmra.mxu0 %v4317
      %v4782 = vpop.f32.mrf.mxu0
      %v4783 = vadd.f32 %v4729, %v4782
      %v4784 = vpop.f32.mrf.mxu0
      %v4785 = vadd.f32 %v4731, %v4784
      %4786 = vmatmul.bf16.gmra.mxu0 %v4326
      %v4787 = vpop.f32.mrf.mxu0
      %v4788 = vadd.f32 %v4734, %v4787
      %v4789 = vpop.f32.mrf.mxu0
      %v4790 = vadd.f32 %v4736, %v4789
      %4791 = vmatmul.bf16.gmra.mxu0 %v4335
      %v4792 = vpop.f32.mrf.mxu0
      %v4793 = vadd.f32 %v4739, %v4792
      %v4794 = vpop.f32.mrf.mxu0
      %v4795 = vadd.f32 %v4741, %v4794
      %4796 = vdwg.mxu0
      %4797 = vmatpush.bf16.msra.mxu0 %v1332
      %4798 = vmatpush.bf16.msra.mxu0 %v1331
      %4799 = vmatpush.bf16.msra.mxu0 %v1330
      %4800 = vmatpush.bf16.msra.mxu0 %v1329
      %4801 = vmatpush.bf16.msra.mxu0 %v1328
      %4802 = vmatpush.bf16.msra.mxu0 %v1327
      %4803 = vmatpush.bf16.msra.mxu0 %v1326
      %4804 = vmatpush.bf16.msra.mxu0 %v1325
      %4805 = vmatmul.bf16.gmra.mxu0 %v4264
      %v4806 = vpop.f32.mrf.mxu0
      %v4807 = vadd.f32 %v4753, %v4806
      %v4808 = vpop.f32.mrf.mxu0
      %v4809 = vadd.f32 %v4755, %v4808
      %4810 = vmatmul.bf16.gmra.mxu0 %v4273
      %v4811 = vpop.f32.mrf.mxu0
      %v4812 = vadd.f32 %v4758, %v4811
      %v4813 = vpop.f32.mrf.mxu0
      %v4814 = vadd.f32 %v4760, %v4813
      %4815 = vmatmul.bf16.gmra.mxu0 %v4282
      %v4816 = vpop.f32.mrf.mxu0
      %v4817 = vadd.f32 %v4763, %v4816
      %v4818 = vpop.f32.mrf.mxu0
      %v4819 = vadd.f32 %v4765, %v4818
      %4820 = vmatmul.bf16.gmra.mxu0 %v4291
      %v4821 = vpop.f32.mrf.mxu0
      %v4822 = vadd.f32 %v4768, %v4821
      %v4823 = vpop.f32.mrf.mxu0
      %v4824 = vadd.f32 %v4770, %v4823
      %4825 = vmatmul.bf16.gmra.mxu0 %v4300
      %v4826 = vpop.f32.mrf.mxu0
      %v4827 = vadd.f32 %v4773, %v4826
      %v4828 = vpop.f32.mrf.mxu0
      %v4829 = vadd.f32 %v4775, %v4828
      %4830 = vmatmul.bf16.gmra.mxu0 %v4309
      %v4831 = vpop.f32.mrf.mxu0
      %v4832 = vadd.f32 %v4778, %v4831
      %v4833 = vpop.f32.mrf.mxu0
      %v4834 = vadd.f32 %v4780, %v4833
      %4835 = vmatmul.bf16.gmra.mxu0 %v4318
      %v4836 = vpop.f32.mrf.mxu0
      %v4837 = vadd.f32 %v4783, %v4836
      %v4838 = vpop.f32.mrf.mxu0
      %v4839 = vadd.f32 %v4785, %v4838
      %4840 = vmatmul.bf16.gmra.mxu0 %v4327
      %v4841 = vpop.f32.mrf.mxu0
      %v4842 = vadd.f32 %v4788, %v4841
      %v4843 = vpop.f32.mrf.mxu0
      %v4844 = vadd.f32 %v4790, %v4843
      %4845 = vmatmul.bf16.gmra.mxu0 %v4336
      %v4846 = vpop.f32.mrf.mxu0
      %v4847 = vadd.f32 %v4793, %v4846
      %v4848 = vpop.f32.mrf.mxu0
      %v4849 = vadd.f32 %v4795, %v4848
      %4850 = vdwg.mxu0
      %4851 = vmatpush.bf16.msra.mxu0 %v1340
      %4852 = vmatpush.bf16.msra.mxu0 %v1339
      %4853 = vmatpush.bf16.msra.mxu0 %v1338
      %4854 = vmatpush.bf16.msra.mxu0 %v1337
      %4855 = vmatpush.bf16.msra.mxu0 %v1336
      %4856 = vmatpush.bf16.msra.mxu0 %v1335
      %4857 = vmatpush.bf16.msra.mxu0 %v1334
      %4858 = vmatpush.bf16.msra.mxu0 %v1333
      %4859 = vmatmul.bf16.gmra.mxu0 %v4265
      %v4860 = vpop.f32.mrf.mxu0
      %v4861 = vadd.f32 %v4807, %v4860
      %v4862 = vpop.f32.mrf.mxu0
      %v4863 = vadd.f32 %v4809, %v4862
      %4864 = vmatmul.bf16.gmra.mxu0 %v4274
      %v4865 = vpop.f32.mrf.mxu0
      %v4866 = vadd.f32 %v4812, %v4865
      %v4867 = vpop.f32.mrf.mxu0
      %v4868 = vadd.f32 %v4814, %v4867
      %4869 = vmatmul.bf16.gmra.mxu0 %v4283
      %v4870 = vpop.f32.mrf.mxu0
      %v4871 = vadd.f32 %v4817, %v4870
      %v4872 = vpop.f32.mrf.mxu0
      %v4873 = vadd.f32 %v4819, %v4872
      %4874 = vmatmul.bf16.gmra.mxu0 %v4292
      %v4875 = vpop.f32.mrf.mxu0
      %v4876 = vadd.f32 %v4822, %v4875
      %v4877 = vpop.f32.mrf.mxu0
      %v4878 = vadd.f32 %v4824, %v4877
      %4879 = vmatmul.bf16.gmra.mxu0 %v4301
      %v4880 = vpop.f32.mrf.mxu0
      %v4881 = vadd.f32 %v4827, %v4880
      %v4882 = vpop.f32.mrf.mxu0
      %v4883 = vadd.f32 %v4829, %v4882
      %4884 = vmatmul.bf16.gmra.mxu0 %v4310
      %v4885 = vpop.f32.mrf.mxu0
      %v4886 = vadd.f32 %v4832, %v4885
      %v4887 = vpop.f32.mrf.mxu0
      %v4888 = vadd.f32 %v4834, %v4887
      %4889 = vmatmul.bf16.gmra.mxu0 %v4319
      %v4890 = vpop.f32.mrf.mxu0
      %v4891 = vadd.f32 %v4837, %v4890
      %v4892 = vpop.f32.mrf.mxu0
      %v4893 = vadd.f32 %v4839, %v4892
      %4894 = vmatmul.bf16.gmra.mxu0 %v4328
      %v4895 = vpop.f32.mrf.mxu0
      %v4896 = vadd.f32 %v4842, %v4895
      %v4897 = vpop.f32.mrf.mxu0
      %v4898 = vadd.f32 %v4844, %v4897
      %4899 = vmatmul.bf16.gmra.mxu0 %v4337
      %v4900 = vpop.f32.mrf.mxu0
      %v4901 = vadd.f32 %v4847, %v4900
      %v4902 = vpop.f32.mrf.mxu0
      %v4903 = vadd.f32 %v4849, %v4902
      %4904 = vdwg.mxu0
      %v4905 = vmax.f32 %v3897, %v4861
      %v4906 = vmax.f32 %v3898, %v4863
      %v4907 = vmax.f32 %v3899, %v4866
      %v4908 = vmax.f32 %v3900, %v4868
      %v4909 = vmax.f32 %v3901, %v4871
      %v4910 = vmax.f32 %v3902, %v4873
      %v4911 = vmax.f32 %v3903, %v4876
      %v4912 = vmax.f32 %v3904, %v4878
      %v4913 = vmax.f32 %v3905, %v4881
      %v4914 = vmax.f32 %v3906, %v4883
      %v4915 = vmax.f32 %v3907, %v4886
      %v4916 = vmax.f32 %v3908, %v4888
      %v4917 = vmax.f32 %v3909, %v4891
      %v4918 = vmax.f32 %v3910, %v4893
      %v4919 = vmax.f32 %v3911, %v4896
      %v4920 = vmax.f32 %v3912, %v4898
      %v4921 = vmax.f32 %v3913, %v4901
      %v4922 = vmax.f32 %v3914, %v4903
      %v4923 = vld [vmem:[%s5] sm:$0x1]
      %v4925 = vperm.slane %v4923, 0
      %v4927 = vadd.f32 %v4905, %v4925
      %v4928 = vadd.f32 %v4906, %v4925
      %v4929 = vadd.f32 %v4907, %v4925
      %v4930 = vadd.f32 %v4908, %v4925
      %v4931 = vadd.f32 %v4909, %v4925
      %v4932 = vadd.f32 %v4910, %v4925
      %v4933 = vadd.f32 %v4911, %v4925
      %v4934 = vadd.f32 %v4912, %v4925
      %v4935 = vadd.f32 %v4913, %v4925
      %v4936 = vadd.f32 %v4914, %v4925
      %v4937 = vadd.f32 %v4915, %v4925
      %v4938 = vadd.f32 %v4916, %v4925
      %v4939 = vadd.f32 %v4917, %v4925
      %v4940 = vadd.f32 %v4918, %v4925
      %v4941 = vadd.f32 %v4919, %v4925
      %v4942 = vadd.f32 %v4920, %v4925
      %v4943 = vadd.f32 %v4921, %v4925
      %v4944 = vadd.f32 %v4922, %v4925
      %v4945 = vmax.f32 %v4927, 0.0
      %v4946 = vmax.f32 %v4928, 0.0
      %v4947 = vmax.f32 %v4929, 0.0
      %v4948 = vmax.f32 %v4930, 0.0
      %v4949 = vmax.f32 %v4931, 0.0
      %v4950 = vmax.f32 %v4932, 0.0
      %v4951 = vmax.f32 %v4933, 0.0
      %v4952 = vmax.f32 %v4934, 0.0
      %v4953 = vmax.f32 %v4935, 0.0
      %v4954 = vmax.f32 %v4936, 0.0
      %v4955 = vmax.f32 %v4937, 0.0
      %v4956 = vmax.f32 %v4938, 0.0
      %v4957 = vmax.f32 %v4939, 0.0
      %v4958 = vmax.f32 %v4940, 0.0
      %v4959 = vmax.f32 %v4941, 0.0
      %v4960 = vmax.f32 %v4942, 0.0
      %v4961 = vmax.f32 %v4943, 0.0
      %v4962 = vmax.f32 %v4944, 0.0
      %v4963 = vpack.c.bf16 %v4945, %v4945
      %v4964 = vpack.c.bf16 %v4946, %v4946
      %v4965 = vpack.c.bf16 %v4947, %v4947
      %v4966 = vpack.c.bf16 %v4948, %v4948
      %v4967 = vpack.c.bf16 %v4949, %v4949
      %v4968 = vpack.c.bf16 %v4950, %v4950
      %v4969 = vpack.c.bf16 %v4951, %v4951
      %v4970 = vpack.c.bf16 %v4952, %v4952
      %v4971 = vpack.c.bf16 %v4953, %v4953
      %v4972 = vpack.c.bf16 %v4954, %v4954
      %v4973 = vpack.c.bf16 %v4955, %v4955
      %v4974 = vpack.c.bf16 %v4956, %v4956
      %v4975 = vpack.c.bf16 %v4957, %v4957
      %v4976 = vpack.c.bf16 %v4958, %v4958
      %v4977 = vpack.c.bf16 %v4959, %v4959
      %v4978 = vpack.c.bf16 %v4960, %v4960
      %v4979 = vpack.c.bf16 %v4961, %v4961
      %v4980 = vpack.c.bf16 %v4962, %v4962
      %vm4981 = vcmask 519168
      %4982 = vst.msk [vmem:[%s331] sm:$0xf] %vm4981, %v4963
      %4983 = vst.msk [vmem:[%s331 + $0x4] sm:$0xf] %vm4981, %v4964
      %4984 = vst.msk [vmem:[%s331 + $0x8] sm:$0xf] %vm4981, %v4965
      %4985 = vst.msk [vmem:[%s331 + $0xc] sm:$0xf] %vm4981, %v4966
      %4986 = vst.msk [vmem:[%s331 + $0x10] sm:$0xf] %vm4981, %v4967
      %4987 = vst.msk [vmem:[%s331 + $0x14] sm:$0xf] %vm4981, %v4968
      %4988 = vst.msk [vmem:[%s331 + $0x18] sm:$0xf] %vm4981, %v4969
      %4989 = vst.msk [vmem:[%s331 + $0x1c] sm:$0xf] %vm4981, %v4970
      %4990 = vst.msk [vmem:[%s331 + $0x20] sm:$0xf] %vm4981, %v4971
      %4991 = vst.msk [vmem:[%s331 + $0x24] sm:$0xf] %vm4981, %v4972
      %4992 = vst.msk [vmem:[%s331 + $0x28] sm:$0xf] %vm4981, %v4973
      %4993 = vst.msk [vmem:[%s331 + $0x2c] sm:$0xf] %vm4981, %v4974
      %4994 = vst.msk [vmem:[%s331 + $0x30] sm:$0xf] %vm4981, %v4975
      %4995 = vst.msk [vmem:[%s331 + $0x34] sm:$0xf] %vm4981, %v4976
      %4996 = vst.msk [vmem:[%s331 + $0x38] sm:$0xf] %vm4981, %v4977
      %4997 = vst.msk [vmem:[%s331 + $0x3c] sm:$0xf] %vm4981, %v4978
      %4998 = vst.msk [vmem:[%s331 + $0x40] sm:$0xf] %vm4981, %v4979
      %4999 = vst.msk [vmem:[%s331 + $0x44] sm:$0xf] %vm4981, %v4980
      %s5000 = smul.u32 18, %s17
      %p5001 = scmp.lt.s32.totalorder %s5000, 35
      %s5002 = scalar_select %p5001, %s5000, 35
      %s5003 = smul.addr %s5002, 4
      %s5004 = scalar_lea.vmem %s6, %s5003
      // Predicated region
      $region45: #{captcha_forward.4} parent=43 // pred_check
        %p5005 = pneg %p181
      $region46: #{captcha_forward.4} parent=43 // pred_check_branch
        %5007 = sbr.rel (%p5005) target = $region48
      $region47: #{captcha_forward.4} parent=43 // pred_region
        %s5008 = smul.u32 18, %s17
      $region48: #{captcha_forward.4} parent=43 // pred_fallthru
        _
    $region44: #{captcha_forward.4} parent=5 // pred_fallthru
      _
    %p5009 = scmp.le.s32.totalorder 2, %s12
    // Predicated region
    $region49: #{captcha_forward.4} parent=5 // pred_check
      %p5010 = pneg %p5009
    $region50: #{captcha_forward.4} parent=5 // pred_check_branch
      %5012 = sbr.rel (%p5010) target = $region52
    $region51: #{captcha_forward.4} parent=5 // pred_region
      %s5013 = ssub.s32 %s12, 2
      // Predicated region
      $region53: #{captcha_forward.4} parent=51 // pred_check
        %p5014 = pneg %p187
      $region54: #{captcha_forward.4} parent=51 // pred_check_branch
        %5016 = sbr.rel (%p5014) target = $region56
      $region55: #{captcha_forward.4} parent=51 // pred_region
        %s5017 = smul.u32 18, %s18
        %p5018 = scmp.lt.s32.totalorder %s5017, 35
        %s5019 = scalar_select %p5018, %s5017, 35
        %s5020 = smul.addr %s5019, 4
        %s5021 = scalar_lea.vmem %s6, %s5020
      $region56: #{captcha_forward.4} parent=51 // pred_fallthru
        _
    $region52: #{captcha_forward.4} parent=5 // pred_fallthru
      _
  $region6: #{captcha_forward.4} parent=0 // loop_footer
    %s16 = sadd.s32 1, %s12
  $region7: #{captcha_forward.4} parent=0 // loop_footer_branch
    %11 = sbr.rel target = $region3
  $region8: #{captcha_forward.4} parent=0 // loop_exit
    _

</llo_original>
